<compile_context>
chip_gen: v6e
topology: v6e:2x2x1
jax: 0.10.0
libtpu: 0.0.40
codegen_flags: <defaults>
</compile_context>

<pallas_src>
import functools

import numpy as np

import jax
import jax.numpy as jnp
from jax.experimental import pallas as pl
from jax.experimental.pallas import tpu as pltpu


# ----------------------------------------------------------------------------
# exact-erf GELU in f32 (matches torch.nn.GELU() to ~1e-6 with the approx recip)
# ----------------------------------------------------------------------------
def _gelu_erf_f32(x):
    # erf via Abramowitz & Stegun 7.1.26 (|err| < 1.5e-7).  The divide is routed
    # to the otherwise-idle EUP slot with pl.reciprocal(approx=True); exp also
    # runs on the EUP, so only ~10 VPU ops remain per element.
    a1, a2, a3, a4, a5 = 0.254829592, -0.284496736, 1.421413741, -1.453152027, 1.061405429
    p = 0.3275911
    z = x * 0.7071067811865476
    sgn = jnp.where(z >= 0.0, 1.0, -1.0)
    az = jnp.abs(z)
    t = pl.reciprocal(1.0 + p * az, approx=True)          # EUP vrcp
    poly = ((((a5 * t + a4) * t + a3) * t + a2) * t + a1) * t
    erf = sgn * (1.0 - poly * jnp.exp(-az * az))          # EUP exp
    return 0.5 * x * (1.0 + erf)


# ----------------------------------------------------------------------------
# fused MLP kernel: one (block_m, C) row-tile per grid step
# ----------------------------------------------------------------------------
def _mlp_kernel(x_ref, w1_ref, b1_ref, w2_ref, b2_ref, o_ref, *, matmul_dtype):
    x = x_ref[...]
    if matmul_dtype is not None and x.dtype != matmul_dtype:
        x = x.astype(matmul_dtype)          # bf16 into the MXU (weights pre-cast in wrapper)

    # fc1: (block_m, C) @ (C, Hd) -> f32 accumulate on the MXU
    h = jnp.dot(x, w1_ref[...], preferred_element_type=jnp.float32)
    h = h + b1_ref[...].astype(jnp.float32)

    # GELU in f32 (VPU/EUP f32 path; safe on v5e which has no bf16 VPU/EUP)
    h = _gelu_erf_f32(h)

    if matmul_dtype is not None:
        h = h.astype(matmul_dtype)

    # fc2: (block_m, Hd) @ (Hd, Co) -> f32 accumulate
    y = jnp.dot(h, w2_ref[...], preferred_element_type=jnp.float32)
    y = y + b2_ref[...].astype(jnp.float32)

    o_ref[...] = y.astype(o_ref.dtype)


def _round_up(a, b):
    return ((a + b - 1) // b) * b


def _mlp_vmem_limit_bytes(block_m, c_in, hidden, c_out,
                          x_bytes, w_bytes, out_bytes, mm_bytes):
    # double-buffered activation tiles (x in, out back)
    io = 2 * block_m * (c_in * x_bytes + c_out * out_bytes)
    # params: constant index_map so fetched once, but default pipelining still
    # allocates 2 buffers each
    weights = 2 * ((c_in * hidden + hidden) + (hidden * c_out + c_out)) * w_bytes
    # in-kernel intermediates: f32 h, plus bf16 copies of x and h fed to the MXU
    interm = block_m * hidden * 4 + block_m * (c_in + hidden) * mm_bytes
    est = io + weights + interm + (2 << 20)      # compiler-temporary slack
    # clamp well under v7x's 64 MiB per-TC physical VMEM (also fine on v5e/v6e)
    return int(min(max(est, 8 << 20), 40 << 20))


def mlp_pallas(x, params, *, block_m=512, matmul_dtype=jnp.bfloat16):
    """Mlp.forward: fc2(GELU(fc1(x))).  x: (..., C_in) -> (..., C_out)."""
    orig_shape = x.shape
    c_in = orig_shape[-1]
    x2 = x.reshape(-1, c_in)
    m = x2.shape[0]

    w1, b1, w2, b2 = params["w1"], params["b1"], params["w2"], params["b2"]
    hidden = w1.shape[1]
    c_out = w2.shape[1]

    if matmul_dtype is not None:
        # pre-cast weights once (halves weight HBM bytes); biases stay f32
        w1 = w1.astype(matmul_dtype)
        w2 = w2.astype(matmul_dtype)

    # No host-side pad / slice: pick a sublane-aligned tile no bigger than the
    # data and let Pallas clip the ragged last block (its OOB rows are discarded
    # at write-back; rows are independent, so valid rows are unaffected).
    bm = min(block_m, _round_up(m, 8))
    n_tiles = pl.cdiv(m, bm)

    mm_bytes = 0 if matmul_dtype is None else jnp.dtype(matmul_dtype).itemsize
    vmem_limit = _mlp_vmem_limit_bytes(
        bm, c_in, hidden, c_out,
        jnp.dtype(x.dtype).itemsize, jnp.dtype(w1.dtype).itemsize,
        jnp.dtype(x.dtype).itemsize, mm_bytes)

    out = pl.pallas_call(
        functools.partial(_mlp_kernel, matmul_dtype=matmul_dtype),
        out_shape=jax.ShapeDtypeStruct((m, c_out), x.dtype),
        grid=(n_tiles,),
        in_specs=[
            pl.BlockSpec((bm, c_in), lambda i: (i, 0)),        # row tile of x
            pl.BlockSpec((c_in, hidden), lambda i: (0, 0)),    # w1: VMEM-resident
            pl.BlockSpec((1, hidden), lambda i: (0, 0)),       # b1
            pl.BlockSpec((hidden, c_out), lambda i: (0, 0)),   # w2: VMEM-resident
            pl.BlockSpec((1, c_out), lambda i: (0, 0)),        # b2
        ],
        out_specs=pl.BlockSpec((bm, c_out), lambda i: (i, 0)),
        compiler_params=pltpu.CompilerParams(
            dimension_semantics=("parallel",),   # megacore-shardable on v7x
            vmem_limit_bytes=vmem_limit,
        ),
    )(x2, w1, b1, w2, b2)

    return out.reshape(orig_shape[:-1] + (c_out,))


# ----------------------------------------------------------------------------
# reference (pure JAX, exact erf GELU) for correctness checking
# ----------------------------------------------------------------------------
def mlp_reference(x, params):
    c_in = x.shape[-1]
    xf = x.astype(jnp.float32).reshape(-1, c_in)
    h = jnp.dot(xf, params["w1"], precision=jax.lax.Precision.HIGHEST) + params["b1"]
    h = jax.nn.gelu(h, approximate=False)
    y = jnp.dot(h, params["w2"], precision=jax.lax.Precision.HIGHEST) + params["b2"]
    return y.reshape(x.shape[:-1] + (params["w2"].shape[1],))


# ----------------------------------------------------------------------------
# main
# ----------------------------------------------------------------------------
if __name__ == "__main__":
    # lane-dense shapes: C / hidden multiples of 128; m = B*S = 1024 rows
    # -> 2 tiles of 512 (even tile count so v7x megacore can use both TCs)
    B, S, C, HIDDEN = 2, 512, 128, 512

    key = jax.random.PRNGKey(0)
    kx, k1, k2, k3, k4 = jax.random.split(key, 5)
    x = jax.random.normal(kx, (B, S, C), jnp.float32)

    # nn.Linear-style init: U(-1/sqrt(fan_in), 1/sqrt(fan_in))
    bound1 = 1.0 / float(np.sqrt(C))
    bound2 = 1.0 / float(np.sqrt(HIDDEN))
    params = {
        "w1": jax.random.uniform(k1, (C, HIDDEN), jnp.float32, -bound1, bound1),
        "b1": jax.random.uniform(k2, (1, HIDDEN), jnp.float32, -bound1, bound1),
        "w2": jax.random.uniform(k3, (HIDDEN, C), jnp.float32, -bound2, bound2),
        "b2": jax.random.uniform(k4, (1, C), jnp.float32, -bound2, bound2),
    }

    ref = mlp_reference(x, params)

    # 1) default path: bf16 MXU, f32 accumulation, f32 GELU, f32 I/O
    fwd = jax.jit(mlp_pallas)
    out = fwd(x, params)
    jax.block_until_ready(out)
    assert out.shape == (B, S, C), out.shape
    assert bool(jnp.all(jnp.isfinite(out)))
    err = float(jnp.max(jnp.abs(out - ref)))
    assert err < 2e-1, f"bf16-MXU path max abs err {err}"

    # 2) f32 MXU path (closest to torch fp32 semantics; TPU f32 MXU is not
    #    bit-exact with a true fp32 matmul)
    fwd_f32 = jax.jit(functools.partial(mlp_pallas, matmul_dtype=None))
    out_f = fwd_f32(x, params)
    jax.block_until_ready(out_f)
    err_f = float(jnp.max(jnp.abs(out_f - ref)))
    assert err_f < 5e-3, f"f32 path max abs err {err_f}"

    # 3) ragged M (no wrapper pad/slice): m = 840 rows -> 2 tiles of 512,
    #    last tile has 328 valid rows clipped by Pallas at write-back.
    x_rag = x.reshape(-1, C)[:840].reshape(3, 280, C)
    out_rag = jax.jit(mlp_pallas)(x_rag, params)
    jax.block_until_ready(out_rag)
    ref_rag = mlp_reference(x_rag, params)
    assert bool(jnp.all(jnp.isfinite(out_rag)))
    err_rag = float(jnp.max(jnp.abs(out_rag - ref_rag)))
    assert err_rag < 2e-1, f"ragged-M path max abs err {err_rag}"

    # 4) bf16 activation I/O (halves the dominant HBM streams when the model
    #    runs in bf16); looser tolerance for the bf16 input/output rounding.
    x_bf16 = x.astype(jnp.bfloat16)
    out_bf = jax.jit(mlp_pallas)(x_bf16, params)
    jax.block_until_ready(out_bf)
    assert out_bf.dtype == jnp.bfloat16
    err_bf = float(jnp.max(jnp.abs(out_bf.astype(jnp.float32) - ref)))
    assert err_bf < 3e-1, f"bf16-I/O path max abs err {err_bf}"

    print("KERNEL_OK")
</pallas_src>

<mosaic_0001>
module attributes {stable_mosaic.version = 11 : i64} {
  func.func @_mlp_kernel(%arg0: i32, %arg1: memref<512x128xf32, #tpu.memory_space<vmem>>, %arg2: memref<128x512xbf16, #tpu.memory_space<vmem>>, %arg3: memref<1x512xf32, #tpu.memory_space<vmem>>, %arg4: memref<512x128xbf16, #tpu.memory_space<vmem>>, %arg5: memref<1x128xf32, #tpu.memory_space<vmem>>, %arg6: memref<512x128xf32, #tpu.memory_space<vmem>>) attributes {dimension_semantics = [#tpu.dimension_semantics<parallel>], iteration_bounds = array<i64: 2>, scalar_prefetch = 0 : i64, scratch_operands = 0 : i64, tpu.core_type = #tpu.core_type<tc>, window_params = [{transform_indices = @transform_0, window_bounds = array<i64: 512, 128>}, {pipeline_mode = #tpu.pipeline_mode<synchronous>, transform_indices = @transform_1, window_bounds = array<i64: 128, 512>}, {pipeline_mode = #tpu.pipeline_mode<synchronous>, transform_indices = @transform_2, window_bounds = array<i64: 1, 512>}, {pipeline_mode = #tpu.pipeline_mode<synchronous>, transform_indices = @transform_3, window_bounds = array<i64: 512, 128>}, {pipeline_mode = #tpu.pipeline_mode<synchronous>, transform_indices = @transform_4, window_bounds = array<i64: 1, 128>}, {transform_indices = @transform_5, window_bounds = array<i64: 512, 128>}]} {
    %c0 = arith.constant 0 : index
    %c0_0 = arith.constant 0 : index
    %0 = vector.load %arg1[%c0, %c0_0] : memref<512x128xf32, #tpu.memory_space<vmem>>, vector<512x128xf32>
    %1 = arith.truncf %0 : vector<512x128xf32> to vector<512x128xbf16>
    %c0_1 = arith.constant 0 : index
    %c0_2 = arith.constant 0 : index
    %2 = vector.load %arg2[%c0_1, %c0_2] : memref<128x512xbf16, #tpu.memory_space<vmem>>, vector<128x512xbf16>
    %cst = arith.constant dense<0.000000e+00> : vector<512x512xf32>
    %3 = tpu.matmul %1, %2, %cst {dimension_numbers = #tpu.dot_dimension_numbers<[1], [0], [0], [1], [0, 0, 1, 1], [], []>} : vector<512x128xbf16>, vector<128x512xbf16>, vector<512x512xf32> -> vector<512x512xf32>
    %c0_3 = arith.constant 0 : index
    %c0_4 = arith.constant 0 : index
    %4 = vector.load %arg3[%c0_3, %c0_4] : memref<1x512xf32, #tpu.memory_space<vmem>>, vector<1x512xf32>
    %5 = vector.broadcast %4 : vector<1x512xf32> to vector<512x512xf32>
    %6 = arith.addf %3, %5 : vector<512x512xf32>
    %cst_5 = arith.constant 0.707106769 : f32
    %7 = vector.broadcast %cst_5 : f32 to vector<512x512xf32>
    %8 = arith.mulf %6, %7 : vector<512x512xf32>
    %cst_6 = arith.constant 0.000000e+00 : f32
    %9 = vector.broadcast %cst_6 : f32 to vector<512x512xf32>
    %10 = arith.cmpf oge, %8, %9 : vector<512x512xf32>
    %cst_7 = arith.constant 1.000000e+00 : f32
    %cst_8 = arith.constant -1.000000e+00 : f32
    %11 = vector.broadcast %cst_7 : f32 to vector<512x512xf32>
    %12 = vector.broadcast %cst_8 : f32 to vector<512x512xf32>
    %13 = arith.select %10, %11, %12 : vector<512x512xi1>, vector<512x512xf32>
    %14 = math.absf %8 : vector<512x512xf32>
    %cst_9 = arith.constant 0.327591091 : f32
    %15 = vector.broadcast %cst_9 : f32 to vector<512x512xf32>
    %16 = arith.mulf %15, %14 : vector<512x512xf32>
    %cst_10 = arith.constant 1.000000e+00 : f32
    %17 = vector.broadcast %cst_10 : f32 to vector<512x512xf32>
    %18 = arith.addf %17, %16 : vector<512x512xf32>
    %19 = tpu.reciprocal %18 {approx = true} : vector<512x512xf32> -> vector<512x512xf32>
    %cst_11 = arith.constant 1.06140542 : f32
    %20 = vector.broadcast %cst_11 : f32 to vector<512x512xf32>
    %21 = arith.mulf %20, %19 : vector<512x512xf32>
    %cst_12 = arith.constant -1.45315206 : f32
    %22 = vector.broadcast %cst_12 : f32 to vector<512x512xf32>
    %23 = arith.addf %21, %22 : vector<512x512xf32>
    %24 = arith.mulf %23, %19 : vector<512x512xf32>
    %cst_13 = arith.constant 1.42141378 : f32
    %25 = vector.broadcast %cst_13 : f32 to vector<512x512xf32>
    %26 = arith.addf %24, %25 : vector<512x512xf32>
    %27 = arith.mulf %26, %19 : vector<512x512xf32>
    %cst_14 = arith.constant -0.284496725 : f32
    %28 = vector.broadcast %cst_14 : f32 to vector<512x512xf32>
    %29 = arith.addf %27, %28 : vector<512x512xf32>
    %30 = arith.mulf %29, %19 : vector<512x512xf32>
    %cst_15 = arith.constant 0.254829586 : f32
    %31 = vector.broadcast %cst_15 : f32 to vector<512x512xf32>
    %32 = arith.addf %30, %31 : vector<512x512xf32>
    %33 = arith.mulf %32, %19 : vector<512x512xf32>
    %cst_16 = arith.constant 0.000000e+00 : f32
    %34 = vector.broadcast %cst_16 : f32 to vector<512x512xf32>
    %35 = arith.subf %34, %14 : vector<512x512xf32>
    %36 = arith.mulf %35, %14 : vector<512x512xf32>
    %37 = math.exp %36 : vector<512x512xf32>
    %38 = arith.mulf %33, %37 : vector<512x512xf32>
    %cst_17 = arith.constant 1.000000e+00 : f32
    %39 = vector.broadcast %cst_17 : f32 to vector<512x512xf32>
    %40 = arith.subf %39, %38 : vector<512x512xf32>
    %41 = arith.mulf %13, %40 : vector<512x512xf32>
    %cst_18 = arith.constant 5.000000e-01 : f32
    %42 = vector.broadcast %cst_18 : f32 to vector<512x512xf32>
    %43 = arith.mulf %42, %6 : vector<512x512xf32>
    %cst_19 = arith.constant 1.000000e+00 : f32
    %44 = vector.broadcast %cst_19 : f32 to vector<512x512xf32>
    %45 = arith.addf %44, %41 : vector<512x512xf32>
    %46 = arith.mulf %43, %45 : vector<512x512xf32>
    %47 = arith.truncf %46 : vector<512x512xf32> to vector<512x512xbf16>
    %c0_20 = arith.constant 0 : index
    %c0_21 = arith.constant 0 : index
    %48 = vector.load %arg4[%c0_20, %c0_21] : memref<512x128xbf16, #tpu.memory_space<vmem>>, vector<512x128xbf16>
    %cst_22 = arith.constant dense<0.000000e+00> : vector<512x128xf32>
    %49 = tpu.matmul %47, %48, %cst_22 {dimension_numbers = #tpu.dot_dimension_numbers<[1], [0], [0], [1], [0, 0, 1, 1], [], []>} : vector<512x512xbf16>, vector<512x128xbf16>, vector<512x128xf32> -> vector<512x128xf32>
    %c0_23 = arith.constant 0 : index
    %c0_24 = arith.constant 0 : index
    %50 = vector.load %arg5[%c0_23, %c0_24] : memref<1x128xf32, #tpu.memory_space<vmem>>, vector<1x128xf32>
    %51 = vector.broadcast %50 : vector<1x128xf32> to vector<512x128xf32>
    %52 = arith.addf %49, %51 : vector<512x128xf32>
    %c0_25 = arith.constant 0 : index
    %c0_26 = arith.constant 0 : index
    %53 = vector.load %arg6[%c0_25, %c0_26] : memref<512x128xf32, #tpu.memory_space<vmem>>, vector<512x128xf32>
    tpu.vector_store %arg6[%c0_25, %c0_26], %52 {strides = array<i32>} : memref<512x128xf32, #tpu.memory_space<vmem>>, vector<512x128xf32>,
    return
  }
  func.func @transform_0(%arg0: i32) -> (i32, i32) {
    %c0_i32 = arith.constant 0 : i32
    %c0_i32_0 = arith.constant 0 : i32
    return %arg0, %c0_i32 : i32, i32
  }
  func.func @transform_1(%arg0: i32) -> (i32, i32) {
    %c0_i32 = arith.constant 0 : i32
    %c0_i32_0 = arith.constant 0 : i32
    %c0_i32_1 = arith.constant 0 : i32
    return %c0_i32, %c0_i32_0 : i32, i32
  }
  func.func @transform_2(%arg0: i32) -> (i32, i32) {
    %c0_i32 = arith.constant 0 : i32
    %c0_i32_0 = arith.constant 0 : i32
    %c0_i32_1 = arith.constant 0 : i32
    return %c0_i32, %c0_i32_0 : i32, i32
  }
  func.func @transform_3(%arg0: i32) -> (i32, i32) {
    %c0_i32 = arith.constant 0 : i32
    %c0_i32_0 = arith.constant 0 : i32
    %c0_i32_1 = arith.constant 0 : i32
    return %c0_i32, %c0_i32_0 : i32, i32
  }
  func.func @transform_4(%arg0: i32) -> (i32, i32) {
    %c0_i32 = arith.constant 0 : i32
    %c0_i32_0 = arith.constant 0 : i32
    %c0_i32_1 = arith.constant 0 : i32
    return %c0_i32, %c0_i32_0 : i32, i32
  }
  func.func @transform_5(%arg0: i32) -> (i32, i32) {
    %c0_i32 = arith.constant 0 : i32
    %c0_i32_0 = arith.constant 0 : i32
    return %arg0, %c0_i32 : i32, i32
  }
}

</mosaic_0001>

<llo_original>
// kernel: mlp_pallas.1
$region0: #{mlp_pallas.1}
  #allocation0 [shape = 'u32[]', space=smem, size = 0x4, offset = 0x4, fixed_abs, tag = 'smem constant byte address 0x4 - core index']
  #allocation1 [shape = 'u32[144,128]{1,0:T(1,128)}', space=vmem, size = 0x12000, scoped, tag = 'internal scratch']
  %s0 = inlined_call_operand.vmem [shape: f32[1024,128], index: 0, kind: input, shape index: {}]
  %s1 = inlined_call_operand.vmem [shape: bf16[128,512], index: 1, kind: input, shape index: {}]
  %s2 = inlined_call_operand.vmem [shape: f32[1,512], index: 2, kind: input, shape index: {}]
  %s3 = inlined_call_operand.vmem [shape: bf16[512,128], index: 3, kind: input, shape index: {}]
  %s4 = inlined_call_operand.vmem [shape: f32[1,128], index: 4, kind: input, shape index: {}]
  %s5 = inlined_call_operand.hbm [shape: f32[1024,128], index: 5, kind: output, shape index: {}]
  %s6 = sld [smem:[#allocation0]]
  $region53: #{mlp_pallas.1} parent=0
    _
  %s8 = ssub.s32 1, %s6
  %s9 = scalar_select 0, %s8, %s6
  $region1: #{mlp_pallas.1} parent=0
    #allocation2 [shape = 'u8[524288]{0}', space=vmem, size = 0x80000, scoped, tag = 'output window, operand 0']
    #allocation3 [shape = 's32[2]{0}', space=sflag, size = 0x8, scoped, tag = 'scoped memory for mlp_pallas.1']
    %10 = vsyncpa [#allocation3], 0
    %s11 = scalar_lea.sflag [#allocation3], 1
    %12 = vsyncpa %s11, 0
    loop: start=0, step=1, limit=4
    $region2: #{mlp_pallas.1} parent=1 // loop_pre_header
      _
    $region3: #{mlp_pallas.1} parent=1 // loop_header
      %s14 = sphi 0, %s18
      %p15 = scmp.ge.s32.totalorder %s14, 4
      %s24 = sphi 0, %s26
      %s27 = sphi 0, %s24
      %s28 = sphi 0, %s27
      %s44 = sphi 0, %s28
      %s48 = sphi 0, %s48
      %s50 = sphi 0, %s48
      %s51 = sphi 0, %s50
      %s65 = sphi 0, %s51
      %s69 = sphi 0, %s69
      %s71 = sphi 0, %s69
      %s72 = sphi 0, %s71
      %s86 = sphi 0, %s72
      %s90 = sphi 0, %s90
      %s92 = sphi 0, %s90
      %s93 = sphi 0, %s92
      %s107 = sphi 0, %s93
      %s111 = sphi 0, %s111
      %s113 = sphi 0, %s111
      %s114 = sphi 0, %s113
      %s128 = sphi 0, %s114
      %s134 = sphi 0, %s136
      %s137 = sphi 0, %s134
      %s138 = sphi 0, %s137
      %s154 = sphi 0, %s138
    $region4: #{mlp_pallas.1} parent=1 // loop_header_branch
      %17 = sbr.rel (%p15) target = $region8
    $region5: #{mlp_pallas.1} parent=1 // loop_body
      %s19 = ssub.s32 %s14, 1
      %s20 = ssub.s32 %s14, 2
      %s21 = sadd.s32 %s14, 1
      %s22 = ssub.s32 %s14, %s21
      %p23 = scmp.eq.s32.totalorder %s22, 0
      %s25 = sadd.s32 %s24, 1
      %s26 = scalar_select %p23, %s24, %s25
      %p29 = pneg %p23
      %p30 = scmp.eq.s32.totalorder %s14, 1
      %p31 = por %p29, %p30
      %p32 = scmp.ne.s32.totalorder %s24, %s27
      %p33 = scmp.eq.s32.totalorder %s14, 0
      %p34 = por %p32, %p33
      %p35 = scmp.ne.s32.totalorder %s24, %s27
      %p36 = scmp.eq.s32.totalorder %s19, 1
      %p37 = por %p35, %p36
      %p38 = scmp.ne.s32.totalorder %s27, %s28
      %p39 = scmp.eq.s32.totalorder %s19, 0
      %p40 = por %p38, %p39
      %p41 = scmp.ne.s32.totalorder %s27, %s28
      %p42 = scmp.eq.s32.totalorder %s20, 1
      %p43 = por %p41, %p42
      %p45 = scmp.ne.s32.totalorder %s28, %s44
      %p46 = scmp.eq.s32.totalorder %s20, 0
      %p47 = por %p45, %p46
      %s49 = sadd.s32 %s48, 1
      %p52 = scmp.eq.s32.totalorder %s14, 1
      %p53 = scmp.ne.s32.totalorder %s48, %s50
      %p54 = scmp.eq.s32.totalorder %s14, 0
      %p55 = por %p53, %p54
      %p56 = scmp.ne.s32.totalorder %s48, %s50
      %p57 = scmp.eq.s32.totalorder %s19, 1
      %p58 = por %p56, %p57
      %p59 = scmp.ne.s32.totalorder %s50, %s51
      %p60 = scmp.eq.s32.totalorder %s19, 0
      %p61 = por %p59, %p60
      %p62 = scmp.ne.s32.totalorder %s50, %s51
      %p63 = scmp.eq.s32.totalorder %s20, 1
      %p64 = por %p62, %p63
      %p66 = scmp.ne.s32.totalorder %s51, %s65
      %p67 = scmp.eq.s32.totalorder %s20, 0
      %p68 = por %p66, %p67
      %s70 = sadd.s32 %s69, 1
      %p73 = scmp.eq.s32.totalorder %s14, 1
      %p74 = scmp.ne.s32.totalorder %s69, %s71
      %p75 = scmp.eq.s32.totalorder %s14, 0
      %p76 = por %p74, %p75
      %p77 = scmp.ne.s32.totalorder %s69, %s71
      %p78 = scmp.eq.s32.totalorder %s19, 1
      %p79 = por %p77, %p78
      %p80 = scmp.ne.s32.totalorder %s71, %s72
      %p81 = scmp.eq.s32.totalorder %s19, 0
      %p82 = por %p80, %p81
      %p83 = scmp.ne.s32.totalorder %s71, %s72
      %p84 = scmp.eq.s32.totalorder %s20, 1
      %p85 = por %p83, %p84
      %p87 = scmp.ne.s32.totalorder %s72, %s86
      %p88 = scmp.eq.s32.totalorder %s20, 0
      %p89 = por %p87, %p88
      %s91 = sadd.s32 %s90, 1
      %p94 = scmp.eq.s32.totalorder %s14, 1
      %p95 = scmp.ne.s32.totalorder %s90, %s92
      %p96 = scmp.eq.s32.totalorder %s14, 0
      %p97 = por %p95, %p96
      %p98 = scmp.ne.s32.totalorder %s90, %s92
      %p99 = scmp.eq.s32.totalorder %s19, 1
      %p100 = por %p98, %p99
      %p101 = scmp.ne.s32.totalorder %s92, %s93
      %p102 = scmp.eq.s32.totalorder %s19, 0
      %p103 = por %p101, %p102
      %p104 = scmp.ne.s32.totalorder %s92, %s93
      %p105 = scmp.eq.s32.totalorder %s20, 1
      %p106 = por %p104, %p105
      %p108 = scmp.ne.s32.totalorder %s93, %s107
      %p109 = scmp.eq.s32.totalorder %s20, 0
      %p110 = por %p108, %p109
      %s112 = sadd.s32 %s111, 1
      %p115 = scmp.eq.s32.totalorder %s14, 1
      %p116 = scmp.ne.s32.totalorder %s111, %s113
      %p117 = scmp.eq.s32.totalorder %s14, 0
      %p118 = por %p116, %p117
      %p119 = scmp.ne.s32.totalorder %s111, %s113
      %p120 = scmp.eq.s32.totalorder %s19, 1
      %p121 = por %p119, %p120
      %p122 = scmp.ne.s32.totalorder %s113, %s114
      %p123 = scmp.eq.s32.totalorder %s19, 0
      %p124 = por %p122, %p123
      %p125 = scmp.ne.s32.totalorder %s113, %s114
      %p126 = scmp.eq.s32.totalorder %s20, 1
      %p127 = por %p125, %p126
      %p129 = scmp.ne.s32.totalorder %s114, %s128
      %p130 = scmp.eq.s32.totalorder %s20, 0
      %p131 = por %p129, %p130
      %s132 = ssub.s32 %s14, %s21
      %p133 = scmp.eq.s32.totalorder %s132, 0
      %s135 = sadd.s32 %s134, 1
      %s136 = scalar_select %p133, %s134, %s135
      %p139 = pneg %p133
      %p140 = scmp.eq.s32.totalorder %s14, 1
      %p141 = por %p139, %p140
      %p142 = scmp.ne.s32.totalorder %s134, %s137
      %p143 = scmp.eq.s32.totalorder %s14, 0
      %p144 = por %p142, %p143
      %p145 = scmp.ne.s32.totalorder %s134, %s137
      %p146 = scmp.eq.s32.totalorder %s19, 1
      %p147 = por %p145, %p146
      %p148 = scmp.ne.s32.totalorder %s137, %s138
      %p149 = scmp.eq.s32.totalorder %s19, 0
      %p150 = por %p148, %p149
      %p151 = scmp.ne.s32.totalorder %s137, %s138
      %p152 = scmp.eq.s32.totalorder %s20, 1
      %p153 = por %p151, %p152
      %p155 = scmp.ne.s32.totalorder %s138, %s154
      %p156 = scmp.eq.s32.totalorder %s20, 0
      %p157 = por %p155, %p156
      %p158 = scmp.le.s32.totalorder 1, %s14
      %p159 = scmp.lt.s32.totalorder %s14, 3
      %p160 = pnand %p158, %p159
      %p161 = pneg %p160
      // Predicated region
      $region9: #{mlp_pallas.1} parent=5 // pred_check
        _
      $region10: #{mlp_pallas.1} parent=5 // pred_check_branch
        %163 = sbr.rel (%p160) target = $region12
      $region11: #{mlp_pallas.1} parent=5 // pred_region
        %s164 = ssub.s32 %s14, 1
        // Predicated region
        $region13: #{mlp_pallas.1} parent=11 // pred_check
          %p165 = pneg %p61
        $region14: #{mlp_pallas.1} parent=11 // pred_check_branch
          %167 = sbr.rel (%p165) target = $region16
        $region15: #{mlp_pallas.1} parent=11 // pred_region
          _
        $region16: #{mlp_pallas.1} parent=11 // pred_fallthru
          _
        // Predicated region
        $region17: #{mlp_pallas.1} parent=11 // pred_check
          %p168 = pneg %p82
        $region18: #{mlp_pallas.1} parent=11 // pred_check_branch
          %170 = sbr.rel (%p168) target = $region20
        $region19: #{mlp_pallas.1} parent=11 // pred_region
          _
        $region20: #{mlp_pallas.1} parent=11 // pred_fallthru
          _
        // Predicated region
        $region21: #{mlp_pallas.1} parent=11 // pred_check
          %p171 = pneg %p103
        $region22: #{mlp_pallas.1} parent=11 // pred_check_branch
          %173 = sbr.rel (%p171) target = $region24
        $region23: #{mlp_pallas.1} parent=11 // pred_region
          _
        $region24: #{mlp_pallas.1} parent=11 // pred_fallthru
          _
        // Predicated region
        $region25: #{mlp_pallas.1} parent=11 // pred_check
          %p174 = pneg %p124
        $region26: #{mlp_pallas.1} parent=11 // pred_check_branch
          %176 = sbr.rel (%p174) target = $region28
        $region27: #{mlp_pallas.1} parent=11 // pred_region
          _
        $region28: #{mlp_pallas.1} parent=11 // pred_fallthru
          _
      $region12: #{mlp_pallas.1} parent=5 // pred_fallthru
        _
      %p177 = scmp.lt.s32.totalorder %s14, 2
      // Predicated region
      $region29: #{mlp_pallas.1} parent=5 // pred_check
        %p178 = pneg %p177
      $region30: #{mlp_pallas.1} parent=5 // pred_check_branch
        %180 = sbr.rel (%p178) target = $region32
      $region31: #{mlp_pallas.1} parent=5 // pred_region
        // Predicated region
        $region33: #{mlp_pallas.1} parent=31 // pred_check
          %p181 = pneg %p34
        $region34: #{mlp_pallas.1} parent=31 // pred_check_branch
          %183 = sbr.rel (%p181) target = $region36
        $region35: #{mlp_pallas.1} parent=31 // pred_region
          %s184 = smul.u32 64, %s14
          %p185 = scmp.lt.s32.totalorder %s184, 127
          %s186 = scalar_select %p185, %s184, 127
          %s187 = smul.addr %s186, 8
          %s188 = scalar_lea.vmem %s0, %s187
          %s189 = smul.u32 64, %s14
        $region36: #{mlp_pallas.1} parent=31 // pred_fallthru
          _
      $region32: #{mlp_pallas.1} parent=5 // pred_fallthru
        _
      %p190 = scmp.le.s32.totalorder 1, %s14
      %p191 = scmp.lt.s32.totalorder %s14, 3
      %p192 = pnand %p190, %p191
      %p193 = pneg %p192
      // Predicated region
      $region37: #{mlp_pallas.1} parent=5 // pred_check
        _
      $region38: #{mlp_pallas.1} parent=5 // pred_check_branch
        %195 = sbr.rel (%p192) target = $region40
      $region39: #{mlp_pallas.1} parent=5 // pred_region
        %s196 = ssub.s32 %s14, 1
        %s197 = smul.u32 64, %s19
        %p198 = scmp.lt.s32.totalorder %s197, 127
        %s199 = scalar_select %p198, %s197, 127
        %s200 = smul.addr %s199, 8
        %s201 = scalar_lea.vmem %s0, %s200
        %p202 = pneg %p40
        %p203 = pneg %p37
        %p204 = pneg %p61
        %p205 = pneg %p58
        %p206 = pneg %p82
        %p207 = pneg %p79
        %p208 = pneg %p103
        %p209 = pneg %p100
        %p210 = pneg %p124
        %p211 = pneg %p121
        %p212 = pneg %p150
        %p213 = pneg %p147
        %s214 = sand.u32 %s137, 1
        %s215 = scalar_lea.sflag [#allocation3], %s214
        %s216 = sand.u32 %s137, 1
        %s217 = smul.addr %s216, 512
        %s218 = scalar_lea.vmem [#allocation2], %s217
        %s219 = smul.u32 64, %s19
        %p220 = scmp.lt.s32.totalorder %s219, 127
        %s221 = scalar_select %p220, %s219, 127
        %s222 = smul.addr %s221, 8
        %s223 = scalar_lea.vmem %s0, %s222
        %s224 = smul.u32 64, %s19
        %s225 = smul.u32 64, %s19
        %v227 = vld [vmem:[%s223] sm:$0xff]
        %v228 = vld [vmem:[%s223 + $0x8] sm:$0xff]
        %v229 = vld [vmem:[%s223 + $0x10] sm:$0xff]
        %v230 = vld [vmem:[%s223 + $0x18] sm:$0xff]
        %v231 = vld [vmem:[%s223 + $0x20] sm:$0xff]
        %v232 = vld [vmem:[%s223 + $0x28] sm:$0xff]
        %v233 = vld [vmem:[%s223 + $0x30] sm:$0xff]
        %v234 = vld [vmem:[%s223 + $0x38] sm:$0xff]
        %v235 = vld [vmem:[%s223 + $0x40] sm:$0xff]
        %v236 = vld [vmem:[%s223 + $0x48] sm:$0xff]
        %v237 = vld [vmem:[%s223 + $0x50] sm:$0xff]
        %v238 = vld [vmem:[%s223 + $0x58] sm:$0xff]
        %v239 = vld [vmem:[%s223 + $0x60] sm:$0xff]
        %v240 = vld [vmem:[%s223 + $0x68] sm:$0xff]
        %v241 = vld [vmem:[%s223 + $0x70] sm:$0xff]
        %v242 = vld [vmem:[%s223 + $0x78] sm:$0xff]
        %v243 = vld [vmem:[%s223 + $0x80] sm:$0xff]
        %v244 = vld [vmem:[%s223 + $0x88] sm:$0xff]
        %v245 = vld [vmem:[%s223 + $0x90] sm:$0xff]
        %v246 = vld [vmem:[%s223 + $0x98] sm:$0xff]
        %v247 = vld [vmem:[%s223 + $0xa0] sm:$0xff]
        %v248 = vld [vmem:[%s223 + $0xa8] sm:$0xff]
        %v249 = vld [vmem:[%s223 + $0xb0] sm:$0xff]
        %v250 = vld [vmem:[%s223 + $0xb8] sm:$0xff]
        %v251 = vld [vmem:[%s223 + $0xc0] sm:$0xff]
        %v252 = vld [vmem:[%s223 + $0xc8] sm:$0xff]
        %v253 = vld [vmem:[%s223 + $0xd0] sm:$0xff]
        %v254 = vld [vmem:[%s223 + $0xd8] sm:$0xff]
        %v255 = vld [vmem:[%s223 + $0xe0] sm:$0xff]
        %v256 = vld [vmem:[%s223 + $0xe8] sm:$0xff]
        %v257 = vld [vmem:[%s223 + $0xf0] sm:$0xff]
        %v258 = vld [vmem:[%s223 + $0xf8] sm:$0xff]
        %v259 = vld [vmem:[%s223 + $0x100] sm:$0xff]
        %v260 = vld [vmem:[%s223 + $0x108] sm:$0xff]
        %v261 = vld [vmem:[%s223 + $0x110] sm:$0xff]
        %v262 = vld [vmem:[%s223 + $0x118] sm:$0xff]
        %v263 = vld [vmem:[%s223 + $0x120] sm:$0xff]
        %v264 = vld [vmem:[%s223 + $0x128] sm:$0xff]
        %v265 = vld [vmem:[%s223 + $0x130] sm:$0xff]
        %v266 = vld [vmem:[%s223 + $0x138] sm:$0xff]
        %v267 = vld [vmem:[%s223 + $0x140] sm:$0xff]
        %v268 = vld [vmem:[%s223 + $0x148] sm:$0xff]
        %v269 = vld [vmem:[%s223 + $0x150] sm:$0xff]
        %v270 = vld [vmem:[%s223 + $0x158] sm:$0xff]
        %v271 = vld [vmem:[%s223 + $0x160] sm:$0xff]
        %v272 = vld [vmem:[%s223 + $0x168] sm:$0xff]
        %v273 = vld [vmem:[%s223 + $0x170] sm:$0xff]
        %v274 = vld [vmem:[%s223 + $0x178] sm:$0xff]
        %v275 = vld [vmem:[%s223 + $0x180] sm:$0xff]
        %v276 = vld [vmem:[%s223 + $0x188] sm:$0xff]
        %v277 = vld [vmem:[%s223 + $0x190] sm:$0xff]
        %v278 = vld [vmem:[%s223 + $0x198] sm:$0xff]
        %v279 = vld [vmem:[%s223 + $0x1a0] sm:$0xff]
        %v280 = vld [vmem:[%s223 + $0x1a8] sm:$0xff]
        %v281 = vld [vmem:[%s223 + $0x1b0] sm:$0xff]
        %v282 = vld [vmem:[%s223 + $0x1b8] sm:$0xff]
        %v283 = vld [vmem:[%s223 + $0x1c0] sm:$0xff]
        %v284 = vld [vmem:[%s223 + $0x1c8] sm:$0xff]
        %v285 = vld [vmem:[%s223 + $0x1d0] sm:$0xff]
        %v286 = vld [vmem:[%s223 + $0x1d8] sm:$0xff]
        %v287 = vld [vmem:[%s223 + $0x1e0] sm:$0xff]
        %v288 = vld [vmem:[%s223 + $0x1e8] sm:$0xff]
        %v289 = vld [vmem:[%s223 + $0x1f0] sm:$0xff]
        %v290 = vld [vmem:[%s223 + $0x1f8] sm:$0xff]
        %v291 = vpack.c.bf16 %v228, %v227
        %v292 = vpack.c.bf16 %v230, %v229
        %v293 = vpack.c.bf16 %v232, %v231
        %v294 = vpack.c.bf16 %v234, %v233
        %v295 = vpack.c.bf16 %v236, %v235
        %v296 = vpack.c.bf16 %v238, %v237
        %v297 = vpack.c.bf16 %v240, %v239
        %v298 = vpack.c.bf16 %v242, %v241
        %v299 = vpack.c.bf16 %v244, %v243
        %v300 = vpack.c.bf16 %v246, %v245
        %v301 = vpack.c.bf16 %v248, %v247
        %v302 = vpack.c.bf16 %v250, %v249
        %v303 = vpack.c.bf16 %v252, %v251
        %v304 = vpack.c.bf16 %v254, %v253
        %v305 = vpack.c.bf16 %v256, %v255
        %v306 = vpack.c.bf16 %v258, %v257
        %v307 = vpack.c.bf16 %v260, %v259
        %v308 = vpack.c.bf16 %v262, %v261
        %v309 = vpack.c.bf16 %v264, %v263
        %v310 = vpack.c.bf16 %v266, %v265
        %v311 = vpack.c.bf16 %v268, %v267
        %v312 = vpack.c.bf16 %v270, %v269
        %v313 = vpack.c.bf16 %v272, %v271
        %v314 = vpack.c.bf16 %v274, %v273
        %v315 = vpack.c.bf16 %v276, %v275
        %v316 = vpack.c.bf16 %v278, %v277
        %v317 = vpack.c.bf16 %v280, %v279
        %v318 = vpack.c.bf16 %v282, %v281
        %v319 = vpack.c.bf16 %v284, %v283
        %v320 = vpack.c.bf16 %v286, %v285
        %v321 = vpack.c.bf16 %v288, %v287
        %v322 = vpack.c.bf16 %v290, %v289
        %v323 = vld [vmem:[%s1] sm:$0xff]
        %v324 = vld [vmem:[%s1 + $0x8] sm:$0xff]
        %v325 = vld [vmem:[%s1 + $0x10] sm:$0xff]
        %v326 = vld [vmem:[%s1 + $0x18] sm:$0xff]
        %v327 = vld [vmem:[%s1 + $0x20] sm:$0xff]
        %v328 = vld [vmem:[%s1 + $0x28] sm:$0xff]
        %v329 = vld [vmem:[%s1 + $0x30] sm:$0xff]
        %v330 = vld [vmem:[%s1 + $0x38] sm:$0xff]
        %v331 = vld [vmem:[%s1 + $0x40] sm:$0xff]
        %v332 = vld [vmem:[%s1 + $0x48] sm:$0xff]
        %v333 = vld [vmem:[%s1 + $0x50] sm:$0xff]
        %v334 = vld [vmem:[%s1 + $0x58] sm:$0xff]
        %v335 = vld [vmem:[%s1 + $0x60] sm:$0xff]
        %v336 = vld [vmem:[%s1 + $0x68] sm:$0xff]
        %v337 = vld [vmem:[%s1 + $0x70] sm:$0xff]
        %v338 = vld [vmem:[%s1 + $0x78] sm:$0xff]
        %v339 = vld [vmem:[%s1 + $0x80] sm:$0xff]
        %v340 = vld [vmem:[%s1 + $0x88] sm:$0xff]
        %v341 = vld [vmem:[%s1 + $0x90] sm:$0xff]
        %v342 = vld [vmem:[%s1 + $0x98] sm:$0xff]
        %v343 = vld [vmem:[%s1 + $0xa0] sm:$0xff]
        %v344 = vld [vmem:[%s1 + $0xa8] sm:$0xff]
        %v345 = vld [vmem:[%s1 + $0xb0] sm:$0xff]
        %v346 = vld [vmem:[%s1 + $0xb8] sm:$0xff]
        %v347 = vld [vmem:[%s1 + $0xc0] sm:$0xff]
        %v348 = vld [vmem:[%s1 + $0xc8] sm:$0xff]
        %v349 = vld [vmem:[%s1 + $0xd0] sm:$0xff]
        %v350 = vld [vmem:[%s1 + $0xd8] sm:$0xff]
        %v351 = vld [vmem:[%s1 + $0xe0] sm:$0xff]
        %v352 = vld [vmem:[%s1 + $0xe8] sm:$0xff]
        %v353 = vld [vmem:[%s1 + $0xf0] sm:$0xff]
        %v354 = vld [vmem:[%s1 + $0xf8] sm:$0xff]
        %v355 = vld [vmem:[%s2] sm:$0xf]
        %v357 = vlaneseq
        %v358 = vshrl.u32 %v357, 7
        %v359 = vsub.s32 0, %v358
        %v360 = vrot.slane %v355, %v359
        %v361 = vlaneseq
        %v362 = vshrl.u32 %v361, 7
        %v363 = vsub.s32 1, %v362
        %v364 = vrot.slane %v355, %v363
        %v365 = vlaneseq
        %v366 = vshrl.u32 %v365, 7
        %v367 = vsub.s32 2, %v366
        %v368 = vrot.slane %v355, %v367
        %v369 = vlaneseq
        %v370 = vshrl.u32 %v369, 7
        %v371 = vsub.s32 3, %v370
        %v372 = vrot.slane %v355, %v371
        %v409 = vunpack.c.l.b16 %v323
        %v410 = vunpack.c.h.b16 %v323
        %v411 = vunpack.c.l.b16 %v324
        %v412 = vunpack.c.h.b16 %v324
        %v413 = vunpack.c.l.b16 %v325
        %v414 = vunpack.c.h.b16 %v325
        %v415 = vunpack.c.l.b16 %v326
        %v416 = vunpack.c.h.b16 %v326
        %v417 = vunpack.c.l.b16 %v327
        %v418 = vunpack.c.h.b16 %v327
        %v419 = vunpack.c.l.b16 %v328
        %v420 = vunpack.c.h.b16 %v328
        %v421 = vunpack.c.l.b16 %v329
        %v422 = vunpack.c.h.b16 %v329
        %v423 = vunpack.c.l.b16 %v330
        %v424 = vunpack.c.h.b16 %v330
        %v425 = vunpack.c.l.b16 %v331
        %v426 = vunpack.c.h.b16 %v331
        %v427 = vunpack.c.l.b16 %v332
        %v428 = vunpack.c.h.b16 %v332
        %v429 = vunpack.c.l.b16 %v333
        %v430 = vunpack.c.h.b16 %v333
        %v431 = vunpack.c.l.b16 %v334
        %v432 = vunpack.c.h.b16 %v334
        %v433 = vunpack.c.l.b16 %v335
        %v434 = vunpack.c.h.b16 %v335
        %v435 = vunpack.c.l.b16 %v336
        %v436 = vunpack.c.h.b16 %v336
        %v437 = vunpack.c.l.b16 %v337
        %v438 = vunpack.c.h.b16 %v337
        %v439 = vunpack.c.l.b16 %v338
        %v440 = vunpack.c.h.b16 %v338
        %v441 = vunpack.c.l.b16 %v339
        %v442 = vunpack.c.h.b16 %v339
        %v443 = vunpack.c.l.b16 %v340
        %v444 = vunpack.c.h.b16 %v340
        %v445 = vunpack.c.l.b16 %v341
        %v446 = vunpack.c.h.b16 %v341
        %v447 = vunpack.c.l.b16 %v342
        %v448 = vunpack.c.h.b16 %v342
        %v449 = vunpack.c.l.b16 %v343
        %v450 = vunpack.c.h.b16 %v343
        %v451 = vunpack.c.l.b16 %v344
        %v452 = vunpack.c.h.b16 %v344
        %v453 = vunpack.c.l.b16 %v345
        %v454 = vunpack.c.h.b16 %v345
        %v455 = vunpack.c.l.b16 %v346
        %v456 = vunpack.c.h.b16 %v346
        %v457 = vunpack.c.l.b16 %v347
        %v458 = vunpack.c.h.b16 %v347
        %v459 = vunpack.c.l.b16 %v348
        %v460 = vunpack.c.h.b16 %v348
        %v461 = vunpack.c.l.b16 %v349
        %v462 = vunpack.c.h.b16 %v349
        %v463 = vunpack.c.l.b16 %v350
        %v464 = vunpack.c.h.b16 %v350
        %v465 = vunpack.c.l.b16 %v351
        %v466 = vunpack.c.h.b16 %v351
        %v467 = vunpack.c.l.b16 %v352
        %v468 = vunpack.c.h.b16 %v352
        %v469 = vunpack.c.l.b16 %v353
        %v470 = vunpack.c.h.b16 %v353
        %v471 = vunpack.c.l.b16 %v354
        %v472 = vunpack.c.h.b16 %v354
        %v473 = vpack.c.b16 %v413, %v409
        %v474 = vpack.c.b16 %v414, %v410
        %v475 = vpack.c.b16 %v415, %v411
        %v476 = vpack.c.b16 %v416, %v412
        %v477 = vpack.c.b16 %v421, %v417
        %v478 = vpack.c.b16 %v422, %v418
        %v479 = vpack.c.b16 %v423, %v419
        %v480 = vpack.c.b16 %v424, %v420
        %v481 = vpack.c.b16 %v429, %v425
        %v482 = vpack.c.b16 %v430, %v426
        %v483 = vpack.c.b16 %v431, %v427
        %v484 = vpack.c.b16 %v432, %v428
        %v485 = vpack.c.b16 %v437, %v433
        %v486 = vpack.c.b16 %v438, %v434
        %v487 = vpack.c.b16 %v439, %v435
        %v488 = vpack.c.b16 %v440, %v436
        %v489 = vpack.c.b16 %v445, %v441
        %v490 = vpack.c.b16 %v446, %v442
        %v491 = vpack.c.b16 %v447, %v443
        %v492 = vpack.c.b16 %v448, %v444
        %v493 = vpack.c.b16 %v453, %v449
        %v494 = vpack.c.b16 %v454, %v450
        %v495 = vpack.c.b16 %v455, %v451
        %v496 = vpack.c.b16 %v456, %v452
        %v497 = vpack.c.b16 %v461, %v457
        %v498 = vpack.c.b16 %v462, %v458
        %v499 = vpack.c.b16 %v463, %v459
        %v500 = vpack.c.b16 %v464, %v460
        %v501 = vpack.c.b16 %v469, %v465
        %v502 = vpack.c.b16 %v470, %v466
        %v503 = vpack.c.b16 %v471, %v467
        %v504 = vpack.c.b16 %v472, %v468
        %537 = vmatprep.subr.bf16.mxu0 %v502
        %538 = vmatpush1.bf16.msra.mxu0 %v501
        %539 = vmatprep.subr.bf16.mxu0 %v498
        %540 = vmatpush1.bf16.msra.mxu0 %v497
        %541 = vmatprep.subr.bf16.mxu0 %v494
        %542 = vmatpush1.bf16.msra.mxu0 %v493
        %543 = vmatprep.subr.bf16.mxu0 %v490
        %544 = vmatpush1.bf16.msra.mxu0 %v489
        %545 = vmatprep.subr.bf16.mxu0 %v486
        %546 = vmatpush1.bf16.msra.mxu0 %v485
        %547 = vmatprep.subr.bf16.mxu0 %v482
        %548 = vmatpush1.bf16.msra.mxu0 %v481
        %549 = vmatprep.subr.bf16.mxu0 %v478
        %550 = vmatpush1.bf16.msra.mxu0 %v477
        %551 = vmatprep.subr.bf16.mxu0 %v474
        %552 = vmatpush1.bf16.msra.mxu0 %v473
        %553 = vmatprep.subr.bf16.mxu0 0
        %554 = vmatpush2.bf16.msra.mxu0 0
        %555 = vmatprep.subr.bf16.mxu0 0
        %556 = vmatpush2.bf16.msra.mxu0 0
        %557 = vmatprep.subr.bf16.mxu0 0
        %558 = vmatpush2.bf16.msra.mxu0 0
        %559 = vmatprep.subr.bf16.mxu0 0
        %560 = vmatpush2.bf16.msra.mxu0 0
        %561 = vmatprep.subr.bf16.mxu0 0
        %562 = vmatpush2.bf16.msra.mxu0 0
        %563 = vmatprep.subr.bf16.mxu0 0
        %564 = vmatpush2.bf16.msra.mxu0 0
        %565 = vmatprep.subr.bf16.mxu0 0
        %566 = vmatpush2.bf16.msra.mxu0 0
        %567 = vmatprep.subr.bf16.mxu0 0
        %568 = vmatpush2.bf16.msra.mxu0 0
        %569 = vmatprep.mubr.bf16.mxu0 0
        %570 = vmatmul.mubr.bf16.gmra.mxu0 %v291
        %v571 = vpop.f32.mrf.mxu0
        %v572 = vadd.f32 %v360, %v571
        %v573 = vpop.f32.mrf.mxu0
        %v574 = vadd.f32 %v364, %v573
        %v575 = vpop.f32.mrf.mxu0
        %v576 = vadd.f32 %v360, %v575
        %v577 = vpop.f32.mrf.mxu0
        %v578 = vadd.f32 %v364, %v577
        %579 = vmatprep.mubr.bf16.mxu0 0
        %580 = vmatmul.mubr.bf16.gmra.mxu0 %v292
        %v581 = vpop.f32.mrf.mxu0
        %v582 = vadd.f32 %v360, %v581
        %v583 = vpop.f32.mrf.mxu0
        %v584 = vadd.f32 %v364, %v583
        %v585 = vpop.f32.mrf.mxu0
        %v586 = vadd.f32 %v360, %v585
        %v587 = vpop.f32.mrf.mxu0
        %v588 = vadd.f32 %v364, %v587
        %589 = vmatprep.mubr.bf16.mxu0 0
        %590 = vmatmul.mubr.bf16.gmra.mxu0 %v293
        %v591 = vpop.f32.mrf.mxu0
        %v592 = vadd.f32 %v360, %v591
        %v593 = vpop.f32.mrf.mxu0
        %v594 = vadd.f32 %v364, %v593
        %v595 = vpop.f32.mrf.mxu0
        %v596 = vadd.f32 %v360, %v595
        %v597 = vpop.f32.mrf.mxu0
        %v598 = vadd.f32 %v364, %v597
        %599 = vmatprep.mubr.bf16.mxu0 0
        %600 = vmatmul.mubr.bf16.gmra.mxu0 %v294
        %v601 = vpop.f32.mrf.mxu0
        %v602 = vadd.f32 %v360, %v601
        %v603 = vpop.f32.mrf.mxu0
        %v604 = vadd.f32 %v364, %v603
        %v605 = vpop.f32.mrf.mxu0
        %v606 = vadd.f32 %v360, %v605
        %v607 = vpop.f32.mrf.mxu0
        %v608 = vadd.f32 %v364, %v607
        %609 = vmatprep.mubr.bf16.mxu0 0
        %610 = vmatmul.mubr.bf16.gmra.mxu0 %v295
        %v611 = vpop.f32.mrf.mxu0
        %v612 = vadd.f32 %v360, %v611
        %v613 = vpop.f32.mrf.mxu0
        %v614 = vadd.f32 %v364, %v613
        %v615 = vpop.f32.mrf.mxu0
        %v616 = vadd.f32 %v360, %v615
        %v617 = vpop.f32.mrf.mxu0
        %v618 = vadd.f32 %v364, %v617
        %619 = vmatprep.mubr.bf16.mxu0 0
        %620 = vmatmul.mubr.bf16.gmra.mxu0 %v296
        %v621 = vpop.f32.mrf.mxu0
        %v622 = vadd.f32 %v360, %v621
        %v623 = vpop.f32.mrf.mxu0
        %v624 = vadd.f32 %v364, %v623
        %v625 = vpop.f32.mrf.mxu0
        %v626 = vadd.f32 %v360, %v625
        %v627 = vpop.f32.mrf.mxu0
        %v628 = vadd.f32 %v364, %v627
        %629 = vmatprep.mubr.bf16.mxu0 0
        %630 = vmatmul.mubr.bf16.gmra.mxu0 %v297
        %v631 = vpop.f32.mrf.mxu0
        %v632 = vadd.f32 %v360, %v631
        %v633 = vpop.f32.mrf.mxu0
        %v634 = vadd.f32 %v364, %v633
        %v635 = vpop.f32.mrf.mxu0
        %v636 = vadd.f32 %v360, %v635
        %v637 = vpop.f32.mrf.mxu0
        %v638 = vadd.f32 %v364, %v637
        %639 = vmatprep.mubr.bf16.mxu0 0
        %640 = vmatmul.mubr.bf16.gmra.mxu0 %v298
        %v641 = vpop.f32.mrf.mxu0
        %v642 = vadd.f32 %v360, %v641
        %v643 = vpop.f32.mrf.mxu0
        %v644 = vadd.f32 %v364, %v643
        %v645 = vpop.f32.mrf.mxu0
        %v646 = vadd.f32 %v360, %v645
        %v647 = vpop.f32.mrf.mxu0
        %v648 = vadd.f32 %v364, %v647
        %649 = vmatprep.mubr.bf16.mxu0 0
        %650 = vmatmul.mubr.bf16.gmra.mxu0 %v299
        %v651 = vpop.f32.mrf.mxu0
        %v652 = vadd.f32 %v360, %v651
        %v653 = vpop.f32.mrf.mxu0
        %v654 = vadd.f32 %v364, %v653
        %v655 = vpop.f32.mrf.mxu0
        %v656 = vadd.f32 %v360, %v655
        %v657 = vpop.f32.mrf.mxu0
        %v658 = vadd.f32 %v364, %v657
        %659 = vmatprep.mubr.bf16.mxu0 0
        %660 = vmatmul.mubr.bf16.gmra.mxu0 %v300
        %v661 = vpop.f32.mrf.mxu0
        %v662 = vadd.f32 %v360, %v661
        %v663 = vpop.f32.mrf.mxu0
        %v664 = vadd.f32 %v364, %v663
        %v665 = vpop.f32.mrf.mxu0
        %v666 = vadd.f32 %v360, %v665
        %v667 = vpop.f32.mrf.mxu0
        %v668 = vadd.f32 %v364, %v667
        %669 = vmatprep.mubr.bf16.mxu0 0
        %670 = vmatmul.mubr.bf16.gmra.mxu0 %v301
        %v671 = vpop.f32.mrf.mxu0
        %v672 = vadd.f32 %v360, %v671
        %v673 = vpop.f32.mrf.mxu0
        %v674 = vadd.f32 %v364, %v673
        %v675 = vpop.f32.mrf.mxu0
        %v676 = vadd.f32 %v360, %v675
        %v677 = vpop.f32.mrf.mxu0
        %v678 = vadd.f32 %v364, %v677
        %679 = vmatprep.mubr.bf16.mxu0 0
        %680 = vmatmul.mubr.bf16.gmra.mxu0 %v302
        %v681 = vpop.f32.mrf.mxu0
        %v682 = vadd.f32 %v360, %v681
        %v683 = vpop.f32.mrf.mxu0
        %v684 = vadd.f32 %v364, %v683
        %v685 = vpop.f32.mrf.mxu0
        %v686 = vadd.f32 %v360, %v685
        %v687 = vpop.f32.mrf.mxu0
        %v688 = vadd.f32 %v364, %v687
        %689 = vmatprep.mubr.bf16.mxu0 0
        %690 = vmatmul.mubr.bf16.gmra.mxu0 %v303
        %v691 = vpop.f32.mrf.mxu0
        %v692 = vadd.f32 %v360, %v691
        %v693 = vpop.f32.mrf.mxu0
        %v694 = vadd.f32 %v364, %v693
        %v695 = vpop.f32.mrf.mxu0
        %v696 = vadd.f32 %v360, %v695
        %v697 = vpop.f32.mrf.mxu0
        %v698 = vadd.f32 %v364, %v697
        %699 = vmatprep.mubr.bf16.mxu0 0
        %700 = vmatmul.mubr.bf16.gmra.mxu0 %v304
        %v701 = vpop.f32.mrf.mxu0
        %v702 = vadd.f32 %v360, %v701
        %v703 = vpop.f32.mrf.mxu0
        %v704 = vadd.f32 %v364, %v703
        %v705 = vpop.f32.mrf.mxu0
        %v706 = vadd.f32 %v360, %v705
        %v707 = vpop.f32.mrf.mxu0
        %v708 = vadd.f32 %v364, %v707
        %709 = vmatprep.mubr.bf16.mxu0 0
        %710 = vmatmul.mubr.bf16.gmra.mxu0 %v305
        %v711 = vpop.f32.mrf.mxu0
        %v712 = vadd.f32 %v360, %v711
        %v713 = vpop.f32.mrf.mxu0
        %v714 = vadd.f32 %v364, %v713
        %v715 = vpop.f32.mrf.mxu0
        %v716 = vadd.f32 %v360, %v715
        %v717 = vpop.f32.mrf.mxu0
        %v718 = vadd.f32 %v364, %v717
        %719 = vmatprep.mubr.bf16.mxu0 0
        %720 = vmatmul.mubr.bf16.gmra.mxu0 %v306
        %v721 = vpop.f32.mrf.mxu0
        %v722 = vadd.f32 %v360, %v721
        %v723 = vpop.f32.mrf.mxu0
        %v724 = vadd.f32 %v364, %v723
        %v725 = vpop.f32.mrf.mxu0
        %v726 = vadd.f32 %v360, %v725
        %v727 = vpop.f32.mrf.mxu0
        %v728 = vadd.f32 %v364, %v727
        %729 = vmatprep.mubr.bf16.mxu0 0
        %730 = vmatmul.mubr.bf16.gmra.mxu0 %v307
        %v731 = vpop.f32.mrf.mxu0
        %v732 = vadd.f32 %v360, %v731
        %v733 = vpop.f32.mrf.mxu0
        %v734 = vadd.f32 %v364, %v733
        %v735 = vpop.f32.mrf.mxu0
        %v736 = vadd.f32 %v360, %v735
        %v737 = vpop.f32.mrf.mxu0
        %v738 = vadd.f32 %v364, %v737
        %739 = vmatprep.mubr.bf16.mxu0 0
        %740 = vmatmul.mubr.bf16.gmra.mxu0 %v308
        %v741 = vpop.f32.mrf.mxu0
        %v742 = vadd.f32 %v360, %v741
        %v743 = vpop.f32.mrf.mxu0
        %v744 = vadd.f32 %v364, %v743
        %v745 = vpop.f32.mrf.mxu0
        %v746 = vadd.f32 %v360, %v745
        %v747 = vpop.f32.mrf.mxu0
        %v748 = vadd.f32 %v364, %v747
        %749 = vmatprep.mubr.bf16.mxu0 0
        %750 = vmatmul.mubr.bf16.gmra.mxu0 %v309
        %v751 = vpop.f32.mrf.mxu0
        %v752 = vadd.f32 %v360, %v751
        %v753 = vpop.f32.mrf.mxu0
        %v754 = vadd.f32 %v364, %v753
        %v755 = vpop.f32.mrf.mxu0
        %v756 = vadd.f32 %v360, %v755
        %v757 = vpop.f32.mrf.mxu0
        %v758 = vadd.f32 %v364, %v757
        %759 = vmatprep.mubr.bf16.mxu0 0
        %760 = vmatmul.mubr.bf16.gmra.mxu0 %v310
        %v761 = vpop.f32.mrf.mxu0
        %v762 = vadd.f32 %v360, %v761
        %v763 = vpop.f32.mrf.mxu0
        %v764 = vadd.f32 %v364, %v763
        %v765 = vpop.f32.mrf.mxu0
        %v766 = vadd.f32 %v360, %v765
        %v767 = vpop.f32.mrf.mxu0
        %v768 = vadd.f32 %v364, %v767
        %769 = vmatprep.mubr.bf16.mxu0 0
        %770 = vmatmul.mubr.bf16.gmra.mxu0 %v311
        %v771 = vpop.f32.mrf.mxu0
        %v772 = vadd.f32 %v360, %v771
        %v773 = vpop.f32.mrf.mxu0
        %v774 = vadd.f32 %v364, %v773
        %v775 = vpop.f32.mrf.mxu0
        %v776 = vadd.f32 %v360, %v775
        %v777 = vpop.f32.mrf.mxu0
        %v778 = vadd.f32 %v364, %v777
        %779 = vmatprep.mubr.bf16.mxu0 0
        %780 = vmatmul.mubr.bf16.gmra.mxu0 %v312
        %v781 = vpop.f32.mrf.mxu0
        %v782 = vadd.f32 %v360, %v781
        %v783 = vpop.f32.mrf.mxu0
        %v784 = vadd.f32 %v364, %v783
        %v785 = vpop.f32.mrf.mxu0
        %v786 = vadd.f32 %v360, %v785
        %v787 = vpop.f32.mrf.mxu0
        %v788 = vadd.f32 %v364, %v787
        %789 = vmatprep.mubr.bf16.mxu0 0
        %790 = vmatmul.mubr.bf16.gmra.mxu0 %v313
        %v791 = vpop.f32.mrf.mxu0
        %v792 = vadd.f32 %v360, %v791
        %v793 = vpop.f32.mrf.mxu0
        %v794 = vadd.f32 %v364, %v793
        %v795 = vpop.f32.mrf.mxu0
        %v796 = vadd.f32 %v360, %v795
        %v797 = vpop.f32.mrf.mxu0
        %v798 = vadd.f32 %v364, %v797
        %799 = vmatprep.mubr.bf16.mxu0 0
        %800 = vmatmul.mubr.bf16.gmra.mxu0 %v314
        %v801 = vpop.f32.mrf.mxu0
        %v802 = vadd.f32 %v360, %v801
        %v803 = vpop.f32.mrf.mxu0
        %v804 = vadd.f32 %v364, %v803
        %v805 = vpop.f32.mrf.mxu0
        %v806 = vadd.f32 %v360, %v805
        %v807 = vpop.f32.mrf.mxu0
        %v808 = vadd.f32 %v364, %v807
        %809 = vmatprep.mubr.bf16.mxu0 0
        %810 = vmatmul.mubr.bf16.gmra.mxu0 %v315
        %v811 = vpop.f32.mrf.mxu0
        %v812 = vadd.f32 %v360, %v811
        %v813 = vpop.f32.mrf.mxu0
        %v814 = vadd.f32 %v364, %v813
        %v815 = vpop.f32.mrf.mxu0
        %v816 = vadd.f32 %v360, %v815
        %v817 = vpop.f32.mrf.mxu0
        %v818 = vadd.f32 %v364, %v817
        %819 = vmatprep.mubr.bf16.mxu0 0
        %820 = vmatmul.mubr.bf16.gmra.mxu0 %v316
        %v821 = vpop.f32.mrf.mxu0
        %v822 = vadd.f32 %v360, %v821
        %v823 = vpop.f32.mrf.mxu0
        %v824 = vadd.f32 %v364, %v823
        %v825 = vpop.f32.mrf.mxu0
        %v826 = vadd.f32 %v360, %v825
        %v827 = vpop.f32.mrf.mxu0
        %v828 = vadd.f32 %v364, %v827
        %829 = vmatprep.mubr.bf16.mxu0 0
        %830 = vmatmul.mubr.bf16.gmra.mxu0 %v317
        %v831 = vpop.f32.mrf.mxu0
        %v832 = vadd.f32 %v360, %v831
        %v833 = vpop.f32.mrf.mxu0
        %v834 = vadd.f32 %v364, %v833
        %v835 = vpop.f32.mrf.mxu0
        %v836 = vadd.f32 %v360, %v835
        %v837 = vpop.f32.mrf.mxu0
        %v838 = vadd.f32 %v364, %v837
        %839 = vmatprep.mubr.bf16.mxu0 0
        %840 = vmatmul.mubr.bf16.gmra.mxu0 %v318
        %v841 = vpop.f32.mrf.mxu0
        %v842 = vadd.f32 %v360, %v841
        %v843 = vpop.f32.mrf.mxu0
        %v844 = vadd.f32 %v364, %v843
        %v845 = vpop.f32.mrf.mxu0
        %v846 = vadd.f32 %v360, %v845
        %v847 = vpop.f32.mrf.mxu0
        %v848 = vadd.f32 %v364, %v847
        %849 = vmatprep.mubr.bf16.mxu0 0
        %850 = vmatmul.mubr.bf16.gmra.mxu0 %v319
        %v851 = vpop.f32.mrf.mxu0
        %v852 = vadd.f32 %v360, %v851
        %v853 = vpop.f32.mrf.mxu0
        %v854 = vadd.f32 %v364, %v853
        %v855 = vpop.f32.mrf.mxu0
        %v856 = vadd.f32 %v360, %v855
        %v857 = vpop.f32.mrf.mxu0
        %v858 = vadd.f32 %v364, %v857
        %859 = vmatprep.mubr.bf16.mxu0 0
        %860 = vmatmul.mubr.bf16.gmra.mxu0 %v320
        %v861 = vpop.f32.mrf.mxu0
        %v862 = vadd.f32 %v360, %v861
        %v863 = vpop.f32.mrf.mxu0
        %v864 = vadd.f32 %v364, %v863
        %v865 = vpop.f32.mrf.mxu0
        %v866 = vadd.f32 %v360, %v865
        %v867 = vpop.f32.mrf.mxu0
        %v868 = vadd.f32 %v364, %v867
        %869 = vmatprep.mubr.bf16.mxu0 0
        %870 = vmatmul.mubr.bf16.gmra.mxu0 %v321
        %v871 = vpop.f32.mrf.mxu0
        %v872 = vadd.f32 %v360, %v871
        %v873 = vpop.f32.mrf.mxu0
        %v874 = vadd.f32 %v364, %v873
        %v875 = vpop.f32.mrf.mxu0
        %v876 = vadd.f32 %v360, %v875
        %v877 = vpop.f32.mrf.mxu0
        %v878 = vadd.f32 %v364, %v877
        %879 = vmatprep.mubr.bf16.mxu0 0
        %880 = vmatmul.mubr.bf16.gmra.mxu0 %v322
        %v881 = vpop.f32.mrf.mxu0
        %v882 = vadd.f32 %v360, %v881
        %v883 = vpop.f32.mrf.mxu0
        %v884 = vadd.f32 %v364, %v883
        %v885 = vpop.f32.mrf.mxu0
        %v886 = vadd.f32 %v360, %v885
        %v887 = vpop.f32.mrf.mxu0
        %v888 = vadd.f32 %v364, %v887
        %889 = vdwg.mxu0
        %890 = vmatprep.subr.bf16.mxu0 %v504
        %891 = vmatpush1.bf16.msra.mxu0 %v503
        %892 = vmatprep.subr.bf16.mxu0 %v500
        %893 = vmatpush1.bf16.msra.mxu0 %v499
        %894 = vmatprep.subr.bf16.mxu0 %v496
        %895 = vmatpush1.bf16.msra.mxu0 %v495
        %896 = vmatprep.subr.bf16.mxu0 %v492
        %897 = vmatpush1.bf16.msra.mxu0 %v491
        %898 = vmatprep.subr.bf16.mxu0 %v488
        %899 = vmatpush1.bf16.msra.mxu0 %v487
        %900 = vmatprep.subr.bf16.mxu0 %v484
        %901 = vmatpush1.bf16.msra.mxu0 %v483
        %902 = vmatprep.subr.bf16.mxu0 %v480
        %903 = vmatpush1.bf16.msra.mxu0 %v479
        %904 = vmatprep.subr.bf16.mxu0 %v476
        %905 = vmatpush1.bf16.msra.mxu0 %v475
        %906 = vmatprep.subr.bf16.mxu0 0
        %907 = vmatpush2.bf16.msra.mxu0 0
        %908 = vmatprep.subr.bf16.mxu0 0
        %909 = vmatpush2.bf16.msra.mxu0 0
        %910 = vmatprep.subr.bf16.mxu0 0
        %911 = vmatpush2.bf16.msra.mxu0 0
        %912 = vmatprep.subr.bf16.mxu0 0
        %913 = vmatpush2.bf16.msra.mxu0 0
        %914 = vmatprep.subr.bf16.mxu0 0
        %915 = vmatpush2.bf16.msra.mxu0 0
        %916 = vmatprep.subr.bf16.mxu0 0
        %917 = vmatpush2.bf16.msra.mxu0 0
        %918 = vmatprep.subr.bf16.mxu0 0
        %919 = vmatpush2.bf16.msra.mxu0 0
        %920 = vmatprep.subr.bf16.mxu0 0
        %921 = vmatpush2.bf16.msra.mxu0 0
        %922 = vmatprep.mubr.bf16.mxu0 0
        %923 = vmatmul.mubr.bf16.gmra.mxu0 %v291
        %v924 = vpop.f32.mrf.mxu0
        %v925 = vadd.f32 %v368, %v924
        %v926 = vpop.f32.mrf.mxu0
        %v927 = vadd.f32 %v372, %v926
        %v928 = vpop.f32.mrf.mxu0
        %v929 = vadd.f32 %v368, %v928
        %v930 = vpop.f32.mrf.mxu0
        %v931 = vadd.f32 %v372, %v930
        %932 = vmatprep.mubr.bf16.mxu0 0
        %933 = vmatmul.mubr.bf16.gmra.mxu0 %v292
        %v934 = vpop.f32.mrf.mxu0
        %v935 = vadd.f32 %v368, %v934
        %v936 = vpop.f32.mrf.mxu0
        %v937 = vadd.f32 %v372, %v936
        %v938 = vpop.f32.mrf.mxu0
        %v939 = vadd.f32 %v368, %v938
        %v940 = vpop.f32.mrf.mxu0
        %v941 = vadd.f32 %v372, %v940
        %942 = vmatprep.mubr.bf16.mxu0 0
        %943 = vmatmul.mubr.bf16.gmra.mxu0 %v293
        %v944 = vpop.f32.mrf.mxu0
        %v945 = vadd.f32 %v368, %v944
        %v946 = vpop.f32.mrf.mxu0
        %v947 = vadd.f32 %v372, %v946
        %v948 = vpop.f32.mrf.mxu0
        %v949 = vadd.f32 %v368, %v948
        %v950 = vpop.f32.mrf.mxu0
        %v951 = vadd.f32 %v372, %v950
        %952 = vmatprep.mubr.bf16.mxu0 0
        %953 = vmatmul.mubr.bf16.gmra.mxu0 %v294
        %v954 = vpop.f32.mrf.mxu0
        %v955 = vadd.f32 %v368, %v954
        %v956 = vpop.f32.mrf.mxu0
        %v957 = vadd.f32 %v372, %v956
        %v958 = vpop.f32.mrf.mxu0
        %v959 = vadd.f32 %v368, %v958
        %v960 = vpop.f32.mrf.mxu0
        %v961 = vadd.f32 %v372, %v960
        %962 = vmatprep.mubr.bf16.mxu0 0
        %963 = vmatmul.mubr.bf16.gmra.mxu0 %v295
        %v964 = vpop.f32.mrf.mxu0
        %v965 = vadd.f32 %v368, %v964
        %v966 = vpop.f32.mrf.mxu0
        %v967 = vadd.f32 %v372, %v966
        %v968 = vpop.f32.mrf.mxu0
        %v969 = vadd.f32 %v368, %v968
        %v970 = vpop.f32.mrf.mxu0
        %v971 = vadd.f32 %v372, %v970
        %972 = vmatprep.mubr.bf16.mxu0 0
        %973 = vmatmul.mubr.bf16.gmra.mxu0 %v296
        %v974 = vpop.f32.mrf.mxu0
        %v975 = vadd.f32 %v368, %v974
        %v976 = vpop.f32.mrf.mxu0
        %v977 = vadd.f32 %v372, %v976
        %v978 = vpop.f32.mrf.mxu0
        %v979 = vadd.f32 %v368, %v978
        %v980 = vpop.f32.mrf.mxu0
        %v981 = vadd.f32 %v372, %v980
        %982 = vmatprep.mubr.bf16.mxu0 0
        %983 = vmatmul.mubr.bf16.gmra.mxu0 %v297
        %v984 = vpop.f32.mrf.mxu0
        %v985 = vadd.f32 %v368, %v984
        %v986 = vpop.f32.mrf.mxu0
        %v987 = vadd.f32 %v372, %v986
        %v988 = vpop.f32.mrf.mxu0
        %v989 = vadd.f32 %v368, %v988
        %v990 = vpop.f32.mrf.mxu0
        %v991 = vadd.f32 %v372, %v990
        %992 = vmatprep.mubr.bf16.mxu0 0
        %993 = vmatmul.mubr.bf16.gmra.mxu0 %v298
        %v994 = vpop.f32.mrf.mxu0
        %v995 = vadd.f32 %v368, %v994
        %v996 = vpop.f32.mrf.mxu0
        %v997 = vadd.f32 %v372, %v996
        %v998 = vpop.f32.mrf.mxu0
        %v999 = vadd.f32 %v368, %v998
        %v1000 = vpop.f32.mrf.mxu0
        %v1001 = vadd.f32 %v372, %v1000
        %1002 = vmatprep.mubr.bf16.mxu0 0
        %1003 = vmatmul.mubr.bf16.gmra.mxu0 %v299
        %v1004 = vpop.f32.mrf.mxu0
        %v1005 = vadd.f32 %v368, %v1004
        %v1006 = vpop.f32.mrf.mxu0
        %v1007 = vadd.f32 %v372, %v1006
        %v1008 = vpop.f32.mrf.mxu0
        %v1009 = vadd.f32 %v368, %v1008
        %v1010 = vpop.f32.mrf.mxu0
        %v1011 = vadd.f32 %v372, %v1010
        %1012 = vmatprep.mubr.bf16.mxu0 0
        %1013 = vmatmul.mubr.bf16.gmra.mxu0 %v300
        %v1014 = vpop.f32.mrf.mxu0
        %v1015 = vadd.f32 %v368, %v1014
        %v1016 = vpop.f32.mrf.mxu0
        %v1017 = vadd.f32 %v372, %v1016
        %v1018 = vpop.f32.mrf.mxu0
        %v1019 = vadd.f32 %v368, %v1018
        %v1020 = vpop.f32.mrf.mxu0
        %v1021 = vadd.f32 %v372, %v1020
        %1022 = vmatprep.mubr.bf16.mxu0 0
        %1023 = vmatmul.mubr.bf16.gmra.mxu0 %v301
        %v1024 = vpop.f32.mrf.mxu0
        %v1025 = vadd.f32 %v368, %v1024
        %v1026 = vpop.f32.mrf.mxu0
        %v1027 = vadd.f32 %v372, %v1026
        %v1028 = vpop.f32.mrf.mxu0
        %v1029 = vadd.f32 %v368, %v1028
        %v1030 = vpop.f32.mrf.mxu0
        %v1031 = vadd.f32 %v372, %v1030
        %1032 = vmatprep.mubr.bf16.mxu0 0
        %1033 = vmatmul.mubr.bf16.gmra.mxu0 %v302
        %v1034 = vpop.f32.mrf.mxu0
        %v1035 = vadd.f32 %v368, %v1034
        %v1036 = vpop.f32.mrf.mxu0
        %v1037 = vadd.f32 %v372, %v1036
        %v1038 = vpop.f32.mrf.mxu0
        %v1039 = vadd.f32 %v368, %v1038
        %v1040 = vpop.f32.mrf.mxu0
        %v1041 = vadd.f32 %v372, %v1040
        %1042 = vmatprep.mubr.bf16.mxu0 0
        %1043 = vmatmul.mubr.bf16.gmra.mxu0 %v303
        %v1044 = vpop.f32.mrf.mxu0
        %v1045 = vadd.f32 %v368, %v1044
        %v1046 = vpop.f32.mrf.mxu0
        %v1047 = vadd.f32 %v372, %v1046
        %v1048 = vpop.f32.mrf.mxu0
        %v1049 = vadd.f32 %v368, %v1048
        %v1050 = vpop.f32.mrf.mxu0
        %v1051 = vadd.f32 %v372, %v1050
        %1052 = vmatprep.mubr.bf16.mxu0 0
        %1053 = vmatmul.mubr.bf16.gmra.mxu0 %v304
        %v1054 = vpop.f32.mrf.mxu0
        %v1055 = vadd.f32 %v368, %v1054
        %v1056 = vpop.f32.mrf.mxu0
        %v1057 = vadd.f32 %v372, %v1056
        %v1058 = vpop.f32.mrf.mxu0
        %v1059 = vadd.f32 %v368, %v1058
        %v1060 = vpop.f32.mrf.mxu0
        %v1061 = vadd.f32 %v372, %v1060
        %1062 = vmatprep.mubr.bf16.mxu0 0
        %1063 = vmatmul.mubr.bf16.gmra.mxu0 %v305
        %v1064 = vpop.f32.mrf.mxu0
        %v1065 = vadd.f32 %v368, %v1064
        %v1066 = vpop.f32.mrf.mxu0
        %v1067 = vadd.f32 %v372, %v1066
        %v1068 = vpop.f32.mrf.mxu0
        %v1069 = vadd.f32 %v368, %v1068
        %v1070 = vpop.f32.mrf.mxu0
        %v1071 = vadd.f32 %v372, %v1070
        %1072 = vmatprep.mubr.bf16.mxu0 0
        %1073 = vmatmul.mubr.bf16.gmra.mxu0 %v306
        %v1074 = vpop.f32.mrf.mxu0
        %v1075 = vadd.f32 %v368, %v1074
        %v1076 = vpop.f32.mrf.mxu0
        %v1077 = vadd.f32 %v372, %v1076
        %v1078 = vpop.f32.mrf.mxu0
        %v1079 = vadd.f32 %v368, %v1078
        %v1080 = vpop.f32.mrf.mxu0
        %v1081 = vadd.f32 %v372, %v1080
        %1082 = vmatprep.mubr.bf16.mxu0 0
        %1083 = vmatmul.mubr.bf16.gmra.mxu0 %v307
        %v1084 = vpop.f32.mrf.mxu0
        %v1085 = vadd.f32 %v368, %v1084
        %v1086 = vpop.f32.mrf.mxu0
        %v1087 = vadd.f32 %v372, %v1086
        %v1088 = vpop.f32.mrf.mxu0
        %v1089 = vadd.f32 %v368, %v1088
        %v1090 = vpop.f32.mrf.mxu0
        %v1091 = vadd.f32 %v372, %v1090
        %1092 = vmatprep.mubr.bf16.mxu0 0
        %1093 = vmatmul.mubr.bf16.gmra.mxu0 %v308
        %v1094 = vpop.f32.mrf.mxu0
        %v1095 = vadd.f32 %v368, %v1094
        %v1096 = vpop.f32.mrf.mxu0
        %v1097 = vadd.f32 %v372, %v1096
        %v1098 = vpop.f32.mrf.mxu0
        %v1099 = vadd.f32 %v368, %v1098
        %v1100 = vpop.f32.mrf.mxu0
        %v1101 = vadd.f32 %v372, %v1100
        %1102 = vmatprep.mubr.bf16.mxu0 0
        %1103 = vmatmul.mubr.bf16.gmra.mxu0 %v309
        %v1104 = vpop.f32.mrf.mxu0
        %v1105 = vadd.f32 %v368, %v1104
        %v1106 = vpop.f32.mrf.mxu0
        %v1107 = vadd.f32 %v372, %v1106
        %v1108 = vpop.f32.mrf.mxu0
        %v1109 = vadd.f32 %v368, %v1108
        %v1110 = vpop.f32.mrf.mxu0
        %v1111 = vadd.f32 %v372, %v1110
        %1112 = vmatprep.mubr.bf16.mxu0 0
        %1113 = vmatmul.mubr.bf16.gmra.mxu0 %v310
        %v1114 = vpop.f32.mrf.mxu0
        %v1115 = vadd.f32 %v368, %v1114
        %v1116 = vpop.f32.mrf.mxu0
        %v1117 = vadd.f32 %v372, %v1116
        %v1118 = vpop.f32.mrf.mxu0
        %v1119 = vadd.f32 %v368, %v1118
        %v1120 = vpop.f32.mrf.mxu0
        %v1121 = vadd.f32 %v372, %v1120
        %1122 = vmatprep.mubr.bf16.mxu0 0
        %1123 = vmatmul.mubr.bf16.gmra.mxu0 %v311
        %v1124 = vpop.f32.mrf.mxu0
        %v1125 = vadd.f32 %v368, %v1124
        %v1126 = vpop.f32.mrf.mxu0
        %v1127 = vadd.f32 %v372, %v1126
        %v1128 = vpop.f32.mrf.mxu0
        %v1129 = vadd.f32 %v368, %v1128
        %v1130 = vpop.f32.mrf.mxu0
        %v1131 = vadd.f32 %v372, %v1130
        %1132 = vmatprep.mubr.bf16.mxu0 0
        %1133 = vmatmul.mubr.bf16.gmra.mxu0 %v312
        %v1134 = vpop.f32.mrf.mxu0
        %v1135 = vadd.f32 %v368, %v1134
        %v1136 = vpop.f32.mrf.mxu0
        %v1137 = vadd.f32 %v372, %v1136
        %v1138 = vpop.f32.mrf.mxu0
        %v1139 = vadd.f32 %v368, %v1138
        %v1140 = vpop.f32.mrf.mxu0
        %v1141 = vadd.f32 %v372, %v1140
        %1142 = vmatprep.mubr.bf16.mxu0 0
        %1143 = vmatmul.mubr.bf16.gmra.mxu0 %v313
        %v1144 = vpop.f32.mrf.mxu0
        %v1145 = vadd.f32 %v368, %v1144
        %v1146 = vpop.f32.mrf.mxu0
        %v1147 = vadd.f32 %v372, %v1146
        %v1148 = vpop.f32.mrf.mxu0
        %v1149 = vadd.f32 %v368, %v1148
        %v1150 = vpop.f32.mrf.mxu0
        %v1151 = vadd.f32 %v372, %v1150
        %1152 = vmatprep.mubr.bf16.mxu0 0
        %1153 = vmatmul.mubr.bf16.gmra.mxu0 %v314
        %v1154 = vpop.f32.mrf.mxu0
        %v1155 = vadd.f32 %v368, %v1154
        %v1156 = vpop.f32.mrf.mxu0
        %v1157 = vadd.f32 %v372, %v1156
        %v1158 = vpop.f32.mrf.mxu0
        %v1159 = vadd.f32 %v368, %v1158
        %v1160 = vpop.f32.mrf.mxu0
        %v1161 = vadd.f32 %v372, %v1160
        %1162 = vmatprep.mubr.bf16.mxu0 0
        %1163 = vmatmul.mubr.bf16.gmra.mxu0 %v315
        %v1164 = vpop.f32.mrf.mxu0
        %v1165 = vadd.f32 %v368, %v1164
        %v1166 = vpop.f32.mrf.mxu0
        %v1167 = vadd.f32 %v372, %v1166
        %v1168 = vpop.f32.mrf.mxu0
        %v1169 = vadd.f32 %v368, %v1168
        %v1170 = vpop.f32.mrf.mxu0
        %v1171 = vadd.f32 %v372, %v1170
        %1172 = vmatprep.mubr.bf16.mxu0 0
        %1173 = vmatmul.mubr.bf16.gmra.mxu0 %v316
        %v1174 = vpop.f32.mrf.mxu0
        %v1175 = vadd.f32 %v368, %v1174
        %v1176 = vpop.f32.mrf.mxu0
        %v1177 = vadd.f32 %v372, %v1176
        %v1178 = vpop.f32.mrf.mxu0
        %v1179 = vadd.f32 %v368, %v1178
        %v1180 = vpop.f32.mrf.mxu0
        %v1181 = vadd.f32 %v372, %v1180
        %1182 = vmatprep.mubr.bf16.mxu0 0
        %1183 = vmatmul.mubr.bf16.gmra.mxu0 %v317
        %v1184 = vpop.f32.mrf.mxu0
        %v1185 = vadd.f32 %v368, %v1184
        %v1186 = vpop.f32.mrf.mxu0
        %v1187 = vadd.f32 %v372, %v1186
        %v1188 = vpop.f32.mrf.mxu0
        %v1189 = vadd.f32 %v368, %v1188
        %v1190 = vpop.f32.mrf.mxu0
        %v1191 = vadd.f32 %v372, %v1190
        %1192 = vmatprep.mubr.bf16.mxu0 0
        %1193 = vmatmul.mubr.bf16.gmra.mxu0 %v318
        %v1194 = vpop.f32.mrf.mxu0
        %v1195 = vadd.f32 %v368, %v1194
        %v1196 = vpop.f32.mrf.mxu0
        %v1197 = vadd.f32 %v372, %v1196
        %v1198 = vpop.f32.mrf.mxu0
        %v1199 = vadd.f32 %v368, %v1198
        %v1200 = vpop.f32.mrf.mxu0
        %v1201 = vadd.f32 %v372, %v1200
        %1202 = vmatprep.mubr.bf16.mxu0 0
        %1203 = vmatmul.mubr.bf16.gmra.mxu0 %v319
        %v1204 = vpop.f32.mrf.mxu0
        %v1205 = vadd.f32 %v368, %v1204
        %v1206 = vpop.f32.mrf.mxu0
        %v1207 = vadd.f32 %v372, %v1206
        %v1208 = vpop.f32.mrf.mxu0
        %v1209 = vadd.f32 %v368, %v1208
        %v1210 = vpop.f32.mrf.mxu0
        %v1211 = vadd.f32 %v372, %v1210
        %1212 = vmatprep.mubr.bf16.mxu0 0
        %1213 = vmatmul.mubr.bf16.gmra.mxu0 %v320
        %v1214 = vpop.f32.mrf.mxu0
        %v1215 = vadd.f32 %v368, %v1214
        %v1216 = vpop.f32.mrf.mxu0
        %v1217 = vadd.f32 %v372, %v1216
        %v1218 = vpop.f32.mrf.mxu0
        %v1219 = vadd.f32 %v368, %v1218
        %v1220 = vpop.f32.mrf.mxu0
        %v1221 = vadd.f32 %v372, %v1220
        %1222 = vmatprep.mubr.bf16.mxu0 0
        %1223 = vmatmul.mubr.bf16.gmra.mxu0 %v321
        %v1224 = vpop.f32.mrf.mxu0
        %v1225 = vadd.f32 %v368, %v1224
        %v1226 = vpop.f32.mrf.mxu0
        %v1227 = vadd.f32 %v372, %v1226
        %v1228 = vpop.f32.mrf.mxu0
        %v1229 = vadd.f32 %v368, %v1228
        %v1230 = vpop.f32.mrf.mxu0
        %v1231 = vadd.f32 %v372, %v1230
        %1232 = vmatprep.mubr.bf16.mxu0 0
        %1233 = vmatmul.mubr.bf16.gmra.mxu0 %v322
        %v1234 = vpop.f32.mrf.mxu0
        %v1235 = vadd.f32 %v368, %v1234
        %v1236 = vpop.f32.mrf.mxu0
        %v1237 = vadd.f32 %v372, %v1236
        %v1238 = vpop.f32.mrf.mxu0
        %v1239 = vadd.f32 %v368, %v1238
        %v1240 = vpop.f32.mrf.mxu0
        %v1241 = vadd.f32 %v372, %v1240
        %1242 = vdwg.mxu0
        %v1243 = vmul.f32 %v572, 0.70710677
        %v1244 = vmul.f32 %v574, 0.70710677
        %v1245 = vmul.f32 %v925, 0.70710677
        %v1246 = vmul.f32 %v927, 0.70710677
        %v1247 = vmul.f32 %v576, 0.70710677
        %v1248 = vmul.f32 %v578, 0.70710677
        %v1249 = vmul.f32 %v929, 0.70710677
        %v1250 = vmul.f32 %v931, 0.70710677
        %v1251 = vmul.f32 %v582, 0.70710677
        %v1252 = vmul.f32 %v584, 0.70710677
        %v1253 = vmul.f32 %v935, 0.70710677
        %v1254 = vmul.f32 %v937, 0.70710677
        %v1255 = vmul.f32 %v586, 0.70710677
        %v1256 = vmul.f32 %v588, 0.70710677
        %v1257 = vmul.f32 %v939, 0.70710677
        %v1258 = vmul.f32 %v941, 0.70710677
        %v1259 = vmul.f32 %v592, 0.70710677
        %v1260 = vmul.f32 %v594, 0.70710677
        %v1261 = vmul.f32 %v945, 0.70710677
        %v1262 = vmul.f32 %v947, 0.70710677
        %v1263 = vmul.f32 %v596, 0.70710677
        %v1264 = vmul.f32 %v598, 0.70710677
        %v1265 = vmul.f32 %v949, 0.70710677
        %v1266 = vmul.f32 %v951, 0.70710677
        %v1267 = vmul.f32 %v602, 0.70710677
        %v1268 = vmul.f32 %v604, 0.70710677
        %v1269 = vmul.f32 %v955, 0.70710677
        %v1270 = vmul.f32 %v957, 0.70710677
        %v1271 = vmul.f32 %v606, 0.70710677
        %v1272 = vmul.f32 %v608, 0.70710677
        %v1273 = vmul.f32 %v959, 0.70710677
        %v1274 = vmul.f32 %v961, 0.70710677
        %v1275 = vmul.f32 %v612, 0.70710677
        %v1276 = vmul.f32 %v614, 0.70710677
        %v1277 = vmul.f32 %v965, 0.70710677
        %v1278 = vmul.f32 %v967, 0.70710677
        %v1279 = vmul.f32 %v616, 0.70710677
        %v1280 = vmul.f32 %v618, 0.70710677
        %v1281 = vmul.f32 %v969, 0.70710677
        %v1282 = vmul.f32 %v971, 0.70710677
        %v1283 = vmul.f32 %v622, 0.70710677
        %v1284 = vmul.f32 %v624, 0.70710677
        %v1285 = vmul.f32 %v975, 0.70710677
        %v1286 = vmul.f32 %v977, 0.70710677
        %v1287 = vmul.f32 %v626, 0.70710677
        %v1288 = vmul.f32 %v628, 0.70710677
        %v1289 = vmul.f32 %v979, 0.70710677
        %v1290 = vmul.f32 %v981, 0.70710677
        %v1291 = vmul.f32 %v632, 0.70710677
        %v1292 = vmul.f32 %v634, 0.70710677
        %v1293 = vmul.f32 %v985, 0.70710677
        %v1294 = vmul.f32 %v987, 0.70710677
        %v1295 = vmul.f32 %v636, 0.70710677
        %v1296 = vmul.f32 %v638, 0.70710677
        %v1297 = vmul.f32 %v989, 0.70710677
        %v1298 = vmul.f32 %v991, 0.70710677
        %v1299 = vmul.f32 %v642, 0.70710677
        %v1300 = vmul.f32 %v644, 0.70710677
        %v1301 = vmul.f32 %v995, 0.70710677
        %v1302 = vmul.f32 %v997, 0.70710677
        %v1303 = vmul.f32 %v646, 0.70710677
        %v1304 = vmul.f32 %v648, 0.70710677
        %v1305 = vmul.f32 %v999, 0.70710677
        %v1306 = vmul.f32 %v1001, 0.70710677
        %v1307 = vmul.f32 %v652, 0.70710677
        %v1308 = vmul.f32 %v654, 0.70710677
        %v1309 = vmul.f32 %v1005, 0.70710677
        %v1310 = vmul.f32 %v1007, 0.70710677
        %v1311 = vmul.f32 %v656, 0.70710677
        %v1312 = vmul.f32 %v658, 0.70710677
        %v1313 = vmul.f32 %v1009, 0.70710677
        %v1314 = vmul.f32 %v1011, 0.70710677
        %v1315 = vmul.f32 %v662, 0.70710677
        %v1316 = vmul.f32 %v664, 0.70710677
        %v1317 = vmul.f32 %v1015, 0.70710677
        %v1318 = vmul.f32 %v1017, 0.70710677
        %v1319 = vmul.f32 %v666, 0.70710677
        %v1320 = vmul.f32 %v668, 0.70710677
        %v1321 = vmul.f32 %v1019, 0.70710677
        %v1322 = vmul.f32 %v1021, 0.70710677
        %v1323 = vmul.f32 %v672, 0.70710677
        %v1324 = vmul.f32 %v674, 0.70710677
        %v1325 = vmul.f32 %v1025, 0.70710677
        %v1326 = vmul.f32 %v1027, 0.70710677
        %v1327 = vmul.f32 %v676, 0.70710677
        %v1328 = vmul.f32 %v678, 0.70710677
        %v1329 = vmul.f32 %v1029, 0.70710677
        %v1330 = vmul.f32 %v1031, 0.70710677
        %v1331 = vmul.f32 %v682, 0.70710677
        %v1332 = vmul.f32 %v684, 0.70710677
        %v1333 = vmul.f32 %v1035, 0.70710677
        %v1334 = vmul.f32 %v1037, 0.70710677
        %v1335 = vmul.f32 %v686, 0.70710677
        %v1336 = vmul.f32 %v688, 0.70710677
        %v1337 = vmul.f32 %v1039, 0.70710677
        %v1338 = vmul.f32 %v1041, 0.70710677
        %v1339 = vmul.f32 %v692, 0.70710677
        %v1340 = vmul.f32 %v694, 0.70710677
        %v1341 = vmul.f32 %v1045, 0.70710677
        %v1342 = vmul.f32 %v1047, 0.70710677
        %v1343 = vmul.f32 %v696, 0.70710677
        %v1344 = vmul.f32 %v698, 0.70710677
        %v1345 = vmul.f32 %v1049, 0.70710677
        %v1346 = vmul.f32 %v1051, 0.70710677
        %v1347 = vmul.f32 %v702, 0.70710677
        %v1348 = vmul.f32 %v704, 0.70710677
        %v1349 = vmul.f32 %v1055, 0.70710677
        %v1350 = vmul.f32 %v1057, 0.70710677
        %v1351 = vmul.f32 %v706, 0.70710677
        %v1352 = vmul.f32 %v708, 0.70710677
        %v1353 = vmul.f32 %v1059, 0.70710677
        %v1354 = vmul.f32 %v1061, 0.70710677
        %v1355 = vmul.f32 %v712, 0.70710677
        %v1356 = vmul.f32 %v714, 0.70710677
        %v1357 = vmul.f32 %v1065, 0.70710677
        %v1358 = vmul.f32 %v1067, 0.70710677
        %v1359 = vmul.f32 %v716, 0.70710677
        %v1360 = vmul.f32 %v718, 0.70710677
        %v1361 = vmul.f32 %v1069, 0.70710677
        %v1362 = vmul.f32 %v1071, 0.70710677
        %v1363 = vmul.f32 %v722, 0.70710677
        %v1364 = vmul.f32 %v724, 0.70710677
        %v1365 = vmul.f32 %v1075, 0.70710677
        %v1366 = vmul.f32 %v1077, 0.70710677
        %v1367 = vmul.f32 %v726, 0.70710677
        %v1368 = vmul.f32 %v728, 0.70710677
        %v1369 = vmul.f32 %v1079, 0.70710677
        %v1370 = vmul.f32 %v1081, 0.70710677
        %v1371 = vmul.f32 %v732, 0.70710677
        %v1372 = vmul.f32 %v734, 0.70710677
        %v1373 = vmul.f32 %v1085, 0.70710677
        %v1374 = vmul.f32 %v1087, 0.70710677
        %v1375 = vmul.f32 %v736, 0.70710677
        %v1376 = vmul.f32 %v738, 0.70710677
        %v1377 = vmul.f32 %v1089, 0.70710677
        %v1378 = vmul.f32 %v1091, 0.70710677
        %v1379 = vmul.f32 %v742, 0.70710677
        %v1380 = vmul.f32 %v744, 0.70710677
        %v1381 = vmul.f32 %v1095, 0.70710677
        %v1382 = vmul.f32 %v1097, 0.70710677
        %v1383 = vmul.f32 %v746, 0.70710677
        %v1384 = vmul.f32 %v748, 0.70710677
        %v1385 = vmul.f32 %v1099, 0.70710677
        %v1386 = vmul.f32 %v1101, 0.70710677
        %v1387 = vmul.f32 %v752, 0.70710677
        %v1388 = vmul.f32 %v754, 0.70710677
        %v1389 = vmul.f32 %v1105, 0.70710677
        %v1390 = vmul.f32 %v1107, 0.70710677
        %v1391 = vmul.f32 %v756, 0.70710677
        %v1392 = vmul.f32 %v758, 0.70710677
        %v1393 = vmul.f32 %v1109, 0.70710677
        %v1394 = vmul.f32 %v1111, 0.70710677
        %v1395 = vmul.f32 %v762, 0.70710677
        %v1396 = vmul.f32 %v764, 0.70710677
        %v1397 = vmul.f32 %v1115, 0.70710677
        %v1398 = vmul.f32 %v1117, 0.70710677
        %v1399 = vmul.f32 %v766, 0.70710677
        %v1400 = vmul.f32 %v768, 0.70710677
        %v1401 = vmul.f32 %v1119, 0.70710677
        %v1402 = vmul.f32 %v1121, 0.70710677
        %v1403 = vmul.f32 %v772, 0.70710677
        %v1404 = vmul.f32 %v774, 0.70710677
        %v1405 = vmul.f32 %v1125, 0.70710677
        %v1406 = vmul.f32 %v1127, 0.70710677
        %v1407 = vmul.f32 %v776, 0.70710677
        %v1408 = vmul.f32 %v778, 0.70710677
        %v1409 = vmul.f32 %v1129, 0.70710677
        %v1410 = vmul.f32 %v1131, 0.70710677
        %v1411 = vmul.f32 %v782, 0.70710677
        %v1412 = vmul.f32 %v784, 0.70710677
        %v1413 = vmul.f32 %v1135, 0.70710677
        %v1414 = vmul.f32 %v1137, 0.70710677
        %v1415 = vmul.f32 %v786, 0.70710677
        %v1416 = vmul.f32 %v788, 0.70710677
        %v1417 = vmul.f32 %v1139, 0.70710677
        %v1418 = vmul.f32 %v1141, 0.70710677
        %v1419 = vmul.f32 %v792, 0.70710677
        %v1420 = vmul.f32 %v794, 0.70710677
        %v1421 = vmul.f32 %v1145, 0.70710677
        %v1422 = vmul.f32 %v1147, 0.70710677
        %v1423 = vmul.f32 %v796, 0.70710677
        %v1424 = vmul.f32 %v798, 0.70710677
        %v1425 = vmul.f32 %v1149, 0.70710677
        %v1426 = vmul.f32 %v1151, 0.70710677
        %v1427 = vmul.f32 %v802, 0.70710677
        %v1428 = vmul.f32 %v804, 0.70710677
        %v1429 = vmul.f32 %v1155, 0.70710677
        %v1430 = vmul.f32 %v1157, 0.70710677
        %v1431 = vmul.f32 %v806, 0.70710677
        %v1432 = vmul.f32 %v808, 0.70710677
        %v1433 = vmul.f32 %v1159, 0.70710677
        %v1434 = vmul.f32 %v1161, 0.70710677
        %v1435 = vmul.f32 %v812, 0.70710677
        %v1436 = vmul.f32 %v814, 0.70710677
        %v1437 = vmul.f32 %v1165, 0.70710677
        %v1438 = vmul.f32 %v1167, 0.70710677
        %v1439 = vmul.f32 %v816, 0.70710677
        %v1440 = vmul.f32 %v818, 0.70710677
        %v1441 = vmul.f32 %v1169, 0.70710677
        %v1442 = vmul.f32 %v1171, 0.70710677
        %v1443 = vmul.f32 %v822, 0.70710677
        %v1444 = vmul.f32 %v824, 0.70710677
        %v1445 = vmul.f32 %v1175, 0.70710677
        %v1446 = vmul.f32 %v1177, 0.70710677
        %v1447 = vmul.f32 %v826, 0.70710677
        %v1448 = vmul.f32 %v828, 0.70710677
        %v1449 = vmul.f32 %v1179, 0.70710677
        %v1450 = vmul.f32 %v1181, 0.70710677
        %v1451 = vmul.f32 %v832, 0.70710677
        %v1452 = vmul.f32 %v834, 0.70710677
        %v1453 = vmul.f32 %v1185, 0.70710677
        %v1454 = vmul.f32 %v1187, 0.70710677
        %v1455 = vmul.f32 %v836, 0.70710677
        %v1456 = vmul.f32 %v838, 0.70710677
        %v1457 = vmul.f32 %v1189, 0.70710677
        %v1458 = vmul.f32 %v1191, 0.70710677
        %v1459 = vmul.f32 %v842, 0.70710677
        %v1460 = vmul.f32 %v844, 0.70710677
        %v1461 = vmul.f32 %v1195, 0.70710677
        %v1462 = vmul.f32 %v1197, 0.70710677
        %v1463 = vmul.f32 %v846, 0.70710677
        %v1464 = vmul.f32 %v848, 0.70710677
        %v1465 = vmul.f32 %v1199, 0.70710677
        %v1466 = vmul.f32 %v1201, 0.70710677
        %v1467 = vmul.f32 %v852, 0.70710677
        %v1468 = vmul.f32 %v854, 0.70710677
        %v1469 = vmul.f32 %v1205, 0.70710677
        %v1470 = vmul.f32 %v1207, 0.70710677
        %v1471 = vmul.f32 %v856, 0.70710677
        %v1472 = vmul.f32 %v858, 0.70710677
        %v1473 = vmul.f32 %v1209, 0.70710677
        %v1474 = vmul.f32 %v1211, 0.70710677
        %v1475 = vmul.f32 %v862, 0.70710677
        %v1476 = vmul.f32 %v864, 0.70710677
        %v1477 = vmul.f32 %v1215, 0.70710677
        %v1478 = vmul.f32 %v1217, 0.70710677
        %v1479 = vmul.f32 %v866, 0.70710677
        %v1480 = vmul.f32 %v868, 0.70710677
        %v1481 = vmul.f32 %v1219, 0.70710677
        %v1482 = vmul.f32 %v1221, 0.70710677
        %v1483 = vmul.f32 %v872, 0.70710677
        %v1484 = vmul.f32 %v874, 0.70710677
        %v1485 = vmul.f32 %v1225, 0.70710677
        %v1486 = vmul.f32 %v1227, 0.70710677
        %v1487 = vmul.f32 %v876, 0.70710677
        %v1488 = vmul.f32 %v878, 0.70710677
        %v1489 = vmul.f32 %v1229, 0.70710677
        %v1490 = vmul.f32 %v1231, 0.70710677
        %v1491 = vmul.f32 %v882, 0.70710677
        %v1492 = vmul.f32 %v884, 0.70710677
        %v1493 = vmul.f32 %v1235, 0.70710677
        %v1494 = vmul.f32 %v1237, 0.70710677
        %v1495 = vmul.f32 %v886, 0.70710677
        %v1496 = vmul.f32 %v888, 0.70710677
        %v1497 = vmul.f32 %v1239, 0.70710677
        %v1498 = vmul.f32 %v1241, 0.70710677
        %vm1499 = vcmp.ge.f32.partialorder %v1243, 0.0
        %vm1500 = vcmp.ge.f32.partialorder %v1244, 0.0
        %vm1501 = vcmp.ge.f32.partialorder %v1245, 0.0
        %vm1502 = vcmp.ge.f32.partialorder %v1246, 0.0
        %vm1503 = vcmp.ge.f32.partialorder %v1247, 0.0
        %vm1504 = vcmp.ge.f32.partialorder %v1248, 0.0
        %vm1505 = vcmp.ge.f32.partialorder %v1249, 0.0
        %vm1506 = vcmp.ge.f32.partialorder %v1250, 0.0
        %vm1507 = vcmp.ge.f32.partialorder %v1251, 0.0
        %vm1508 = vcmp.ge.f32.partialorder %v1252, 0.0
        %vm1509 = vcmp.ge.f32.partialorder %v1253, 0.0
        %vm1510 = vcmp.ge.f32.partialorder %v1254, 0.0
        %vm1511 = vcmp.ge.f32.partialorder %v1255, 0.0
        %vm1512 = vcmp.ge.f32.partialorder %v1256, 0.0
        %vm1513 = vcmp.ge.f32.partialorder %v1257, 0.0
        %vm1514 = vcmp.ge.f32.partialorder %v1258, 0.0
        %vm1515 = vcmp.ge.f32.partialorder %v1259, 0.0
        %vm1516 = vcmp.ge.f32.partialorder %v1260, 0.0
        %vm1517 = vcmp.ge.f32.partialorder %v1261, 0.0
        %vm1518 = vcmp.ge.f32.partialorder %v1262, 0.0
        %vm1519 = vcmp.ge.f32.partialorder %v1263, 0.0
        %vm1520 = vcmp.ge.f32.partialorder %v1264, 0.0
        %vm1521 = vcmp.ge.f32.partialorder %v1265, 0.0
        %vm1522 = vcmp.ge.f32.partialorder %v1266, 0.0
        %vm1523 = vcmp.ge.f32.partialorder %v1267, 0.0
        %vm1524 = vcmp.ge.f32.partialorder %v1268, 0.0
        %vm1525 = vcmp.ge.f32.partialorder %v1269, 0.0
        %vm1526 = vcmp.ge.f32.partialorder %v1270, 0.0
        %vm1527 = vcmp.ge.f32.partialorder %v1271, 0.0
        %vm1528 = vcmp.ge.f32.partialorder %v1272, 0.0
        %vm1529 = vcmp.ge.f32.partialorder %v1273, 0.0
        %vm1530 = vcmp.ge.f32.partialorder %v1274, 0.0
        %vm1531 = vcmp.ge.f32.partialorder %v1275, 0.0
        %vm1532 = vcmp.ge.f32.partialorder %v1276, 0.0
        %vm1533 = vcmp.ge.f32.partialorder %v1277, 0.0
        %vm1534 = vcmp.ge.f32.partialorder %v1278, 0.0
        %vm1535 = vcmp.ge.f32.partialorder %v1279, 0.0
        %vm1536 = vcmp.ge.f32.partialorder %v1280, 0.0
        %vm1537 = vcmp.ge.f32.partialorder %v1281, 0.0
        %vm1538 = vcmp.ge.f32.partialorder %v1282, 0.0
        %vm1539 = vcmp.ge.f32.partialorder %v1283, 0.0
        %vm1540 = vcmp.ge.f32.partialorder %v1284, 0.0
        %vm1541 = vcmp.ge.f32.partialorder %v1285, 0.0
        %vm1542 = vcmp.ge.f32.partialorder %v1286, 0.0
        %vm1543 = vcmp.ge.f32.partialorder %v1287, 0.0
        %vm1544 = vcmp.ge.f32.partialorder %v1288, 0.0
        %vm1545 = vcmp.ge.f32.partialorder %v1289, 0.0
        %vm1546 = vcmp.ge.f32.partialorder %v1290, 0.0
        %vm1547 = vcmp.ge.f32.partialorder %v1291, 0.0
        %vm1548 = vcmp.ge.f32.partialorder %v1292, 0.0
        %vm1549 = vcmp.ge.f32.partialorder %v1293, 0.0
        %vm1550 = vcmp.ge.f32.partialorder %v1294, 0.0
        %vm1551 = vcmp.ge.f32.partialorder %v1295, 0.0
        %vm1552 = vcmp.ge.f32.partialorder %v1296, 0.0
        %vm1553 = vcmp.ge.f32.partialorder %v1297, 0.0
        %vm1554 = vcmp.ge.f32.partialorder %v1298, 0.0
        %vm1555 = vcmp.ge.f32.partialorder %v1299, 0.0
        %vm1556 = vcmp.ge.f32.partialorder %v1300, 0.0
        %vm1557 = vcmp.ge.f32.partialorder %v1301, 0.0
        %vm1558 = vcmp.ge.f32.partialorder %v1302, 0.0
        %vm1559 = vcmp.ge.f32.partialorder %v1303, 0.0
        %vm1560 = vcmp.ge.f32.partialorder %v1304, 0.0
        %vm1561 = vcmp.ge.f32.partialorder %v1305, 0.0
        %vm1562 = vcmp.ge.f32.partialorder %v1306, 0.0
        %vm1563 = vcmp.ge.f32.partialorder %v1307, 0.0
        %vm1564 = vcmp.ge.f32.partialorder %v1308, 0.0
        %vm1565 = vcmp.ge.f32.partialorder %v1309, 0.0
        %vm1566 = vcmp.ge.f32.partialorder %v1310, 0.0
        %vm1567 = vcmp.ge.f32.partialorder %v1311, 0.0
        %vm1568 = vcmp.ge.f32.partialorder %v1312, 0.0
        %vm1569 = vcmp.ge.f32.partialorder %v1313, 0.0
        %vm1570 = vcmp.ge.f32.partialorder %v1314, 0.0
        %vm1571 = vcmp.ge.f32.partialorder %v1315, 0.0
        %vm1572 = vcmp.ge.f32.partialorder %v1316, 0.0
        %vm1573 = vcmp.ge.f32.partialorder %v1317, 0.0
        %vm1574 = vcmp.ge.f32.partialorder %v1318, 0.0
        %vm1575 = vcmp.ge.f32.partialorder %v1319, 0.0
        %vm1576 = vcmp.ge.f32.partialorder %v1320, 0.0
        %vm1577 = vcmp.ge.f32.partialorder %v1321, 0.0
        %vm1578 = vcmp.ge.f32.partialorder %v1322, 0.0
        %vm1579 = vcmp.ge.f32.partialorder %v1323, 0.0
        %vm1580 = vcmp.ge.f32.partialorder %v1324, 0.0
        %vm1581 = vcmp.ge.f32.partialorder %v1325, 0.0
        %vm1582 = vcmp.ge.f32.partialorder %v1326, 0.0
        %vm1583 = vcmp.ge.f32.partialorder %v1327, 0.0
        %vm1584 = vcmp.ge.f32.partialorder %v1328, 0.0
        %vm1585 = vcmp.ge.f32.partialorder %v1329, 0.0
        %vm1586 = vcmp.ge.f32.partialorder %v1330, 0.0
        %vm1587 = vcmp.ge.f32.partialorder %v1331, 0.0
        %vm1588 = vcmp.ge.f32.partialorder %v1332, 0.0
        %vm1589 = vcmp.ge.f32.partialorder %v1333, 0.0
        %vm1590 = vcmp.ge.f32.partialorder %v1334, 0.0
        %vm1591 = vcmp.ge.f32.partialorder %v1335, 0.0
        %vm1592 = vcmp.ge.f32.partialorder %v1336, 0.0
        %vm1593 = vcmp.ge.f32.partialorder %v1337, 0.0
        %vm1594 = vcmp.ge.f32.partialorder %v1338, 0.0
        %vm1595 = vcmp.ge.f32.partialorder %v1339, 0.0
        %vm1596 = vcmp.ge.f32.partialorder %v1340, 0.0
        %vm1597 = vcmp.ge.f32.partialorder %v1341, 0.0
        %vm1598 = vcmp.ge.f32.partialorder %v1342, 0.0
        %vm1599 = vcmp.ge.f32.partialorder %v1343, 0.0
        %vm1600 = vcmp.ge.f32.partialorder %v1344, 0.0
        %vm1601 = vcmp.ge.f32.partialorder %v1345, 0.0
        %vm1602 = vcmp.ge.f32.partialorder %v1346, 0.0
        %vm1603 = vcmp.ge.f32.partialorder %v1347, 0.0
        %vm1604 = vcmp.ge.f32.partialorder %v1348, 0.0
        %vm1605 = vcmp.ge.f32.partialorder %v1349, 0.0
        %vm1606 = vcmp.ge.f32.partialorder %v1350, 0.0
        %vm1607 = vcmp.ge.f32.partialorder %v1351, 0.0
        %vm1608 = vcmp.ge.f32.partialorder %v1352, 0.0
        %vm1609 = vcmp.ge.f32.partialorder %v1353, 0.0
        %vm1610 = vcmp.ge.f32.partialorder %v1354, 0.0
        %vm1611 = vcmp.ge.f32.partialorder %v1355, 0.0
        %vm1612 = vcmp.ge.f32.partialorder %v1356, 0.0
        %vm1613 = vcmp.ge.f32.partialorder %v1357, 0.0
        %vm1614 = vcmp.ge.f32.partialorder %v1358, 0.0
        %vm1615 = vcmp.ge.f32.partialorder %v1359, 0.0
        %vm1616 = vcmp.ge.f32.partialorder %v1360, 0.0
        %vm1617 = vcmp.ge.f32.partialorder %v1361, 0.0
        %vm1618 = vcmp.ge.f32.partialorder %v1362, 0.0
        %vm1619 = vcmp.ge.f32.partialorder %v1363, 0.0
        %vm1620 = vcmp.ge.f32.partialorder %v1364, 0.0
        %vm1621 = vcmp.ge.f32.partialorder %v1365, 0.0
        %vm1622 = vcmp.ge.f32.partialorder %v1366, 0.0
        %vm1623 = vcmp.ge.f32.partialorder %v1367, 0.0
        %vm1624 = vcmp.ge.f32.partialorder %v1368, 0.0
        %vm1625 = vcmp.ge.f32.partialorder %v1369, 0.0
        %vm1626 = vcmp.ge.f32.partialorder %v1370, 0.0
        %vm1627 = vcmp.ge.f32.partialorder %v1371, 0.0
        %vm1628 = vcmp.ge.f32.partialorder %v1372, 0.0
        %vm1629 = vcmp.ge.f32.partialorder %v1373, 0.0
        %vm1630 = vcmp.ge.f32.partialorder %v1374, 0.0
        %vm1631 = vcmp.ge.f32.partialorder %v1375, 0.0
        %vm1632 = vcmp.ge.f32.partialorder %v1376, 0.0
        %vm1633 = vcmp.ge.f32.partialorder %v1377, 0.0
        %vm1634 = vcmp.ge.f32.partialorder %v1378, 0.0
        %vm1635 = vcmp.ge.f32.partialorder %v1379, 0.0
        %vm1636 = vcmp.ge.f32.partialorder %v1380, 0.0
        %vm1637 = vcmp.ge.f32.partialorder %v1381, 0.0
        %vm1638 = vcmp.ge.f32.partialorder %v1382, 0.0
        %vm1639 = vcmp.ge.f32.partialorder %v1383, 0.0
        %vm1640 = vcmp.ge.f32.partialorder %v1384, 0.0
        %vm1641 = vcmp.ge.f32.partialorder %v1385, 0.0
        %vm1642 = vcmp.ge.f32.partialorder %v1386, 0.0
        %vm1643 = vcmp.ge.f32.partialorder %v1387, 0.0
        %vm1644 = vcmp.ge.f32.partialorder %v1388, 0.0
        %vm1645 = vcmp.ge.f32.partialorder %v1389, 0.0
        %vm1646 = vcmp.ge.f32.partialorder %v1390, 0.0
        %vm1647 = vcmp.ge.f32.partialorder %v1391, 0.0
        %vm1648 = vcmp.ge.f32.partialorder %v1392, 0.0
        %vm1649 = vcmp.ge.f32.partialorder %v1393, 0.0
        %vm1650 = vcmp.ge.f32.partialorder %v1394, 0.0
        %vm1651 = vcmp.ge.f32.partialorder %v1395, 0.0
        %vm1652 = vcmp.ge.f32.partialorder %v1396, 0.0
        %vm1653 = vcmp.ge.f32.partialorder %v1397, 0.0
        %vm1654 = vcmp.ge.f32.partialorder %v1398, 0.0
        %vm1655 = vcmp.ge.f32.partialorder %v1399, 0.0
        %vm1656 = vcmp.ge.f32.partialorder %v1400, 0.0
        %vm1657 = vcmp.ge.f32.partialorder %v1401, 0.0
        %vm1658 = vcmp.ge.f32.partialorder %v1402, 0.0
        %vm1659 = vcmp.ge.f32.partialorder %v1403, 0.0
        %vm1660 = vcmp.ge.f32.partialorder %v1404, 0.0
        %vm1661 = vcmp.ge.f32.partialorder %v1405, 0.0
        %vm1662 = vcmp.ge.f32.partialorder %v1406, 0.0
        %vm1663 = vcmp.ge.f32.partialorder %v1407, 0.0
        %vm1664 = vcmp.ge.f32.partialorder %v1408, 0.0
        %vm1665 = vcmp.ge.f32.partialorder %v1409, 0.0
        %vm1666 = vcmp.ge.f32.partialorder %v1410, 0.0
        %vm1667 = vcmp.ge.f32.partialorder %v1411, 0.0
        %vm1668 = vcmp.ge.f32.partialorder %v1412, 0.0
        %vm1669 = vcmp.ge.f32.partialorder %v1413, 0.0
        %vm1670 = vcmp.ge.f32.partialorder %v1414, 0.0
        %vm1671 = vcmp.ge.f32.partialorder %v1415, 0.0
        %vm1672 = vcmp.ge.f32.partialorder %v1416, 0.0
        %vm1673 = vcmp.ge.f32.partialorder %v1417, 0.0
        %vm1674 = vcmp.ge.f32.partialorder %v1418, 0.0
        %vm1675 = vcmp.ge.f32.partialorder %v1419, 0.0
        %vm1676 = vcmp.ge.f32.partialorder %v1420, 0.0
        %vm1677 = vcmp.ge.f32.partialorder %v1421, 0.0
        %vm1678 = vcmp.ge.f32.partialorder %v1422, 0.0
        %vm1679 = vcmp.ge.f32.partialorder %v1423, 0.0
        %vm1680 = vcmp.ge.f32.partialorder %v1424, 0.0
        %vm1681 = vcmp.ge.f32.partialorder %v1425, 0.0
        %vm1682 = vcmp.ge.f32.partialorder %v1426, 0.0
        %vm1683 = vcmp.ge.f32.partialorder %v1427, 0.0
        %vm1684 = vcmp.ge.f32.partialorder %v1428, 0.0
        %vm1685 = vcmp.ge.f32.partialorder %v1429, 0.0
        %vm1686 = vcmp.ge.f32.partialorder %v1430, 0.0
        %vm1687 = vcmp.ge.f32.partialorder %v1431, 0.0
        %vm1688 = vcmp.ge.f32.partialorder %v1432, 0.0
        %vm1689 = vcmp.ge.f32.partialorder %v1433, 0.0
        %vm1690 = vcmp.ge.f32.partialorder %v1434, 0.0
        %vm1691 = vcmp.ge.f32.partialorder %v1435, 0.0
        %vm1692 = vcmp.ge.f32.partialorder %v1436, 0.0
        %vm1693 = vcmp.ge.f32.partialorder %v1437, 0.0
        %vm1694 = vcmp.ge.f32.partialorder %v1438, 0.0
        %vm1695 = vcmp.ge.f32.partialorder %v1439, 0.0
        %vm1696 = vcmp.ge.f32.partialorder %v1440, 0.0
        %vm1697 = vcmp.ge.f32.partialorder %v1441, 0.0
        %vm1698 = vcmp.ge.f32.partialorder %v1442, 0.0
        %vm1699 = vcmp.ge.f32.partialorder %v1443, 0.0
        %vm1700 = vcmp.ge.f32.partialorder %v1444, 0.0
        %vm1701 = vcmp.ge.f32.partialorder %v1445, 0.0
        %vm1702 = vcmp.ge.f32.partialorder %v1446, 0.0
        %vm1703 = vcmp.ge.f32.partialorder %v1447, 0.0
        %vm1704 = vcmp.ge.f32.partialorder %v1448, 0.0
        %vm1705 = vcmp.ge.f32.partialorder %v1449, 0.0
        %vm1706 = vcmp.ge.f32.partialorder %v1450, 0.0
        %vm1707 = vcmp.ge.f32.partialorder %v1451, 0.0
        %vm1708 = vcmp.ge.f32.partialorder %v1452, 0.0
        %vm1709 = vcmp.ge.f32.partialorder %v1453, 0.0
        %vm1710 = vcmp.ge.f32.partialorder %v1454, 0.0
        %vm1711 = vcmp.ge.f32.partialorder %v1455, 0.0
        %vm1712 = vcmp.ge.f32.partialorder %v1456, 0.0
        %vm1713 = vcmp.ge.f32.partialorder %v1457, 0.0
        %vm1714 = vcmp.ge.f32.partialorder %v1458, 0.0
        %vm1715 = vcmp.ge.f32.partialorder %v1459, 0.0
        %vm1716 = vcmp.ge.f32.partialorder %v1460, 0.0
        %vm1717 = vcmp.ge.f32.partialorder %v1461, 0.0
        %vm1718 = vcmp.ge.f32.partialorder %v1462, 0.0
        %vm1719 = vcmp.ge.f32.partialorder %v1463, 0.0
        %vm1720 = vcmp.ge.f32.partialorder %v1464, 0.0
        %vm1721 = vcmp.ge.f32.partialorder %v1465, 0.0
        %vm1722 = vcmp.ge.f32.partialorder %v1466, 0.0
        %vm1723 = vcmp.ge.f32.partialorder %v1467, 0.0
        %vm1724 = vcmp.ge.f32.partialorder %v1468, 0.0
        %vm1725 = vcmp.ge.f32.partialorder %v1469, 0.0
        %vm1726 = vcmp.ge.f32.partialorder %v1470, 0.0
        %vm1727 = vcmp.ge.f32.partialorder %v1471, 0.0
        %vm1728 = vcmp.ge.f32.partialorder %v1472, 0.0
        %vm1729 = vcmp.ge.f32.partialorder %v1473, 0.0
        %vm1730 = vcmp.ge.f32.partialorder %v1474, 0.0
        %vm1731 = vcmp.ge.f32.partialorder %v1475, 0.0
        %vm1732 = vcmp.ge.f32.partialorder %v1476, 0.0
        %vm1733 = vcmp.ge.f32.partialorder %v1477, 0.0
        %vm1734 = vcmp.ge.f32.partialorder %v1478, 0.0
        %vm1735 = vcmp.ge.f32.partialorder %v1479, 0.0
        %vm1736 = vcmp.ge.f32.partialorder %v1480, 0.0
        %vm1737 = vcmp.ge.f32.partialorder %v1481, 0.0
        %vm1738 = vcmp.ge.f32.partialorder %v1482, 0.0
        %vm1739 = vcmp.ge.f32.partialorder %v1483, 0.0
        %vm1740 = vcmp.ge.f32.partialorder %v1484, 0.0
        %vm1741 = vcmp.ge.f32.partialorder %v1485, 0.0
        %vm1742 = vcmp.ge.f32.partialorder %v1486, 0.0
        %vm1743 = vcmp.ge.f32.partialorder %v1487, 0.0
        %vm1744 = vcmp.ge.f32.partialorder %v1488, 0.0
        %vm1745 = vcmp.ge.f32.partialorder %v1489, 0.0
        %vm1746 = vcmp.ge.f32.partialorder %v1490, 0.0
        %vm1747 = vcmp.ge.f32.partialorder %v1491, 0.0
        %vm1748 = vcmp.ge.f32.partialorder %v1492, 0.0
        %vm1749 = vcmp.ge.f32.partialorder %v1493, 0.0
        %vm1750 = vcmp.ge.f32.partialorder %v1494, 0.0
        %vm1751 = vcmp.ge.f32.partialorder %v1495, 0.0
        %vm1752 = vcmp.ge.f32.partialorder %v1496, 0.0
        %vm1753 = vcmp.ge.f32.partialorder %v1497, 0.0
        %vm1754 = vcmp.ge.f32.partialorder %v1498, 0.0
        %v1755 = vsel %vm1499, 1.0, -1.0
        %v1756 = vsel %vm1500, 1.0, -1.0
        %v1757 = vsel %vm1501, 1.0, -1.0
        %v1758 = vsel %vm1502, 1.0, -1.0
        %v1759 = vsel %vm1503, 1.0, -1.0
        %v1760 = vsel %vm1504, 1.0, -1.0
        %v1761 = vsel %vm1505, 1.0, -1.0
        %v1762 = vsel %vm1506, 1.0, -1.0
        %v1763 = vsel %vm1507, 1.0, -1.0
        %v1764 = vsel %vm1508, 1.0, -1.0
        %v1765 = vsel %vm1509, 1.0, -1.0
        %v1766 = vsel %vm1510, 1.0, -1.0
        %v1767 = vsel %vm1511, 1.0, -1.0
        %v1768 = vsel %vm1512, 1.0, -1.0
        %v1769 = vsel %vm1513, 1.0, -1.0
        %v1770 = vsel %vm1514, 1.0, -1.0
        %v1771 = vsel %vm1515, 1.0, -1.0
        %v1772 = vsel %vm1516, 1.0, -1.0
        %v1773 = vsel %vm1517, 1.0, -1.0
        %v1774 = vsel %vm1518, 1.0, -1.0
        %v1775 = vsel %vm1519, 1.0, -1.0
        %v1776 = vsel %vm1520, 1.0, -1.0
        %v1777 = vsel %vm1521, 1.0, -1.0
        %v1778 = vsel %vm1522, 1.0, -1.0
        %v1779 = vsel %vm1523, 1.0, -1.0
        %v1780 = vsel %vm1524, 1.0, -1.0
        %v1781 = vsel %vm1525, 1.0, -1.0
        %v1782 = vsel %vm1526, 1.0, -1.0
        %v1783 = vsel %vm1527, 1.0, -1.0
        %v1784 = vsel %vm1528, 1.0, -1.0
        %v1785 = vsel %vm1529, 1.0, -1.0
        %v1786 = vsel %vm1530, 1.0, -1.0
        %v1787 = vsel %vm1531, 1.0, -1.0
        %v1788 = vsel %vm1532, 1.0, -1.0
        %v1789 = vsel %vm1533, 1.0, -1.0
        %v1790 = vsel %vm1534, 1.0, -1.0
        %v1791 = vsel %vm1535, 1.0, -1.0
        %v1792 = vsel %vm1536, 1.0, -1.0
        %v1793 = vsel %vm1537, 1.0, -1.0
        %v1794 = vsel %vm1538, 1.0, -1.0
        %v1795 = vsel %vm1539, 1.0, -1.0
        %v1796 = vsel %vm1540, 1.0, -1.0
        %v1797 = vsel %vm1541, 1.0, -1.0
        %v1798 = vsel %vm1542, 1.0, -1.0
        %v1799 = vsel %vm1543, 1.0, -1.0
        %v1800 = vsel %vm1544, 1.0, -1.0
        %v1801 = vsel %vm1545, 1.0, -1.0
        %v1802 = vsel %vm1546, 1.0, -1.0
        %v1803 = vsel %vm1547, 1.0, -1.0
        %v1804 = vsel %vm1548, 1.0, -1.0
        %v1805 = vsel %vm1549, 1.0, -1.0
        %v1806 = vsel %vm1550, 1.0, -1.0
        %v1807 = vsel %vm1551, 1.0, -1.0
        %v1808 = vsel %vm1552, 1.0, -1.0
        %v1809 = vsel %vm1553, 1.0, -1.0
        %v1810 = vsel %vm1554, 1.0, -1.0
        %v1811 = vsel %vm1555, 1.0, -1.0
        %v1812 = vsel %vm1556, 1.0, -1.0
        %v1813 = vsel %vm1557, 1.0, -1.0
        %v1814 = vsel %vm1558, 1.0, -1.0
        %v1815 = vsel %vm1559, 1.0, -1.0
        %v1816 = vsel %vm1560, 1.0, -1.0
        %v1817 = vsel %vm1561, 1.0, -1.0
        %v1818 = vsel %vm1562, 1.0, -1.0
        %v1819 = vsel %vm1563, 1.0, -1.0
        %v1820 = vsel %vm1564, 1.0, -1.0
        %v1821 = vsel %vm1565, 1.0, -1.0
        %v1822 = vsel %vm1566, 1.0, -1.0
        %v1823 = vsel %vm1567, 1.0, -1.0
        %v1824 = vsel %vm1568, 1.0, -1.0
        %v1825 = vsel %vm1569, 1.0, -1.0
        %v1826 = vsel %vm1570, 1.0, -1.0
        %v1827 = vsel %vm1571, 1.0, -1.0
        %v1828 = vsel %vm1572, 1.0, -1.0
        %v1829 = vsel %vm1573, 1.0, -1.0
        %v1830 = vsel %vm1574, 1.0, -1.0
        %v1831 = vsel %vm1575, 1.0, -1.0
        %v1832 = vsel %vm1576, 1.0, -1.0
        %v1833 = vsel %vm1577, 1.0, -1.0
        %v1834 = vsel %vm1578, 1.0, -1.0
        %v1835 = vsel %vm1579, 1.0, -1.0
        %v1836 = vsel %vm1580, 1.0, -1.0
        %v1837 = vsel %vm1581, 1.0, -1.0
        %v1838 = vsel %vm1582, 1.0, -1.0
        %v1839 = vsel %vm1583, 1.0, -1.0
        %v1840 = vsel %vm1584, 1.0, -1.0
        %v1841 = vsel %vm1585, 1.0, -1.0
        %v1842 = vsel %vm1586, 1.0, -1.0
        %v1843 = vsel %vm1587, 1.0, -1.0
        %v1844 = vsel %vm1588, 1.0, -1.0
        %v1845 = vsel %vm1589, 1.0, -1.0
        %v1846 = vsel %vm1590, 1.0, -1.0
        %v1847 = vsel %vm1591, 1.0, -1.0
        %v1848 = vsel %vm1592, 1.0, -1.0
        %v1849 = vsel %vm1593, 1.0, -1.0
        %v1850 = vsel %vm1594, 1.0, -1.0
        %v1851 = vsel %vm1595, 1.0, -1.0
        %v1852 = vsel %vm1596, 1.0, -1.0
        %v1853 = vsel %vm1597, 1.0, -1.0
        %v1854 = vsel %vm1598, 1.0, -1.0
        %v1855 = vsel %vm1599, 1.0, -1.0
        %v1856 = vsel %vm1600, 1.0, -1.0
        %v1857 = vsel %vm1601, 1.0, -1.0
        %v1858 = vsel %vm1602, 1.0, -1.0
        %v1859 = vsel %vm1603, 1.0, -1.0
        %v1860 = vsel %vm1604, 1.0, -1.0
        %v1861 = vsel %vm1605, 1.0, -1.0
        %v1862 = vsel %vm1606, 1.0, -1.0
        %v1863 = vsel %vm1607, 1.0, -1.0
        %v1864 = vsel %vm1608, 1.0, -1.0
        %v1865 = vsel %vm1609, 1.0, -1.0
        %v1866 = vsel %vm1610, 1.0, -1.0
        %v1867 = vsel %vm1611, 1.0, -1.0
        %v1868 = vsel %vm1612, 1.0, -1.0
        %v1869 = vsel %vm1613, 1.0, -1.0
        %v1870 = vsel %vm1614, 1.0, -1.0
        %v1871 = vsel %vm1615, 1.0, -1.0
        %v1872 = vsel %vm1616, 1.0, -1.0
        %v1873 = vsel %vm1617, 1.0, -1.0
        %v1874 = vsel %vm1618, 1.0, -1.0
        %v1875 = vsel %vm1619, 1.0, -1.0
        %v1876 = vsel %vm1620, 1.0, -1.0
        %v1877 = vsel %vm1621, 1.0, -1.0
        %v1878 = vsel %vm1622, 1.0, -1.0
        %v1879 = vsel %vm1623, 1.0, -1.0
        %v1880 = vsel %vm1624, 1.0, -1.0
        %v1881 = vsel %vm1625, 1.0, -1.0
        %v1882 = vsel %vm1626, 1.0, -1.0
        %v1883 = vsel %vm1627, 1.0, -1.0
        %v1884 = vsel %vm1628, 1.0, -1.0
        %v1885 = vsel %vm1629, 1.0, -1.0
        %v1886 = vsel %vm1630, 1.0, -1.0
        %v1887 = vsel %vm1631, 1.0, -1.0
        %v1888 = vsel %vm1632, 1.0, -1.0
        %v1889 = vsel %vm1633, 1.0, -1.0
        %v1890 = vsel %vm1634, 1.0, -1.0
        %v1891 = vsel %vm1635, 1.0, -1.0
        %v1892 = vsel %vm1636, 1.0, -1.0
        %v1893 = vsel %vm1637, 1.0, -1.0
        %v1894 = vsel %vm1638, 1.0, -1.0
        %v1895 = vsel %vm1639, 1.0, -1.0
        %v1896 = vsel %vm1640, 1.0, -1.0
        %v1897 = vsel %vm1641, 1.0, -1.0
        %v1898 = vsel %vm1642, 1.0, -1.0
        %v1899 = vsel %vm1643, 1.0, -1.0
        %v1900 = vsel %vm1644, 1.0, -1.0
        %v1901 = vsel %vm1645, 1.0, -1.0
        %v1902 = vsel %vm1646, 1.0, -1.0
        %v1903 = vsel %vm1647, 1.0, -1.0
        %v1904 = vsel %vm1648, 1.0, -1.0
        %v1905 = vsel %vm1649, 1.0, -1.0
        %v1906 = vsel %vm1650, 1.0, -1.0
        %v1907 = vsel %vm1651, 1.0, -1.0
        %v1908 = vsel %vm1652, 1.0, -1.0
        %v1909 = vsel %vm1653, 1.0, -1.0
        %v1910 = vsel %vm1654, 1.0, -1.0
        %v1911 = vsel %vm1655, 1.0, -1.0
        %v1912 = vsel %vm1656, 1.0, -1.0
        %v1913 = vsel %vm1657, 1.0, -1.0
        %v1914 = vsel %vm1658, 1.0, -1.0
        %v1915 = vsel %vm1659, 1.0, -1.0
        %v1916 = vsel %vm1660, 1.0, -1.0
        %v1917 = vsel %vm1661, 1.0, -1.0
        %v1918 = vsel %vm1662, 1.0, -1.0
        %v1919 = vsel %vm1663, 1.0, -1.0
        %v1920 = vsel %vm1664, 1.0, -1.0
        %v1921 = vsel %vm1665, 1.0, -1.0
        %v1922 = vsel %vm1666, 1.0, -1.0
        %v1923 = vsel %vm1667, 1.0, -1.0
        %v1924 = vsel %vm1668, 1.0, -1.0
        %v1925 = vsel %vm1669, 1.0, -1.0
        %v1926 = vsel %vm1670, 1.0, -1.0
        %v1927 = vsel %vm1671, 1.0, -1.0
        %v1928 = vsel %vm1672, 1.0, -1.0
        %v1929 = vsel %vm1673, 1.0, -1.0
        %v1930 = vsel %vm1674, 1.0, -1.0
        %v1931 = vsel %vm1675, 1.0, -1.0
        %v1932 = vsel %vm1676, 1.0, -1.0
        %v1933 = vsel %vm1677, 1.0, -1.0
        %v1934 = vsel %vm1678, 1.0, -1.0
        %v1935 = vsel %vm1679, 1.0, -1.0
        %v1936 = vsel %vm1680, 1.0, -1.0
        %v1937 = vsel %vm1681, 1.0, -1.0
        %v1938 = vsel %vm1682, 1.0, -1.0
        %v1939 = vsel %vm1683, 1.0, -1.0
        %v1940 = vsel %vm1684, 1.0, -1.0
        %v1941 = vsel %vm1685, 1.0, -1.0
        %v1942 = vsel %vm1686, 1.0, -1.0
        %v1943 = vsel %vm1687, 1.0, -1.0
        %v1944 = vsel %vm1688, 1.0, -1.0
        %v1945 = vsel %vm1689, 1.0, -1.0
        %v1946 = vsel %vm1690, 1.0, -1.0
        %v1947 = vsel %vm1691, 1.0, -1.0
        %v1948 = vsel %vm1692, 1.0, -1.0
        %v1949 = vsel %vm1693, 1.0, -1.0
        %v1950 = vsel %vm1694, 1.0, -1.0
        %v1951 = vsel %vm1695, 1.0, -1.0
        %v1952 = vsel %vm1696, 1.0, -1.0
        %v1953 = vsel %vm1697, 1.0, -1.0
        %v1954 = vsel %vm1698, 1.0, -1.0
        %v1955 = vsel %vm1699, 1.0, -1.0
        %v1956 = vsel %vm1700, 1.0, -1.0
        %v1957 = vsel %vm1701, 1.0, -1.0
        %v1958 = vsel %vm1702, 1.0, -1.0
        %v1959 = vsel %vm1703, 1.0, -1.0
        %v1960 = vsel %vm1704, 1.0, -1.0
        %v1961 = vsel %vm1705, 1.0, -1.0
        %v1962 = vsel %vm1706, 1.0, -1.0
        %v1963 = vsel %vm1707, 1.0, -1.0
        %v1964 = vsel %vm1708, 1.0, -1.0
        %v1965 = vsel %vm1709, 1.0, -1.0
        %v1966 = vsel %vm1710, 1.0, -1.0
        %v1967 = vsel %vm1711, 1.0, -1.0
        %v1968 = vsel %vm1712, 1.0, -1.0
        %v1969 = vsel %vm1713, 1.0, -1.0
        %v1970 = vsel %vm1714, 1.0, -1.0
        %v1971 = vsel %vm1715, 1.0, -1.0
        %v1972 = vsel %vm1716, 1.0, -1.0
        %v1973 = vsel %vm1717, 1.0, -1.0
        %v1974 = vsel %vm1718, 1.0, -1.0
        %v1975 = vsel %vm1719, 1.0, -1.0
        %v1976 = vsel %vm1720, 1.0, -1.0
        %v1977 = vsel %vm1721, 1.0, -1.0
        %v1978 = vsel %vm1722, 1.0, -1.0
        %v1979 = vsel %vm1723, 1.0, -1.0
        %v1980 = vsel %vm1724, 1.0, -1.0
        %v1981 = vsel %vm1725, 1.0, -1.0
        %v1982 = vsel %vm1726, 1.0, -1.0
        %v1983 = vsel %vm1727, 1.0, -1.0
        %v1984 = vsel %vm1728, 1.0, -1.0
        %v1985 = vsel %vm1729, 1.0, -1.0
        %v1986 = vsel %vm1730, 1.0, -1.0
        %v1987 = vsel %vm1731, 1.0, -1.0
        %v1988 = vsel %vm1732, 1.0, -1.0
        %v1989 = vsel %vm1733, 1.0, -1.0
        %v1990 = vsel %vm1734, 1.0, -1.0
        %v1991 = vsel %vm1735, 1.0, -1.0
        %v1992 = vsel %vm1736, 1.0, -1.0
        %v1993 = vsel %vm1737, 1.0, -1.0
        %v1994 = vsel %vm1738, 1.0, -1.0
        %v1995 = vsel %vm1739, 1.0, -1.0
        %v1996 = vsel %vm1740, 1.0, -1.0
        %v1997 = vsel %vm1741, 1.0, -1.0
        %v1998 = vsel %vm1742, 1.0, -1.0
        %v1999 = vsel %vm1743, 1.0, -1.0
        %v2000 = vsel %vm1744, 1.0, -1.0
        %v2001 = vsel %vm1745, 1.0, -1.0
        %v2002 = vsel %vm1746, 1.0, -1.0
        %v2003 = vsel %vm1747, 1.0, -1.0
        %v2004 = vsel %vm1748, 1.0, -1.0
        %v2005 = vsel %vm1749, 1.0, -1.0
        %v2006 = vsel %vm1750, 1.0, -1.0
        %v2007 = vsel %vm1751, 1.0, -1.0
        %v2008 = vsel %vm1752, 1.0, -1.0
        %v2009 = vsel %vm1753, 1.0, -1.0
        %v2010 = vsel %vm1754, 1.0, -1.0
        %v2011 = vand.u32 2147483647, %v1243
        %v2012 = vand.u32 2147483647, %v1244
        %v2013 = vand.u32 2147483647, %v1245
        %v2014 = vand.u32 2147483647, %v1246
        %v2015 = vand.u32 2147483647, %v1247
        %v2016 = vand.u32 2147483647, %v1248
        %v2017 = vand.u32 2147483647, %v1249
        %v2018 = vand.u32 2147483647, %v1250
        %v2019 = vand.u32 2147483647, %v1251
        %v2020 = vand.u32 2147483647, %v1252
        %v2021 = vand.u32 2147483647, %v1253
        %v2022 = vand.u32 2147483647, %v1254
        %v2023 = vand.u32 2147483647, %v1255
        %v2024 = vand.u32 2147483647, %v1256
        %v2025 = vand.u32 2147483647, %v1257
        %v2026 = vand.u32 2147483647, %v1258
        %v2027 = vand.u32 2147483647, %v1259
        %v2028 = vand.u32 2147483647, %v1260
        %v2029 = vand.u32 2147483647, %v1261
        %v2030 = vand.u32 2147483647, %v1262
        %v2031 = vand.u32 2147483647, %v1263
        %v2032 = vand.u32 2147483647, %v1264
        %v2033 = vand.u32 2147483647, %v1265
        %v2034 = vand.u32 2147483647, %v1266
        %v2035 = vand.u32 2147483647, %v1267
        %v2036 = vand.u32 2147483647, %v1268
        %v2037 = vand.u32 2147483647, %v1269
        %v2038 = vand.u32 2147483647, %v1270
        %v2039 = vand.u32 2147483647, %v1271
        %v2040 = vand.u32 2147483647, %v1272
        %v2041 = vand.u32 2147483647, %v1273
        %v2042 = vand.u32 2147483647, %v1274
        %v2043 = vand.u32 2147483647, %v1275
        %v2044 = vand.u32 2147483647, %v1276
        %v2045 = vand.u32 2147483647, %v1277
        %v2046 = vand.u32 2147483647, %v1278
        %v2047 = vand.u32 2147483647, %v1279
        %v2048 = vand.u32 2147483647, %v1280
        %v2049 = vand.u32 2147483647, %v1281
        %v2050 = vand.u32 2147483647, %v1282
        %v2051 = vand.u32 2147483647, %v1283
        %v2052 = vand.u32 2147483647, %v1284
        %v2053 = vand.u32 2147483647, %v1285
        %v2054 = vand.u32 2147483647, %v1286
        %v2055 = vand.u32 2147483647, %v1287
        %v2056 = vand.u32 2147483647, %v1288
        %v2057 = vand.u32 2147483647, %v1289
        %v2058 = vand.u32 2147483647, %v1290
        %v2059 = vand.u32 2147483647, %v1291
        %v2060 = vand.u32 2147483647, %v1292
        %v2061 = vand.u32 2147483647, %v1293
        %v2062 = vand.u32 2147483647, %v1294
        %v2063 = vand.u32 2147483647, %v1295
        %v2064 = vand.u32 2147483647, %v1296
        %v2065 = vand.u32 2147483647, %v1297
        %v2066 = vand.u32 2147483647, %v1298
        %v2067 = vand.u32 2147483647, %v1299
        %v2068 = vand.u32 2147483647, %v1300
        %v2069 = vand.u32 2147483647, %v1301
        %v2070 = vand.u32 2147483647, %v1302
        %v2071 = vand.u32 2147483647, %v1303
        %v2072 = vand.u32 2147483647, %v1304
        %v2073 = vand.u32 2147483647, %v1305
        %v2074 = vand.u32 2147483647, %v1306
        %v2075 = vand.u32 2147483647, %v1307
        %v2076 = vand.u32 2147483647, %v1308
        %v2077 = vand.u32 2147483647, %v1309
        %v2078 = vand.u32 2147483647, %v1310
        %v2079 = vand.u32 2147483647, %v1311
        %v2080 = vand.u32 2147483647, %v1312
        %v2081 = vand.u32 2147483647, %v1313
        %v2082 = vand.u32 2147483647, %v1314
        %v2083 = vand.u32 2147483647, %v1315
        %v2084 = vand.u32 2147483647, %v1316
        %v2085 = vand.u32 2147483647, %v1317
        %v2086 = vand.u32 2147483647, %v1318
        %v2087 = vand.u32 2147483647, %v1319
        %v2088 = vand.u32 2147483647, %v1320
        %v2089 = vand.u32 2147483647, %v1321
        %v2090 = vand.u32 2147483647, %v1322
        %v2091 = vand.u32 2147483647, %v1323
        %v2092 = vand.u32 2147483647, %v1324
        %v2093 = vand.u32 2147483647, %v1325
        %v2094 = vand.u32 2147483647, %v1326
        %v2095 = vand.u32 2147483647, %v1327
        %v2096 = vand.u32 2147483647, %v1328
        %v2097 = vand.u32 2147483647, %v1329
        %v2098 = vand.u32 2147483647, %v1330
        %v2099 = vand.u32 2147483647, %v1331
        %v2100 = vand.u32 2147483647, %v1332
        %v2101 = vand.u32 2147483647, %v1333
        %v2102 = vand.u32 2147483647, %v1334
        %v2103 = vand.u32 2147483647, %v1335
        %v2104 = vand.u32 2147483647, %v1336
        %v2105 = vand.u32 2147483647, %v1337
        %v2106 = vand.u32 2147483647, %v1338
        %v2107 = vand.u32 2147483647, %v1339
        %v2108 = vand.u32 2147483647, %v1340
        %v2109 = vand.u32 2147483647, %v1341
        %v2110 = vand.u32 2147483647, %v1342
        %v2111 = vand.u32 2147483647, %v1343
        %v2112 = vand.u32 2147483647, %v1344
        %v2113 = vand.u32 2147483647, %v1345
        %v2114 = vand.u32 2147483647, %v1346
        %v2115 = vand.u32 2147483647, %v1347
        %v2116 = vand.u32 2147483647, %v1348
        %v2117 = vand.u32 2147483647, %v1349
        %v2118 = vand.u32 2147483647, %v1350
        %v2119 = vand.u32 2147483647, %v1351
        %v2120 = vand.u32 2147483647, %v1352
        %v2121 = vand.u32 2147483647, %v1353
        %v2122 = vand.u32 2147483647, %v1354
        %v2123 = vand.u32 2147483647, %v1355
        %v2124 = vand.u32 2147483647, %v1356
        %v2125 = vand.u32 2147483647, %v1357
        %v2126 = vand.u32 2147483647, %v1358
        %v2127 = vand.u32 2147483647, %v1359
        %v2128 = vand.u32 2147483647, %v1360
        %v2129 = vand.u32 2147483647, %v1361
        %v2130 = vand.u32 2147483647, %v1362
        %v2131 = vand.u32 2147483647, %v1363
        %v2132 = vand.u32 2147483647, %v1364
        %v2133 = vand.u32 2147483647, %v1365
        %v2134 = vand.u32 2147483647, %v1366
        %v2135 = vand.u32 2147483647, %v1367
        %v2136 = vand.u32 2147483647, %v1368
        %v2137 = vand.u32 2147483647, %v1369
        %v2138 = vand.u32 2147483647, %v1370
        %v2139 = vand.u32 2147483647, %v1371
        %v2140 = vand.u32 2147483647, %v1372
        %v2141 = vand.u32 2147483647, %v1373
        %v2142 = vand.u32 2147483647, %v1374
        %v2143 = vand.u32 2147483647, %v1375
        %v2144 = vand.u32 2147483647, %v1376
        %v2145 = vand.u32 2147483647, %v1377
        %v2146 = vand.u32 2147483647, %v1378
        %v2147 = vand.u32 2147483647, %v1379
        %v2148 = vand.u32 2147483647, %v1380
        %v2149 = vand.u32 2147483647, %v1381
        %v2150 = vand.u32 2147483647, %v1382
        %v2151 = vand.u32 2147483647, %v1383
        %v2152 = vand.u32 2147483647, %v1384
        %v2153 = vand.u32 2147483647, %v1385
        %v2154 = vand.u32 2147483647, %v1386
        %v2155 = vand.u32 2147483647, %v1387
        %v2156 = vand.u32 2147483647, %v1388
        %v2157 = vand.u32 2147483647, %v1389
        %v2158 = vand.u32 2147483647, %v1390
        %v2159 = vand.u32 2147483647, %v1391
        %v2160 = vand.u32 2147483647, %v1392
        %v2161 = vand.u32 2147483647, %v1393
        %v2162 = vand.u32 2147483647, %v1394
        %v2163 = vand.u32 2147483647, %v1395
        %v2164 = vand.u32 2147483647, %v1396
        %v2165 = vand.u32 2147483647, %v1397
        %v2166 = vand.u32 2147483647, %v1398
        %v2167 = vand.u32 2147483647, %v1399
        %v2168 = vand.u32 2147483647, %v1400
        %v2169 = vand.u32 2147483647, %v1401
        %v2170 = vand.u32 2147483647, %v1402
        %v2171 = vand.u32 2147483647, %v1403
        %v2172 = vand.u32 2147483647, %v1404
        %v2173 = vand.u32 2147483647, %v1405
        %v2174 = vand.u32 2147483647, %v1406
        %v2175 = vand.u32 2147483647, %v1407
        %v2176 = vand.u32 2147483647, %v1408
        %v2177 = vand.u32 2147483647, %v1409
        %v2178 = vand.u32 2147483647, %v1410
        %v2179 = vand.u32 2147483647, %v1411
        %v2180 = vand.u32 2147483647, %v1412
        %v2181 = vand.u32 2147483647, %v1413
        %v2182 = vand.u32 2147483647, %v1414
        %v2183 = vand.u32 2147483647, %v1415
        %v2184 = vand.u32 2147483647, %v1416
        %v2185 = vand.u32 2147483647, %v1417
        %v2186 = vand.u32 2147483647, %v1418
        %v2187 = vand.u32 2147483647, %v1419
        %v2188 = vand.u32 2147483647, %v1420
        %v2189 = vand.u32 2147483647, %v1421
        %v2190 = vand.u32 2147483647, %v1422
        %v2191 = vand.u32 2147483647, %v1423
        %v2192 = vand.u32 2147483647, %v1424
        %v2193 = vand.u32 2147483647, %v1425
        %v2194 = vand.u32 2147483647, %v1426
        %v2195 = vand.u32 2147483647, %v1427
        %v2196 = vand.u32 2147483647, %v1428
        %v2197 = vand.u32 2147483647, %v1429
        %v2198 = vand.u32 2147483647, %v1430
        %v2199 = vand.u32 2147483647, %v1431
        %v2200 = vand.u32 2147483647, %v1432
        %v2201 = vand.u32 2147483647, %v1433
        %v2202 = vand.u32 2147483647, %v1434
        %v2203 = vand.u32 2147483647, %v1435
        %v2204 = vand.u32 2147483647, %v1436
        %v2205 = vand.u32 2147483647, %v1437
        %v2206 = vand.u32 2147483647, %v1438
        %v2207 = vand.u32 2147483647, %v1439
        %v2208 = vand.u32 2147483647, %v1440
        %v2209 = vand.u32 2147483647, %v1441
        %v2210 = vand.u32 2147483647, %v1442
        %v2211 = vand.u32 2147483647, %v1443
        %v2212 = vand.u32 2147483647, %v1444
        %v2213 = vand.u32 2147483647, %v1445
        %v2214 = vand.u32 2147483647, %v1446
        %v2215 = vand.u32 2147483647, %v1447
        %v2216 = vand.u32 2147483647, %v1448
        %v2217 = vand.u32 2147483647, %v1449
        %v2218 = vand.u32 2147483647, %v1450
        %v2219 = vand.u32 2147483647, %v1451
        %v2220 = vand.u32 2147483647, %v1452
        %v2221 = vand.u32 2147483647, %v1453
        %v2222 = vand.u32 2147483647, %v1454
        %v2223 = vand.u32 2147483647, %v1455
        %v2224 = vand.u32 2147483647, %v1456
        %v2225 = vand.u32 2147483647, %v1457
        %v2226 = vand.u32 2147483647, %v1458
        %v2227 = vand.u32 2147483647, %v1459
        %v2228 = vand.u32 2147483647, %v1460
        %v2229 = vand.u32 2147483647, %v1461
        %v2230 = vand.u32 2147483647, %v1462
        %v2231 = vand.u32 2147483647, %v1463
        %v2232 = vand.u32 2147483647, %v1464
        %v2233 = vand.u32 2147483647, %v1465
        %v2234 = vand.u32 2147483647, %v1466
        %v2235 = vand.u32 2147483647, %v1467
        %v2236 = vand.u32 2147483647, %v1468
        %v2237 = vand.u32 2147483647, %v1469
        %v2238 = vand.u32 2147483647, %v1470
        %v2239 = vand.u32 2147483647, %v1471
        %v2240 = vand.u32 2147483647, %v1472
        %v2241 = vand.u32 2147483647, %v1473
        %v2242 = vand.u32 2147483647, %v1474
        %v2243 = vand.u32 2147483647, %v1475
        %v2244 = vand.u32 2147483647, %v1476
        %v2245 = vand.u32 2147483647, %v1477
        %v2246 = vand.u32 2147483647, %v1478
        %v2247 = vand.u32 2147483647, %v1479
        %v2248 = vand.u32 2147483647, %v1480
        %v2249 = vand.u32 2147483647, %v1481
        %v2250 = vand.u32 2147483647, %v1482
        %v2251 = vand.u32 2147483647, %v1483
        %v2252 = vand.u32 2147483647, %v1484
        %v2253 = vand.u32 2147483647, %v1485
        %v2254 = vand.u32 2147483647, %v1486
        %v2255 = vand.u32 2147483647, %v1487
        %v2256 = vand.u32 2147483647, %v1488
        %v2257 = vand.u32 2147483647, %v1489
        %v2258 = vand.u32 2147483647, %v1490
        %v2259 = vand.u32 2147483647, %v1491
        %v2260 = vand.u32 2147483647, %v1492
        %v2261 = vand.u32 2147483647, %v1493
        %v2262 = vand.u32 2147483647, %v1494
        %v2263 = vand.u32 2147483647, %v1495
        %v2264 = vand.u32 2147483647, %v1496
        %v2265 = vand.u32 2147483647, %v1497
        %v2266 = vand.u32 2147483647, %v1498
        %v2267 = vmul.f32 %v2011, 0.3275911
        %v2268 = vmul.f32 %v2012, 0.3275911
        %v2269 = vmul.f32 %v2013, 0.3275911
        %v2270 = vmul.f32 %v2014, 0.3275911
        %v2271 = vmul.f32 %v2015, 0.3275911
        %v2272 = vmul.f32 %v2016, 0.3275911
        %v2273 = vmul.f32 %v2017, 0.3275911
        %v2274 = vmul.f32 %v2018, 0.3275911
        %v2275 = vmul.f32 %v2019, 0.3275911
        %v2276 = vmul.f32 %v2020, 0.3275911
        %v2277 = vmul.f32 %v2021, 0.3275911
        %v2278 = vmul.f32 %v2022, 0.3275911
        %v2279 = vmul.f32 %v2023, 0.3275911
        %v2280 = vmul.f32 %v2024, 0.3275911
        %v2281 = vmul.f32 %v2025, 0.3275911
        %v2282 = vmul.f32 %v2026, 0.3275911
        %v2283 = vmul.f32 %v2027, 0.3275911
        %v2284 = vmul.f32 %v2028, 0.3275911
        %v2285 = vmul.f32 %v2029, 0.3275911
        %v2286 = vmul.f32 %v2030, 0.3275911
        %v2287 = vmul.f32 %v2031, 0.3275911
        %v2288 = vmul.f32 %v2032, 0.3275911
        %v2289 = vmul.f32 %v2033, 0.3275911
        %v2290 = vmul.f32 %v2034, 0.3275911
        %v2291 = vmul.f32 %v2035, 0.3275911
        %v2292 = vmul.f32 %v2036, 0.3275911
        %v2293 = vmul.f32 %v2037, 0.3275911
        %v2294 = vmul.f32 %v2038, 0.3275911
        %v2295 = vmul.f32 %v2039, 0.3275911
        %v2296 = vmul.f32 %v2040, 0.3275911
        %v2297 = vmul.f32 %v2041, 0.3275911
        %v2298 = vmul.f32 %v2042, 0.3275911
        %v2299 = vmul.f32 %v2043, 0.3275911
        %v2300 = vmul.f32 %v2044, 0.3275911
        %v2301 = vmul.f32 %v2045, 0.3275911
        %v2302 = vmul.f32 %v2046, 0.3275911
        %v2303 = vmul.f32 %v2047, 0.3275911
        %v2304 = vmul.f32 %v2048, 0.3275911
        %v2305 = vmul.f32 %v2049, 0.3275911
        %v2306 = vmul.f32 %v2050, 0.3275911
        %v2307 = vmul.f32 %v2051, 0.3275911
        %v2308 = vmul.f32 %v2052, 0.3275911
        %v2309 = vmul.f32 %v2053, 0.3275911
        %v2310 = vmul.f32 %v2054, 0.3275911
        %v2311 = vmul.f32 %v2055, 0.3275911
        %v2312 = vmul.f32 %v2056, 0.3275911
        %v2313 = vmul.f32 %v2057, 0.3275911
        %v2314 = vmul.f32 %v2058, 0.3275911
        %v2315 = vmul.f32 %v2059, 0.3275911
        %v2316 = vmul.f32 %v2060, 0.3275911
        %v2317 = vmul.f32 %v2061, 0.3275911
        %v2318 = vmul.f32 %v2062, 0.3275911
        %v2319 = vmul.f32 %v2063, 0.3275911
        %v2320 = vmul.f32 %v2064, 0.3275911
        %v2321 = vmul.f32 %v2065, 0.3275911
        %v2322 = vmul.f32 %v2066, 0.3275911
        %v2323 = vmul.f32 %v2067, 0.3275911
        %v2324 = vmul.f32 %v2068, 0.3275911
        %v2325 = vmul.f32 %v2069, 0.3275911
        %v2326 = vmul.f32 %v2070, 0.3275911
        %v2327 = vmul.f32 %v2071, 0.3275911
        %v2328 = vmul.f32 %v2072, 0.3275911
        %v2329 = vmul.f32 %v2073, 0.3275911
        %v2330 = vmul.f32 %v2074, 0.3275911
        %v2331 = vmul.f32 %v2075, 0.3275911
        %v2332 = vmul.f32 %v2076, 0.3275911
        %v2333 = vmul.f32 %v2077, 0.3275911
        %v2334 = vmul.f32 %v2078, 0.3275911
        %v2335 = vmul.f32 %v2079, 0.3275911
        %v2336 = vmul.f32 %v2080, 0.3275911
        %v2337 = vmul.f32 %v2081, 0.3275911
        %v2338 = vmul.f32 %v2082, 0.3275911
        %v2339 = vmul.f32 %v2083, 0.3275911
        %v2340 = vmul.f32 %v2084, 0.3275911
        %v2341 = vmul.f32 %v2085, 0.3275911
        %v2342 = vmul.f32 %v2086, 0.3275911
        %v2343 = vmul.f32 %v2087, 0.3275911
        %v2344 = vmul.f32 %v2088, 0.3275911
        %v2345 = vmul.f32 %v2089, 0.3275911
        %v2346 = vmul.f32 %v2090, 0.3275911
        %v2347 = vmul.f32 %v2091, 0.3275911
        %v2348 = vmul.f32 %v2092, 0.3275911
        %v2349 = vmul.f32 %v2093, 0.3275911
        %v2350 = vmul.f32 %v2094, 0.3275911
        %v2351 = vmul.f32 %v2095, 0.3275911
        %v2352 = vmul.f32 %v2096, 0.3275911
        %v2353 = vmul.f32 %v2097, 0.3275911
        %v2354 = vmul.f32 %v2098, 0.3275911
        %v2355 = vmul.f32 %v2099, 0.3275911
        %v2356 = vmul.f32 %v2100, 0.3275911
        %v2357 = vmul.f32 %v2101, 0.3275911
        %v2358 = vmul.f32 %v2102, 0.3275911
        %v2359 = vmul.f32 %v2103, 0.3275911
        %v2360 = vmul.f32 %v2104, 0.3275911
        %v2361 = vmul.f32 %v2105, 0.3275911
        %v2362 = vmul.f32 %v2106, 0.3275911
        %v2363 = vmul.f32 %v2107, 0.3275911
        %v2364 = vmul.f32 %v2108, 0.3275911
        %v2365 = vmul.f32 %v2109, 0.3275911
        %v2366 = vmul.f32 %v2110, 0.3275911
        %v2367 = vmul.f32 %v2111, 0.3275911
        %v2368 = vmul.f32 %v2112, 0.3275911
        %v2369 = vmul.f32 %v2113, 0.3275911
        %v2370 = vmul.f32 %v2114, 0.3275911
        %v2371 = vmul.f32 %v2115, 0.3275911
        %v2372 = vmul.f32 %v2116, 0.3275911
        %v2373 = vmul.f32 %v2117, 0.3275911
        %v2374 = vmul.f32 %v2118, 0.3275911
        %v2375 = vmul.f32 %v2119, 0.3275911
        %v2376 = vmul.f32 %v2120, 0.3275911
        %v2377 = vmul.f32 %v2121, 0.3275911
        %v2378 = vmul.f32 %v2122, 0.3275911
        %v2379 = vmul.f32 %v2123, 0.3275911
        %v2380 = vmul.f32 %v2124, 0.3275911
        %v2381 = vmul.f32 %v2125, 0.3275911
        %v2382 = vmul.f32 %v2126, 0.3275911
        %v2383 = vmul.f32 %v2127, 0.3275911
        %v2384 = vmul.f32 %v2128, 0.3275911
        %v2385 = vmul.f32 %v2129, 0.3275911
        %v2386 = vmul.f32 %v2130, 0.3275911
        %v2387 = vmul.f32 %v2131, 0.3275911
        %v2388 = vmul.f32 %v2132, 0.3275911
        %v2389 = vmul.f32 %v2133, 0.3275911
        %v2390 = vmul.f32 %v2134, 0.3275911
        %v2391 = vmul.f32 %v2135, 0.3275911
        %v2392 = vmul.f32 %v2136, 0.3275911
        %v2393 = vmul.f32 %v2137, 0.3275911
        %v2394 = vmul.f32 %v2138, 0.3275911
        %v2395 = vmul.f32 %v2139, 0.3275911
        %v2396 = vmul.f32 %v2140, 0.3275911
        %v2397 = vmul.f32 %v2141, 0.3275911
        %v2398 = vmul.f32 %v2142, 0.3275911
        %v2399 = vmul.f32 %v2143, 0.3275911
        %v2400 = vmul.f32 %v2144, 0.3275911
        %v2401 = vmul.f32 %v2145, 0.3275911
        %v2402 = vmul.f32 %v2146, 0.3275911
        %v2403 = vmul.f32 %v2147, 0.3275911
        %v2404 = vmul.f32 %v2148, 0.3275911
        %v2405 = vmul.f32 %v2149, 0.3275911
        %v2406 = vmul.f32 %v2150, 0.3275911
        %v2407 = vmul.f32 %v2151, 0.3275911
        %v2408 = vmul.f32 %v2152, 0.3275911
        %v2409 = vmul.f32 %v2153, 0.3275911
        %v2410 = vmul.f32 %v2154, 0.3275911
        %v2411 = vmul.f32 %v2155, 0.3275911
        %v2412 = vmul.f32 %v2156, 0.3275911
        %v2413 = vmul.f32 %v2157, 0.3275911
        %v2414 = vmul.f32 %v2158, 0.3275911
        %v2415 = vmul.f32 %v2159, 0.3275911
        %v2416 = vmul.f32 %v2160, 0.3275911
        %v2417 = vmul.f32 %v2161, 0.3275911
        %v2418 = vmul.f32 %v2162, 0.3275911
        %v2419 = vmul.f32 %v2163, 0.3275911
        %v2420 = vmul.f32 %v2164, 0.3275911
        %v2421 = vmul.f32 %v2165, 0.3275911
        %v2422 = vmul.f32 %v2166, 0.3275911
        %v2423 = vmul.f32 %v2167, 0.3275911
        %v2424 = vmul.f32 %v2168, 0.3275911
        %v2425 = vmul.f32 %v2169, 0.3275911
        %v2426 = vmul.f32 %v2170, 0.3275911
        %v2427 = vmul.f32 %v2171, 0.3275911
        %v2428 = vmul.f32 %v2172, 0.3275911
        %v2429 = vmul.f32 %v2173, 0.3275911
        %v2430 = vmul.f32 %v2174, 0.3275911
        %v2431 = vmul.f32 %v2175, 0.3275911
        %v2432 = vmul.f32 %v2176, 0.3275911
        %v2433 = vmul.f32 %v2177, 0.3275911
        %v2434 = vmul.f32 %v2178, 0.3275911
        %v2435 = vmul.f32 %v2179, 0.3275911
        %v2436 = vmul.f32 %v2180, 0.3275911
        %v2437 = vmul.f32 %v2181, 0.3275911
        %v2438 = vmul.f32 %v2182, 0.3275911
        %v2439 = vmul.f32 %v2183, 0.3275911
        %v2440 = vmul.f32 %v2184, 0.3275911
        %v2441 = vmul.f32 %v2185, 0.3275911
        %v2442 = vmul.f32 %v2186, 0.3275911
        %v2443 = vmul.f32 %v2187, 0.3275911
        %v2444 = vmul.f32 %v2188, 0.3275911
        %v2445 = vmul.f32 %v2189, 0.3275911
        %v2446 = vmul.f32 %v2190, 0.3275911
        %v2447 = vmul.f32 %v2191, 0.3275911
        %v2448 = vmul.f32 %v2192, 0.3275911
        %v2449 = vmul.f32 %v2193, 0.3275911
        %v2450 = vmul.f32 %v2194, 0.3275911
        %v2451 = vmul.f32 %v2195, 0.3275911
        %v2452 = vmul.f32 %v2196, 0.3275911
        %v2453 = vmul.f32 %v2197, 0.3275911
        %v2454 = vmul.f32 %v2198, 0.3275911
        %v2455 = vmul.f32 %v2199, 0.3275911
        %v2456 = vmul.f32 %v2200, 0.3275911
        %v2457 = vmul.f32 %v2201, 0.3275911
        %v2458 = vmul.f32 %v2202, 0.3275911
        %v2459 = vmul.f32 %v2203, 0.3275911
        %v2460 = vmul.f32 %v2204, 0.3275911
        %v2461 = vmul.f32 %v2205, 0.3275911
        %v2462 = vmul.f32 %v2206, 0.3275911
        %v2463 = vmul.f32 %v2207, 0.3275911
        %v2464 = vmul.f32 %v2208, 0.3275911
        %v2465 = vmul.f32 %v2209, 0.3275911
        %v2466 = vmul.f32 %v2210, 0.3275911
        %v2467 = vmul.f32 %v2211, 0.3275911
        %v2468 = vmul.f32 %v2212, 0.3275911
        %v2469 = vmul.f32 %v2213, 0.3275911
        %v2470 = vmul.f32 %v2214, 0.3275911
        %v2471 = vmul.f32 %v2215, 0.3275911
        %v2472 = vmul.f32 %v2216, 0.3275911
        %v2473 = vmul.f32 %v2217, 0.3275911
        %v2474 = vmul.f32 %v2218, 0.3275911
        %v2475 = vmul.f32 %v2219, 0.3275911
        %v2476 = vmul.f32 %v2220, 0.3275911
        %v2477 = vmul.f32 %v2221, 0.3275911
        %v2478 = vmul.f32 %v2222, 0.3275911
        %v2479 = vmul.f32 %v2223, 0.3275911
        %v2480 = vmul.f32 %v2224, 0.3275911
        %v2481 = vmul.f32 %v2225, 0.3275911
        %v2482 = vmul.f32 %v2226, 0.3275911
        %v2483 = vmul.f32 %v2227, 0.3275911
        %v2484 = vmul.f32 %v2228, 0.3275911
        %v2485 = vmul.f32 %v2229, 0.3275911
        %v2486 = vmul.f32 %v2230, 0.3275911
        %v2487 = vmul.f32 %v2231, 0.3275911
        %v2488 = vmul.f32 %v2232, 0.3275911
        %v2489 = vmul.f32 %v2233, 0.3275911
        %v2490 = vmul.f32 %v2234, 0.3275911
        %v2491 = vmul.f32 %v2235, 0.3275911
        %v2492 = vmul.f32 %v2236, 0.3275911
        %v2493 = vmul.f32 %v2237, 0.3275911
        %v2494 = vmul.f32 %v2238, 0.3275911
        %v2495 = vmul.f32 %v2239, 0.3275911
        %v2496 = vmul.f32 %v2240, 0.3275911
        %v2497 = vmul.f32 %v2241, 0.3275911
        %v2498 = vmul.f32 %v2242, 0.3275911
        %v2499 = vmul.f32 %v2243, 0.3275911
        %v2500 = vmul.f32 %v2244, 0.3275911
        %v2501 = vmul.f32 %v2245, 0.3275911
        %v2502 = vmul.f32 %v2246, 0.3275911
        %v2503 = vmul.f32 %v2247, 0.3275911
        %v2504 = vmul.f32 %v2248, 0.3275911
        %v2505 = vmul.f32 %v2249, 0.3275911
        %v2506 = vmul.f32 %v2250, 0.3275911
        %v2507 = vmul.f32 %v2251, 0.3275911
        %v2508 = vmul.f32 %v2252, 0.3275911
        %v2509 = vmul.f32 %v2253, 0.3275911
        %v2510 = vmul.f32 %v2254, 0.3275911
        %v2511 = vmul.f32 %v2255, 0.3275911
        %v2512 = vmul.f32 %v2256, 0.3275911
        %v2513 = vmul.f32 %v2257, 0.3275911
        %v2514 = vmul.f32 %v2258, 0.3275911
        %v2515 = vmul.f32 %v2259, 0.3275911
        %v2516 = vmul.f32 %v2260, 0.3275911
        %v2517 = vmul.f32 %v2261, 0.3275911
        %v2518 = vmul.f32 %v2262, 0.3275911
        %v2519 = vmul.f32 %v2263, 0.3275911
        %v2520 = vmul.f32 %v2264, 0.3275911
        %v2521 = vmul.f32 %v2265, 0.3275911
        %v2522 = vmul.f32 %v2266, 0.3275911
        %v2523 = vadd.f32 %v2267, 1.0
        %v2524 = vadd.f32 %v2268, 1.0
        %v2525 = vadd.f32 %v2269, 1.0
        %v2526 = vadd.f32 %v2270, 1.0
        %v2527 = vadd.f32 %v2271, 1.0
        %v2528 = vadd.f32 %v2272, 1.0
        %v2529 = vadd.f32 %v2273, 1.0
        %v2530 = vadd.f32 %v2274, 1.0
        %v2531 = vadd.f32 %v2275, 1.0
        %v2532 = vadd.f32 %v2276, 1.0
        %v2533 = vadd.f32 %v2277, 1.0
        %v2534 = vadd.f32 %v2278, 1.0
        %v2535 = vadd.f32 %v2279, 1.0
        %v2536 = vadd.f32 %v2280, 1.0
        %v2537 = vadd.f32 %v2281, 1.0
        %v2538 = vadd.f32 %v2282, 1.0
        %v2539 = vadd.f32 %v2283, 1.0
        %v2540 = vadd.f32 %v2284, 1.0
        %v2541 = vadd.f32 %v2285, 1.0
        %v2542 = vadd.f32 %v2286, 1.0
        %v2543 = vadd.f32 %v2287, 1.0
        %v2544 = vadd.f32 %v2288, 1.0
        %v2545 = vadd.f32 %v2289, 1.0
        %v2546 = vadd.f32 %v2290, 1.0
        %v2547 = vadd.f32 %v2291, 1.0
        %v2548 = vadd.f32 %v2292, 1.0
        %v2549 = vadd.f32 %v2293, 1.0
        %v2550 = vadd.f32 %v2294, 1.0
        %v2551 = vadd.f32 %v2295, 1.0
        %v2552 = vadd.f32 %v2296, 1.0
        %v2553 = vadd.f32 %v2297, 1.0
        %v2554 = vadd.f32 %v2298, 1.0
        %v2555 = vadd.f32 %v2299, 1.0
        %v2556 = vadd.f32 %v2300, 1.0
        %v2557 = vadd.f32 %v2301, 1.0
        %v2558 = vadd.f32 %v2302, 1.0
        %v2559 = vadd.f32 %v2303, 1.0
        %v2560 = vadd.f32 %v2304, 1.0
        %v2561 = vadd.f32 %v2305, 1.0
        %v2562 = vadd.f32 %v2306, 1.0
        %v2563 = vadd.f32 %v2307, 1.0
        %v2564 = vadd.f32 %v2308, 1.0
        %v2565 = vadd.f32 %v2309, 1.0
        %v2566 = vadd.f32 %v2310, 1.0
        %v2567 = vadd.f32 %v2311, 1.0
        %v2568 = vadd.f32 %v2312, 1.0
        %v2569 = vadd.f32 %v2313, 1.0
        %v2570 = vadd.f32 %v2314, 1.0
        %v2571 = vadd.f32 %v2315, 1.0
        %v2572 = vadd.f32 %v2316, 1.0
        %v2573 = vadd.f32 %v2317, 1.0
        %v2574 = vadd.f32 %v2318, 1.0
        %v2575 = vadd.f32 %v2319, 1.0
        %v2576 = vadd.f32 %v2320, 1.0
        %v2577 = vadd.f32 %v2321, 1.0
        %v2578 = vadd.f32 %v2322, 1.0
        %v2579 = vadd.f32 %v2323, 1.0
        %v2580 = vadd.f32 %v2324, 1.0
        %v2581 = vadd.f32 %v2325, 1.0
        %v2582 = vadd.f32 %v2326, 1.0
        %v2583 = vadd.f32 %v2327, 1.0
        %v2584 = vadd.f32 %v2328, 1.0
        %v2585 = vadd.f32 %v2329, 1.0
        %v2586 = vadd.f32 %v2330, 1.0
        %v2587 = vadd.f32 %v2331, 1.0
        %v2588 = vadd.f32 %v2332, 1.0
        %v2589 = vadd.f32 %v2333, 1.0
        %v2590 = vadd.f32 %v2334, 1.0
        %v2591 = vadd.f32 %v2335, 1.0
        %v2592 = vadd.f32 %v2336, 1.0
        %v2593 = vadd.f32 %v2337, 1.0
        %v2594 = vadd.f32 %v2338, 1.0
        %v2595 = vadd.f32 %v2339, 1.0
        %v2596 = vadd.f32 %v2340, 1.0
        %v2597 = vadd.f32 %v2341, 1.0
        %v2598 = vadd.f32 %v2342, 1.0
        %v2599 = vadd.f32 %v2343, 1.0
        %v2600 = vadd.f32 %v2344, 1.0
        %v2601 = vadd.f32 %v2345, 1.0
        %v2602 = vadd.f32 %v2346, 1.0
        %v2603 = vadd.f32 %v2347, 1.0
        %v2604 = vadd.f32 %v2348, 1.0
        %v2605 = vadd.f32 %v2349, 1.0
        %v2606 = vadd.f32 %v2350, 1.0
        %v2607 = vadd.f32 %v2351, 1.0
        %v2608 = vadd.f32 %v2352, 1.0
        %v2609 = vadd.f32 %v2353, 1.0
        %v2610 = vadd.f32 %v2354, 1.0
        %v2611 = vadd.f32 %v2355, 1.0
        %v2612 = vadd.f32 %v2356, 1.0
        %v2613 = vadd.f32 %v2357, 1.0
        %v2614 = vadd.f32 %v2358, 1.0
        %v2615 = vadd.f32 %v2359, 1.0
        %v2616 = vadd.f32 %v2360, 1.0
        %v2617 = vadd.f32 %v2361, 1.0
        %v2618 = vadd.f32 %v2362, 1.0
        %v2619 = vadd.f32 %v2363, 1.0
        %v2620 = vadd.f32 %v2364, 1.0
        %v2621 = vadd.f32 %v2365, 1.0
        %v2622 = vadd.f32 %v2366, 1.0
        %v2623 = vadd.f32 %v2367, 1.0
        %v2624 = vadd.f32 %v2368, 1.0
        %v2625 = vadd.f32 %v2369, 1.0
        %v2626 = vadd.f32 %v2370, 1.0
        %v2627 = vadd.f32 %v2371, 1.0
        %v2628 = vadd.f32 %v2372, 1.0
        %v2629 = vadd.f32 %v2373, 1.0
        %v2630 = vadd.f32 %v2374, 1.0
        %v2631 = vadd.f32 %v2375, 1.0
        %v2632 = vadd.f32 %v2376, 1.0
        %v2633 = vadd.f32 %v2377, 1.0
        %v2634 = vadd.f32 %v2378, 1.0
        %v2635 = vadd.f32 %v2379, 1.0
        %v2636 = vadd.f32 %v2380, 1.0
        %v2637 = vadd.f32 %v2381, 1.0
        %v2638 = vadd.f32 %v2382, 1.0
        %v2639 = vadd.f32 %v2383, 1.0
        %v2640 = vadd.f32 %v2384, 1.0
        %v2641 = vadd.f32 %v2385, 1.0
        %v2642 = vadd.f32 %v2386, 1.0
        %v2643 = vadd.f32 %v2387, 1.0
        %v2644 = vadd.f32 %v2388, 1.0
        %v2645 = vadd.f32 %v2389, 1.0
        %v2646 = vadd.f32 %v2390, 1.0
        %v2647 = vadd.f32 %v2391, 1.0
        %v2648 = vadd.f32 %v2392, 1.0
        %v2649 = vadd.f32 %v2393, 1.0
        %v2650 = vadd.f32 %v2394, 1.0
        %v2651 = vadd.f32 %v2395, 1.0
        %v2652 = vadd.f32 %v2396, 1.0
        %v2653 = vadd.f32 %v2397, 1.0
        %v2654 = vadd.f32 %v2398, 1.0
        %v2655 = vadd.f32 %v2399, 1.0
        %v2656 = vadd.f32 %v2400, 1.0
        %v2657 = vadd.f32 %v2401, 1.0
        %v2658 = vadd.f32 %v2402, 1.0
        %v2659 = vadd.f32 %v2403, 1.0
        %v2660 = vadd.f32 %v2404, 1.0
        %v2661 = vadd.f32 %v2405, 1.0
        %v2662 = vadd.f32 %v2406, 1.0
        %v2663 = vadd.f32 %v2407, 1.0
        %v2664 = vadd.f32 %v2408, 1.0
        %v2665 = vadd.f32 %v2409, 1.0
        %v2666 = vadd.f32 %v2410, 1.0
        %v2667 = vadd.f32 %v2411, 1.0
        %v2668 = vadd.f32 %v2412, 1.0
        %v2669 = vadd.f32 %v2413, 1.0
        %v2670 = vadd.f32 %v2414, 1.0
        %v2671 = vadd.f32 %v2415, 1.0
        %v2672 = vadd.f32 %v2416, 1.0
        %v2673 = vadd.f32 %v2417, 1.0
        %v2674 = vadd.f32 %v2418, 1.0
        %v2675 = vadd.f32 %v2419, 1.0
        %v2676 = vadd.f32 %v2420, 1.0
        %v2677 = vadd.f32 %v2421, 1.0
        %v2678 = vadd.f32 %v2422, 1.0
        %v2679 = vadd.f32 %v2423, 1.0
        %v2680 = vadd.f32 %v2424, 1.0
        %v2681 = vadd.f32 %v2425, 1.0
        %v2682 = vadd.f32 %v2426, 1.0
        %v2683 = vadd.f32 %v2427, 1.0
        %v2684 = vadd.f32 %v2428, 1.0
        %v2685 = vadd.f32 %v2429, 1.0
        %v2686 = vadd.f32 %v2430, 1.0
        %v2687 = vadd.f32 %v2431, 1.0
        %v2688 = vadd.f32 %v2432, 1.0
        %v2689 = vadd.f32 %v2433, 1.0
        %v2690 = vadd.f32 %v2434, 1.0
        %v2691 = vadd.f32 %v2435, 1.0
        %v2692 = vadd.f32 %v2436, 1.0
        %v2693 = vadd.f32 %v2437, 1.0
        %v2694 = vadd.f32 %v2438, 1.0
        %v2695 = vadd.f32 %v2439, 1.0
        %v2696 = vadd.f32 %v2440, 1.0
        %v2697 = vadd.f32 %v2441, 1.0
        %v2698 = vadd.f32 %v2442, 1.0
        %v2699 = vadd.f32 %v2443, 1.0
        %v2700 = vadd.f32 %v2444, 1.0
        %v2701 = vadd.f32 %v2445, 1.0
        %v2702 = vadd.f32 %v2446, 1.0
        %v2703 = vadd.f32 %v2447, 1.0
        %v2704 = vadd.f32 %v2448, 1.0
        %v2705 = vadd.f32 %v2449, 1.0
        %v2706 = vadd.f32 %v2450, 1.0
        %v2707 = vadd.f32 %v2451, 1.0
        %v2708 = vadd.f32 %v2452, 1.0
        %v2709 = vadd.f32 %v2453, 1.0
        %v2710 = vadd.f32 %v2454, 1.0
        %v2711 = vadd.f32 %v2455, 1.0
        %v2712 = vadd.f32 %v2456, 1.0
        %v2713 = vadd.f32 %v2457, 1.0
        %v2714 = vadd.f32 %v2458, 1.0
        %v2715 = vadd.f32 %v2459, 1.0
        %v2716 = vadd.f32 %v2460, 1.0
        %v2717 = vadd.f32 %v2461, 1.0
        %v2718 = vadd.f32 %v2462, 1.0
        %v2719 = vadd.f32 %v2463, 1.0
        %v2720 = vadd.f32 %v2464, 1.0
        %v2721 = vadd.f32 %v2465, 1.0
        %v2722 = vadd.f32 %v2466, 1.0
        %v2723 = vadd.f32 %v2467, 1.0
        %v2724 = vadd.f32 %v2468, 1.0
        %v2725 = vadd.f32 %v2469, 1.0
        %v2726 = vadd.f32 %v2470, 1.0
        %v2727 = vadd.f32 %v2471, 1.0
        %v2728 = vadd.f32 %v2472, 1.0
        %v2729 = vadd.f32 %v2473, 1.0
        %v2730 = vadd.f32 %v2474, 1.0
        %v2731 = vadd.f32 %v2475, 1.0
        %v2732 = vadd.f32 %v2476, 1.0
        %v2733 = vadd.f32 %v2477, 1.0
        %v2734 = vadd.f32 %v2478, 1.0
        %v2735 = vadd.f32 %v2479, 1.0
        %v2736 = vadd.f32 %v2480, 1.0
        %v2737 = vadd.f32 %v2481, 1.0
        %v2738 = vadd.f32 %v2482, 1.0
        %v2739 = vadd.f32 %v2483, 1.0
        %v2740 = vadd.f32 %v2484, 1.0
        %v2741 = vadd.f32 %v2485, 1.0
        %v2742 = vadd.f32 %v2486, 1.0
        %v2743 = vadd.f32 %v2487, 1.0
        %v2744 = vadd.f32 %v2488, 1.0
        %v2745 = vadd.f32 %v2489, 1.0
        %v2746 = vadd.f32 %v2490, 1.0
        %v2747 = vadd.f32 %v2491, 1.0
        %v2748 = vadd.f32 %v2492, 1.0
        %v2749 = vadd.f32 %v2493, 1.0
        %v2750 = vadd.f32 %v2494, 1.0
        %v2751 = vadd.f32 %v2495, 1.0
        %v2752 = vadd.f32 %v2496, 1.0
        %v2753 = vadd.f32 %v2497, 1.0
        %v2754 = vadd.f32 %v2498, 1.0
        %v2755 = vadd.f32 %v2499, 1.0
        %v2756 = vadd.f32 %v2500, 1.0
        %v2757 = vadd.f32 %v2501, 1.0
        %v2758 = vadd.f32 %v2502, 1.0
        %v2759 = vadd.f32 %v2503, 1.0
        %v2760 = vadd.f32 %v2504, 1.0
        %v2761 = vadd.f32 %v2505, 1.0
        %v2762 = vadd.f32 %v2506, 1.0
        %v2763 = vadd.f32 %v2507, 1.0
        %v2764 = vadd.f32 %v2508, 1.0
        %v2765 = vadd.f32 %v2509, 1.0
        %v2766 = vadd.f32 %v2510, 1.0
        %v2767 = vadd.f32 %v2511, 1.0
        %v2768 = vadd.f32 %v2512, 1.0
        %v2769 = vadd.f32 %v2513, 1.0
        %v2770 = vadd.f32 %v2514, 1.0
        %v2771 = vadd.f32 %v2515, 1.0
        %v2772 = vadd.f32 %v2516, 1.0
        %v2773 = vadd.f32 %v2517, 1.0
        %v2774 = vadd.f32 %v2518, 1.0
        %v2775 = vadd.f32 %v2519, 1.0
        %v2776 = vadd.f32 %v2520, 1.0
        %v2777 = vadd.f32 %v2521, 1.0
        %v2778 = vadd.f32 %v2522, 1.0
        %v2779 = vrcp.pop %v2523
        %v2780 = vrcp.pop %v2524
        %v2781 = vrcp.pop %v2525
        %v2782 = vrcp.pop %v2526
        %v2783 = vrcp.pop %v2527
        %v2784 = vrcp.pop %v2528
        %v2785 = vrcp.pop %v2529
        %v2786 = vrcp.pop %v2530
        %v2787 = vrcp.pop %v2531
        %v2788 = vrcp.pop %v2532
        %v2789 = vrcp.pop %v2533
        %v2790 = vrcp.pop %v2534
        %v2791 = vrcp.pop %v2535
        %v2792 = vrcp.pop %v2536
        %v2793 = vrcp.pop %v2537
        %v2794 = vrcp.pop %v2538
        %v2795 = vrcp.pop %v2539
        %v2796 = vrcp.pop %v2540
        %v2797 = vrcp.pop %v2541
        %v2798 = vrcp.pop %v2542
        %v2799 = vrcp.pop %v2543
        %v2800 = vrcp.pop %v2544
        %v2801 = vrcp.pop %v2545
        %v2802 = vrcp.pop %v2546
        %v2803 = vrcp.pop %v2547
        %v2804 = vrcp.pop %v2548
        %v2805 = vrcp.pop %v2549
        %v2806 = vrcp.pop %v2550
        %v2807 = vrcp.pop %v2551
        %v2808 = vrcp.pop %v2552
        %v2809 = vrcp.pop %v2553
        %v2810 = vrcp.pop %v2554
        %v2811 = vrcp.pop %v2555
        %v2812 = vrcp.pop %v2556
        %v2813 = vrcp.pop %v2557
        %v2814 = vrcp.pop %v2558
        %v2815 = vrcp.pop %v2559
        %v2816 = vrcp.pop %v2560
        %v2817 = vrcp.pop %v2561
        %v2818 = vrcp.pop %v2562
        %v2819 = vrcp.pop %v2563
        %v2820 = vrcp.pop %v2564
        %v2821 = vrcp.pop %v2565
        %v2822 = vrcp.pop %v2566
        %v2823 = vrcp.pop %v2567
        %v2824 = vrcp.pop %v2568
        %v2825 = vrcp.pop %v2569
        %v2826 = vrcp.pop %v2570
        %v2827 = vrcp.pop %v2571
        %v2828 = vrcp.pop %v2572
        %v2829 = vrcp.pop %v2573
        %v2830 = vrcp.pop %v2574
        %v2831 = vrcp.pop %v2575
        %v2832 = vrcp.pop %v2576
        %v2833 = vrcp.pop %v2577
        %v2834 = vrcp.pop %v2578
        %v2835 = vrcp.pop %v2579
        %v2836 = vrcp.pop %v2580
        %v2837 = vrcp.pop %v2581
        %v2838 = vrcp.pop %v2582
        %v2839 = vrcp.pop %v2583
        %v2840 = vrcp.pop %v2584
        %v2841 = vrcp.pop %v2585
        %v2842 = vrcp.pop %v2586
        %v2843 = vrcp.pop %v2587
        %v2844 = vrcp.pop %v2588
        %v2845 = vrcp.pop %v2589
        %v2846 = vrcp.pop %v2590
        %v2847 = vrcp.pop %v2591
        %v2848 = vrcp.pop %v2592
        %v2849 = vrcp.pop %v2593
        %v2850 = vrcp.pop %v2594
        %v2851 = vrcp.pop %v2595
        %v2852 = vrcp.pop %v2596
        %v2853 = vrcp.pop %v2597
        %v2854 = vrcp.pop %v2598
        %v2855 = vrcp.pop %v2599
        %v2856 = vrcp.pop %v2600
        %v2857 = vrcp.pop %v2601
        %v2858 = vrcp.pop %v2602
        %v2859 = vrcp.pop %v2603
        %v2860 = vrcp.pop %v2604
        %v2861 = vrcp.pop %v2605
        %v2862 = vrcp.pop %v2606
        %v2863 = vrcp.pop %v2607
        %v2864 = vrcp.pop %v2608
        %v2865 = vrcp.pop %v2609
        %v2866 = vrcp.pop %v2610
        %v2867 = vrcp.pop %v2611
        %v2868 = vrcp.pop %v2612
        %v2869 = vrcp.pop %v2613
        %v2870 = vrcp.pop %v2614
        %v2871 = vrcp.pop %v2615
        %v2872 = vrcp.pop %v2616
        %v2873 = vrcp.pop %v2617
        %v2874 = vrcp.pop %v2618
        %v2875 = vrcp.pop %v2619
        %v2876 = vrcp.pop %v2620
        %v2877 = vrcp.pop %v2621
        %v2878 = vrcp.pop %v2622
        %v2879 = vrcp.pop %v2623
        %v2880 = vrcp.pop %v2624
        %v2881 = vrcp.pop %v2625
        %v2882 = vrcp.pop %v2626
        %v2883 = vrcp.pop %v2627
        %v2884 = vrcp.pop %v2628
        %v2885 = vrcp.pop %v2629
        %v2886 = vrcp.pop %v2630
        %v2887 = vrcp.pop %v2631
        %v2888 = vrcp.pop %v2632
        %v2889 = vrcp.pop %v2633
        %v2890 = vrcp.pop %v2634
        %v2891 = vrcp.pop %v2635
        %v2892 = vrcp.pop %v2636
        %v2893 = vrcp.pop %v2637
        %v2894 = vrcp.pop %v2638
        %v2895 = vrcp.pop %v2639
        %v2896 = vrcp.pop %v2640
        %v2897 = vrcp.pop %v2641
        %v2898 = vrcp.pop %v2642
        %v2899 = vrcp.pop %v2643
        %v2900 = vrcp.pop %v2644
        %v2901 = vrcp.pop %v2645
        %v2902 = vrcp.pop %v2646
        %v2903 = vrcp.pop %v2647
        %v2904 = vrcp.pop %v2648
        %v2905 = vrcp.pop %v2649
        %v2906 = vrcp.pop %v2650
        %v2907 = vrcp.pop %v2651
        %v2908 = vrcp.pop %v2652
        %v2909 = vrcp.pop %v2653
        %v2910 = vrcp.pop %v2654
        %v2911 = vrcp.pop %v2655
        %v2912 = vrcp.pop %v2656
        %v2913 = vrcp.pop %v2657
        %v2914 = vrcp.pop %v2658
        %v2915 = vrcp.pop %v2659
        %v2916 = vrcp.pop %v2660
        %v2917 = vrcp.pop %v2661
        %v2918 = vrcp.pop %v2662
        %v2919 = vrcp.pop %v2663
        %v2920 = vrcp.pop %v2664
        %v2921 = vrcp.pop %v2665
        %v2922 = vrcp.pop %v2666
        %v2923 = vrcp.pop %v2667
        %v2924 = vrcp.pop %v2668
        %v2925 = vrcp.pop %v2669
        %v2926 = vrcp.pop %v2670
        %v2927 = vrcp.pop %v2671
        %v2928 = vrcp.pop %v2672
        %v2929 = vrcp.pop %v2673
        %v2930 = vrcp.pop %v2674
        %v2931 = vrcp.pop %v2675
        %v2932 = vrcp.pop %v2676
        %v2933 = vrcp.pop %v2677
        %v2934 = vrcp.pop %v2678
        %v2935 = vrcp.pop %v2679
        %v2936 = vrcp.pop %v2680
        %v2937 = vrcp.pop %v2681
        %v2938 = vrcp.pop %v2682
        %v2939 = vrcp.pop %v2683
        %v2940 = vrcp.pop %v2684
        %v2941 = vrcp.pop %v2685
        %v2942 = vrcp.pop %v2686
        %v2943 = vrcp.pop %v2687
        %v2944 = vrcp.pop %v2688
        %v2945 = vrcp.pop %v2689
        %v2946 = vrcp.pop %v2690
        %v2947 = vrcp.pop %v2691
        %v2948 = vrcp.pop %v2692
        %v2949 = vrcp.pop %v2693
        %v2950 = vrcp.pop %v2694
        %v2951 = vrcp.pop %v2695
        %v2952 = vrcp.pop %v2696
        %v2953 = vrcp.pop %v2697
        %v2954 = vrcp.pop %v2698
        %v2955 = vrcp.pop %v2699
        %v2956 = vrcp.pop %v2700
        %v2957 = vrcp.pop %v2701
        %v2958 = vrcp.pop %v2702
        %v2959 = vrcp.pop %v2703
        %v2960 = vrcp.pop %v2704
        %v2961 = vrcp.pop %v2705
        %v2962 = vrcp.pop %v2706
        %v2963 = vrcp.pop %v2707
        %v2964 = vrcp.pop %v2708
        %v2965 = vrcp.pop %v2709
        %v2966 = vrcp.pop %v2710
        %v2967 = vrcp.pop %v2711
        %v2968 = vrcp.pop %v2712
        %v2969 = vrcp.pop %v2713
        %v2970 = vrcp.pop %v2714
        %v2971 = vrcp.pop %v2715
        %v2972 = vrcp.pop %v2716
        %v2973 = vrcp.pop %v2717
        %v2974 = vrcp.pop %v2718
        %v2975 = vrcp.pop %v2719
        %v2976 = vrcp.pop %v2720
        %v2977 = vrcp.pop %v2721
        %v2978 = vrcp.pop %v2722
        %v2979 = vrcp.pop %v2723
        %v2980 = vrcp.pop %v2724
        %v2981 = vrcp.pop %v2725
        %v2982 = vrcp.pop %v2726
        %v2983 = vrcp.pop %v2727
        %v2984 = vrcp.pop %v2728
        %v2985 = vrcp.pop %v2729
        %v2986 = vrcp.pop %v2730
        %v2987 = vrcp.pop %v2731
        %v2988 = vrcp.pop %v2732
        %v2989 = vrcp.pop %v2733
        %v2990 = vrcp.pop %v2734
        %v2991 = vrcp.pop %v2735
        %v2992 = vrcp.pop %v2736
        %v2993 = vrcp.pop %v2737
        %v2994 = vrcp.pop %v2738
        %v2995 = vrcp.pop %v2739
        %v2996 = vrcp.pop %v2740
        %v2997 = vrcp.pop %v2741
        %v2998 = vrcp.pop %v2742
        %v2999 = vrcp.pop %v2743
        %v3000 = vrcp.pop %v2744
        %v3001 = vrcp.pop %v2745
        %v3002 = vrcp.pop %v2746
        %v3003 = vrcp.pop %v2747
        %v3004 = vrcp.pop %v2748
        %v3005 = vrcp.pop %v2749
        %v3006 = vrcp.pop %v2750
        %v3007 = vrcp.pop %v2751
        %v3008 = vrcp.pop %v2752
        %v3009 = vrcp.pop %v2753
        %v3010 = vrcp.pop %v2754
        %v3011 = vrcp.pop %v2755
        %v3012 = vrcp.pop %v2756
        %v3013 = vrcp.pop %v2757
        %v3014 = vrcp.pop %v2758
        %v3015 = vrcp.pop %v2759
        %v3016 = vrcp.pop %v2760
        %v3017 = vrcp.pop %v2761
        %v3018 = vrcp.pop %v2762
        %v3019 = vrcp.pop %v2763
        %v3020 = vrcp.pop %v2764
        %v3021 = vrcp.pop %v2765
        %v3022 = vrcp.pop %v2766
        %v3023 = vrcp.pop %v2767
        %v3024 = vrcp.pop %v2768
        %v3025 = vrcp.pop %v2769
        %v3026 = vrcp.pop %v2770
        %v3027 = vrcp.pop %v2771
        %v3028 = vrcp.pop %v2772
        %v3029 = vrcp.pop %v2773
        %v3030 = vrcp.pop %v2774
        %v3031 = vrcp.pop %v2775
        %v3032 = vrcp.pop %v2776
        %v3033 = vrcp.pop %v2777
        %v3034 = vrcp.pop %v2778
        %v3035 = vmul.f32 %v2779, 1.0614054
        %v3036 = vmul.f32 %v2780, 1.0614054
        %v3037 = vmul.f32 %v2781, 1.0614054
        %v3038 = vmul.f32 %v2782, 1.0614054
        %v3039 = vmul.f32 %v2783, 1.0614054
        %v3040 = vmul.f32 %v2784, 1.0614054
        %v3041 = vmul.f32 %v2785, 1.0614054
        %v3042 = vmul.f32 %v2786, 1.0614054
        %v3043 = vmul.f32 %v2787, 1.0614054
        %v3044 = vmul.f32 %v2788, 1.0614054
        %v3045 = vmul.f32 %v2789, 1.0614054
        %v3046 = vmul.f32 %v2790, 1.0614054
        %v3047 = vmul.f32 %v2791, 1.0614054
        %v3048 = vmul.f32 %v2792, 1.0614054
        %v3049 = vmul.f32 %v2793, 1.0614054
        %v3050 = vmul.f32 %v2794, 1.0614054
        %v3051 = vmul.f32 %v2795, 1.0614054
        %v3052 = vmul.f32 %v2796, 1.0614054
        %v3053 = vmul.f32 %v2797, 1.0614054
        %v3054 = vmul.f32 %v2798, 1.0614054
        %v3055 = vmul.f32 %v2799, 1.0614054
        %v3056 = vmul.f32 %v2800, 1.0614054
        %v3057 = vmul.f32 %v2801, 1.0614054
        %v3058 = vmul.f32 %v2802, 1.0614054
        %v3059 = vmul.f32 %v2803, 1.0614054
        %v3060 = vmul.f32 %v2804, 1.0614054
        %v3061 = vmul.f32 %v2805, 1.0614054
        %v3062 = vmul.f32 %v2806, 1.0614054
        %v3063 = vmul.f32 %v2807, 1.0614054
        %v3064 = vmul.f32 %v2808, 1.0614054
        %v3065 = vmul.f32 %v2809, 1.0614054
        %v3066 = vmul.f32 %v2810, 1.0614054
        %v3067 = vmul.f32 %v2811, 1.0614054
        %v3068 = vmul.f32 %v2812, 1.0614054
        %v3069 = vmul.f32 %v2813, 1.0614054
        %v3070 = vmul.f32 %v2814, 1.0614054
        %v3071 = vmul.f32 %v2815, 1.0614054
        %v3072 = vmul.f32 %v2816, 1.0614054
        %v3073 = vmul.f32 %v2817, 1.0614054
        %v3074 = vmul.f32 %v2818, 1.0614054
        %v3075 = vmul.f32 %v2819, 1.0614054
        %v3076 = vmul.f32 %v2820, 1.0614054
        %v3077 = vmul.f32 %v2821, 1.0614054
        %v3078 = vmul.f32 %v2822, 1.0614054
        %v3079 = vmul.f32 %v2823, 1.0614054
        %v3080 = vmul.f32 %v2824, 1.0614054
        %v3081 = vmul.f32 %v2825, 1.0614054
        %v3082 = vmul.f32 %v2826, 1.0614054
        %v3083 = vmul.f32 %v2827, 1.0614054
        %v3084 = vmul.f32 %v2828, 1.0614054
        %v3085 = vmul.f32 %v2829, 1.0614054
        %v3086 = vmul.f32 %v2830, 1.0614054
        %v3087 = vmul.f32 %v2831, 1.0614054
        %v3088 = vmul.f32 %v2832, 1.0614054
        %v3089 = vmul.f32 %v2833, 1.0614054
        %v3090 = vmul.f32 %v2834, 1.0614054
        %v3091 = vmul.f32 %v2835, 1.0614054
        %v3092 = vmul.f32 %v2836, 1.0614054
        %v3093 = vmul.f32 %v2837, 1.0614054
        %v3094 = vmul.f32 %v2838, 1.0614054
        %v3095 = vmul.f32 %v2839, 1.0614054
        %v3096 = vmul.f32 %v2840, 1.0614054
        %v3097 = vmul.f32 %v2841, 1.0614054
        %v3098 = vmul.f32 %v2842, 1.0614054
        %v3099 = vmul.f32 %v2843, 1.0614054
        %v3100 = vmul.f32 %v2844, 1.0614054
        %v3101 = vmul.f32 %v2845, 1.0614054
        %v3102 = vmul.f32 %v2846, 1.0614054
        %v3103 = vmul.f32 %v2847, 1.0614054
        %v3104 = vmul.f32 %v2848, 1.0614054
        %v3105 = vmul.f32 %v2849, 1.0614054
        %v3106 = vmul.f32 %v2850, 1.0614054
        %v3107 = vmul.f32 %v2851, 1.0614054
        %v3108 = vmul.f32 %v2852, 1.0614054
        %v3109 = vmul.f32 %v2853, 1.0614054
        %v3110 = vmul.f32 %v2854, 1.0614054
        %v3111 = vmul.f32 %v2855, 1.0614054
        %v3112 = vmul.f32 %v2856, 1.0614054
        %v3113 = vmul.f32 %v2857, 1.0614054
        %v3114 = vmul.f32 %v2858, 1.0614054
        %v3115 = vmul.f32 %v2859, 1.0614054
        %v3116 = vmul.f32 %v2860, 1.0614054
        %v3117 = vmul.f32 %v2861, 1.0614054
        %v3118 = vmul.f32 %v2862, 1.0614054
        %v3119 = vmul.f32 %v2863, 1.0614054
        %v3120 = vmul.f32 %v2864, 1.0614054
        %v3121 = vmul.f32 %v2865, 1.0614054
        %v3122 = vmul.f32 %v2866, 1.0614054
        %v3123 = vmul.f32 %v2867, 1.0614054
        %v3124 = vmul.f32 %v2868, 1.0614054
        %v3125 = vmul.f32 %v2869, 1.0614054
        %v3126 = vmul.f32 %v2870, 1.0614054
        %v3127 = vmul.f32 %v2871, 1.0614054
        %v3128 = vmul.f32 %v2872, 1.0614054
        %v3129 = vmul.f32 %v2873, 1.0614054
        %v3130 = vmul.f32 %v2874, 1.0614054
        %v3131 = vmul.f32 %v2875, 1.0614054
        %v3132 = vmul.f32 %v2876, 1.0614054
        %v3133 = vmul.f32 %v2877, 1.0614054
        %v3134 = vmul.f32 %v2878, 1.0614054
        %v3135 = vmul.f32 %v2879, 1.0614054
        %v3136 = vmul.f32 %v2880, 1.0614054
        %v3137 = vmul.f32 %v2881, 1.0614054
        %v3138 = vmul.f32 %v2882, 1.0614054
        %v3139 = vmul.f32 %v2883, 1.0614054
        %v3140 = vmul.f32 %v2884, 1.0614054
        %v3141 = vmul.f32 %v2885, 1.0614054
        %v3142 = vmul.f32 %v2886, 1.0614054
        %v3143 = vmul.f32 %v2887, 1.0614054
        %v3144 = vmul.f32 %v2888, 1.0614054
        %v3145 = vmul.f32 %v2889, 1.0614054
        %v3146 = vmul.f32 %v2890, 1.0614054
        %v3147 = vmul.f32 %v2891, 1.0614054
        %v3148 = vmul.f32 %v2892, 1.0614054
        %v3149 = vmul.f32 %v2893, 1.0614054
        %v3150 = vmul.f32 %v2894, 1.0614054
        %v3151 = vmul.f32 %v2895, 1.0614054
        %v3152 = vmul.f32 %v2896, 1.0614054
        %v3153 = vmul.f32 %v2897, 1.0614054
        %v3154 = vmul.f32 %v2898, 1.0614054
        %v3155 = vmul.f32 %v2899, 1.0614054
        %v3156 = vmul.f32 %v2900, 1.0614054
        %v3157 = vmul.f32 %v2901, 1.0614054
        %v3158 = vmul.f32 %v2902, 1.0614054
        %v3159 = vmul.f32 %v2903, 1.0614054
        %v3160 = vmul.f32 %v2904, 1.0614054
        %v3161 = vmul.f32 %v2905, 1.0614054
        %v3162 = vmul.f32 %v2906, 1.0614054
        %v3163 = vmul.f32 %v2907, 1.0614054
        %v3164 = vmul.f32 %v2908, 1.0614054
        %v3165 = vmul.f32 %v2909, 1.0614054
        %v3166 = vmul.f32 %v2910, 1.0614054
        %v3167 = vmul.f32 %v2911, 1.0614054
        %v3168 = vmul.f32 %v2912, 1.0614054
        %v3169 = vmul.f32 %v2913, 1.0614054
        %v3170 = vmul.f32 %v2914, 1.0614054
        %v3171 = vmul.f32 %v2915, 1.0614054
        %v3172 = vmul.f32 %v2916, 1.0614054
        %v3173 = vmul.f32 %v2917, 1.0614054
        %v3174 = vmul.f32 %v2918, 1.0614054
        %v3175 = vmul.f32 %v2919, 1.0614054
        %v3176 = vmul.f32 %v2920, 1.0614054
        %v3177 = vmul.f32 %v2921, 1.0614054
        %v3178 = vmul.f32 %v2922, 1.0614054
        %v3179 = vmul.f32 %v2923, 1.0614054
        %v3180 = vmul.f32 %v2924, 1.0614054
        %v3181 = vmul.f32 %v2925, 1.0614054
        %v3182 = vmul.f32 %v2926, 1.0614054
        %v3183 = vmul.f32 %v2927, 1.0614054
        %v3184 = vmul.f32 %v2928, 1.0614054
        %v3185 = vmul.f32 %v2929, 1.0614054
        %v3186 = vmul.f32 %v2930, 1.0614054
        %v3187 = vmul.f32 %v2931, 1.0614054
        %v3188 = vmul.f32 %v2932, 1.0614054
        %v3189 = vmul.f32 %v2933, 1.0614054
        %v3190 = vmul.f32 %v2934, 1.0614054
        %v3191 = vmul.f32 %v2935, 1.0614054
        %v3192 = vmul.f32 %v2936, 1.0614054
        %v3193 = vmul.f32 %v2937, 1.0614054
        %v3194 = vmul.f32 %v2938, 1.0614054
        %v3195 = vmul.f32 %v2939, 1.0614054
        %v3196 = vmul.f32 %v2940, 1.0614054
        %v3197 = vmul.f32 %v2941, 1.0614054
        %v3198 = vmul.f32 %v2942, 1.0614054
        %v3199 = vmul.f32 %v2943, 1.0614054
        %v3200 = vmul.f32 %v2944, 1.0614054
        %v3201 = vmul.f32 %v2945, 1.0614054
        %v3202 = vmul.f32 %v2946, 1.0614054
        %v3203 = vmul.f32 %v2947, 1.0614054
        %v3204 = vmul.f32 %v2948, 1.0614054
        %v3205 = vmul.f32 %v2949, 1.0614054
        %v3206 = vmul.f32 %v2950, 1.0614054
        %v3207 = vmul.f32 %v2951, 1.0614054
        %v3208 = vmul.f32 %v2952, 1.0614054
        %v3209 = vmul.f32 %v2953, 1.0614054
        %v3210 = vmul.f32 %v2954, 1.0614054
        %v3211 = vmul.f32 %v2955, 1.0614054
        %v3212 = vmul.f32 %v2956, 1.0614054
        %v3213 = vmul.f32 %v2957, 1.0614054
        %v3214 = vmul.f32 %v2958, 1.0614054
        %v3215 = vmul.f32 %v2959, 1.0614054
        %v3216 = vmul.f32 %v2960, 1.0614054
        %v3217 = vmul.f32 %v2961, 1.0614054
        %v3218 = vmul.f32 %v2962, 1.0614054
        %v3219 = vmul.f32 %v2963, 1.0614054
        %v3220 = vmul.f32 %v2964, 1.0614054
        %v3221 = vmul.f32 %v2965, 1.0614054
        %v3222 = vmul.f32 %v2966, 1.0614054
        %v3223 = vmul.f32 %v2967, 1.0614054
        %v3224 = vmul.f32 %v2968, 1.0614054
        %v3225 = vmul.f32 %v2969, 1.0614054
        %v3226 = vmul.f32 %v2970, 1.0614054
        %v3227 = vmul.f32 %v2971, 1.0614054
        %v3228 = vmul.f32 %v2972, 1.0614054
        %v3229 = vmul.f32 %v2973, 1.0614054
        %v3230 = vmul.f32 %v2974, 1.0614054
        %v3231 = vmul.f32 %v2975, 1.0614054
        %v3232 = vmul.f32 %v2976, 1.0614054
        %v3233 = vmul.f32 %v2977, 1.0614054
        %v3234 = vmul.f32 %v2978, 1.0614054
        %v3235 = vmul.f32 %v2979, 1.0614054
        %v3236 = vmul.f32 %v2980, 1.0614054
        %v3237 = vmul.f32 %v2981, 1.0614054
        %v3238 = vmul.f32 %v2982, 1.0614054
        %v3239 = vmul.f32 %v2983, 1.0614054
        %v3240 = vmul.f32 %v2984, 1.0614054
        %v3241 = vmul.f32 %v2985, 1.0614054
        %v3242 = vmul.f32 %v2986, 1.0614054
        %v3243 = vmul.f32 %v2987, 1.0614054
        %v3244 = vmul.f32 %v2988, 1.0614054
        %v3245 = vmul.f32 %v2989, 1.0614054
        %v3246 = vmul.f32 %v2990, 1.0614054
        %v3247 = vmul.f32 %v2991, 1.0614054
        %v3248 = vmul.f32 %v2992, 1.0614054
        %v3249 = vmul.f32 %v2993, 1.0614054
        %v3250 = vmul.f32 %v2994, 1.0614054
        %v3251 = vmul.f32 %v2995, 1.0614054
        %v3252 = vmul.f32 %v2996, 1.0614054
        %v3253 = vmul.f32 %v2997, 1.0614054
        %v3254 = vmul.f32 %v2998, 1.0614054
        %v3255 = vmul.f32 %v2999, 1.0614054
        %v3256 = vmul.f32 %v3000, 1.0614054
        %v3257 = vmul.f32 %v3001, 1.0614054
        %v3258 = vmul.f32 %v3002, 1.0614054
        %v3259 = vmul.f32 %v3003, 1.0614054
        %v3260 = vmul.f32 %v3004, 1.0614054
        %v3261 = vmul.f32 %v3005, 1.0614054
        %v3262 = vmul.f32 %v3006, 1.0614054
        %v3263 = vmul.f32 %v3007, 1.0614054
        %v3264 = vmul.f32 %v3008, 1.0614054
        %v3265 = vmul.f32 %v3009, 1.0614054
        %v3266 = vmul.f32 %v3010, 1.0614054
        %v3267 = vmul.f32 %v3011, 1.0614054
        %v3268 = vmul.f32 %v3012, 1.0614054
        %v3269 = vmul.f32 %v3013, 1.0614054
        %v3270 = vmul.f32 %v3014, 1.0614054
        %v3271 = vmul.f32 %v3015, 1.0614054
        %v3272 = vmul.f32 %v3016, 1.0614054
        %v3273 = vmul.f32 %v3017, 1.0614054
        %v3274 = vmul.f32 %v3018, 1.0614054
        %v3275 = vmul.f32 %v3019, 1.0614054
        %v3276 = vmul.f32 %v3020, 1.0614054
        %v3277 = vmul.f32 %v3021, 1.0614054
        %v3278 = vmul.f32 %v3022, 1.0614054
        %v3279 = vmul.f32 %v3023, 1.0614054
        %v3280 = vmul.f32 %v3024, 1.0614054
        %v3281 = vmul.f32 %v3025, 1.0614054
        %v3282 = vmul.f32 %v3026, 1.0614054
        %v3283 = vmul.f32 %v3027, 1.0614054
        %v3284 = vmul.f32 %v3028, 1.0614054
        %v3285 = vmul.f32 %v3029, 1.0614054
        %v3286 = vmul.f32 %v3030, 1.0614054
        %v3287 = vmul.f32 %v3031, 1.0614054
        %v3288 = vmul.f32 %v3032, 1.0614054
        %v3289 = vmul.f32 %v3033, 1.0614054
        %v3290 = vmul.f32 %v3034, 1.0614054
        %v3291 = vadd.f32 %v3035, -1.4531521
        %v3292 = vadd.f32 %v3036, -1.4531521
        %v3293 = vadd.f32 %v3037, -1.4531521
        %v3294 = vadd.f32 %v3038, -1.4531521
        %v3295 = vadd.f32 %v3039, -1.4531521
        %v3296 = vadd.f32 %v3040, -1.4531521
        %v3297 = vadd.f32 %v3041, -1.4531521
        %v3298 = vadd.f32 %v3042, -1.4531521
        %v3299 = vadd.f32 %v3043, -1.4531521
        %v3300 = vadd.f32 %v3044, -1.4531521
        %v3301 = vadd.f32 %v3045, -1.4531521
        %v3302 = vadd.f32 %v3046, -1.4531521
        %v3303 = vadd.f32 %v3047, -1.4531521
        %v3304 = vadd.f32 %v3048, -1.4531521
        %v3305 = vadd.f32 %v3049, -1.4531521
        %v3306 = vadd.f32 %v3050, -1.4531521
        %v3307 = vadd.f32 %v3051, -1.4531521
        %v3308 = vadd.f32 %v3052, -1.4531521
        %v3309 = vadd.f32 %v3053, -1.4531521
        %v3310 = vadd.f32 %v3054, -1.4531521
        %v3311 = vadd.f32 %v3055, -1.4531521
        %v3312 = vadd.f32 %v3056, -1.4531521
        %v3313 = vadd.f32 %v3057, -1.4531521
        %v3314 = vadd.f32 %v3058, -1.4531521
        %v3315 = vadd.f32 %v3059, -1.4531521
        %v3316 = vadd.f32 %v3060, -1.4531521
        %v3317 = vadd.f32 %v3061, -1.4531521
        %v3318 = vadd.f32 %v3062, -1.4531521
        %v3319 = vadd.f32 %v3063, -1.4531521
        %v3320 = vadd.f32 %v3064, -1.4531521
        %v3321 = vadd.f32 %v3065, -1.4531521
        %v3322 = vadd.f32 %v3066, -1.4531521
        %v3323 = vadd.f32 %v3067, -1.4531521
        %v3324 = vadd.f32 %v3068, -1.4531521
        %v3325 = vadd.f32 %v3069, -1.4531521
        %v3326 = vadd.f32 %v3070, -1.4531521
        %v3327 = vadd.f32 %v3071, -1.4531521
        %v3328 = vadd.f32 %v3072, -1.4531521
        %v3329 = vadd.f32 %v3073, -1.4531521
        %v3330 = vadd.f32 %v3074, -1.4531521
        %v3331 = vadd.f32 %v3075, -1.4531521
        %v3332 = vadd.f32 %v3076, -1.4531521
        %v3333 = vadd.f32 %v3077, -1.4531521
        %v3334 = vadd.f32 %v3078, -1.4531521
        %v3335 = vadd.f32 %v3079, -1.4531521
        %v3336 = vadd.f32 %v3080, -1.4531521
        %v3337 = vadd.f32 %v3081, -1.4531521
        %v3338 = vadd.f32 %v3082, -1.4531521
        %v3339 = vadd.f32 %v3083, -1.4531521
        %v3340 = vadd.f32 %v3084, -1.4531521
        %v3341 = vadd.f32 %v3085, -1.4531521
        %v3342 = vadd.f32 %v3086, -1.4531521
        %v3343 = vadd.f32 %v3087, -1.4531521
        %v3344 = vadd.f32 %v3088, -1.4531521
        %v3345 = vadd.f32 %v3089, -1.4531521
        %v3346 = vadd.f32 %v3090, -1.4531521
        %v3347 = vadd.f32 %v3091, -1.4531521
        %v3348 = vadd.f32 %v3092, -1.4531521
        %v3349 = vadd.f32 %v3093, -1.4531521
        %v3350 = vadd.f32 %v3094, -1.4531521
        %v3351 = vadd.f32 %v3095, -1.4531521
        %v3352 = vadd.f32 %v3096, -1.4531521
        %v3353 = vadd.f32 %v3097, -1.4531521
        %v3354 = vadd.f32 %v3098, -1.4531521
        %v3355 = vadd.f32 %v3099, -1.4531521
        %v3356 = vadd.f32 %v3100, -1.4531521
        %v3357 = vadd.f32 %v3101, -1.4531521
        %v3358 = vadd.f32 %v3102, -1.4531521
        %v3359 = vadd.f32 %v3103, -1.4531521
        %v3360 = vadd.f32 %v3104, -1.4531521
        %v3361 = vadd.f32 %v3105, -1.4531521
        %v3362 = vadd.f32 %v3106, -1.4531521
        %v3363 = vadd.f32 %v3107, -1.4531521
        %v3364 = vadd.f32 %v3108, -1.4531521
        %v3365 = vadd.f32 %v3109, -1.4531521
        %v3366 = vadd.f32 %v3110, -1.4531521
        %v3367 = vadd.f32 %v3111, -1.4531521
        %v3368 = vadd.f32 %v3112, -1.4531521
        %v3369 = vadd.f32 %v3113, -1.4531521
        %v3370 = vadd.f32 %v3114, -1.4531521
        %v3371 = vadd.f32 %v3115, -1.4531521
        %v3372 = vadd.f32 %v3116, -1.4531521
        %v3373 = vadd.f32 %v3117, -1.4531521
        %v3374 = vadd.f32 %v3118, -1.4531521
        %v3375 = vadd.f32 %v3119, -1.4531521
        %v3376 = vadd.f32 %v3120, -1.4531521
        %v3377 = vadd.f32 %v3121, -1.4531521
        %v3378 = vadd.f32 %v3122, -1.4531521
        %v3379 = vadd.f32 %v3123, -1.4531521
        %v3380 = vadd.f32 %v3124, -1.4531521
        %v3381 = vadd.f32 %v3125, -1.4531521
        %v3382 = vadd.f32 %v3126, -1.4531521
        %v3383 = vadd.f32 %v3127, -1.4531521
        %v3384 = vadd.f32 %v3128, -1.4531521
        %v3385 = vadd.f32 %v3129, -1.4531521
        %v3386 = vadd.f32 %v3130, -1.4531521
        %v3387 = vadd.f32 %v3131, -1.4531521
        %v3388 = vadd.f32 %v3132, -1.4531521
        %v3389 = vadd.f32 %v3133, -1.4531521
        %v3390 = vadd.f32 %v3134, -1.4531521
        %v3391 = vadd.f32 %v3135, -1.4531521
        %v3392 = vadd.f32 %v3136, -1.4531521
        %v3393 = vadd.f32 %v3137, -1.4531521
        %v3394 = vadd.f32 %v3138, -1.4531521
        %v3395 = vadd.f32 %v3139, -1.4531521
        %v3396 = vadd.f32 %v3140, -1.4531521
        %v3397 = vadd.f32 %v3141, -1.4531521
        %v3398 = vadd.f32 %v3142, -1.4531521
        %v3399 = vadd.f32 %v3143, -1.4531521
        %v3400 = vadd.f32 %v3144, -1.4531521
        %v3401 = vadd.f32 %v3145, -1.4531521
        %v3402 = vadd.f32 %v3146, -1.4531521
        %v3403 = vadd.f32 %v3147, -1.4531521
        %v3404 = vadd.f32 %v3148, -1.4531521
        %v3405 = vadd.f32 %v3149, -1.4531521
        %v3406 = vadd.f32 %v3150, -1.4531521
        %v3407 = vadd.f32 %v3151, -1.4531521
        %v3408 = vadd.f32 %v3152, -1.4531521
        %v3409 = vadd.f32 %v3153, -1.4531521
        %v3410 = vadd.f32 %v3154, -1.4531521
        %v3411 = vadd.f32 %v3155, -1.4531521
        %v3412 = vadd.f32 %v3156, -1.4531521
        %v3413 = vadd.f32 %v3157, -1.4531521
        %v3414 = vadd.f32 %v3158, -1.4531521
        %v3415 = vadd.f32 %v3159, -1.4531521
        %v3416 = vadd.f32 %v3160, -1.4531521
        %v3417 = vadd.f32 %v3161, -1.4531521
        %v3418 = vadd.f32 %v3162, -1.4531521
        %v3419 = vadd.f32 %v3163, -1.4531521
        %v3420 = vadd.f32 %v3164, -1.4531521
        %v3421 = vadd.f32 %v3165, -1.4531521
        %v3422 = vadd.f32 %v3166, -1.4531521
        %v3423 = vadd.f32 %v3167, -1.4531521
        %v3424 = vadd.f32 %v3168, -1.4531521
        %v3425 = vadd.f32 %v3169, -1.4531521
        %v3426 = vadd.f32 %v3170, -1.4531521
        %v3427 = vadd.f32 %v3171, -1.4531521
        %v3428 = vadd.f32 %v3172, -1.4531521
        %v3429 = vadd.f32 %v3173, -1.4531521
        %v3430 = vadd.f32 %v3174, -1.4531521
        %v3431 = vadd.f32 %v3175, -1.4531521
        %v3432 = vadd.f32 %v3176, -1.4531521
        %v3433 = vadd.f32 %v3177, -1.4531521
        %v3434 = vadd.f32 %v3178, -1.4531521
        %v3435 = vadd.f32 %v3179, -1.4531521
        %v3436 = vadd.f32 %v3180, -1.4531521
        %v3437 = vadd.f32 %v3181, -1.4531521
        %v3438 = vadd.f32 %v3182, -1.4531521
        %v3439 = vadd.f32 %v3183, -1.4531521
        %v3440 = vadd.f32 %v3184, -1.4531521
        %v3441 = vadd.f32 %v3185, -1.4531521
        %v3442 = vadd.f32 %v3186, -1.4531521
        %v3443 = vadd.f32 %v3187, -1.4531521
        %v3444 = vadd.f32 %v3188, -1.4531521
        %v3445 = vadd.f32 %v3189, -1.4531521
        %v3446 = vadd.f32 %v3190, -1.4531521
        %v3447 = vadd.f32 %v3191, -1.4531521
        %v3448 = vadd.f32 %v3192, -1.4531521
        %v3449 = vadd.f32 %v3193, -1.4531521
        %v3450 = vadd.f32 %v3194, -1.4531521
        %v3451 = vadd.f32 %v3195, -1.4531521
        %v3452 = vadd.f32 %v3196, -1.4531521
        %v3453 = vadd.f32 %v3197, -1.4531521
        %v3454 = vadd.f32 %v3198, -1.4531521
        %v3455 = vadd.f32 %v3199, -1.4531521
        %v3456 = vadd.f32 %v3200, -1.4531521
        %v3457 = vadd.f32 %v3201, -1.4531521
        %v3458 = vadd.f32 %v3202, -1.4531521
        %v3459 = vadd.f32 %v3203, -1.4531521
        %v3460 = vadd.f32 %v3204, -1.4531521
        %v3461 = vadd.f32 %v3205, -1.4531521
        %v3462 = vadd.f32 %v3206, -1.4531521
        %v3463 = vadd.f32 %v3207, -1.4531521
        %v3464 = vadd.f32 %v3208, -1.4531521
        %v3465 = vadd.f32 %v3209, -1.4531521
        %v3466 = vadd.f32 %v3210, -1.4531521
        %v3467 = vadd.f32 %v3211, -1.4531521
        %v3468 = vadd.f32 %v3212, -1.4531521
        %v3469 = vadd.f32 %v3213, -1.4531521
        %v3470 = vadd.f32 %v3214, -1.4531521
        %v3471 = vadd.f32 %v3215, -1.4531521
        %v3472 = vadd.f32 %v3216, -1.4531521
        %v3473 = vadd.f32 %v3217, -1.4531521
        %v3474 = vadd.f32 %v3218, -1.4531521
        %v3475 = vadd.f32 %v3219, -1.4531521
        %v3476 = vadd.f32 %v3220, -1.4531521
        %v3477 = vadd.f32 %v3221, -1.4531521
        %v3478 = vadd.f32 %v3222, -1.4531521
        %v3479 = vadd.f32 %v3223, -1.4531521
        %v3480 = vadd.f32 %v3224, -1.4531521
        %v3481 = vadd.f32 %v3225, -1.4531521
        %v3482 = vadd.f32 %v3226, -1.4531521
        %v3483 = vadd.f32 %v3227, -1.4531521
        %v3484 = vadd.f32 %v3228, -1.4531521
        %v3485 = vadd.f32 %v3229, -1.4531521
        %v3486 = vadd.f32 %v3230, -1.4531521
        %v3487 = vadd.f32 %v3231, -1.4531521
        %v3488 = vadd.f32 %v3232, -1.4531521
        %v3489 = vadd.f32 %v3233, -1.4531521
        %v3490 = vadd.f32 %v3234, -1.4531521
        %v3491 = vadd.f32 %v3235, -1.4531521
        %v3492 = vadd.f32 %v3236, -1.4531521
        %v3493 = vadd.f32 %v3237, -1.4531521
        %v3494 = vadd.f32 %v3238, -1.4531521
        %v3495 = vadd.f32 %v3239, -1.4531521
        %v3496 = vadd.f32 %v3240, -1.4531521
        %v3497 = vadd.f32 %v3241, -1.4531521
        %v3498 = vadd.f32 %v3242, -1.4531521
        %v3499 = vadd.f32 %v3243, -1.4531521
        %v3500 = vadd.f32 %v3244, -1.4531521
        %v3501 = vadd.f32 %v3245, -1.4531521
        %v3502 = vadd.f32 %v3246, -1.4531521
        %v3503 = vadd.f32 %v3247, -1.4531521
        %v3504 = vadd.f32 %v3248, -1.4531521
        %v3505 = vadd.f32 %v3249, -1.4531521
        %v3506 = vadd.f32 %v3250, -1.4531521
        %v3507 = vadd.f32 %v3251, -1.4531521
        %v3508 = vadd.f32 %v3252, -1.4531521
        %v3509 = vadd.f32 %v3253, -1.4531521
        %v3510 = vadd.f32 %v3254, -1.4531521
        %v3511 = vadd.f32 %v3255, -1.4531521
        %v3512 = vadd.f32 %v3256, -1.4531521
        %v3513 = vadd.f32 %v3257, -1.4531521
        %v3514 = vadd.f32 %v3258, -1.4531521
        %v3515 = vadd.f32 %v3259, -1.4531521
        %v3516 = vadd.f32 %v3260, -1.4531521
        %v3517 = vadd.f32 %v3261, -1.4531521
        %v3518 = vadd.f32 %v3262, -1.4531521
        %v3519 = vadd.f32 %v3263, -1.4531521
        %v3520 = vadd.f32 %v3264, -1.4531521
        %v3521 = vadd.f32 %v3265, -1.4531521
        %v3522 = vadd.f32 %v3266, -1.4531521
        %v3523 = vadd.f32 %v3267, -1.4531521
        %v3524 = vadd.f32 %v3268, -1.4531521
        %v3525 = vadd.f32 %v3269, -1.4531521
        %v3526 = vadd.f32 %v3270, -1.4531521
        %v3527 = vadd.f32 %v3271, -1.4531521
        %v3528 = vadd.f32 %v3272, -1.4531521
        %v3529 = vadd.f32 %v3273, -1.4531521
        %v3530 = vadd.f32 %v3274, -1.4531521
        %v3531 = vadd.f32 %v3275, -1.4531521
        %v3532 = vadd.f32 %v3276, -1.4531521
        %v3533 = vadd.f32 %v3277, -1.4531521
        %v3534 = vadd.f32 %v3278, -1.4531521
        %v3535 = vadd.f32 %v3279, -1.4531521
        %v3536 = vadd.f32 %v3280, -1.4531521
        %v3537 = vadd.f32 %v3281, -1.4531521
        %v3538 = vadd.f32 %v3282, -1.4531521
        %v3539 = vadd.f32 %v3283, -1.4531521
        %v3540 = vadd.f32 %v3284, -1.4531521
        %v3541 = vadd.f32 %v3285, -1.4531521
        %v3542 = vadd.f32 %v3286, -1.4531521
        %v3543 = vadd.f32 %v3287, -1.4531521
        %v3544 = vadd.f32 %v3288, -1.4531521
        %v3545 = vadd.f32 %v3289, -1.4531521
        %v3546 = vadd.f32 %v3290, -1.4531521
        %v3547 = vmul.f32 %v3291, %v2779
        %v3548 = vmul.f32 %v3292, %v2780
        %v3549 = vmul.f32 %v3293, %v2781
        %v3550 = vmul.f32 %v3294, %v2782
        %v3551 = vmul.f32 %v3295, %v2783
        %v3552 = vmul.f32 %v3296, %v2784
        %v3553 = vmul.f32 %v3297, %v2785
        %v3554 = vmul.f32 %v3298, %v2786
        %v3555 = vmul.f32 %v3299, %v2787
        %v3556 = vmul.f32 %v3300, %v2788
        %v3557 = vmul.f32 %v3301, %v2789
        %v3558 = vmul.f32 %v3302, %v2790
        %v3559 = vmul.f32 %v3303, %v2791
        %v3560 = vmul.f32 %v3304, %v2792
        %v3561 = vmul.f32 %v3305, %v2793
        %v3562 = vmul.f32 %v3306, %v2794
        %v3563 = vmul.f32 %v3307, %v2795
        %v3564 = vmul.f32 %v3308, %v2796
        %v3565 = vmul.f32 %v3309, %v2797
        %v3566 = vmul.f32 %v3310, %v2798
        %v3567 = vmul.f32 %v3311, %v2799
        %v3568 = vmul.f32 %v3312, %v2800
        %v3569 = vmul.f32 %v3313, %v2801
        %v3570 = vmul.f32 %v3314, %v2802
        %v3571 = vmul.f32 %v3315, %v2803
        %v3572 = vmul.f32 %v3316, %v2804
        %v3573 = vmul.f32 %v3317, %v2805
        %v3574 = vmul.f32 %v3318, %v2806
        %v3575 = vmul.f32 %v3319, %v2807
        %v3576 = vmul.f32 %v3320, %v2808
        %v3577 = vmul.f32 %v3321, %v2809
        %v3578 = vmul.f32 %v3322, %v2810
        %v3579 = vmul.f32 %v3323, %v2811
        %v3580 = vmul.f32 %v3324, %v2812
        %v3581 = vmul.f32 %v3325, %v2813
        %v3582 = vmul.f32 %v3326, %v2814
        %v3583 = vmul.f32 %v3327, %v2815
        %v3584 = vmul.f32 %v3328, %v2816
        %v3585 = vmul.f32 %v3329, %v2817
        %v3586 = vmul.f32 %v3330, %v2818
        %v3587 = vmul.f32 %v3331, %v2819
        %v3588 = vmul.f32 %v3332, %v2820
        %v3589 = vmul.f32 %v3333, %v2821
        %v3590 = vmul.f32 %v3334, %v2822
        %v3591 = vmul.f32 %v3335, %v2823
        %v3592 = vmul.f32 %v3336, %v2824
        %v3593 = vmul.f32 %v3337, %v2825
        %v3594 = vmul.f32 %v3338, %v2826
        %v3595 = vmul.f32 %v3339, %v2827
        %v3596 = vmul.f32 %v3340, %v2828
        %v3597 = vmul.f32 %v3341, %v2829
        %v3598 = vmul.f32 %v3342, %v2830
        %v3599 = vmul.f32 %v3343, %v2831
        %v3600 = vmul.f32 %v3344, %v2832
        %v3601 = vmul.f32 %v3345, %v2833
        %v3602 = vmul.f32 %v3346, %v2834
        %v3603 = vmul.f32 %v3347, %v2835
        %v3604 = vmul.f32 %v3348, %v2836
        %v3605 = vmul.f32 %v3349, %v2837
        %v3606 = vmul.f32 %v3350, %v2838
        %v3607 = vmul.f32 %v3351, %v2839
        %v3608 = vmul.f32 %v3352, %v2840
        %v3609 = vmul.f32 %v3353, %v2841
        %v3610 = vmul.f32 %v3354, %v2842
        %v3611 = vmul.f32 %v3355, %v2843
        %v3612 = vmul.f32 %v3356, %v2844
        %v3613 = vmul.f32 %v3357, %v2845
        %v3614 = vmul.f32 %v3358, %v2846
        %v3615 = vmul.f32 %v3359, %v2847
        %v3616 = vmul.f32 %v3360, %v2848
        %v3617 = vmul.f32 %v3361, %v2849
        %v3618 = vmul.f32 %v3362, %v2850
        %v3619 = vmul.f32 %v3363, %v2851
        %v3620 = vmul.f32 %v3364, %v2852
        %v3621 = vmul.f32 %v3365, %v2853
        %v3622 = vmul.f32 %v3366, %v2854
        %v3623 = vmul.f32 %v3367, %v2855
        %v3624 = vmul.f32 %v3368, %v2856
        %v3625 = vmul.f32 %v3369, %v2857
        %v3626 = vmul.f32 %v3370, %v2858
        %v3627 = vmul.f32 %v3371, %v2859
        %v3628 = vmul.f32 %v3372, %v2860
        %v3629 = vmul.f32 %v3373, %v2861
        %v3630 = vmul.f32 %v3374, %v2862
        %v3631 = vmul.f32 %v3375, %v2863
        %v3632 = vmul.f32 %v3376, %v2864
        %v3633 = vmul.f32 %v3377, %v2865
        %v3634 = vmul.f32 %v3378, %v2866
        %v3635 = vmul.f32 %v3379, %v2867
        %v3636 = vmul.f32 %v3380, %v2868
        %v3637 = vmul.f32 %v3381, %v2869
        %v3638 = vmul.f32 %v3382, %v2870
        %v3639 = vmul.f32 %v3383, %v2871
        %v3640 = vmul.f32 %v3384, %v2872
        %v3641 = vmul.f32 %v3385, %v2873
        %v3642 = vmul.f32 %v3386, %v2874
        %v3643 = vmul.f32 %v3387, %v2875
        %v3644 = vmul.f32 %v3388, %v2876
        %v3645 = vmul.f32 %v3389, %v2877
        %v3646 = vmul.f32 %v3390, %v2878
        %v3647 = vmul.f32 %v3391, %v2879
        %v3648 = vmul.f32 %v3392, %v2880
        %v3649 = vmul.f32 %v3393, %v2881
        %v3650 = vmul.f32 %v3394, %v2882
        %v3651 = vmul.f32 %v3395, %v2883
        %v3652 = vmul.f32 %v3396, %v2884
        %v3653 = vmul.f32 %v3397, %v2885
        %v3654 = vmul.f32 %v3398, %v2886
        %v3655 = vmul.f32 %v3399, %v2887
        %v3656 = vmul.f32 %v3400, %v2888
        %v3657 = vmul.f32 %v3401, %v2889
        %v3658 = vmul.f32 %v3402, %v2890
        %v3659 = vmul.f32 %v3403, %v2891
        %v3660 = vmul.f32 %v3404, %v2892
        %v3661 = vmul.f32 %v3405, %v2893
        %v3662 = vmul.f32 %v3406, %v2894
        %v3663 = vmul.f32 %v3407, %v2895
        %v3664 = vmul.f32 %v3408, %v2896
        %v3665 = vmul.f32 %v3409, %v2897
        %v3666 = vmul.f32 %v3410, %v2898
        %v3667 = vmul.f32 %v3411, %v2899
        %v3668 = vmul.f32 %v3412, %v2900
        %v3669 = vmul.f32 %v3413, %v2901
        %v3670 = vmul.f32 %v3414, %v2902
        %v3671 = vmul.f32 %v3415, %v2903
        %v3672 = vmul.f32 %v3416, %v2904
        %v3673 = vmul.f32 %v3417, %v2905
        %v3674 = vmul.f32 %v3418, %v2906
        %v3675 = vmul.f32 %v3419, %v2907
        %v3676 = vmul.f32 %v3420, %v2908
        %v3677 = vmul.f32 %v3421, %v2909
        %v3678 = vmul.f32 %v3422, %v2910
        %v3679 = vmul.f32 %v3423, %v2911
        %v3680 = vmul.f32 %v3424, %v2912
        %v3681 = vmul.f32 %v3425, %v2913
        %v3682 = vmul.f32 %v3426, %v2914
        %v3683 = vmul.f32 %v3427, %v2915
        %v3684 = vmul.f32 %v3428, %v2916
        %v3685 = vmul.f32 %v3429, %v2917
        %v3686 = vmul.f32 %v3430, %v2918
        %v3687 = vmul.f32 %v3431, %v2919
        %v3688 = vmul.f32 %v3432, %v2920
        %v3689 = vmul.f32 %v3433, %v2921
        %v3690 = vmul.f32 %v3434, %v2922
        %v3691 = vmul.f32 %v3435, %v2923
        %v3692 = vmul.f32 %v3436, %v2924
        %v3693 = vmul.f32 %v3437, %v2925
        %v3694 = vmul.f32 %v3438, %v2926
        %v3695 = vmul.f32 %v3439, %v2927
        %v3696 = vmul.f32 %v3440, %v2928
        %v3697 = vmul.f32 %v3441, %v2929
        %v3698 = vmul.f32 %v3442, %v2930
        %v3699 = vmul.f32 %v3443, %v2931
        %v3700 = vmul.f32 %v3444, %v2932
        %v3701 = vmul.f32 %v3445, %v2933
        %v3702 = vmul.f32 %v3446, %v2934
        %v3703 = vmul.f32 %v3447, %v2935
        %v3704 = vmul.f32 %v3448, %v2936
        %v3705 = vmul.f32 %v3449, %v2937
        %v3706 = vmul.f32 %v3450, %v2938
        %v3707 = vmul.f32 %v3451, %v2939
        %v3708 = vmul.f32 %v3452, %v2940
        %v3709 = vmul.f32 %v3453, %v2941
        %v3710 = vmul.f32 %v3454, %v2942
        %v3711 = vmul.f32 %v3455, %v2943
        %v3712 = vmul.f32 %v3456, %v2944
        %v3713 = vmul.f32 %v3457, %v2945
        %v3714 = vmul.f32 %v3458, %v2946
        %v3715 = vmul.f32 %v3459, %v2947
        %v3716 = vmul.f32 %v3460, %v2948
        %v3717 = vmul.f32 %v3461, %v2949
        %v3718 = vmul.f32 %v3462, %v2950
        %v3719 = vmul.f32 %v3463, %v2951
        %v3720 = vmul.f32 %v3464, %v2952
        %v3721 = vmul.f32 %v3465, %v2953
        %v3722 = vmul.f32 %v3466, %v2954
        %v3723 = vmul.f32 %v3467, %v2955
        %v3724 = vmul.f32 %v3468, %v2956
        %v3725 = vmul.f32 %v3469, %v2957
        %v3726 = vmul.f32 %v3470, %v2958
        %v3727 = vmul.f32 %v3471, %v2959
        %v3728 = vmul.f32 %v3472, %v2960
        %v3729 = vmul.f32 %v3473, %v2961
        %v3730 = vmul.f32 %v3474, %v2962
        %v3731 = vmul.f32 %v3475, %v2963
        %v3732 = vmul.f32 %v3476, %v2964
        %v3733 = vmul.f32 %v3477, %v2965
        %v3734 = vmul.f32 %v3478, %v2966
        %v3735 = vmul.f32 %v3479, %v2967
        %v3736 = vmul.f32 %v3480, %v2968
        %v3737 = vmul.f32 %v3481, %v2969
        %v3738 = vmul.f32 %v3482, %v2970
        %v3739 = vmul.f32 %v3483, %v2971
        %v3740 = vmul.f32 %v3484, %v2972
        %v3741 = vmul.f32 %v3485, %v2973
        %v3742 = vmul.f32 %v3486, %v2974
        %v3743 = vmul.f32 %v3487, %v2975
        %v3744 = vmul.f32 %v3488, %v2976
        %v3745 = vmul.f32 %v3489, %v2977
        %v3746 = vmul.f32 %v3490, %v2978
        %v3747 = vmul.f32 %v3491, %v2979
        %v3748 = vmul.f32 %v3492, %v2980
        %v3749 = vmul.f32 %v3493, %v2981
        %v3750 = vmul.f32 %v3494, %v2982
        %v3751 = vmul.f32 %v3495, %v2983
        %v3752 = vmul.f32 %v3496, %v2984
        %v3753 = vmul.f32 %v3497, %v2985
        %v3754 = vmul.f32 %v3498, %v2986
        %v3755 = vmul.f32 %v3499, %v2987
        %v3756 = vmul.f32 %v3500, %v2988
        %v3757 = vmul.f32 %v3501, %v2989
        %v3758 = vmul.f32 %v3502, %v2990
        %v3759 = vmul.f32 %v3503, %v2991
        %v3760 = vmul.f32 %v3504, %v2992
        %v3761 = vmul.f32 %v3505, %v2993
        %v3762 = vmul.f32 %v3506, %v2994
        %v3763 = vmul.f32 %v3507, %v2995
        %v3764 = vmul.f32 %v3508, %v2996
        %v3765 = vmul.f32 %v3509, %v2997
        %v3766 = vmul.f32 %v3510, %v2998
        %v3767 = vmul.f32 %v3511, %v2999
        %v3768 = vmul.f32 %v3512, %v3000
        %v3769 = vmul.f32 %v3513, %v3001
        %v3770 = vmul.f32 %v3514, %v3002
        %v3771 = vmul.f32 %v3515, %v3003
        %v3772 = vmul.f32 %v3516, %v3004
        %v3773 = vmul.f32 %v3517, %v3005
        %v3774 = vmul.f32 %v3518, %v3006
        %v3775 = vmul.f32 %v3519, %v3007
        %v3776 = vmul.f32 %v3520, %v3008
        %v3777 = vmul.f32 %v3521, %v3009
        %v3778 = vmul.f32 %v3522, %v3010
        %v3779 = vmul.f32 %v3523, %v3011
        %v3780 = vmul.f32 %v3524, %v3012
        %v3781 = vmul.f32 %v3525, %v3013
        %v3782 = vmul.f32 %v3526, %v3014
        %v3783 = vmul.f32 %v3527, %v3015
        %v3784 = vmul.f32 %v3528, %v3016
        %v3785 = vmul.f32 %v3529, %v3017
        %v3786 = vmul.f32 %v3530, %v3018
        %v3787 = vmul.f32 %v3531, %v3019
        %v3788 = vmul.f32 %v3532, %v3020
        %v3789 = vmul.f32 %v3533, %v3021
        %v3790 = vmul.f32 %v3534, %v3022
        %v3791 = vmul.f32 %v3535, %v3023
        %v3792 = vmul.f32 %v3536, %v3024
        %v3793 = vmul.f32 %v3537, %v3025
        %v3794 = vmul.f32 %v3538, %v3026
        %v3795 = vmul.f32 %v3539, %v3027
        %v3796 = vmul.f32 %v3540, %v3028
        %v3797 = vmul.f32 %v3541, %v3029
        %v3798 = vmul.f32 %v3542, %v3030
        %v3799 = vmul.f32 %v3543, %v3031
        %v3800 = vmul.f32 %v3544, %v3032
        %v3801 = vmul.f32 %v3545, %v3033
        %v3802 = vmul.f32 %v3546, %v3034
        %v3803 = vadd.f32 %v3547, 1.4214138
        %v3804 = vadd.f32 %v3548, 1.4214138
        %v3805 = vadd.f32 %v3549, 1.4214138
        %v3806 = vadd.f32 %v3550, 1.4214138
        %v3807 = vadd.f32 %v3551, 1.4214138
        %v3808 = vadd.f32 %v3552, 1.4214138
        %v3809 = vadd.f32 %v3553, 1.4214138
        %v3810 = vadd.f32 %v3554, 1.4214138
        %v3811 = vadd.f32 %v3555, 1.4214138
        %v3812 = vadd.f32 %v3556, 1.4214138
        %v3813 = vadd.f32 %v3557, 1.4214138
        %v3814 = vadd.f32 %v3558, 1.4214138
        %v3815 = vadd.f32 %v3559, 1.4214138
        %v3816 = vadd.f32 %v3560, 1.4214138
        %v3817 = vadd.f32 %v3561, 1.4214138
        %v3818 = vadd.f32 %v3562, 1.4214138
        %v3819 = vadd.f32 %v3563, 1.4214138
        %v3820 = vadd.f32 %v3564, 1.4214138
        %v3821 = vadd.f32 %v3565, 1.4214138
        %v3822 = vadd.f32 %v3566, 1.4214138
        %v3823 = vadd.f32 %v3567, 1.4214138
        %v3824 = vadd.f32 %v3568, 1.4214138
        %v3825 = vadd.f32 %v3569, 1.4214138
        %v3826 = vadd.f32 %v3570, 1.4214138
        %v3827 = vadd.f32 %v3571, 1.4214138
        %v3828 = vadd.f32 %v3572, 1.4214138
        %v3829 = vadd.f32 %v3573, 1.4214138
        %v3830 = vadd.f32 %v3574, 1.4214138
        %v3831 = vadd.f32 %v3575, 1.4214138
        %v3832 = vadd.f32 %v3576, 1.4214138
        %v3833 = vadd.f32 %v3577, 1.4214138
        %v3834 = vadd.f32 %v3578, 1.4214138
        %v3835 = vadd.f32 %v3579, 1.4214138
        %v3836 = vadd.f32 %v3580, 1.4214138
        %v3837 = vadd.f32 %v3581, 1.4214138
        %v3838 = vadd.f32 %v3582, 1.4214138
        %v3839 = vadd.f32 %v3583, 1.4214138
        %v3840 = vadd.f32 %v3584, 1.4214138
        %v3841 = vadd.f32 %v3585, 1.4214138
        %v3842 = vadd.f32 %v3586, 1.4214138
        %v3843 = vadd.f32 %v3587, 1.4214138
        %v3844 = vadd.f32 %v3588, 1.4214138
        %v3845 = vadd.f32 %v3589, 1.4214138
        %v3846 = vadd.f32 %v3590, 1.4214138
        %v3847 = vadd.f32 %v3591, 1.4214138
        %v3848 = vadd.f32 %v3592, 1.4214138
        %v3849 = vadd.f32 %v3593, 1.4214138
        %v3850 = vadd.f32 %v3594, 1.4214138
        %v3851 = vadd.f32 %v3595, 1.4214138
        %v3852 = vadd.f32 %v3596, 1.4214138
        %v3853 = vadd.f32 %v3597, 1.4214138
        %v3854 = vadd.f32 %v3598, 1.4214138
        %v3855 = vadd.f32 %v3599, 1.4214138
        %v3856 = vadd.f32 %v3600, 1.4214138
        %v3857 = vadd.f32 %v3601, 1.4214138
        %v3858 = vadd.f32 %v3602, 1.4214138
        %v3859 = vadd.f32 %v3603, 1.4214138
        %v3860 = vadd.f32 %v3604, 1.4214138
        %v3861 = vadd.f32 %v3605, 1.4214138
        %v3862 = vadd.f32 %v3606, 1.4214138
        %v3863 = vadd.f32 %v3607, 1.4214138
        %v3864 = vadd.f32 %v3608, 1.4214138
        %v3865 = vadd.f32 %v3609, 1.4214138
        %v3866 = vadd.f32 %v3610, 1.4214138
        %v3867 = vadd.f32 %v3611, 1.4214138
        %v3868 = vadd.f32 %v3612, 1.4214138
        %v3869 = vadd.f32 %v3613, 1.4214138
        %v3870 = vadd.f32 %v3614, 1.4214138
        %v3871 = vadd.f32 %v3615, 1.4214138
        %v3872 = vadd.f32 %v3616, 1.4214138
        %v3873 = vadd.f32 %v3617, 1.4214138
        %v3874 = vadd.f32 %v3618, 1.4214138
        %v3875 = vadd.f32 %v3619, 1.4214138
        %v3876 = vadd.f32 %v3620, 1.4214138
        %v3877 = vadd.f32 %v3621, 1.4214138
        %v3878 = vadd.f32 %v3622, 1.4214138
        %v3879 = vadd.f32 %v3623, 1.4214138
        %v3880 = vadd.f32 %v3624, 1.4214138
        %v3881 = vadd.f32 %v3625, 1.4214138
        %v3882 = vadd.f32 %v3626, 1.4214138
        %v3883 = vadd.f32 %v3627, 1.4214138
        %v3884 = vadd.f32 %v3628, 1.4214138
        %v3885 = vadd.f32 %v3629, 1.4214138
        %v3886 = vadd.f32 %v3630, 1.4214138
        %v3887 = vadd.f32 %v3631, 1.4214138
        %v3888 = vadd.f32 %v3632, 1.4214138
        %v3889 = vadd.f32 %v3633, 1.4214138
        %v3890 = vadd.f32 %v3634, 1.4214138
        %v3891 = vadd.f32 %v3635, 1.4214138
        %v3892 = vadd.f32 %v3636, 1.4214138
        %v3893 = vadd.f32 %v3637, 1.4214138
        %v3894 = vadd.f32 %v3638, 1.4214138
        %v3895 = vadd.f32 %v3639, 1.4214138
        %v3896 = vadd.f32 %v3640, 1.4214138
        %v3897 = vadd.f32 %v3641, 1.4214138
        %v3898 = vadd.f32 %v3642, 1.4214138
        %v3899 = vadd.f32 %v3643, 1.4214138
        %v3900 = vadd.f32 %v3644, 1.4214138
        %v3901 = vadd.f32 %v3645, 1.4214138
        %v3902 = vadd.f32 %v3646, 1.4214138
        %v3903 = vadd.f32 %v3647, 1.4214138
        %v3904 = vadd.f32 %v3648, 1.4214138
        %v3905 = vadd.f32 %v3649, 1.4214138
        %v3906 = vadd.f32 %v3650, 1.4214138
        %v3907 = vadd.f32 %v3651, 1.4214138
        %v3908 = vadd.f32 %v3652, 1.4214138
        %v3909 = vadd.f32 %v3653, 1.4214138
        %v3910 = vadd.f32 %v3654, 1.4214138
        %v3911 = vadd.f32 %v3655, 1.4214138
        %v3912 = vadd.f32 %v3656, 1.4214138
        %v3913 = vadd.f32 %v3657, 1.4214138
        %v3914 = vadd.f32 %v3658, 1.4214138
        %v3915 = vadd.f32 %v3659, 1.4214138
        %v3916 = vadd.f32 %v3660, 1.4214138
        %v3917 = vadd.f32 %v3661, 1.4214138
        %v3918 = vadd.f32 %v3662, 1.4214138
        %v3919 = vadd.f32 %v3663, 1.4214138
        %v3920 = vadd.f32 %v3664, 1.4214138
        %v3921 = vadd.f32 %v3665, 1.4214138
        %v3922 = vadd.f32 %v3666, 1.4214138
        %v3923 = vadd.f32 %v3667, 1.4214138
        %v3924 = vadd.f32 %v3668, 1.4214138
        %v3925 = vadd.f32 %v3669, 1.4214138
        %v3926 = vadd.f32 %v3670, 1.4214138
        %v3927 = vadd.f32 %v3671, 1.4214138
        %v3928 = vadd.f32 %v3672, 1.4214138
        %v3929 = vadd.f32 %v3673, 1.4214138
        %v3930 = vadd.f32 %v3674, 1.4214138
        %v3931 = vadd.f32 %v3675, 1.4214138
        %v3932 = vadd.f32 %v3676, 1.4214138
        %v3933 = vadd.f32 %v3677, 1.4214138
        %v3934 = vadd.f32 %v3678, 1.4214138
        %v3935 = vadd.f32 %v3679, 1.4214138
        %v3936 = vadd.f32 %v3680, 1.4214138
        %v3937 = vadd.f32 %v3681, 1.4214138
        %v3938 = vadd.f32 %v3682, 1.4214138
        %v3939 = vadd.f32 %v3683, 1.4214138
        %v3940 = vadd.f32 %v3684, 1.4214138
        %v3941 = vadd.f32 %v3685, 1.4214138
        %v3942 = vadd.f32 %v3686, 1.4214138
        %v3943 = vadd.f32 %v3687, 1.4214138
        %v3944 = vadd.f32 %v3688, 1.4214138
        %v3945 = vadd.f32 %v3689, 1.4214138
        %v3946 = vadd.f32 %v3690, 1.4214138
        %v3947 = vadd.f32 %v3691, 1.4214138
        %v3948 = vadd.f32 %v3692, 1.4214138
        %v3949 = vadd.f32 %v3693, 1.4214138
        %v3950 = vadd.f32 %v3694, 1.4214138
        %v3951 = vadd.f32 %v3695, 1.4214138
        %v3952 = vadd.f32 %v3696, 1.4214138
        %v3953 = vadd.f32 %v3697, 1.4214138
        %v3954 = vadd.f32 %v3698, 1.4214138
        %v3955 = vadd.f32 %v3699, 1.4214138
        %v3956 = vadd.f32 %v3700, 1.4214138
        %v3957 = vadd.f32 %v3701, 1.4214138
        %v3958 = vadd.f32 %v3702, 1.4214138
        %v3959 = vadd.f32 %v3703, 1.4214138
        %v3960 = vadd.f32 %v3704, 1.4214138
        %v3961 = vadd.f32 %v3705, 1.4214138
        %v3962 = vadd.f32 %v3706, 1.4214138
        %v3963 = vadd.f32 %v3707, 1.4214138
        %v3964 = vadd.f32 %v3708, 1.4214138
        %v3965 = vadd.f32 %v3709, 1.4214138
        %v3966 = vadd.f32 %v3710, 1.4214138
        %v3967 = vadd.f32 %v3711, 1.4214138
        %v3968 = vadd.f32 %v3712, 1.4214138
        %v3969 = vadd.f32 %v3713, 1.4214138
        %v3970 = vadd.f32 %v3714, 1.4214138
        %v3971 = vadd.f32 %v3715, 1.4214138
        %v3972 = vadd.f32 %v3716, 1.4214138
        %v3973 = vadd.f32 %v3717, 1.4214138
        %v3974 = vadd.f32 %v3718, 1.4214138
        %v3975 = vadd.f32 %v3719, 1.4214138
        %v3976 = vadd.f32 %v3720, 1.4214138
        %v3977 = vadd.f32 %v3721, 1.4214138
        %v3978 = vadd.f32 %v3722, 1.4214138
        %v3979 = vadd.f32 %v3723, 1.4214138
        %v3980 = vadd.f32 %v3724, 1.4214138
        %v3981 = vadd.f32 %v3725, 1.4214138
        %v3982 = vadd.f32 %v3726, 1.4214138
        %v3983 = vadd.f32 %v3727, 1.4214138
        %v3984 = vadd.f32 %v3728, 1.4214138
        %v3985 = vadd.f32 %v3729, 1.4214138
        %v3986 = vadd.f32 %v3730, 1.4214138
        %v3987 = vadd.f32 %v3731, 1.4214138
        %v3988 = vadd.f32 %v3732, 1.4214138
        %v3989 = vadd.f32 %v3733, 1.4214138
        %v3990 = vadd.f32 %v3734, 1.4214138
        %v3991 = vadd.f32 %v3735, 1.4214138
        %v3992 = vadd.f32 %v3736, 1.4214138
        %v3993 = vadd.f32 %v3737, 1.4214138
        %v3994 = vadd.f32 %v3738, 1.4214138
        %v3995 = vadd.f32 %v3739, 1.4214138
        %v3996 = vadd.f32 %v3740, 1.4214138
        %v3997 = vadd.f32 %v3741, 1.4214138
        %v3998 = vadd.f32 %v3742, 1.4214138
        %v3999 = vadd.f32 %v3743, 1.4214138
        %v4000 = vadd.f32 %v3744, 1.4214138
        %v4001 = vadd.f32 %v3745, 1.4214138
        %v4002 = vadd.f32 %v3746, 1.4214138
        %v4003 = vadd.f32 %v3747, 1.4214138
        %v4004 = vadd.f32 %v3748, 1.4214138
        %v4005 = vadd.f32 %v3749, 1.4214138
        %v4006 = vadd.f32 %v3750, 1.4214138
        %v4007 = vadd.f32 %v3751, 1.4214138
        %v4008 = vadd.f32 %v3752, 1.4214138
        %v4009 = vadd.f32 %v3753, 1.4214138
        %v4010 = vadd.f32 %v3754, 1.4214138
        %v4011 = vadd.f32 %v3755, 1.4214138
        %v4012 = vadd.f32 %v3756, 1.4214138
        %v4013 = vadd.f32 %v3757, 1.4214138
        %v4014 = vadd.f32 %v3758, 1.4214138
        %v4015 = vadd.f32 %v3759, 1.4214138
        %v4016 = vadd.f32 %v3760, 1.4214138
        %v4017 = vadd.f32 %v3761, 1.4214138
        %v4018 = vadd.f32 %v3762, 1.4214138
        %v4019 = vadd.f32 %v3763, 1.4214138
        %v4020 = vadd.f32 %v3764, 1.4214138
        %v4021 = vadd.f32 %v3765, 1.4214138
        %v4022 = vadd.f32 %v3766, 1.4214138
        %v4023 = vadd.f32 %v3767, 1.4214138
        %v4024 = vadd.f32 %v3768, 1.4214138
        %v4025 = vadd.f32 %v3769, 1.4214138
        %v4026 = vadd.f32 %v3770, 1.4214138
        %v4027 = vadd.f32 %v3771, 1.4214138
        %v4028 = vadd.f32 %v3772, 1.4214138
        %v4029 = vadd.f32 %v3773, 1.4214138
        %v4030 = vadd.f32 %v3774, 1.4214138
        %v4031 = vadd.f32 %v3775, 1.4214138
        %v4032 = vadd.f32 %v3776, 1.4214138
        %v4033 = vadd.f32 %v3777, 1.4214138
        %v4034 = vadd.f32 %v3778, 1.4214138
        %v4035 = vadd.f32 %v3779, 1.4214138
        %v4036 = vadd.f32 %v3780, 1.4214138
        %v4037 = vadd.f32 %v3781, 1.4214138
        %v4038 = vadd.f32 %v3782, 1.4214138
        %v4039 = vadd.f32 %v3783, 1.4214138
        %v4040 = vadd.f32 %v3784, 1.4214138
        %v4041 = vadd.f32 %v3785, 1.4214138
        %v4042 = vadd.f32 %v3786, 1.4214138
        %v4043 = vadd.f32 %v3787, 1.4214138
        %v4044 = vadd.f32 %v3788, 1.4214138
        %v4045 = vadd.f32 %v3789, 1.4214138
        %v4046 = vadd.f32 %v3790, 1.4214138
        %v4047 = vadd.f32 %v3791, 1.4214138
        %v4048 = vadd.f32 %v3792, 1.4214138
        %v4049 = vadd.f32 %v3793, 1.4214138
        %v4050 = vadd.f32 %v3794, 1.4214138
        %v4051 = vadd.f32 %v3795, 1.4214138
        %v4052 = vadd.f32 %v3796, 1.4214138
        %v4053 = vadd.f32 %v3797, 1.4214138
        %v4054 = vadd.f32 %v3798, 1.4214138
        %v4055 = vadd.f32 %v3799, 1.4214138
        %v4056 = vadd.f32 %v3800, 1.4214138
        %v4057 = vadd.f32 %v3801, 1.4214138
        %v4058 = vadd.f32 %v3802, 1.4214138
        %v4059 = vmul.f32 %v3803, %v2779
        %v4060 = vmul.f32 %v3804, %v2780
        %v4061 = vmul.f32 %v3805, %v2781
        %v4062 = vmul.f32 %v3806, %v2782
        %v4063 = vmul.f32 %v3807, %v2783
        %v4064 = vmul.f32 %v3808, %v2784
        %v4065 = vmul.f32 %v3809, %v2785
        %v4066 = vmul.f32 %v3810, %v2786
        %v4067 = vmul.f32 %v3811, %v2787
        %v4068 = vmul.f32 %v3812, %v2788
        %v4069 = vmul.f32 %v3813, %v2789
        %v4070 = vmul.f32 %v3814, %v2790
        %v4071 = vmul.f32 %v3815, %v2791
        %v4072 = vmul.f32 %v3816, %v2792
        %v4073 = vmul.f32 %v3817, %v2793
        %v4074 = vmul.f32 %v3818, %v2794
        %v4075 = vmul.f32 %v3819, %v2795
        %v4076 = vmul.f32 %v3820, %v2796
        %v4077 = vmul.f32 %v3821, %v2797
        %v4078 = vmul.f32 %v3822, %v2798
        %v4079 = vmul.f32 %v3823, %v2799
        %v4080 = vmul.f32 %v3824, %v2800
        %v4081 = vmul.f32 %v3825, %v2801
        %v4082 = vmul.f32 %v3826, %v2802
        %v4083 = vmul.f32 %v3827, %v2803
        %v4084 = vmul.f32 %v3828, %v2804
        %v4085 = vmul.f32 %v3829, %v2805
        %v4086 = vmul.f32 %v3830, %v2806
        %v4087 = vmul.f32 %v3831, %v2807
        %v4088 = vmul.f32 %v3832, %v2808
        %v4089 = vmul.f32 %v3833, %v2809
        %v4090 = vmul.f32 %v3834, %v2810
        %v4091 = vmul.f32 %v3835, %v2811
        %v4092 = vmul.f32 %v3836, %v2812
        %v4093 = vmul.f32 %v3837, %v2813
        %v4094 = vmul.f32 %v3838, %v2814
        %v4095 = vmul.f32 %v3839, %v2815
        %v4096 = vmul.f32 %v3840, %v2816
        %v4097 = vmul.f32 %v3841, %v2817
        %v4098 = vmul.f32 %v3842, %v2818
        %v4099 = vmul.f32 %v3843, %v2819
        %v4100 = vmul.f32 %v3844, %v2820
        %v4101 = vmul.f32 %v3845, %v2821
        %v4102 = vmul.f32 %v3846, %v2822
        %v4103 = vmul.f32 %v3847, %v2823
        %v4104 = vmul.f32 %v3848, %v2824
        %v4105 = vmul.f32 %v3849, %v2825
        %v4106 = vmul.f32 %v3850, %v2826
        %v4107 = vmul.f32 %v3851, %v2827
        %v4108 = vmul.f32 %v3852, %v2828
        %v4109 = vmul.f32 %v3853, %v2829
        %v4110 = vmul.f32 %v3854, %v2830
        %v4111 = vmul.f32 %v3855, %v2831
        %v4112 = vmul.f32 %v3856, %v2832
        %v4113 = vmul.f32 %v3857, %v2833
        %v4114 = vmul.f32 %v3858, %v2834
        %v4115 = vmul.f32 %v3859, %v2835
        %v4116 = vmul.f32 %v3860, %v2836
        %v4117 = vmul.f32 %v3861, %v2837
        %v4118 = vmul.f32 %v3862, %v2838
        %v4119 = vmul.f32 %v3863, %v2839
        %v4120 = vmul.f32 %v3864, %v2840
        %v4121 = vmul.f32 %v3865, %v2841
        %v4122 = vmul.f32 %v3866, %v2842
        %v4123 = vmul.f32 %v3867, %v2843
        %v4124 = vmul.f32 %v3868, %v2844
        %v4125 = vmul.f32 %v3869, %v2845
        %v4126 = vmul.f32 %v3870, %v2846
        %v4127 = vmul.f32 %v3871, %v2847
        %v4128 = vmul.f32 %v3872, %v2848
        %v4129 = vmul.f32 %v3873, %v2849
        %v4130 = vmul.f32 %v3874, %v2850
        %v4131 = vmul.f32 %v3875, %v2851
        %v4132 = vmul.f32 %v3876, %v2852
        %v4133 = vmul.f32 %v3877, %v2853
        %v4134 = vmul.f32 %v3878, %v2854
        %v4135 = vmul.f32 %v3879, %v2855
        %v4136 = vmul.f32 %v3880, %v2856
        %v4137 = vmul.f32 %v3881, %v2857
        %v4138 = vmul.f32 %v3882, %v2858
        %v4139 = vmul.f32 %v3883, %v2859
        %v4140 = vmul.f32 %v3884, %v2860
        %v4141 = vmul.f32 %v3885, %v2861
        %v4142 = vmul.f32 %v3886, %v2862
        %v4143 = vmul.f32 %v3887, %v2863
        %v4144 = vmul.f32 %v3888, %v2864
        %v4145 = vmul.f32 %v3889, %v2865
        %v4146 = vmul.f32 %v3890, %v2866
        %v4147 = vmul.f32 %v3891, %v2867
        %v4148 = vmul.f32 %v3892, %v2868
        %v4149 = vmul.f32 %v3893, %v2869
        %v4150 = vmul.f32 %v3894, %v2870
        %v4151 = vmul.f32 %v3895, %v2871
        %v4152 = vmul.f32 %v3896, %v2872
        %v4153 = vmul.f32 %v3897, %v2873
        %v4154 = vmul.f32 %v3898, %v2874
        %v4155 = vmul.f32 %v3899, %v2875
        %v4156 = vmul.f32 %v3900, %v2876
        %v4157 = vmul.f32 %v3901, %v2877
        %v4158 = vmul.f32 %v3902, %v2878
        %v4159 = vmul.f32 %v3903, %v2879
        %v4160 = vmul.f32 %v3904, %v2880
        %v4161 = vmul.f32 %v3905, %v2881
        %v4162 = vmul.f32 %v3906, %v2882
        %v4163 = vmul.f32 %v3907, %v2883
        %v4164 = vmul.f32 %v3908, %v2884
        %v4165 = vmul.f32 %v3909, %v2885
        %v4166 = vmul.f32 %v3910, %v2886
        %v4167 = vmul.f32 %v3911, %v2887
        %v4168 = vmul.f32 %v3912, %v2888
        %v4169 = vmul.f32 %v3913, %v2889
        %v4170 = vmul.f32 %v3914, %v2890
        %v4171 = vmul.f32 %v3915, %v2891
        %v4172 = vmul.f32 %v3916, %v2892
        %v4173 = vmul.f32 %v3917, %v2893
        %v4174 = vmul.f32 %v3918, %v2894
        %v4175 = vmul.f32 %v3919, %v2895
        %v4176 = vmul.f32 %v3920, %v2896
        %v4177 = vmul.f32 %v3921, %v2897
        %v4178 = vmul.f32 %v3922, %v2898
        %v4179 = vmul.f32 %v3923, %v2899
        %v4180 = vmul.f32 %v3924, %v2900
        %v4181 = vmul.f32 %v3925, %v2901
        %v4182 = vmul.f32 %v3926, %v2902
        %v4183 = vmul.f32 %v3927, %v2903
        %v4184 = vmul.f32 %v3928, %v2904
        %v4185 = vmul.f32 %v3929, %v2905
        %v4186 = vmul.f32 %v3930, %v2906
        %v4187 = vmul.f32 %v3931, %v2907
        %v4188 = vmul.f32 %v3932, %v2908
        %v4189 = vmul.f32 %v3933, %v2909
        %v4190 = vmul.f32 %v3934, %v2910
        %v4191 = vmul.f32 %v3935, %v2911
        %v4192 = vmul.f32 %v3936, %v2912
        %v4193 = vmul.f32 %v3937, %v2913
        %v4194 = vmul.f32 %v3938, %v2914
        %v4195 = vmul.f32 %v3939, %v2915
        %v4196 = vmul.f32 %v3940, %v2916
        %v4197 = vmul.f32 %v3941, %v2917
        %v4198 = vmul.f32 %v3942, %v2918
        %v4199 = vmul.f32 %v3943, %v2919
        %v4200 = vmul.f32 %v3944, %v2920
        %v4201 = vmul.f32 %v3945, %v2921
        %v4202 = vmul.f32 %v3946, %v2922
        %v4203 = vmul.f32 %v3947, %v2923
        %v4204 = vmul.f32 %v3948, %v2924
        %v4205 = vmul.f32 %v3949, %v2925
        %v4206 = vmul.f32 %v3950, %v2926
        %v4207 = vmul.f32 %v3951, %v2927
        %v4208 = vmul.f32 %v3952, %v2928
        %v4209 = vmul.f32 %v3953, %v2929
        %v4210 = vmul.f32 %v3954, %v2930
        %v4211 = vmul.f32 %v3955, %v2931
        %v4212 = vmul.f32 %v3956, %v2932
        %v4213 = vmul.f32 %v3957, %v2933
        %v4214 = vmul.f32 %v3958, %v2934
        %v4215 = vmul.f32 %v3959, %v2935
        %v4216 = vmul.f32 %v3960, %v2936
        %v4217 = vmul.f32 %v3961, %v2937
        %v4218 = vmul.f32 %v3962, %v2938
        %v4219 = vmul.f32 %v3963, %v2939
        %v4220 = vmul.f32 %v3964, %v2940
        %v4221 = vmul.f32 %v3965, %v2941
        %v4222 = vmul.f32 %v3966, %v2942
        %v4223 = vmul.f32 %v3967, %v2943
        %v4224 = vmul.f32 %v3968, %v2944
        %v4225 = vmul.f32 %v3969, %v2945
        %v4226 = vmul.f32 %v3970, %v2946
        %v4227 = vmul.f32 %v3971, %v2947
        %v4228 = vmul.f32 %v3972, %v2948
        %v4229 = vmul.f32 %v3973, %v2949
        %v4230 = vmul.f32 %v3974, %v2950
        %v4231 = vmul.f32 %v3975, %v2951
        %v4232 = vmul.f32 %v3976, %v2952
        %v4233 = vmul.f32 %v3977, %v2953
        %v4234 = vmul.f32 %v3978, %v2954
        %v4235 = vmul.f32 %v3979, %v2955
        %v4236 = vmul.f32 %v3980, %v2956
        %v4237 = vmul.f32 %v3981, %v2957
        %v4238 = vmul.f32 %v3982, %v2958
        %v4239 = vmul.f32 %v3983, %v2959
        %v4240 = vmul.f32 %v3984, %v2960
        %v4241 = vmul.f32 %v3985, %v2961
        %v4242 = vmul.f32 %v3986, %v2962
        %v4243 = vmul.f32 %v3987, %v2963
        %v4244 = vmul.f32 %v3988, %v2964
        %v4245 = vmul.f32 %v3989, %v2965
        %v4246 = vmul.f32 %v3990, %v2966
        %v4247 = vmul.f32 %v3991, %v2967
        %v4248 = vmul.f32 %v3992, %v2968
        %v4249 = vmul.f32 %v3993, %v2969
        %v4250 = vmul.f32 %v3994, %v2970
        %v4251 = vmul.f32 %v3995, %v2971
        %v4252 = vmul.f32 %v3996, %v2972
        %v4253 = vmul.f32 %v3997, %v2973
        %v4254 = vmul.f32 %v3998, %v2974
        %v4255 = vmul.f32 %v3999, %v2975
        %v4256 = vmul.f32 %v4000, %v2976
        %v4257 = vmul.f32 %v4001, %v2977
        %v4258 = vmul.f32 %v4002, %v2978
        %v4259 = vmul.f32 %v4003, %v2979
        %v4260 = vmul.f32 %v4004, %v2980
        %v4261 = vmul.f32 %v4005, %v2981
        %v4262 = vmul.f32 %v4006, %v2982
        %v4263 = vmul.f32 %v4007, %v2983
        %v4264 = vmul.f32 %v4008, %v2984
        %v4265 = vmul.f32 %v4009, %v2985
        %v4266 = vmul.f32 %v4010, %v2986
        %v4267 = vmul.f32 %v4011, %v2987
        %v4268 = vmul.f32 %v4012, %v2988
        %v4269 = vmul.f32 %v4013, %v2989
        %v4270 = vmul.f32 %v4014, %v2990
        %v4271 = vmul.f32 %v4015, %v2991
        %v4272 = vmul.f32 %v4016, %v2992
        %v4273 = vmul.f32 %v4017, %v2993
        %v4274 = vmul.f32 %v4018, %v2994
        %v4275 = vmul.f32 %v4019, %v2995
        %v4276 = vmul.f32 %v4020, %v2996
        %v4277 = vmul.f32 %v4021, %v2997
        %v4278 = vmul.f32 %v4022, %v2998
        %v4279 = vmul.f32 %v4023, %v2999
        %v4280 = vmul.f32 %v4024, %v3000
        %v4281 = vmul.f32 %v4025, %v3001
        %v4282 = vmul.f32 %v4026, %v3002
        %v4283 = vmul.f32 %v4027, %v3003
        %v4284 = vmul.f32 %v4028, %v3004
        %v4285 = vmul.f32 %v4029, %v3005
        %v4286 = vmul.f32 %v4030, %v3006
        %v4287 = vmul.f32 %v4031, %v3007
        %v4288 = vmul.f32 %v4032, %v3008
        %v4289 = vmul.f32 %v4033, %v3009
        %v4290 = vmul.f32 %v4034, %v3010
        %v4291 = vmul.f32 %v4035, %v3011
        %v4292 = vmul.f32 %v4036, %v3012
        %v4293 = vmul.f32 %v4037, %v3013
        %v4294 = vmul.f32 %v4038, %v3014
        %v4295 = vmul.f32 %v4039, %v3015
        %v4296 = vmul.f32 %v4040, %v3016
        %v4297 = vmul.f32 %v4041, %v3017
        %v4298 = vmul.f32 %v4042, %v3018
        %v4299 = vmul.f32 %v4043, %v3019
        %v4300 = vmul.f32 %v4044, %v3020
        %v4301 = vmul.f32 %v4045, %v3021
        %v4302 = vmul.f32 %v4046, %v3022
        %v4303 = vmul.f32 %v4047, %v3023
        %v4304 = vmul.f32 %v4048, %v3024
        %v4305 = vmul.f32 %v4049, %v3025
        %v4306 = vmul.f32 %v4050, %v3026
        %v4307 = vmul.f32 %v4051, %v3027
        %v4308 = vmul.f32 %v4052, %v3028
        %v4309 = vmul.f32 %v4053, %v3029
        %v4310 = vmul.f32 %v4054, %v3030
        %v4311 = vmul.f32 %v4055, %v3031
        %v4312 = vmul.f32 %v4056, %v3032
        %v4313 = vmul.f32 %v4057, %v3033
        %v4314 = vmul.f32 %v4058, %v3034
        %v4315 = vadd.f32 %v4059, -0.28449672
        %v4316 = vadd.f32 %v4060, -0.28449672
        %v4317 = vadd.f32 %v4061, -0.28449672
        %v4318 = vadd.f32 %v4062, -0.28449672
        %v4319 = vadd.f32 %v4063, -0.28449672
        %v4320 = vadd.f32 %v4064, -0.28449672
        %v4321 = vadd.f32 %v4065, -0.28449672
        %v4322 = vadd.f32 %v4066, -0.28449672
        %v4323 = vadd.f32 %v4067, -0.28449672
        %v4324 = vadd.f32 %v4068, -0.28449672
        %v4325 = vadd.f32 %v4069, -0.28449672
        %v4326 = vadd.f32 %v4070, -0.28449672
        %v4327 = vadd.f32 %v4071, -0.28449672
        %v4328 = vadd.f32 %v4072, -0.28449672
        %v4329 = vadd.f32 %v4073, -0.28449672
        %v4330 = vadd.f32 %v4074, -0.28449672
        %v4331 = vadd.f32 %v4075, -0.28449672
        %v4332 = vadd.f32 %v4076, -0.28449672
        %v4333 = vadd.f32 %v4077, -0.28449672
        %v4334 = vadd.f32 %v4078, -0.28449672
        %v4335 = vadd.f32 %v4079, -0.28449672
        %v4336 = vadd.f32 %v4080, -0.28449672
        %v4337 = vadd.f32 %v4081, -0.28449672
        %v4338 = vadd.f32 %v4082, -0.28449672
        %v4339 = vadd.f32 %v4083, -0.28449672
        %v4340 = vadd.f32 %v4084, -0.28449672
        %v4341 = vadd.f32 %v4085, -0.28449672
        %v4342 = vadd.f32 %v4086, -0.28449672
        %v4343 = vadd.f32 %v4087, -0.28449672
        %v4344 = vadd.f32 %v4088, -0.28449672
        %v4345 = vadd.f32 %v4089, -0.28449672
        %v4346 = vadd.f32 %v4090, -0.28449672
        %v4347 = vadd.f32 %v4091, -0.28449672
        %v4348 = vadd.f32 %v4092, -0.28449672
        %v4349 = vadd.f32 %v4093, -0.28449672
        %v4350 = vadd.f32 %v4094, -0.28449672
        %v4351 = vadd.f32 %v4095, -0.28449672
        %v4352 = vadd.f32 %v4096, -0.28449672
        %v4353 = vadd.f32 %v4097, -0.28449672
        %v4354 = vadd.f32 %v4098, -0.28449672
        %v4355 = vadd.f32 %v4099, -0.28449672
        %v4356 = vadd.f32 %v4100, -0.28449672
        %v4357 = vadd.f32 %v4101, -0.28449672
        %v4358 = vadd.f32 %v4102, -0.28449672
        %v4359 = vadd.f32 %v4103, -0.28449672
        %v4360 = vadd.f32 %v4104, -0.28449672
        %v4361 = vadd.f32 %v4105, -0.28449672
        %v4362 = vadd.f32 %v4106, -0.28449672
        %v4363 = vadd.f32 %v4107, -0.28449672
        %v4364 = vadd.f32 %v4108, -0.28449672
        %v4365 = vadd.f32 %v4109, -0.28449672
        %v4366 = vadd.f32 %v4110, -0.28449672
        %v4367 = vadd.f32 %v4111, -0.28449672
        %v4368 = vadd.f32 %v4112, -0.28449672
        %v4369 = vadd.f32 %v4113, -0.28449672
        %v4370 = vadd.f32 %v4114, -0.28449672
        %v4371 = vadd.f32 %v4115, -0.28449672
        %v4372 = vadd.f32 %v4116, -0.28449672
        %v4373 = vadd.f32 %v4117, -0.28449672
        %v4374 = vadd.f32 %v4118, -0.28449672
        %v4375 = vadd.f32 %v4119, -0.28449672
        %v4376 = vadd.f32 %v4120, -0.28449672
        %v4377 = vadd.f32 %v4121, -0.28449672
        %v4378 = vadd.f32 %v4122, -0.28449672
        %v4379 = vadd.f32 %v4123, -0.28449672
        %v4380 = vadd.f32 %v4124, -0.28449672
        %v4381 = vadd.f32 %v4125, -0.28449672
        %v4382 = vadd.f32 %v4126, -0.28449672
        %v4383 = vadd.f32 %v4127, -0.28449672
        %v4384 = vadd.f32 %v4128, -0.28449672
        %v4385 = vadd.f32 %v4129, -0.28449672
        %v4386 = vadd.f32 %v4130, -0.28449672
        %v4387 = vadd.f32 %v4131, -0.28449672
        %v4388 = vadd.f32 %v4132, -0.28449672
        %v4389 = vadd.f32 %v4133, -0.28449672
        %v4390 = vadd.f32 %v4134, -0.28449672
        %v4391 = vadd.f32 %v4135, -0.28449672
        %v4392 = vadd.f32 %v4136, -0.28449672
        %v4393 = vadd.f32 %v4137, -0.28449672
        %v4394 = vadd.f32 %v4138, -0.28449672
        %v4395 = vadd.f32 %v4139, -0.28449672
        %v4396 = vadd.f32 %v4140, -0.28449672
        %v4397 = vadd.f32 %v4141, -0.28449672
        %v4398 = vadd.f32 %v4142, -0.28449672
        %v4399 = vadd.f32 %v4143, -0.28449672
        %v4400 = vadd.f32 %v4144, -0.28449672
        %v4401 = vadd.f32 %v4145, -0.28449672
        %v4402 = vadd.f32 %v4146, -0.28449672
        %v4403 = vadd.f32 %v4147, -0.28449672
        %v4404 = vadd.f32 %v4148, -0.28449672
        %v4405 = vadd.f32 %v4149, -0.28449672
        %v4406 = vadd.f32 %v4150, -0.28449672
        %v4407 = vadd.f32 %v4151, -0.28449672
        %v4408 = vadd.f32 %v4152, -0.28449672
        %v4409 = vadd.f32 %v4153, -0.28449672
        %v4410 = vadd.f32 %v4154, -0.28449672
        %v4411 = vadd.f32 %v4155, -0.28449672
        %v4412 = vadd.f32 %v4156, -0.28449672
        %v4413 = vadd.f32 %v4157, -0.28449672
        %v4414 = vadd.f32 %v4158, -0.28449672
        %v4415 = vadd.f32 %v4159, -0.28449672
        %v4416 = vadd.f32 %v4160, -0.28449672
        %v4417 = vadd.f32 %v4161, -0.28449672
        %v4418 = vadd.f32 %v4162, -0.28449672
        %v4419 = vadd.f32 %v4163, -0.28449672
        %v4420 = vadd.f32 %v4164, -0.28449672
        %v4421 = vadd.f32 %v4165, -0.28449672
        %v4422 = vadd.f32 %v4166, -0.28449672
        %v4423 = vadd.f32 %v4167, -0.28449672
        %v4424 = vadd.f32 %v4168, -0.28449672
        %v4425 = vadd.f32 %v4169, -0.28449672
        %v4426 = vadd.f32 %v4170, -0.28449672
        %v4427 = vadd.f32 %v4171, -0.28449672
        %v4428 = vadd.f32 %v4172, -0.28449672
        %v4429 = vadd.f32 %v4173, -0.28449672
        %v4430 = vadd.f32 %v4174, -0.28449672
        %v4431 = vadd.f32 %v4175, -0.28449672
        %v4432 = vadd.f32 %v4176, -0.28449672
        %v4433 = vadd.f32 %v4177, -0.28449672
        %v4434 = vadd.f32 %v4178, -0.28449672
        %v4435 = vadd.f32 %v4179, -0.28449672
        %v4436 = vadd.f32 %v4180, -0.28449672
        %v4437 = vadd.f32 %v4181, -0.28449672
        %v4438 = vadd.f32 %v4182, -0.28449672
        %v4439 = vadd.f32 %v4183, -0.28449672
        %v4440 = vadd.f32 %v4184, -0.28449672
        %v4441 = vadd.f32 %v4185, -0.28449672
        %v4442 = vadd.f32 %v4186, -0.28449672
        %v4443 = vadd.f32 %v4187, -0.28449672
        %v4444 = vadd.f32 %v4188, -0.28449672
        %v4445 = vadd.f32 %v4189, -0.28449672
        %v4446 = vadd.f32 %v4190, -0.28449672
        %v4447 = vadd.f32 %v4191, -0.28449672
        %v4448 = vadd.f32 %v4192, -0.28449672
        %v4449 = vadd.f32 %v4193, -0.28449672
        %v4450 = vadd.f32 %v4194, -0.28449672
        %v4451 = vadd.f32 %v4195, -0.28449672
        %v4452 = vadd.f32 %v4196, -0.28449672
        %v4453 = vadd.f32 %v4197, -0.28449672
        %v4454 = vadd.f32 %v4198, -0.28449672
        %v4455 = vadd.f32 %v4199, -0.28449672
        %v4456 = vadd.f32 %v4200, -0.28449672
        %v4457 = vadd.f32 %v4201, -0.28449672
        %v4458 = vadd.f32 %v4202, -0.28449672
        %v4459 = vadd.f32 %v4203, -0.28449672
        %v4460 = vadd.f32 %v4204, -0.28449672
        %v4461 = vadd.f32 %v4205, -0.28449672
        %v4462 = vadd.f32 %v4206, -0.28449672
        %v4463 = vadd.f32 %v4207, -0.28449672
        %v4464 = vadd.f32 %v4208, -0.28449672
        %v4465 = vadd.f32 %v4209, -0.28449672
        %v4466 = vadd.f32 %v4210, -0.28449672
        %v4467 = vadd.f32 %v4211, -0.28449672
        %v4468 = vadd.f32 %v4212, -0.28449672
        %v4469 = vadd.f32 %v4213, -0.28449672
        %v4470 = vadd.f32 %v4214, -0.28449672
        %v4471 = vadd.f32 %v4215, -0.28449672
        %v4472 = vadd.f32 %v4216, -0.28449672
        %v4473 = vadd.f32 %v4217, -0.28449672
        %v4474 = vadd.f32 %v4218, -0.28449672
        %v4475 = vadd.f32 %v4219, -0.28449672
        %v4476 = vadd.f32 %v4220, -0.28449672
        %v4477 = vadd.f32 %v4221, -0.28449672
        %v4478 = vadd.f32 %v4222, -0.28449672
        %v4479 = vadd.f32 %v4223, -0.28449672
        %v4480 = vadd.f32 %v4224, -0.28449672
        %v4481 = vadd.f32 %v4225, -0.28449672
        %v4482 = vadd.f32 %v4226, -0.28449672
        %v4483 = vadd.f32 %v4227, -0.28449672
        %v4484 = vadd.f32 %v4228, -0.28449672
        %v4485 = vadd.f32 %v4229, -0.28449672
        %v4486 = vadd.f32 %v4230, -0.28449672
        %v4487 = vadd.f32 %v4231, -0.28449672
        %v4488 = vadd.f32 %v4232, -0.28449672
        %v4489 = vadd.f32 %v4233, -0.28449672
        %v4490 = vadd.f32 %v4234, -0.28449672
        %v4491 = vadd.f32 %v4235, -0.28449672
        %v4492 = vadd.f32 %v4236, -0.28449672
        %v4493 = vadd.f32 %v4237, -0.28449672
        %v4494 = vadd.f32 %v4238, -0.28449672
        %v4495 = vadd.f32 %v4239, -0.28449672
        %v4496 = vadd.f32 %v4240, -0.28449672
        %v4497 = vadd.f32 %v4241, -0.28449672
        %v4498 = vadd.f32 %v4242, -0.28449672
        %v4499 = vadd.f32 %v4243, -0.28449672
        %v4500 = vadd.f32 %v4244, -0.28449672
        %v4501 = vadd.f32 %v4245, -0.28449672
        %v4502 = vadd.f32 %v4246, -0.28449672
        %v4503 = vadd.f32 %v4247, -0.28449672
        %v4504 = vadd.f32 %v4248, -0.28449672
        %v4505 = vadd.f32 %v4249, -0.28449672
        %v4506 = vadd.f32 %v4250, -0.28449672
        %v4507 = vadd.f32 %v4251, -0.28449672
        %v4508 = vadd.f32 %v4252, -0.28449672
        %v4509 = vadd.f32 %v4253, -0.28449672
        %v4510 = vadd.f32 %v4254, -0.28449672
        %v4511 = vadd.f32 %v4255, -0.28449672
        %v4512 = vadd.f32 %v4256, -0.28449672
        %v4513 = vadd.f32 %v4257, -0.28449672
        %v4514 = vadd.f32 %v4258, -0.28449672
        %v4515 = vadd.f32 %v4259, -0.28449672
        %v4516 = vadd.f32 %v4260, -0.28449672
        %v4517 = vadd.f32 %v4261, -0.28449672
        %v4518 = vadd.f32 %v4262, -0.28449672
        %v4519 = vadd.f32 %v4263, -0.28449672
        %v4520 = vadd.f32 %v4264, -0.28449672
        %v4521 = vadd.f32 %v4265, -0.28449672
        %v4522 = vadd.f32 %v4266, -0.28449672
        %v4523 = vadd.f32 %v4267, -0.28449672
        %v4524 = vadd.f32 %v4268, -0.28449672
        %v4525 = vadd.f32 %v4269, -0.28449672
        %v4526 = vadd.f32 %v4270, -0.28449672
        %v4527 = vadd.f32 %v4271, -0.28449672
        %v4528 = vadd.f32 %v4272, -0.28449672
        %v4529 = vadd.f32 %v4273, -0.28449672
        %v4530 = vadd.f32 %v4274, -0.28449672
        %v4531 = vadd.f32 %v4275, -0.28449672
        %v4532 = vadd.f32 %v4276, -0.28449672
        %v4533 = vadd.f32 %v4277, -0.28449672
        %v4534 = vadd.f32 %v4278, -0.28449672
        %v4535 = vadd.f32 %v4279, -0.28449672
        %v4536 = vadd.f32 %v4280, -0.28449672
        %v4537 = vadd.f32 %v4281, -0.28449672
        %v4538 = vadd.f32 %v4282, -0.28449672
        %v4539 = vadd.f32 %v4283, -0.28449672
        %v4540 = vadd.f32 %v4284, -0.28449672
        %v4541 = vadd.f32 %v4285, -0.28449672
        %v4542 = vadd.f32 %v4286, -0.28449672
        %v4543 = vadd.f32 %v4287, -0.28449672
        %v4544 = vadd.f32 %v4288, -0.28449672
        %v4545 = vadd.f32 %v4289, -0.28449672
        %v4546 = vadd.f32 %v4290, -0.28449672
        %v4547 = vadd.f32 %v4291, -0.28449672
        %v4548 = vadd.f32 %v4292, -0.28449672
        %v4549 = vadd.f32 %v4293, -0.28449672
        %v4550 = vadd.f32 %v4294, -0.28449672
        %v4551 = vadd.f32 %v4295, -0.28449672
        %v4552 = vadd.f32 %v4296, -0.28449672
        %v4553 = vadd.f32 %v4297, -0.28449672
        %v4554 = vadd.f32 %v4298, -0.28449672
        %v4555 = vadd.f32 %v4299, -0.28449672
        %v4556 = vadd.f32 %v4300, -0.28449672
        %v4557 = vadd.f32 %v4301, -0.28449672
        %v4558 = vadd.f32 %v4302, -0.28449672
        %v4559 = vadd.f32 %v4303, -0.28449672
        %v4560 = vadd.f32 %v4304, -0.28449672
        %v4561 = vadd.f32 %v4305, -0.28449672
        %v4562 = vadd.f32 %v4306, -0.28449672
        %v4563 = vadd.f32 %v4307, -0.28449672
        %v4564 = vadd.f32 %v4308, -0.28449672
        %v4565 = vadd.f32 %v4309, -0.28449672
        %v4566 = vadd.f32 %v4310, -0.28449672
        %v4567 = vadd.f32 %v4311, -0.28449672
        %v4568 = vadd.f32 %v4312, -0.28449672
        %v4569 = vadd.f32 %v4313, -0.28449672
        %v4570 = vadd.f32 %v4314, -0.28449672
        %v4571 = vmul.f32 %v4315, %v2779
        %v4572 = vmul.f32 %v4316, %v2780
        %v4573 = vmul.f32 %v4317, %v2781
        %v4574 = vmul.f32 %v4318, %v2782
        %v4575 = vmul.f32 %v4319, %v2783
        %v4576 = vmul.f32 %v4320, %v2784
        %v4577 = vmul.f32 %v4321, %v2785
        %v4578 = vmul.f32 %v4322, %v2786
        %v4579 = vmul.f32 %v4323, %v2787
        %v4580 = vmul.f32 %v4324, %v2788
        %v4581 = vmul.f32 %v4325, %v2789
        %v4582 = vmul.f32 %v4326, %v2790
        %v4583 = vmul.f32 %v4327, %v2791
        %v4584 = vmul.f32 %v4328, %v2792
        %v4585 = vmul.f32 %v4329, %v2793
        %v4586 = vmul.f32 %v4330, %v2794
        %v4587 = vmul.f32 %v4331, %v2795
        %v4588 = vmul.f32 %v4332, %v2796
        %v4589 = vmul.f32 %v4333, %v2797
        %v4590 = vmul.f32 %v4334, %v2798
        %v4591 = vmul.f32 %v4335, %v2799
        %v4592 = vmul.f32 %v4336, %v2800
        %v4593 = vmul.f32 %v4337, %v2801
        %v4594 = vmul.f32 %v4338, %v2802
        %v4595 = vmul.f32 %v4339, %v2803
        %v4596 = vmul.f32 %v4340, %v2804
        %v4597 = vmul.f32 %v4341, %v2805
        %v4598 = vmul.f32 %v4342, %v2806
        %v4599 = vmul.f32 %v4343, %v2807
        %v4600 = vmul.f32 %v4344, %v2808
        %v4601 = vmul.f32 %v4345, %v2809
        %v4602 = vmul.f32 %v4346, %v2810
        %v4603 = vmul.f32 %v4347, %v2811
        %v4604 = vmul.f32 %v4348, %v2812
        %v4605 = vmul.f32 %v4349, %v2813
        %v4606 = vmul.f32 %v4350, %v2814
        %v4607 = vmul.f32 %v4351, %v2815
        %v4608 = vmul.f32 %v4352, %v2816
        %v4609 = vmul.f32 %v4353, %v2817
        %v4610 = vmul.f32 %v4354, %v2818
        %v4611 = vmul.f32 %v4355, %v2819
        %v4612 = vmul.f32 %v4356, %v2820
        %v4613 = vmul.f32 %v4357, %v2821
        %v4614 = vmul.f32 %v4358, %v2822
        %v4615 = vmul.f32 %v4359, %v2823
        %v4616 = vmul.f32 %v4360, %v2824
        %v4617 = vmul.f32 %v4361, %v2825
        %v4618 = vmul.f32 %v4362, %v2826
        %v4619 = vmul.f32 %v4363, %v2827
        %v4620 = vmul.f32 %v4364, %v2828
        %v4621 = vmul.f32 %v4365, %v2829
        %v4622 = vmul.f32 %v4366, %v2830
        %v4623 = vmul.f32 %v4367, %v2831
        %v4624 = vmul.f32 %v4368, %v2832
        %v4625 = vmul.f32 %v4369, %v2833
        %v4626 = vmul.f32 %v4370, %v2834
        %v4627 = vmul.f32 %v4371, %v2835
        %v4628 = vmul.f32 %v4372, %v2836
        %v4629 = vmul.f32 %v4373, %v2837
        %v4630 = vmul.f32 %v4374, %v2838
        %v4631 = vmul.f32 %v4375, %v2839
        %v4632 = vmul.f32 %v4376, %v2840
        %v4633 = vmul.f32 %v4377, %v2841
        %v4634 = vmul.f32 %v4378, %v2842
        %v4635 = vmul.f32 %v4379, %v2843
        %v4636 = vmul.f32 %v4380, %v2844
        %v4637 = vmul.f32 %v4381, %v2845
        %v4638 = vmul.f32 %v4382, %v2846
        %v4639 = vmul.f32 %v4383, %v2847
        %v4640 = vmul.f32 %v4384, %v2848
        %v4641 = vmul.f32 %v4385, %v2849
        %v4642 = vmul.f32 %v4386, %v2850
        %v4643 = vmul.f32 %v4387, %v2851
        %v4644 = vmul.f32 %v4388, %v2852
        %v4645 = vmul.f32 %v4389, %v2853
        %v4646 = vmul.f32 %v4390, %v2854
        %v4647 = vmul.f32 %v4391, %v2855
        %v4648 = vmul.f32 %v4392, %v2856
        %v4649 = vmul.f32 %v4393, %v2857
        %v4650 = vmul.f32 %v4394, %v2858
        %v4651 = vmul.f32 %v4395, %v2859
        %v4652 = vmul.f32 %v4396, %v2860
        %v4653 = vmul.f32 %v4397, %v2861
        %v4654 = vmul.f32 %v4398, %v2862
        %v4655 = vmul.f32 %v4399, %v2863
        %v4656 = vmul.f32 %v4400, %v2864
        %v4657 = vmul.f32 %v4401, %v2865
        %v4658 = vmul.f32 %v4402, %v2866
        %v4659 = vmul.f32 %v4403, %v2867
        %v4660 = vmul.f32 %v4404, %v2868
        %v4661 = vmul.f32 %v4405, %v2869
        %v4662 = vmul.f32 %v4406, %v2870
        %v4663 = vmul.f32 %v4407, %v2871
        %v4664 = vmul.f32 %v4408, %v2872
        %v4665 = vmul.f32 %v4409, %v2873
        %v4666 = vmul.f32 %v4410, %v2874
        %v4667 = vmul.f32 %v4411, %v2875
        %v4668 = vmul.f32 %v4412, %v2876
        %v4669 = vmul.f32 %v4413, %v2877
        %v4670 = vmul.f32 %v4414, %v2878
        %v4671 = vmul.f32 %v4415, %v2879
        %v4672 = vmul.f32 %v4416, %v2880
        %v4673 = vmul.f32 %v4417, %v2881
        %v4674 = vmul.f32 %v4418, %v2882
        %v4675 = vmul.f32 %v4419, %v2883
        %v4676 = vmul.f32 %v4420, %v2884
        %v4677 = vmul.f32 %v4421, %v2885
        %v4678 = vmul.f32 %v4422, %v2886
        %v4679 = vmul.f32 %v4423, %v2887
        %v4680 = vmul.f32 %v4424, %v2888
        %v4681 = vmul.f32 %v4425, %v2889
        %v4682 = vmul.f32 %v4426, %v2890
        %v4683 = vmul.f32 %v4427, %v2891
        %v4684 = vmul.f32 %v4428, %v2892
        %v4685 = vmul.f32 %v4429, %v2893
        %v4686 = vmul.f32 %v4430, %v2894
        %v4687 = vmul.f32 %v4431, %v2895
        %v4688 = vmul.f32 %v4432, %v2896
        %v4689 = vmul.f32 %v4433, %v2897
        %v4690 = vmul.f32 %v4434, %v2898
        %v4691 = vmul.f32 %v4435, %v2899
        %v4692 = vmul.f32 %v4436, %v2900
        %v4693 = vmul.f32 %v4437, %v2901
        %v4694 = vmul.f32 %v4438, %v2902
        %v4695 = vmul.f32 %v4439, %v2903
        %v4696 = vmul.f32 %v4440, %v2904
        %v4697 = vmul.f32 %v4441, %v2905
        %v4698 = vmul.f32 %v4442, %v2906
        %v4699 = vmul.f32 %v4443, %v2907
        %v4700 = vmul.f32 %v4444, %v2908
        %v4701 = vmul.f32 %v4445, %v2909
        %v4702 = vmul.f32 %v4446, %v2910
        %v4703 = vmul.f32 %v4447, %v2911
        %v4704 = vmul.f32 %v4448, %v2912
        %v4705 = vmul.f32 %v4449, %v2913
        %v4706 = vmul.f32 %v4450, %v2914
        %v4707 = vmul.f32 %v4451, %v2915
        %v4708 = vmul.f32 %v4452, %v2916
        %v4709 = vmul.f32 %v4453, %v2917
        %v4710 = vmul.f32 %v4454, %v2918
        %v4711 = vmul.f32 %v4455, %v2919
        %v4712 = vmul.f32 %v4456, %v2920
        %v4713 = vmul.f32 %v4457, %v2921
        %v4714 = vmul.f32 %v4458, %v2922
        %v4715 = vmul.f32 %v4459, %v2923
        %v4716 = vmul.f32 %v4460, %v2924
        %v4717 = vmul.f32 %v4461, %v2925
        %v4718 = vmul.f32 %v4462, %v2926
        %v4719 = vmul.f32 %v4463, %v2927
        %v4720 = vmul.f32 %v4464, %v2928
        %v4721 = vmul.f32 %v4465, %v2929
        %v4722 = vmul.f32 %v4466, %v2930
        %v4723 = vmul.f32 %v4467, %v2931
        %v4724 = vmul.f32 %v4468, %v2932
        %v4725 = vmul.f32 %v4469, %v2933
        %v4726 = vmul.f32 %v4470, %v2934
        %v4727 = vmul.f32 %v4471, %v2935
        %v4728 = vmul.f32 %v4472, %v2936
        %v4729 = vmul.f32 %v4473, %v2937
        %v4730 = vmul.f32 %v4474, %v2938
        %v4731 = vmul.f32 %v4475, %v2939
        %v4732 = vmul.f32 %v4476, %v2940
        %v4733 = vmul.f32 %v4477, %v2941
        %v4734 = vmul.f32 %v4478, %v2942
        %v4735 = vmul.f32 %v4479, %v2943
        %v4736 = vmul.f32 %v4480, %v2944
        %v4737 = vmul.f32 %v4481, %v2945
        %v4738 = vmul.f32 %v4482, %v2946
        %v4739 = vmul.f32 %v4483, %v2947
        %v4740 = vmul.f32 %v4484, %v2948
        %v4741 = vmul.f32 %v4485, %v2949
        %v4742 = vmul.f32 %v4486, %v2950
        %v4743 = vmul.f32 %v4487, %v2951
        %v4744 = vmul.f32 %v4488, %v2952
        %v4745 = vmul.f32 %v4489, %v2953
        %v4746 = vmul.f32 %v4490, %v2954
        %v4747 = vmul.f32 %v4491, %v2955
        %v4748 = vmul.f32 %v4492, %v2956
        %v4749 = vmul.f32 %v4493, %v2957
        %v4750 = vmul.f32 %v4494, %v2958
        %v4751 = vmul.f32 %v4495, %v2959
        %v4752 = vmul.f32 %v4496, %v2960
        %v4753 = vmul.f32 %v4497, %v2961
        %v4754 = vmul.f32 %v4498, %v2962
        %v4755 = vmul.f32 %v4499, %v2963
        %v4756 = vmul.f32 %v4500, %v2964
        %v4757 = vmul.f32 %v4501, %v2965
        %v4758 = vmul.f32 %v4502, %v2966
        %v4759 = vmul.f32 %v4503, %v2967
        %v4760 = vmul.f32 %v4504, %v2968
        %v4761 = vmul.f32 %v4505, %v2969
        %v4762 = vmul.f32 %v4506, %v2970
        %v4763 = vmul.f32 %v4507, %v2971
        %v4764 = vmul.f32 %v4508, %v2972
        %v4765 = vmul.f32 %v4509, %v2973
        %v4766 = vmul.f32 %v4510, %v2974
        %v4767 = vmul.f32 %v4511, %v2975
        %v4768 = vmul.f32 %v4512, %v2976
        %v4769 = vmul.f32 %v4513, %v2977
        %v4770 = vmul.f32 %v4514, %v2978
        %v4771 = vmul.f32 %v4515, %v2979
        %v4772 = vmul.f32 %v4516, %v2980
        %v4773 = vmul.f32 %v4517, %v2981
        %v4774 = vmul.f32 %v4518, %v2982
        %v4775 = vmul.f32 %v4519, %v2983
        %v4776 = vmul.f32 %v4520, %v2984
        %v4777 = vmul.f32 %v4521, %v2985
        %v4778 = vmul.f32 %v4522, %v2986
        %v4779 = vmul.f32 %v4523, %v2987
        %v4780 = vmul.f32 %v4524, %v2988
        %v4781 = vmul.f32 %v4525, %v2989
        %v4782 = vmul.f32 %v4526, %v2990
        %v4783 = vmul.f32 %v4527, %v2991
        %v4784 = vmul.f32 %v4528, %v2992
        %v4785 = vmul.f32 %v4529, %v2993
        %v4786 = vmul.f32 %v4530, %v2994
        %v4787 = vmul.f32 %v4531, %v2995
        %v4788 = vmul.f32 %v4532, %v2996
        %v4789 = vmul.f32 %v4533, %v2997
        %v4790 = vmul.f32 %v4534, %v2998
        %v4791 = vmul.f32 %v4535, %v2999
        %v4792 = vmul.f32 %v4536, %v3000
        %v4793 = vmul.f32 %v4537, %v3001
        %v4794 = vmul.f32 %v4538, %v3002
        %v4795 = vmul.f32 %v4539, %v3003
        %v4796 = vmul.f32 %v4540, %v3004
        %v4797 = vmul.f32 %v4541, %v3005
        %v4798 = vmul.f32 %v4542, %v3006
        %v4799 = vmul.f32 %v4543, %v3007
        %v4800 = vmul.f32 %v4544, %v3008
        %v4801 = vmul.f32 %v4545, %v3009
        %v4802 = vmul.f32 %v4546, %v3010
        %v4803 = vmul.f32 %v4547, %v3011
        %v4804 = vmul.f32 %v4548, %v3012
        %v4805 = vmul.f32 %v4549, %v3013
        %v4806 = vmul.f32 %v4550, %v3014
        %v4807 = vmul.f32 %v4551, %v3015
        %v4808 = vmul.f32 %v4552, %v3016
        %v4809 = vmul.f32 %v4553, %v3017
        %v4810 = vmul.f32 %v4554, %v3018
        %v4811 = vmul.f32 %v4555, %v3019
        %v4812 = vmul.f32 %v4556, %v3020
        %v4813 = vmul.f32 %v4557, %v3021
        %v4814 = vmul.f32 %v4558, %v3022
        %v4815 = vmul.f32 %v4559, %v3023
        %v4816 = vmul.f32 %v4560, %v3024
        %v4817 = vmul.f32 %v4561, %v3025
        %v4818 = vmul.f32 %v4562, %v3026
        %v4819 = vmul.f32 %v4563, %v3027
        %v4820 = vmul.f32 %v4564, %v3028
        %v4821 = vmul.f32 %v4565, %v3029
        %v4822 = vmul.f32 %v4566, %v3030
        %v4823 = vmul.f32 %v4567, %v3031
        %v4824 = vmul.f32 %v4568, %v3032
        %v4825 = vmul.f32 %v4569, %v3033
        %v4826 = vmul.f32 %v4570, %v3034
        %v4827 = vadd.f32 %v4571, 0.2548296
        %v4828 = vadd.f32 %v4572, 0.2548296
        %v4829 = vadd.f32 %v4573, 0.2548296
        %v4830 = vadd.f32 %v4574, 0.2548296
        %v4831 = vadd.f32 %v4575, 0.2548296
        %v4832 = vadd.f32 %v4576, 0.2548296
        %v4833 = vadd.f32 %v4577, 0.2548296
        %v4834 = vadd.f32 %v4578, 0.2548296
        %v4835 = vadd.f32 %v4579, 0.2548296
        %v4836 = vadd.f32 %v4580, 0.2548296
        %v4837 = vadd.f32 %v4581, 0.2548296
        %v4838 = vadd.f32 %v4582, 0.2548296
        %v4839 = vadd.f32 %v4583, 0.2548296
        %v4840 = vadd.f32 %v4584, 0.2548296
        %v4841 = vadd.f32 %v4585, 0.2548296
        %v4842 = vadd.f32 %v4586, 0.2548296
        %v4843 = vadd.f32 %v4587, 0.2548296
        %v4844 = vadd.f32 %v4588, 0.2548296
        %v4845 = vadd.f32 %v4589, 0.2548296
        %v4846 = vadd.f32 %v4590, 0.2548296
        %v4847 = vadd.f32 %v4591, 0.2548296
        %v4848 = vadd.f32 %v4592, 0.2548296
        %v4849 = vadd.f32 %v4593, 0.2548296
        %v4850 = vadd.f32 %v4594, 0.2548296
        %v4851 = vadd.f32 %v4595, 0.2548296
        %v4852 = vadd.f32 %v4596, 0.2548296
        %v4853 = vadd.f32 %v4597, 0.2548296
        %v4854 = vadd.f32 %v4598, 0.2548296
        %v4855 = vadd.f32 %v4599, 0.2548296
        %v4856 = vadd.f32 %v4600, 0.2548296
        %v4857 = vadd.f32 %v4601, 0.2548296
        %v4858 = vadd.f32 %v4602, 0.2548296
        %v4859 = vadd.f32 %v4603, 0.2548296
        %v4860 = vadd.f32 %v4604, 0.2548296
        %v4861 = vadd.f32 %v4605, 0.2548296
        %v4862 = vadd.f32 %v4606, 0.2548296
        %v4863 = vadd.f32 %v4607, 0.2548296
        %v4864 = vadd.f32 %v4608, 0.2548296
        %v4865 = vadd.f32 %v4609, 0.2548296
        %v4866 = vadd.f32 %v4610, 0.2548296
        %v4867 = vadd.f32 %v4611, 0.2548296
        %v4868 = vadd.f32 %v4612, 0.2548296
        %v4869 = vadd.f32 %v4613, 0.2548296
        %v4870 = vadd.f32 %v4614, 0.2548296
        %v4871 = vadd.f32 %v4615, 0.2548296
        %v4872 = vadd.f32 %v4616, 0.2548296
        %v4873 = vadd.f32 %v4617, 0.2548296
        %v4874 = vadd.f32 %v4618, 0.2548296
        %v4875 = vadd.f32 %v4619, 0.2548296
        %v4876 = vadd.f32 %v4620, 0.2548296
        %v4877 = vadd.f32 %v4621, 0.2548296
        %v4878 = vadd.f32 %v4622, 0.2548296
        %v4879 = vadd.f32 %v4623, 0.2548296
        %v4880 = vadd.f32 %v4624, 0.2548296
        %v4881 = vadd.f32 %v4625, 0.2548296
        %v4882 = vadd.f32 %v4626, 0.2548296
        %v4883 = vadd.f32 %v4627, 0.2548296
        %v4884 = vadd.f32 %v4628, 0.2548296
        %v4885 = vadd.f32 %v4629, 0.2548296
        %v4886 = vadd.f32 %v4630, 0.2548296
        %v4887 = vadd.f32 %v4631, 0.2548296
        %v4888 = vadd.f32 %v4632, 0.2548296
        %v4889 = vadd.f32 %v4633, 0.2548296
        %v4890 = vadd.f32 %v4634, 0.2548296
        %v4891 = vadd.f32 %v4635, 0.2548296
        %v4892 = vadd.f32 %v4636, 0.2548296
        %v4893 = vadd.f32 %v4637, 0.2548296
        %v4894 = vadd.f32 %v4638, 0.2548296
        %v4895 = vadd.f32 %v4639, 0.2548296
        %v4896 = vadd.f32 %v4640, 0.2548296
        %v4897 = vadd.f32 %v4641, 0.2548296
        %v4898 = vadd.f32 %v4642, 0.2548296
        %v4899 = vadd.f32 %v4643, 0.2548296
        %v4900 = vadd.f32 %v4644, 0.2548296
        %v4901 = vadd.f32 %v4645, 0.2548296
        %v4902 = vadd.f32 %v4646, 0.2548296
        %v4903 = vadd.f32 %v4647, 0.2548296
        %v4904 = vadd.f32 %v4648, 0.2548296
        %v4905 = vadd.f32 %v4649, 0.2548296
        %v4906 = vadd.f32 %v4650, 0.2548296
        %v4907 = vadd.f32 %v4651, 0.2548296
        %v4908 = vadd.f32 %v4652, 0.2548296
        %v4909 = vadd.f32 %v4653, 0.2548296
        %v4910 = vadd.f32 %v4654, 0.2548296
        %v4911 = vadd.f32 %v4655, 0.2548296
        %v4912 = vadd.f32 %v4656, 0.2548296
        %v4913 = vadd.f32 %v4657, 0.2548296
        %v4914 = vadd.f32 %v4658, 0.2548296
        %v4915 = vadd.f32 %v4659, 0.2548296
        %v4916 = vadd.f32 %v4660, 0.2548296
        %v4917 = vadd.f32 %v4661, 0.2548296
        %v4918 = vadd.f32 %v4662, 0.2548296
        %v4919 = vadd.f32 %v4663, 0.2548296
        %v4920 = vadd.f32 %v4664, 0.2548296
        %v4921 = vadd.f32 %v4665, 0.2548296
        %v4922 = vadd.f32 %v4666, 0.2548296
        %v4923 = vadd.f32 %v4667, 0.2548296
        %v4924 = vadd.f32 %v4668, 0.2548296
        %v4925 = vadd.f32 %v4669, 0.2548296
        %v4926 = vadd.f32 %v4670, 0.2548296
        %v4927 = vadd.f32 %v4671, 0.2548296
        %v4928 = vadd.f32 %v4672, 0.2548296
        %v4929 = vadd.f32 %v4673, 0.2548296
        %v4930 = vadd.f32 %v4674, 0.2548296
        %v4931 = vadd.f32 %v4675, 0.2548296
        %v4932 = vadd.f32 %v4676, 0.2548296
        %v4933 = vadd.f32 %v4677, 0.2548296
        %v4934 = vadd.f32 %v4678, 0.2548296
        %v4935 = vadd.f32 %v4679, 0.2548296
        %v4936 = vadd.f32 %v4680, 0.2548296
        %v4937 = vadd.f32 %v4681, 0.2548296
        %v4938 = vadd.f32 %v4682, 0.2548296
        %v4939 = vadd.f32 %v4683, 0.2548296
        %v4940 = vadd.f32 %v4684, 0.2548296
        %v4941 = vadd.f32 %v4685, 0.2548296
        %v4942 = vadd.f32 %v4686, 0.2548296
        %v4943 = vadd.f32 %v4687, 0.2548296
        %v4944 = vadd.f32 %v4688, 0.2548296
        %v4945 = vadd.f32 %v4689, 0.2548296
        %v4946 = vadd.f32 %v4690, 0.2548296
        %v4947 = vadd.f32 %v4691, 0.2548296
        %v4948 = vadd.f32 %v4692, 0.2548296
        %v4949 = vadd.f32 %v4693, 0.2548296
        %v4950 = vadd.f32 %v4694, 0.2548296
        %v4951 = vadd.f32 %v4695, 0.2548296
        %v4952 = vadd.f32 %v4696, 0.2548296
        %v4953 = vadd.f32 %v4697, 0.2548296
        %v4954 = vadd.f32 %v4698, 0.2548296
        %v4955 = vadd.f32 %v4699, 0.2548296
        %v4956 = vadd.f32 %v4700, 0.2548296
        %v4957 = vadd.f32 %v4701, 0.2548296
        %v4958 = vadd.f32 %v4702, 0.2548296
        %v4959 = vadd.f32 %v4703, 0.2548296
        %v4960 = vadd.f32 %v4704, 0.2548296
        %v4961 = vadd.f32 %v4705, 0.2548296
        %v4962 = vadd.f32 %v4706, 0.2548296
        %v4963 = vadd.f32 %v4707, 0.2548296
        %v4964 = vadd.f32 %v4708, 0.2548296
        %v4965 = vadd.f32 %v4709, 0.2548296
        %v4966 = vadd.f32 %v4710, 0.2548296
        %v4967 = vadd.f32 %v4711, 0.2548296
        %v4968 = vadd.f32 %v4712, 0.2548296
        %v4969 = vadd.f32 %v4713, 0.2548296
        %v4970 = vadd.f32 %v4714, 0.2548296
        %v4971 = vadd.f32 %v4715, 0.2548296
        %v4972 = vadd.f32 %v4716, 0.2548296
        %v4973 = vadd.f32 %v4717, 0.2548296
        %v4974 = vadd.f32 %v4718, 0.2548296
        %v4975 = vadd.f32 %v4719, 0.2548296
        %v4976 = vadd.f32 %v4720, 0.2548296
        %v4977 = vadd.f32 %v4721, 0.2548296
        %v4978 = vadd.f32 %v4722, 0.2548296
        %v4979 = vadd.f32 %v4723, 0.2548296
        %v4980 = vadd.f32 %v4724, 0.2548296
        %v4981 = vadd.f32 %v4725, 0.2548296
        %v4982 = vadd.f32 %v4726, 0.2548296
        %v4983 = vadd.f32 %v4727, 0.2548296
        %v4984 = vadd.f32 %v4728, 0.2548296
        %v4985 = vadd.f32 %v4729, 0.2548296
        %v4986 = vadd.f32 %v4730, 0.2548296
        %v4987 = vadd.f32 %v4731, 0.2548296
        %v4988 = vadd.f32 %v4732, 0.2548296
        %v4989 = vadd.f32 %v4733, 0.2548296
        %v4990 = vadd.f32 %v4734, 0.2548296
        %v4991 = vadd.f32 %v4735, 0.2548296
        %v4992 = vadd.f32 %v4736, 0.2548296
        %v4993 = vadd.f32 %v4737, 0.2548296
        %v4994 = vadd.f32 %v4738, 0.2548296
        %v4995 = vadd.f32 %v4739, 0.2548296
        %v4996 = vadd.f32 %v4740, 0.2548296
        %v4997 = vadd.f32 %v4741, 0.2548296
        %v4998 = vadd.f32 %v4742, 0.2548296
        %v4999 = vadd.f32 %v4743, 0.2548296
        %v5000 = vadd.f32 %v4744, 0.2548296
        %v5001 = vadd.f32 %v4745, 0.2548296
        %v5002 = vadd.f32 %v4746, 0.2548296
        %v5003 = vadd.f32 %v4747, 0.2548296
        %v5004 = vadd.f32 %v4748, 0.2548296
        %v5005 = vadd.f32 %v4749, 0.2548296
        %v5006 = vadd.f32 %v4750, 0.2548296
        %v5007 = vadd.f32 %v4751, 0.2548296
        %v5008 = vadd.f32 %v4752, 0.2548296
        %v5009 = vadd.f32 %v4753, 0.2548296
        %v5010 = vadd.f32 %v4754, 0.2548296
        %v5011 = vadd.f32 %v4755, 0.2548296
        %v5012 = vadd.f32 %v4756, 0.2548296
        %v5013 = vadd.f32 %v4757, 0.2548296
        %v5014 = vadd.f32 %v4758, 0.2548296
        %v5015 = vadd.f32 %v4759, 0.2548296
        %v5016 = vadd.f32 %v4760, 0.2548296
        %v5017 = vadd.f32 %v4761, 0.2548296
        %v5018 = vadd.f32 %v4762, 0.2548296
        %v5019 = vadd.f32 %v4763, 0.2548296
        %v5020 = vadd.f32 %v4764, 0.2548296
        %v5021 = vadd.f32 %v4765, 0.2548296
        %v5022 = vadd.f32 %v4766, 0.2548296
        %v5023 = vadd.f32 %v4767, 0.2548296
        %v5024 = vadd.f32 %v4768, 0.2548296
        %v5025 = vadd.f32 %v4769, 0.2548296
        %v5026 = vadd.f32 %v4770, 0.2548296
        %v5027 = vadd.f32 %v4771, 0.2548296
        %v5028 = vadd.f32 %v4772, 0.2548296
        %v5029 = vadd.f32 %v4773, 0.2548296
        %v5030 = vadd.f32 %v4774, 0.2548296
        %v5031 = vadd.f32 %v4775, 0.2548296
        %v5032 = vadd.f32 %v4776, 0.2548296
        %v5033 = vadd.f32 %v4777, 0.2548296
        %v5034 = vadd.f32 %v4778, 0.2548296
        %v5035 = vadd.f32 %v4779, 0.2548296
        %v5036 = vadd.f32 %v4780, 0.2548296
        %v5037 = vadd.f32 %v4781, 0.2548296
        %v5038 = vadd.f32 %v4782, 0.2548296
        %v5039 = vadd.f32 %v4783, 0.2548296
        %v5040 = vadd.f32 %v4784, 0.2548296
        %v5041 = vadd.f32 %v4785, 0.2548296
        %v5042 = vadd.f32 %v4786, 0.2548296
        %v5043 = vadd.f32 %v4787, 0.2548296
        %v5044 = vadd.f32 %v4788, 0.2548296
        %v5045 = vadd.f32 %v4789, 0.2548296
        %v5046 = vadd.f32 %v4790, 0.2548296
        %v5047 = vadd.f32 %v4791, 0.2548296
        %v5048 = vadd.f32 %v4792, 0.2548296
        %v5049 = vadd.f32 %v4793, 0.2548296
        %v5050 = vadd.f32 %v4794, 0.2548296
        %v5051 = vadd.f32 %v4795, 0.2548296
        %v5052 = vadd.f32 %v4796, 0.2548296
        %v5053 = vadd.f32 %v4797, 0.2548296
        %v5054 = vadd.f32 %v4798, 0.2548296
        %v5055 = vadd.f32 %v4799, 0.2548296
        %v5056 = vadd.f32 %v4800, 0.2548296
        %v5057 = vadd.f32 %v4801, 0.2548296
        %v5058 = vadd.f32 %v4802, 0.2548296
        %v5059 = vadd.f32 %v4803, 0.2548296
        %v5060 = vadd.f32 %v4804, 0.2548296
        %v5061 = vadd.f32 %v4805, 0.2548296
        %v5062 = vadd.f32 %v4806, 0.2548296
        %v5063 = vadd.f32 %v4807, 0.2548296
        %v5064 = vadd.f32 %v4808, 0.2548296
        %v5065 = vadd.f32 %v4809, 0.2548296
        %v5066 = vadd.f32 %v4810, 0.2548296
        %v5067 = vadd.f32 %v4811, 0.2548296
        %v5068 = vadd.f32 %v4812, 0.2548296
        %v5069 = vadd.f32 %v4813, 0.2548296
        %v5070 = vadd.f32 %v4814, 0.2548296
        %v5071 = vadd.f32 %v4815, 0.2548296
        %v5072 = vadd.f32 %v4816, 0.2548296
        %v5073 = vadd.f32 %v4817, 0.2548296
        %v5074 = vadd.f32 %v4818, 0.2548296
        %v5075 = vadd.f32 %v4819, 0.2548296
        %v5076 = vadd.f32 %v4820, 0.2548296
        %v5077 = vadd.f32 %v4821, 0.2548296
        %v5078 = vadd.f32 %v4822, 0.2548296
        %v5079 = vadd.f32 %v4823, 0.2548296
        %v5080 = vadd.f32 %v4824, 0.2548296
        %v5081 = vadd.f32 %v4825, 0.2548296
        %v5082 = vadd.f32 %v4826, 0.2548296
        %v5083 = vmul.f32 %v4827, %v2779
        %v5084 = vmul.f32 %v4828, %v2780
        %v5085 = vmul.f32 %v4829, %v2781
        %v5086 = vmul.f32 %v4830, %v2782
        %v5087 = vmul.f32 %v4831, %v2783
        %v5088 = vmul.f32 %v4832, %v2784
        %v5089 = vmul.f32 %v4833, %v2785
        %v5090 = vmul.f32 %v4834, %v2786
        %v5091 = vmul.f32 %v4835, %v2787
        %v5092 = vmul.f32 %v4836, %v2788
        %v5093 = vmul.f32 %v4837, %v2789
        %v5094 = vmul.f32 %v4838, %v2790
        %v5095 = vmul.f32 %v4839, %v2791
        %v5096 = vmul.f32 %v4840, %v2792
        %v5097 = vmul.f32 %v4841, %v2793
        %v5098 = vmul.f32 %v4842, %v2794
        %v5099 = vmul.f32 %v4843, %v2795
        %v5100 = vmul.f32 %v4844, %v2796
        %v5101 = vmul.f32 %v4845, %v2797
        %v5102 = vmul.f32 %v4846, %v2798
        %v5103 = vmul.f32 %v4847, %v2799
        %v5104 = vmul.f32 %v4848, %v2800
        %v5105 = vmul.f32 %v4849, %v2801
        %v5106 = vmul.f32 %v4850, %v2802
        %v5107 = vmul.f32 %v4851, %v2803
        %v5108 = vmul.f32 %v4852, %v2804
        %v5109 = vmul.f32 %v4853, %v2805
        %v5110 = vmul.f32 %v4854, %v2806
        %v5111 = vmul.f32 %v4855, %v2807
        %v5112 = vmul.f32 %v4856, %v2808
        %v5113 = vmul.f32 %v4857, %v2809
        %v5114 = vmul.f32 %v4858, %v2810
        %v5115 = vmul.f32 %v4859, %v2811
        %v5116 = vmul.f32 %v4860, %v2812
        %v5117 = vmul.f32 %v4861, %v2813
        %v5118 = vmul.f32 %v4862, %v2814
        %v5119 = vmul.f32 %v4863, %v2815
        %v5120 = vmul.f32 %v4864, %v2816
        %v5121 = vmul.f32 %v4865, %v2817
        %v5122 = vmul.f32 %v4866, %v2818
        %v5123 = vmul.f32 %v4867, %v2819
        %v5124 = vmul.f32 %v4868, %v2820
        %v5125 = vmul.f32 %v4869, %v2821
        %v5126 = vmul.f32 %v4870, %v2822
        %v5127 = vmul.f32 %v4871, %v2823
        %v5128 = vmul.f32 %v4872, %v2824
        %v5129 = vmul.f32 %v4873, %v2825
        %v5130 = vmul.f32 %v4874, %v2826
        %v5131 = vmul.f32 %v4875, %v2827
        %v5132 = vmul.f32 %v4876, %v2828
        %v5133 = vmul.f32 %v4877, %v2829
        %v5134 = vmul.f32 %v4878, %v2830
        %v5135 = vmul.f32 %v4879, %v2831
        %v5136 = vmul.f32 %v4880, %v2832
        %v5137 = vmul.f32 %v4881, %v2833
        %v5138 = vmul.f32 %v4882, %v2834
        %v5139 = vmul.f32 %v4883, %v2835
        %v5140 = vmul.f32 %v4884, %v2836
        %v5141 = vmul.f32 %v4885, %v2837
        %v5142 = vmul.f32 %v4886, %v2838
        %v5143 = vmul.f32 %v4887, %v2839
        %v5144 = vmul.f32 %v4888, %v2840
        %v5145 = vmul.f32 %v4889, %v2841
        %v5146 = vmul.f32 %v4890, %v2842
        %v5147 = vmul.f32 %v4891, %v2843
        %v5148 = vmul.f32 %v4892, %v2844
        %v5149 = vmul.f32 %v4893, %v2845
        %v5150 = vmul.f32 %v4894, %v2846
        %v5151 = vmul.f32 %v4895, %v2847
        %v5152 = vmul.f32 %v4896, %v2848
        %v5153 = vmul.f32 %v4897, %v2849
        %v5154 = vmul.f32 %v4898, %v2850
        %v5155 = vmul.f32 %v4899, %v2851
        %v5156 = vmul.f32 %v4900, %v2852
        %v5157 = vmul.f32 %v4901, %v2853
        %v5158 = vmul.f32 %v4902, %v2854
        %v5159 = vmul.f32 %v4903, %v2855
        %v5160 = vmul.f32 %v4904, %v2856
        %v5161 = vmul.f32 %v4905, %v2857
        %v5162 = vmul.f32 %v4906, %v2858
        %v5163 = vmul.f32 %v4907, %v2859
        %v5164 = vmul.f32 %v4908, %v2860
        %v5165 = vmul.f32 %v4909, %v2861
        %v5166 = vmul.f32 %v4910, %v2862
        %v5167 = vmul.f32 %v4911, %v2863
        %v5168 = vmul.f32 %v4912, %v2864
        %v5169 = vmul.f32 %v4913, %v2865
        %v5170 = vmul.f32 %v4914, %v2866
        %v5171 = vmul.f32 %v4915, %v2867
        %v5172 = vmul.f32 %v4916, %v2868
        %v5173 = vmul.f32 %v4917, %v2869
        %v5174 = vmul.f32 %v4918, %v2870
        %v5175 = vmul.f32 %v4919, %v2871
        %v5176 = vmul.f32 %v4920, %v2872
        %v5177 = vmul.f32 %v4921, %v2873
        %v5178 = vmul.f32 %v4922, %v2874
        %v5179 = vmul.f32 %v4923, %v2875
        %v5180 = vmul.f32 %v4924, %v2876
        %v5181 = vmul.f32 %v4925, %v2877
        %v5182 = vmul.f32 %v4926, %v2878
        %v5183 = vmul.f32 %v4927, %v2879
        %v5184 = vmul.f32 %v4928, %v2880
        %v5185 = vmul.f32 %v4929, %v2881
        %v5186 = vmul.f32 %v4930, %v2882
        %v5187 = vmul.f32 %v4931, %v2883
        %v5188 = vmul.f32 %v4932, %v2884
        %v5189 = vmul.f32 %v4933, %v2885
        %v5190 = vmul.f32 %v4934, %v2886
        %v5191 = vmul.f32 %v4935, %v2887
        %v5192 = vmul.f32 %v4936, %v2888
        %v5193 = vmul.f32 %v4937, %v2889
        %v5194 = vmul.f32 %v4938, %v2890
        %v5195 = vmul.f32 %v4939, %v2891
        %v5196 = vmul.f32 %v4940, %v2892
        %v5197 = vmul.f32 %v4941, %v2893
        %v5198 = vmul.f32 %v4942, %v2894
        %v5199 = vmul.f32 %v4943, %v2895
        %v5200 = vmul.f32 %v4944, %v2896
        %v5201 = vmul.f32 %v4945, %v2897
        %v5202 = vmul.f32 %v4946, %v2898
        %v5203 = vmul.f32 %v4947, %v2899
        %v5204 = vmul.f32 %v4948, %v2900
        %v5205 = vmul.f32 %v4949, %v2901
        %v5206 = vmul.f32 %v4950, %v2902
        %v5207 = vmul.f32 %v4951, %v2903
        %v5208 = vmul.f32 %v4952, %v2904
        %v5209 = vmul.f32 %v4953, %v2905
        %v5210 = vmul.f32 %v4954, %v2906
        %v5211 = vmul.f32 %v4955, %v2907
        %v5212 = vmul.f32 %v4956, %v2908
        %v5213 = vmul.f32 %v4957, %v2909
        %v5214 = vmul.f32 %v4958, %v2910
        %v5215 = vmul.f32 %v4959, %v2911
        %v5216 = vmul.f32 %v4960, %v2912
        %v5217 = vmul.f32 %v4961, %v2913
        %v5218 = vmul.f32 %v4962, %v2914
        %v5219 = vmul.f32 %v4963, %v2915
        %v5220 = vmul.f32 %v4964, %v2916
        %v5221 = vmul.f32 %v4965, %v2917
        %v5222 = vmul.f32 %v4966, %v2918
        %v5223 = vmul.f32 %v4967, %v2919
        %v5224 = vmul.f32 %v4968, %v2920
        %v5225 = vmul.f32 %v4969, %v2921
        %v5226 = vmul.f32 %v4970, %v2922
        %v5227 = vmul.f32 %v4971, %v2923
        %v5228 = vmul.f32 %v4972, %v2924
        %v5229 = vmul.f32 %v4973, %v2925
        %v5230 = vmul.f32 %v4974, %v2926
        %v5231 = vmul.f32 %v4975, %v2927
        %v5232 = vmul.f32 %v4976, %v2928
        %v5233 = vmul.f32 %v4977, %v2929
        %v5234 = vmul.f32 %v4978, %v2930
        %v5235 = vmul.f32 %v4979, %v2931
        %v5236 = vmul.f32 %v4980, %v2932
        %v5237 = vmul.f32 %v4981, %v2933
        %v5238 = vmul.f32 %v4982, %v2934
        %v5239 = vmul.f32 %v4983, %v2935
        %v5240 = vmul.f32 %v4984, %v2936
        %v5241 = vmul.f32 %v4985, %v2937
        %v5242 = vmul.f32 %v4986, %v2938
        %v5243 = vmul.f32 %v4987, %v2939
        %v5244 = vmul.f32 %v4988, %v2940
        %v5245 = vmul.f32 %v4989, %v2941
        %v5246 = vmul.f32 %v4990, %v2942
        %v5247 = vmul.f32 %v4991, %v2943
        %v5248 = vmul.f32 %v4992, %v2944
        %v5249 = vmul.f32 %v4993, %v2945
        %v5250 = vmul.f32 %v4994, %v2946
        %v5251 = vmul.f32 %v4995, %v2947
        %v5252 = vmul.f32 %v4996, %v2948
        %v5253 = vmul.f32 %v4997, %v2949
        %v5254 = vmul.f32 %v4998, %v2950
        %v5255 = vmul.f32 %v4999, %v2951
        %v5256 = vmul.f32 %v5000, %v2952
        %v5257 = vmul.f32 %v5001, %v2953
        %v5258 = vmul.f32 %v5002, %v2954
        %v5259 = vmul.f32 %v5003, %v2955
        %v5260 = vmul.f32 %v5004, %v2956
        %v5261 = vmul.f32 %v5005, %v2957
        %v5262 = vmul.f32 %v5006, %v2958
        %v5263 = vmul.f32 %v5007, %v2959
        %v5264 = vmul.f32 %v5008, %v2960
        %v5265 = vmul.f32 %v5009, %v2961
        %v5266 = vmul.f32 %v5010, %v2962
        %v5267 = vmul.f32 %v5011, %v2963
        %v5268 = vmul.f32 %v5012, %v2964
        %v5269 = vmul.f32 %v5013, %v2965
        %v5270 = vmul.f32 %v5014, %v2966
        %v5271 = vmul.f32 %v5015, %v2967
        %v5272 = vmul.f32 %v5016, %v2968
        %v5273 = vmul.f32 %v5017, %v2969
        %v5274 = vmul.f32 %v5018, %v2970
        %v5275 = vmul.f32 %v5019, %v2971
        %v5276 = vmul.f32 %v5020, %v2972
        %v5277 = vmul.f32 %v5021, %v2973
        %v5278 = vmul.f32 %v5022, %v2974
        %v5279 = vmul.f32 %v5023, %v2975
        %v5280 = vmul.f32 %v5024, %v2976
        %v5281 = vmul.f32 %v5025, %v2977
        %v5282 = vmul.f32 %v5026, %v2978
        %v5283 = vmul.f32 %v5027, %v2979
        %v5284 = vmul.f32 %v5028, %v2980
        %v5285 = vmul.f32 %v5029, %v2981
        %v5286 = vmul.f32 %v5030, %v2982
        %v5287 = vmul.f32 %v5031, %v2983
        %v5288 = vmul.f32 %v5032, %v2984
        %v5289 = vmul.f32 %v5033, %v2985
        %v5290 = vmul.f32 %v5034, %v2986
        %v5291 = vmul.f32 %v5035, %v2987
        %v5292 = vmul.f32 %v5036, %v2988
        %v5293 = vmul.f32 %v5037, %v2989
        %v5294 = vmul.f32 %v5038, %v2990
        %v5295 = vmul.f32 %v5039, %v2991
        %v5296 = vmul.f32 %v5040, %v2992
        %v5297 = vmul.f32 %v5041, %v2993
        %v5298 = vmul.f32 %v5042, %v2994
        %v5299 = vmul.f32 %v5043, %v2995
        %v5300 = vmul.f32 %v5044, %v2996
        %v5301 = vmul.f32 %v5045, %v2997
        %v5302 = vmul.f32 %v5046, %v2998
        %v5303 = vmul.f32 %v5047, %v2999
        %v5304 = vmul.f32 %v5048, %v3000
        %v5305 = vmul.f32 %v5049, %v3001
        %v5306 = vmul.f32 %v5050, %v3002
        %v5307 = vmul.f32 %v5051, %v3003
        %v5308 = vmul.f32 %v5052, %v3004
        %v5309 = vmul.f32 %v5053, %v3005
        %v5310 = vmul.f32 %v5054, %v3006
        %v5311 = vmul.f32 %v5055, %v3007
        %v5312 = vmul.f32 %v5056, %v3008
        %v5313 = vmul.f32 %v5057, %v3009
        %v5314 = vmul.f32 %v5058, %v3010
        %v5315 = vmul.f32 %v5059, %v3011
        %v5316 = vmul.f32 %v5060, %v3012
        %v5317 = vmul.f32 %v5061, %v3013
        %v5318 = vmul.f32 %v5062, %v3014
        %v5319 = vmul.f32 %v5063, %v3015
        %v5320 = vmul.f32 %v5064, %v3016
        %v5321 = vmul.f32 %v5065, %v3017
        %v5322 = vmul.f32 %v5066, %v3018
        %v5323 = vmul.f32 %v5067, %v3019
        %v5324 = vmul.f32 %v5068, %v3020
        %v5325 = vmul.f32 %v5069, %v3021
        %v5326 = vmul.f32 %v5070, %v3022
        %v5327 = vmul.f32 %v5071, %v3023
        %v5328 = vmul.f32 %v5072, %v3024
        %v5329 = vmul.f32 %v5073, %v3025
        %v5330 = vmul.f32 %v5074, %v3026
        %v5331 = vmul.f32 %v5075, %v3027
        %v5332 = vmul.f32 %v5076, %v3028
        %v5333 = vmul.f32 %v5077, %v3029
        %v5334 = vmul.f32 %v5078, %v3030
        %v5335 = vmul.f32 %v5079, %v3031
        %v5336 = vmul.f32 %v5080, %v3032
        %v5337 = vmul.f32 %v5081, %v3033
        %v5338 = vmul.f32 %v5082, %v3034
        %v5339 = vsub.f32 0.0, %v2011
        %v5340 = vsub.f32 0.0, %v2012
        %v5341 = vsub.f32 0.0, %v2013
        %v5342 = vsub.f32 0.0, %v2014
        %v5343 = vsub.f32 0.0, %v2015
        %v5344 = vsub.f32 0.0, %v2016
        %v5345 = vsub.f32 0.0, %v2017
        %v5346 = vsub.f32 0.0, %v2018
        %v5347 = vsub.f32 0.0, %v2019
        %v5348 = vsub.f32 0.0, %v2020
        %v5349 = vsub.f32 0.0, %v2021
        %v5350 = vsub.f32 0.0, %v2022
        %v5351 = vsub.f32 0.0, %v2023
        %v5352 = vsub.f32 0.0, %v2024
        %v5353 = vsub.f32 0.0, %v2025
        %v5354 = vsub.f32 0.0, %v2026
        %v5355 = vsub.f32 0.0, %v2027
        %v5356 = vsub.f32 0.0, %v2028
        %v5357 = vsub.f32 0.0, %v2029
        %v5358 = vsub.f32 0.0, %v2030
        %v5359 = vsub.f32 0.0, %v2031
        %v5360 = vsub.f32 0.0, %v2032
        %v5361 = vsub.f32 0.0, %v2033
        %v5362 = vsub.f32 0.0, %v2034
        %v5363 = vsub.f32 0.0, %v2035
        %v5364 = vsub.f32 0.0, %v2036
        %v5365 = vsub.f32 0.0, %v2037
        %v5366 = vsub.f32 0.0, %v2038
        %v5367 = vsub.f32 0.0, %v2039
        %v5368 = vsub.f32 0.0, %v2040
        %v5369 = vsub.f32 0.0, %v2041
        %v5370 = vsub.f32 0.0, %v2042
        %v5371 = vsub.f32 0.0, %v2043
        %v5372 = vsub.f32 0.0, %v2044
        %v5373 = vsub.f32 0.0, %v2045
        %v5374 = vsub.f32 0.0, %v2046
        %v5375 = vsub.f32 0.0, %v2047
        %v5376 = vsub.f32 0.0, %v2048
        %v5377 = vsub.f32 0.0, %v2049
        %v5378 = vsub.f32 0.0, %v2050
        %v5379 = vsub.f32 0.0, %v2051
        %v5380 = vsub.f32 0.0, %v2052
        %v5381 = vsub.f32 0.0, %v2053
        %v5382 = vsub.f32 0.0, %v2054
        %v5383 = vsub.f32 0.0, %v2055
        %v5384 = vsub.f32 0.0, %v2056
        %v5385 = vsub.f32 0.0, %v2057
        %v5386 = vsub.f32 0.0, %v2058
        %v5387 = vsub.f32 0.0, %v2059
        %v5388 = vsub.f32 0.0, %v2060
        %v5389 = vsub.f32 0.0, %v2061
        %v5390 = vsub.f32 0.0, %v2062
        %v5391 = vsub.f32 0.0, %v2063
        %v5392 = vsub.f32 0.0, %v2064
        %v5393 = vsub.f32 0.0, %v2065
        %v5394 = vsub.f32 0.0, %v2066
        %v5395 = vsub.f32 0.0, %v2067
        %v5396 = vsub.f32 0.0, %v2068
        %v5397 = vsub.f32 0.0, %v2069
        %v5398 = vsub.f32 0.0, %v2070
        %v5399 = vsub.f32 0.0, %v2071
        %v5400 = vsub.f32 0.0, %v2072
        %v5401 = vsub.f32 0.0, %v2073
        %v5402 = vsub.f32 0.0, %v2074
        %v5403 = vsub.f32 0.0, %v2075
        %v5404 = vsub.f32 0.0, %v2076
        %v5405 = vsub.f32 0.0, %v2077
        %v5406 = vsub.f32 0.0, %v2078
        %v5407 = vsub.f32 0.0, %v2079
        %v5408 = vsub.f32 0.0, %v2080
        %v5409 = vsub.f32 0.0, %v2081
        %v5410 = vsub.f32 0.0, %v2082
        %v5411 = vsub.f32 0.0, %v2083
        %v5412 = vsub.f32 0.0, %v2084
        %v5413 = vsub.f32 0.0, %v2085
        %v5414 = vsub.f32 0.0, %v2086
        %v5415 = vsub.f32 0.0, %v2087
        %v5416 = vsub.f32 0.0, %v2088
        %v5417 = vsub.f32 0.0, %v2089
        %v5418 = vsub.f32 0.0, %v2090
        %v5419 = vsub.f32 0.0, %v2091
        %v5420 = vsub.f32 0.0, %v2092
        %v5421 = vsub.f32 0.0, %v2093
        %v5422 = vsub.f32 0.0, %v2094
        %v5423 = vsub.f32 0.0, %v2095
        %v5424 = vsub.f32 0.0, %v2096
        %v5425 = vsub.f32 0.0, %v2097
        %v5426 = vsub.f32 0.0, %v2098
        %v5427 = vsub.f32 0.0, %v2099
        %v5428 = vsub.f32 0.0, %v2100
        %v5429 = vsub.f32 0.0, %v2101
        %v5430 = vsub.f32 0.0, %v2102
        %v5431 = vsub.f32 0.0, %v2103
        %v5432 = vsub.f32 0.0, %v2104
        %v5433 = vsub.f32 0.0, %v2105
        %v5434 = vsub.f32 0.0, %v2106
        %v5435 = vsub.f32 0.0, %v2107
        %v5436 = vsub.f32 0.0, %v2108
        %v5437 = vsub.f32 0.0, %v2109
        %v5438 = vsub.f32 0.0, %v2110
        %v5439 = vsub.f32 0.0, %v2111
        %v5440 = vsub.f32 0.0, %v2112
        %v5441 = vsub.f32 0.0, %v2113
        %v5442 = vsub.f32 0.0, %v2114
        %v5443 = vsub.f32 0.0, %v2115
        %v5444 = vsub.f32 0.0, %v2116
        %v5445 = vsub.f32 0.0, %v2117
        %v5446 = vsub.f32 0.0, %v2118
        %v5447 = vsub.f32 0.0, %v2119
        %v5448 = vsub.f32 0.0, %v2120
        %v5449 = vsub.f32 0.0, %v2121
        %v5450 = vsub.f32 0.0, %v2122
        %v5451 = vsub.f32 0.0, %v2123
        %v5452 = vsub.f32 0.0, %v2124
        %v5453 = vsub.f32 0.0, %v2125
        %v5454 = vsub.f32 0.0, %v2126
        %v5455 = vsub.f32 0.0, %v2127
        %v5456 = vsub.f32 0.0, %v2128
        %v5457 = vsub.f32 0.0, %v2129
        %v5458 = vsub.f32 0.0, %v2130
        %v5459 = vsub.f32 0.0, %v2131
        %v5460 = vsub.f32 0.0, %v2132
        %v5461 = vsub.f32 0.0, %v2133
        %v5462 = vsub.f32 0.0, %v2134
        %v5463 = vsub.f32 0.0, %v2135
        %v5464 = vsub.f32 0.0, %v2136
        %v5465 = vsub.f32 0.0, %v2137
        %v5466 = vsub.f32 0.0, %v2138
        %v5467 = vsub.f32 0.0, %v2139
        %v5468 = vsub.f32 0.0, %v2140
        %v5469 = vsub.f32 0.0, %v2141
        %v5470 = vsub.f32 0.0, %v2142
        %v5471 = vsub.f32 0.0, %v2143
        %v5472 = vsub.f32 0.0, %v2144
        %v5473 = vsub.f32 0.0, %v2145
        %v5474 = vsub.f32 0.0, %v2146
        %v5475 = vsub.f32 0.0, %v2147
        %v5476 = vsub.f32 0.0, %v2148
        %v5477 = vsub.f32 0.0, %v2149
        %v5478 = vsub.f32 0.0, %v2150
        %v5479 = vsub.f32 0.0, %v2151
        %v5480 = vsub.f32 0.0, %v2152
        %v5481 = vsub.f32 0.0, %v2153
        %v5482 = vsub.f32 0.0, %v2154
        %v5483 = vsub.f32 0.0, %v2155
        %v5484 = vsub.f32 0.0, %v2156
        %v5485 = vsub.f32 0.0, %v2157
        %v5486 = vsub.f32 0.0, %v2158
        %v5487 = vsub.f32 0.0, %v2159
        %v5488 = vsub.f32 0.0, %v2160
        %v5489 = vsub.f32 0.0, %v2161
        %v5490 = vsub.f32 0.0, %v2162
        %v5491 = vsub.f32 0.0, %v2163
        %v5492 = vsub.f32 0.0, %v2164
        %v5493 = vsub.f32 0.0, %v2165
        %v5494 = vsub.f32 0.0, %v2166
        %v5495 = vsub.f32 0.0, %v2167
        %v5496 = vsub.f32 0.0, %v2168
        %v5497 = vsub.f32 0.0, %v2169
        %v5498 = vsub.f32 0.0, %v2170
        %v5499 = vsub.f32 0.0, %v2171
        %v5500 = vsub.f32 0.0, %v2172
        %v5501 = vsub.f32 0.0, %v2173
        %v5502 = vsub.f32 0.0, %v2174
        %v5503 = vsub.f32 0.0, %v2175
        %v5504 = vsub.f32 0.0, %v2176
        %v5505 = vsub.f32 0.0, %v2177
        %v5506 = vsub.f32 0.0, %v2178
        %v5507 = vsub.f32 0.0, %v2179
        %v5508 = vsub.f32 0.0, %v2180
        %v5509 = vsub.f32 0.0, %v2181
        %v5510 = vsub.f32 0.0, %v2182
        %v5511 = vsub.f32 0.0, %v2183
        %v5512 = vsub.f32 0.0, %v2184
        %v5513 = vsub.f32 0.0, %v2185
        %v5514 = vsub.f32 0.0, %v2186
        %v5515 = vsub.f32 0.0, %v2187
        %v5516 = vsub.f32 0.0, %v2188
        %v5517 = vsub.f32 0.0, %v2189
        %v5518 = vsub.f32 0.0, %v2190
        %v5519 = vsub.f32 0.0, %v2191
        %v5520 = vsub.f32 0.0, %v2192
        %v5521 = vsub.f32 0.0, %v2193
        %v5522 = vsub.f32 0.0, %v2194
        %v5523 = vsub.f32 0.0, %v2195
        %v5524 = vsub.f32 0.0, %v2196
        %v5525 = vsub.f32 0.0, %v2197
        %v5526 = vsub.f32 0.0, %v2198
        %v5527 = vsub.f32 0.0, %v2199
        %v5528 = vsub.f32 0.0, %v2200
        %v5529 = vsub.f32 0.0, %v2201
        %v5530 = vsub.f32 0.0, %v2202
        %v5531 = vsub.f32 0.0, %v2203
        %v5532 = vsub.f32 0.0, %v2204
        %v5533 = vsub.f32 0.0, %v2205
        %v5534 = vsub.f32 0.0, %v2206
        %v5535 = vsub.f32 0.0, %v2207
        %v5536 = vsub.f32 0.0, %v2208
        %v5537 = vsub.f32 0.0, %v2209
        %v5538 = vsub.f32 0.0, %v2210
        %v5539 = vsub.f32 0.0, %v2211
        %v5540 = vsub.f32 0.0, %v2212
        %v5541 = vsub.f32 0.0, %v2213
        %v5542 = vsub.f32 0.0, %v2214
        %v5543 = vsub.f32 0.0, %v2215
        %v5544 = vsub.f32 0.0, %v2216
        %v5545 = vsub.f32 0.0, %v2217
        %v5546 = vsub.f32 0.0, %v2218
        %v5547 = vsub.f32 0.0, %v2219
        %v5548 = vsub.f32 0.0, %v2220
        %v5549 = vsub.f32 0.0, %v2221
        %v5550 = vsub.f32 0.0, %v2222
        %v5551 = vsub.f32 0.0, %v2223
        %v5552 = vsub.f32 0.0, %v2224
        %v5553 = vsub.f32 0.0, %v2225
        %v5554 = vsub.f32 0.0, %v2226
        %v5555 = vsub.f32 0.0, %v2227
        %v5556 = vsub.f32 0.0, %v2228
        %v5557 = vsub.f32 0.0, %v2229
        %v5558 = vsub.f32 0.0, %v2230
        %v5559 = vsub.f32 0.0, %v2231
        %v5560 = vsub.f32 0.0, %v2232
        %v5561 = vsub.f32 0.0, %v2233
        %v5562 = vsub.f32 0.0, %v2234
        %v5563 = vsub.f32 0.0, %v2235
        %v5564 = vsub.f32 0.0, %v2236
        %v5565 = vsub.f32 0.0, %v2237
        %v5566 = vsub.f32 0.0, %v2238
        %v5567 = vsub.f32 0.0, %v2239
        %v5568 = vsub.f32 0.0, %v2240
        %v5569 = vsub.f32 0.0, %v2241
        %v5570 = vsub.f32 0.0, %v2242
        %v5571 = vsub.f32 0.0, %v2243
        %v5572 = vsub.f32 0.0, %v2244
        %v5573 = vsub.f32 0.0, %v2245
        %v5574 = vsub.f32 0.0, %v2246
        %v5575 = vsub.f32 0.0, %v2247
        %v5576 = vsub.f32 0.0, %v2248
        %v5577 = vsub.f32 0.0, %v2249
        %v5578 = vsub.f32 0.0, %v2250
        %v5579 = vsub.f32 0.0, %v2251
        %v5580 = vsub.f32 0.0, %v2252
        %v5581 = vsub.f32 0.0, %v2253
        %v5582 = vsub.f32 0.0, %v2254
        %v5583 = vsub.f32 0.0, %v2255
        %v5584 = vsub.f32 0.0, %v2256
        %v5585 = vsub.f32 0.0, %v2257
        %v5586 = vsub.f32 0.0, %v2258
        %v5587 = vsub.f32 0.0, %v2259
        %v5588 = vsub.f32 0.0, %v2260
        %v5589 = vsub.f32 0.0, %v2261
        %v5590 = vsub.f32 0.0, %v2262
        %v5591 = vsub.f32 0.0, %v2263
        %v5592 = vsub.f32 0.0, %v2264
        %v5593 = vsub.f32 0.0, %v2265
        %v5594 = vsub.f32 0.0, %v2266
        %v5595 = vmul.f32 %v5339, %v2011
        %v5596 = vmul.f32 %v5340, %v2012
        %v5597 = vmul.f32 %v5341, %v2013
        %v5598 = vmul.f32 %v5342, %v2014
        %v5599 = vmul.f32 %v5343, %v2015
        %v5600 = vmul.f32 %v5344, %v2016
        %v5601 = vmul.f32 %v5345, %v2017
        %v5602 = vmul.f32 %v5346, %v2018
        %v5603 = vmul.f32 %v5347, %v2019
        %v5604 = vmul.f32 %v5348, %v2020
        %v5605 = vmul.f32 %v5349, %v2021
        %v5606 = vmul.f32 %v5350, %v2022
        %v5607 = vmul.f32 %v5351, %v2023
        %v5608 = vmul.f32 %v5352, %v2024
        %v5609 = vmul.f32 %v5353, %v2025
        %v5610 = vmul.f32 %v5354, %v2026
        %v5611 = vmul.f32 %v5355, %v2027
        %v5612 = vmul.f32 %v5356, %v2028
        %v5613 = vmul.f32 %v5357, %v2029
        %v5614 = vmul.f32 %v5358, %v2030
        %v5615 = vmul.f32 %v5359, %v2031
        %v5616 = vmul.f32 %v5360, %v2032
        %v5617 = vmul.f32 %v5361, %v2033
        %v5618 = vmul.f32 %v5362, %v2034
        %v5619 = vmul.f32 %v5363, %v2035
        %v5620 = vmul.f32 %v5364, %v2036
        %v5621 = vmul.f32 %v5365, %v2037
        %v5622 = vmul.f32 %v5366, %v2038
        %v5623 = vmul.f32 %v5367, %v2039
        %v5624 = vmul.f32 %v5368, %v2040
        %v5625 = vmul.f32 %v5369, %v2041
        %v5626 = vmul.f32 %v5370, %v2042
        %v5627 = vmul.f32 %v5371, %v2043
        %v5628 = vmul.f32 %v5372, %v2044
        %v5629 = vmul.f32 %v5373, %v2045
        %v5630 = vmul.f32 %v5374, %v2046
        %v5631 = vmul.f32 %v5375, %v2047
        %v5632 = vmul.f32 %v5376, %v2048
        %v5633 = vmul.f32 %v5377, %v2049
        %v5634 = vmul.f32 %v5378, %v2050
        %v5635 = vmul.f32 %v5379, %v2051
        %v5636 = vmul.f32 %v5380, %v2052
        %v5637 = vmul.f32 %v5381, %v2053
        %v5638 = vmul.f32 %v5382, %v2054
        %v5639 = vmul.f32 %v5383, %v2055
        %v5640 = vmul.f32 %v5384, %v2056
        %v5641 = vmul.f32 %v5385, %v2057
        %v5642 = vmul.f32 %v5386, %v2058
        %v5643 = vmul.f32 %v5387, %v2059
        %v5644 = vmul.f32 %v5388, %v2060
        %v5645 = vmul.f32 %v5389, %v2061
        %v5646 = vmul.f32 %v5390, %v2062
        %v5647 = vmul.f32 %v5391, %v2063
        %v5648 = vmul.f32 %v5392, %v2064
        %v5649 = vmul.f32 %v5393, %v2065
        %v5650 = vmul.f32 %v5394, %v2066
        %v5651 = vmul.f32 %v5395, %v2067
        %v5652 = vmul.f32 %v5396, %v2068
        %v5653 = vmul.f32 %v5397, %v2069
        %v5654 = vmul.f32 %v5398, %v2070
        %v5655 = vmul.f32 %v5399, %v2071
        %v5656 = vmul.f32 %v5400, %v2072
        %v5657 = vmul.f32 %v5401, %v2073
        %v5658 = vmul.f32 %v5402, %v2074
        %v5659 = vmul.f32 %v5403, %v2075
        %v5660 = vmul.f32 %v5404, %v2076
        %v5661 = vmul.f32 %v5405, %v2077
        %v5662 = vmul.f32 %v5406, %v2078
        %v5663 = vmul.f32 %v5407, %v2079
        %v5664 = vmul.f32 %v5408, %v2080
        %v5665 = vmul.f32 %v5409, %v2081
        %v5666 = vmul.f32 %v5410, %v2082
        %v5667 = vmul.f32 %v5411, %v2083
        %v5668 = vmul.f32 %v5412, %v2084
        %v5669 = vmul.f32 %v5413, %v2085
        %v5670 = vmul.f32 %v5414, %v2086
        %v5671 = vmul.f32 %v5415, %v2087
        %v5672 = vmul.f32 %v5416, %v2088
        %v5673 = vmul.f32 %v5417, %v2089
        %v5674 = vmul.f32 %v5418, %v2090
        %v5675 = vmul.f32 %v5419, %v2091
        %v5676 = vmul.f32 %v5420, %v2092
        %v5677 = vmul.f32 %v5421, %v2093
        %v5678 = vmul.f32 %v5422, %v2094
        %v5679 = vmul.f32 %v5423, %v2095
        %v5680 = vmul.f32 %v5424, %v2096
        %v5681 = vmul.f32 %v5425, %v2097
        %v5682 = vmul.f32 %v5426, %v2098
        %v5683 = vmul.f32 %v5427, %v2099
        %v5684 = vmul.f32 %v5428, %v2100
        %v5685 = vmul.f32 %v5429, %v2101
        %v5686 = vmul.f32 %v5430, %v2102
        %v5687 = vmul.f32 %v5431, %v2103
        %v5688 = vmul.f32 %v5432, %v2104
        %v5689 = vmul.f32 %v5433, %v2105
        %v5690 = vmul.f32 %v5434, %v2106
        %v5691 = vmul.f32 %v5435, %v2107
        %v5692 = vmul.f32 %v5436, %v2108
        %v5693 = vmul.f32 %v5437, %v2109
        %v5694 = vmul.f32 %v5438, %v2110
        %v5695 = vmul.f32 %v5439, %v2111
        %v5696 = vmul.f32 %v5440, %v2112
        %v5697 = vmul.f32 %v5441, %v2113
        %v5698 = vmul.f32 %v5442, %v2114
        %v5699 = vmul.f32 %v5443, %v2115
        %v5700 = vmul.f32 %v5444, %v2116
        %v5701 = vmul.f32 %v5445, %v2117
        %v5702 = vmul.f32 %v5446, %v2118
        %v5703 = vmul.f32 %v5447, %v2119
        %v5704 = vmul.f32 %v5448, %v2120
        %v5705 = vmul.f32 %v5449, %v2121
        %v5706 = vmul.f32 %v5450, %v2122
        %v5707 = vmul.f32 %v5451, %v2123
        %v5708 = vmul.f32 %v5452, %v2124
        %v5709 = vmul.f32 %v5453, %v2125
        %v5710 = vmul.f32 %v5454, %v2126
        %v5711 = vmul.f32 %v5455, %v2127
        %v5712 = vmul.f32 %v5456, %v2128
        %v5713 = vmul.f32 %v5457, %v2129
        %v5714 = vmul.f32 %v5458, %v2130
        %v5715 = vmul.f32 %v5459, %v2131
        %v5716 = vmul.f32 %v5460, %v2132
        %v5717 = vmul.f32 %v5461, %v2133
        %v5718 = vmul.f32 %v5462, %v2134
        %v5719 = vmul.f32 %v5463, %v2135
        %v5720 = vmul.f32 %v5464, %v2136
        %v5721 = vmul.f32 %v5465, %v2137
        %v5722 = vmul.f32 %v5466, %v2138
        %v5723 = vmul.f32 %v5467, %v2139
        %v5724 = vmul.f32 %v5468, %v2140
        %v5725 = vmul.f32 %v5469, %v2141
        %v5726 = vmul.f32 %v5470, %v2142
        %v5727 = vmul.f32 %v5471, %v2143
        %v5728 = vmul.f32 %v5472, %v2144
        %v5729 = vmul.f32 %v5473, %v2145
        %v5730 = vmul.f32 %v5474, %v2146
        %v5731 = vmul.f32 %v5475, %v2147
        %v5732 = vmul.f32 %v5476, %v2148
        %v5733 = vmul.f32 %v5477, %v2149
        %v5734 = vmul.f32 %v5478, %v2150
        %v5735 = vmul.f32 %v5479, %v2151
        %v5736 = vmul.f32 %v5480, %v2152
        %v5737 = vmul.f32 %v5481, %v2153
        %v5738 = vmul.f32 %v5482, %v2154
        %v5739 = vmul.f32 %v5483, %v2155
        %v5740 = vmul.f32 %v5484, %v2156
        %v5741 = vmul.f32 %v5485, %v2157
        %v5742 = vmul.f32 %v5486, %v2158
        %v5743 = vmul.f32 %v5487, %v2159
        %v5744 = vmul.f32 %v5488, %v2160
        %v5745 = vmul.f32 %v5489, %v2161
        %v5746 = vmul.f32 %v5490, %v2162
        %v5747 = vmul.f32 %v5491, %v2163
        %v5748 = vmul.f32 %v5492, %v2164
        %v5749 = vmul.f32 %v5493, %v2165
        %v5750 = vmul.f32 %v5494, %v2166
        %v5751 = vmul.f32 %v5495, %v2167
        %v5752 = vmul.f32 %v5496, %v2168
        %v5753 = vmul.f32 %v5497, %v2169
        %v5754 = vmul.f32 %v5498, %v2170
        %v5755 = vmul.f32 %v5499, %v2171
        %v5756 = vmul.f32 %v5500, %v2172
        %v5757 = vmul.f32 %v5501, %v2173
        %v5758 = vmul.f32 %v5502, %v2174
        %v5759 = vmul.f32 %v5503, %v2175
        %v5760 = vmul.f32 %v5504, %v2176
        %v5761 = vmul.f32 %v5505, %v2177
        %v5762 = vmul.f32 %v5506, %v2178
        %v5763 = vmul.f32 %v5507, %v2179
        %v5764 = vmul.f32 %v5508, %v2180
        %v5765 = vmul.f32 %v5509, %v2181
        %v5766 = vmul.f32 %v5510, %v2182
        %v5767 = vmul.f32 %v5511, %v2183
        %v5768 = vmul.f32 %v5512, %v2184
        %v5769 = vmul.f32 %v5513, %v2185
        %v5770 = vmul.f32 %v5514, %v2186
        %v5771 = vmul.f32 %v5515, %v2187
        %v5772 = vmul.f32 %v5516, %v2188
        %v5773 = vmul.f32 %v5517, %v2189
        %v5774 = vmul.f32 %v5518, %v2190
        %v5775 = vmul.f32 %v5519, %v2191
        %v5776 = vmul.f32 %v5520, %v2192
        %v5777 = vmul.f32 %v5521, %v2193
        %v5778 = vmul.f32 %v5522, %v2194
        %v5779 = vmul.f32 %v5523, %v2195
        %v5780 = vmul.f32 %v5524, %v2196
        %v5781 = vmul.f32 %v5525, %v2197
        %v5782 = vmul.f32 %v5526, %v2198
        %v5783 = vmul.f32 %v5527, %v2199
        %v5784 = vmul.f32 %v5528, %v2200
        %v5785 = vmul.f32 %v5529, %v2201
        %v5786 = vmul.f32 %v5530, %v2202
        %v5787 = vmul.f32 %v5531, %v2203
        %v5788 = vmul.f32 %v5532, %v2204
        %v5789 = vmul.f32 %v5533, %v2205
        %v5790 = vmul.f32 %v5534, %v2206
        %v5791 = vmul.f32 %v5535, %v2207
        %v5792 = vmul.f32 %v5536, %v2208
        %v5793 = vmul.f32 %v5537, %v2209
        %v5794 = vmul.f32 %v5538, %v2210
        %v5795 = vmul.f32 %v5539, %v2211
        %v5796 = vmul.f32 %v5540, %v2212
        %v5797 = vmul.f32 %v5541, %v2213
        %v5798 = vmul.f32 %v5542, %v2214
        %v5799 = vmul.f32 %v5543, %v2215
        %v5800 = vmul.f32 %v5544, %v2216
        %v5801 = vmul.f32 %v5545, %v2217
        %v5802 = vmul.f32 %v5546, %v2218
        %v5803 = vmul.f32 %v5547, %v2219
        %v5804 = vmul.f32 %v5548, %v2220
        %v5805 = vmul.f32 %v5549, %v2221
        %v5806 = vmul.f32 %v5550, %v2222
        %v5807 = vmul.f32 %v5551, %v2223
        %v5808 = vmul.f32 %v5552, %v2224
        %v5809 = vmul.f32 %v5553, %v2225
        %v5810 = vmul.f32 %v5554, %v2226
        %v5811 = vmul.f32 %v5555, %v2227
        %v5812 = vmul.f32 %v5556, %v2228
        %v5813 = vmul.f32 %v5557, %v2229
        %v5814 = vmul.f32 %v5558, %v2230
        %v5815 = vmul.f32 %v5559, %v2231
        %v5816 = vmul.f32 %v5560, %v2232
        %v5817 = vmul.f32 %v5561, %v2233
        %v5818 = vmul.f32 %v5562, %v2234
        %v5819 = vmul.f32 %v5563, %v2235
        %v5820 = vmul.f32 %v5564, %v2236
        %v5821 = vmul.f32 %v5565, %v2237
        %v5822 = vmul.f32 %v5566, %v2238
        %v5823 = vmul.f32 %v5567, %v2239
        %v5824 = vmul.f32 %v5568, %v2240
        %v5825 = vmul.f32 %v5569, %v2241
        %v5826 = vmul.f32 %v5570, %v2242
        %v5827 = vmul.f32 %v5571, %v2243
        %v5828 = vmul.f32 %v5572, %v2244
        %v5829 = vmul.f32 %v5573, %v2245
        %v5830 = vmul.f32 %v5574, %v2246
        %v5831 = vmul.f32 %v5575, %v2247
        %v5832 = vmul.f32 %v5576, %v2248
        %v5833 = vmul.f32 %v5577, %v2249
        %v5834 = vmul.f32 %v5578, %v2250
        %v5835 = vmul.f32 %v5579, %v2251
        %v5836 = vmul.f32 %v5580, %v2252
        %v5837 = vmul.f32 %v5581, %v2253
        %v5838 = vmul.f32 %v5582, %v2254
        %v5839 = vmul.f32 %v5583, %v2255
        %v5840 = vmul.f32 %v5584, %v2256
        %v5841 = vmul.f32 %v5585, %v2257
        %v5842 = vmul.f32 %v5586, %v2258
        %v5843 = vmul.f32 %v5587, %v2259
        %v5844 = vmul.f32 %v5588, %v2260
        %v5845 = vmul.f32 %v5589, %v2261
        %v5846 = vmul.f32 %v5590, %v2262
        %v5847 = vmul.f32 %v5591, %v2263
        %v5848 = vmul.f32 %v5592, %v2264
        %v5849 = vmul.f32 %v5593, %v2265
        %v5850 = vmul.f32 %v5594, %v2266
        %v5851 = vmul.f32 %v5595, 1.442695
        %v5852 = vpow.pop %v5851
        %v5853 = vmul.f32 %v5596, 1.442695
        %v5854 = vpow.pop %v5853
        %v5855 = vmul.f32 %v5597, 1.442695
        %v5856 = vpow.pop %v5855
        %v5857 = vmul.f32 %v5598, 1.442695
        %v5858 = vpow.pop %v5857
        %v5859 = vmul.f32 %v5599, 1.442695
        %v5860 = vpow.pop %v5859
        %v5861 = vmul.f32 %v5600, 1.442695
        %v5862 = vpow.pop %v5861
        %v5863 = vmul.f32 %v5601, 1.442695
        %v5864 = vpow.pop %v5863
        %v5865 = vmul.f32 %v5602, 1.442695
        %v5866 = vpow.pop %v5865
        %v5867 = vmul.f32 %v5603, 1.442695
        %v5868 = vpow.pop %v5867
        %v5869 = vmul.f32 %v5604, 1.442695
        %v5870 = vpow.pop %v5869
        %v5871 = vmul.f32 %v5605, 1.442695
        %v5872 = vpow.pop %v5871
        %v5873 = vmul.f32 %v5606, 1.442695
        %v5874 = vpow.pop %v5873
        %v5875 = vmul.f32 %v5607, 1.442695
        %v5876 = vpow.pop %v5875
        %v5877 = vmul.f32 %v5608, 1.442695
        %v5878 = vpow.pop %v5877
        %v5879 = vmul.f32 %v5609, 1.442695
        %v5880 = vpow.pop %v5879
        %v5881 = vmul.f32 %v5610, 1.442695
        %v5882 = vpow.pop %v5881
        %v5883 = vmul.f32 %v5611, 1.442695
        %v5884 = vpow.pop %v5883
        %v5885 = vmul.f32 %v5612, 1.442695
        %v5886 = vpow.pop %v5885
        %v5887 = vmul.f32 %v5613, 1.442695
        %v5888 = vpow.pop %v5887
        %v5889 = vmul.f32 %v5614, 1.442695
        %v5890 = vpow.pop %v5889
        %v5891 = vmul.f32 %v5615, 1.442695
        %v5892 = vpow.pop %v5891
        %v5893 = vmul.f32 %v5616, 1.442695
        %v5894 = vpow.pop %v5893
        %v5895 = vmul.f32 %v5617, 1.442695
        %v5896 = vpow.pop %v5895
        %v5897 = vmul.f32 %v5618, 1.442695
        %v5898 = vpow.pop %v5897
        %v5899 = vmul.f32 %v5619, 1.442695
        %v5900 = vpow.pop %v5899
        %v5901 = vmul.f32 %v5620, 1.442695
        %v5902 = vpow.pop %v5901
        %v5903 = vmul.f32 %v5621, 1.442695
        %v5904 = vpow.pop %v5903
        %v5905 = vmul.f32 %v5622, 1.442695
        %v5906 = vpow.pop %v5905
        %v5907 = vmul.f32 %v5623, 1.442695
        %v5908 = vpow.pop %v5907
        %v5909 = vmul.f32 %v5624, 1.442695
        %v5910 = vpow.pop %v5909
        %v5911 = vmul.f32 %v5625, 1.442695
        %v5912 = vpow.pop %v5911
        %v5913 = vmul.f32 %v5626, 1.442695
        %v5914 = vpow.pop %v5913
        %v5915 = vmul.f32 %v5627, 1.442695
        %v5916 = vpow.pop %v5915
        %v5917 = vmul.f32 %v5628, 1.442695
        %v5918 = vpow.pop %v5917
        %v5919 = vmul.f32 %v5629, 1.442695
        %v5920 = vpow.pop %v5919
        %v5921 = vmul.f32 %v5630, 1.442695
        %v5922 = vpow.pop %v5921
        %v5923 = vmul.f32 %v5631, 1.442695
        %v5924 = vpow.pop %v5923
        %v5925 = vmul.f32 %v5632, 1.442695
        %v5926 = vpow.pop %v5925
        %v5927 = vmul.f32 %v5633, 1.442695
        %v5928 = vpow.pop %v5927
        %v5929 = vmul.f32 %v5634, 1.442695
        %v5930 = vpow.pop %v5929
        %v5931 = vmul.f32 %v5635, 1.442695
        %v5932 = vpow.pop %v5931
        %v5933 = vmul.f32 %v5636, 1.442695
        %v5934 = vpow.pop %v5933
        %v5935 = vmul.f32 %v5637, 1.442695
        %v5936 = vpow.pop %v5935
        %v5937 = vmul.f32 %v5638, 1.442695
        %v5938 = vpow.pop %v5937
        %v5939 = vmul.f32 %v5639, 1.442695
        %v5940 = vpow.pop %v5939
        %v5941 = vmul.f32 %v5640, 1.442695
        %v5942 = vpow.pop %v5941
        %v5943 = vmul.f32 %v5641, 1.442695
        %v5944 = vpow.pop %v5943
        %v5945 = vmul.f32 %v5642, 1.442695
        %v5946 = vpow.pop %v5945
        %v5947 = vmul.f32 %v5643, 1.442695
        %v5948 = vpow.pop %v5947
        %v5949 = vmul.f32 %v5644, 1.442695
        %v5950 = vpow.pop %v5949
        %v5951 = vmul.f32 %v5645, 1.442695
        %v5952 = vpow.pop %v5951
        %v5953 = vmul.f32 %v5646, 1.442695
        %v5954 = vpow.pop %v5953
        %v5955 = vmul.f32 %v5647, 1.442695
        %v5956 = vpow.pop %v5955
        %v5957 = vmul.f32 %v5648, 1.442695
        %v5958 = vpow.pop %v5957
        %v5959 = vmul.f32 %v5649, 1.442695
        %v5960 = vpow.pop %v5959
        %v5961 = vmul.f32 %v5650, 1.442695
        %v5962 = vpow.pop %v5961
        %v5963 = vmul.f32 %v5651, 1.442695
        %v5964 = vpow.pop %v5963
        %v5965 = vmul.f32 %v5652, 1.442695
        %v5966 = vpow.pop %v5965
        %v5967 = vmul.f32 %v5653, 1.442695
        %v5968 = vpow.pop %v5967
        %v5969 = vmul.f32 %v5654, 1.442695
        %v5970 = vpow.pop %v5969
        %v5971 = vmul.f32 %v5655, 1.442695
        %v5972 = vpow.pop %v5971
        %v5973 = vmul.f32 %v5656, 1.442695
        %v5974 = vpow.pop %v5973
        %v5975 = vmul.f32 %v5657, 1.442695
        %v5976 = vpow.pop %v5975
        %v5977 = vmul.f32 %v5658, 1.442695
        %v5978 = vpow.pop %v5977
        %v5979 = vmul.f32 %v5659, 1.442695
        %v5980 = vpow.pop %v5979
        %v5981 = vmul.f32 %v5660, 1.442695
        %v5982 = vpow.pop %v5981
        %v5983 = vmul.f32 %v5661, 1.442695
        %v5984 = vpow.pop %v5983
        %v5985 = vmul.f32 %v5662, 1.442695
        %v5986 = vpow.pop %v5985
        %v5987 = vmul.f32 %v5663, 1.442695
        %v5988 = vpow.pop %v5987
        %v5989 = vmul.f32 %v5664, 1.442695
        %v5990 = vpow.pop %v5989
        %v5991 = vmul.f32 %v5665, 1.442695
        %v5992 = vpow.pop %v5991
        %v5993 = vmul.f32 %v5666, 1.442695
        %v5994 = vpow.pop %v5993
        %v5995 = vmul.f32 %v5667, 1.442695
        %v5996 = vpow.pop %v5995
        %v5997 = vmul.f32 %v5668, 1.442695
        %v5998 = vpow.pop %v5997
        %v5999 = vmul.f32 %v5669, 1.442695
        %v6000 = vpow.pop %v5999
        %v6001 = vmul.f32 %v5670, 1.442695
        %v6002 = vpow.pop %v6001
        %v6003 = vmul.f32 %v5671, 1.442695
        %v6004 = vpow.pop %v6003
        %v6005 = vmul.f32 %v5672, 1.442695
        %v6006 = vpow.pop %v6005
        %v6007 = vmul.f32 %v5673, 1.442695
        %v6008 = vpow.pop %v6007
        %v6009 = vmul.f32 %v5674, 1.442695
        %v6010 = vpow.pop %v6009
        %v6011 = vmul.f32 %v5675, 1.442695
        %v6012 = vpow.pop %v6011
        %v6013 = vmul.f32 %v5676, 1.442695
        %v6014 = vpow.pop %v6013
        %v6015 = vmul.f32 %v5677, 1.442695
        %v6016 = vpow.pop %v6015
        %v6017 = vmul.f32 %v5678, 1.442695
        %v6018 = vpow.pop %v6017
        %v6019 = vmul.f32 %v5679, 1.442695
        %v6020 = vpow.pop %v6019
        %v6021 = vmul.f32 %v5680, 1.442695
        %v6022 = vpow.pop %v6021
        %v6023 = vmul.f32 %v5681, 1.442695
        %v6024 = vpow.pop %v6023
        %v6025 = vmul.f32 %v5682, 1.442695
        %v6026 = vpow.pop %v6025
        %v6027 = vmul.f32 %v5683, 1.442695
        %v6028 = vpow.pop %v6027
        %v6029 = vmul.f32 %v5684, 1.442695
        %v6030 = vpow.pop %v6029
        %v6031 = vmul.f32 %v5685, 1.442695
        %v6032 = vpow.pop %v6031
        %v6033 = vmul.f32 %v5686, 1.442695
        %v6034 = vpow.pop %v6033
        %v6035 = vmul.f32 %v5687, 1.442695
        %v6036 = vpow.pop %v6035
        %v6037 = vmul.f32 %v5688, 1.442695
        %v6038 = vpow.pop %v6037
        %v6039 = vmul.f32 %v5689, 1.442695
        %v6040 = vpow.pop %v6039
        %v6041 = vmul.f32 %v5690, 1.442695
        %v6042 = vpow.pop %v6041
        %v6043 = vmul.f32 %v5691, 1.442695
        %v6044 = vpow.pop %v6043
        %v6045 = vmul.f32 %v5692, 1.442695
        %v6046 = vpow.pop %v6045
        %v6047 = vmul.f32 %v5693, 1.442695
        %v6048 = vpow.pop %v6047
        %v6049 = vmul.f32 %v5694, 1.442695
        %v6050 = vpow.pop %v6049
        %v6051 = vmul.f32 %v5695, 1.442695
        %v6052 = vpow.pop %v6051
        %v6053 = vmul.f32 %v5696, 1.442695
        %v6054 = vpow.pop %v6053
        %v6055 = vmul.f32 %v5697, 1.442695
        %v6056 = vpow.pop %v6055
        %v6057 = vmul.f32 %v5698, 1.442695
        %v6058 = vpow.pop %v6057
        %v6059 = vmul.f32 %v5699, 1.442695
        %v6060 = vpow.pop %v6059
        %v6061 = vmul.f32 %v5700, 1.442695
        %v6062 = vpow.pop %v6061
        %v6063 = vmul.f32 %v5701, 1.442695
        %v6064 = vpow.pop %v6063
        %v6065 = vmul.f32 %v5702, 1.442695
        %v6066 = vpow.pop %v6065
        %v6067 = vmul.f32 %v5703, 1.442695
        %v6068 = vpow.pop %v6067
        %v6069 = vmul.f32 %v5704, 1.442695
        %v6070 = vpow.pop %v6069
        %v6071 = vmul.f32 %v5705, 1.442695
        %v6072 = vpow.pop %v6071
        %v6073 = vmul.f32 %v5706, 1.442695
        %v6074 = vpow.pop %v6073
        %v6075 = vmul.f32 %v5707, 1.442695
        %v6076 = vpow.pop %v6075
        %v6077 = vmul.f32 %v5708, 1.442695
        %v6078 = vpow.pop %v6077
        %v6079 = vmul.f32 %v5709, 1.442695
        %v6080 = vpow.pop %v6079
        %v6081 = vmul.f32 %v5710, 1.442695
        %v6082 = vpow.pop %v6081
        %v6083 = vmul.f32 %v5711, 1.442695
        %v6084 = vpow.pop %v6083
        %v6085 = vmul.f32 %v5712, 1.442695
        %v6086 = vpow.pop %v6085
        %v6087 = vmul.f32 %v5713, 1.442695
        %v6088 = vpow.pop %v6087
        %v6089 = vmul.f32 %v5714, 1.442695
        %v6090 = vpow.pop %v6089
        %v6091 = vmul.f32 %v5715, 1.442695
        %v6092 = vpow.pop %v6091
        %v6093 = vmul.f32 %v5716, 1.442695
        %v6094 = vpow.pop %v6093
        %v6095 = vmul.f32 %v5717, 1.442695
        %v6096 = vpow.pop %v6095
        %v6097 = vmul.f32 %v5718, 1.442695
        %v6098 = vpow.pop %v6097
        %v6099 = vmul.f32 %v5719, 1.442695
        %v6100 = vpow.pop %v6099
        %v6101 = vmul.f32 %v5720, 1.442695
        %v6102 = vpow.pop %v6101
        %v6103 = vmul.f32 %v5721, 1.442695
        %v6104 = vpow.pop %v6103
        %v6105 = vmul.f32 %v5722, 1.442695
        %v6106 = vpow.pop %v6105
        %v6107 = vmul.f32 %v5723, 1.442695
        %v6108 = vpow.pop %v6107
        %v6109 = vmul.f32 %v5724, 1.442695
        %v6110 = vpow.pop %v6109
        %v6111 = vmul.f32 %v5725, 1.442695
        %v6112 = vpow.pop %v6111
        %v6113 = vmul.f32 %v5726, 1.442695
        %v6114 = vpow.pop %v6113
        %v6115 = vmul.f32 %v5727, 1.442695
        %v6116 = vpow.pop %v6115
        %v6117 = vmul.f32 %v5728, 1.442695
        %v6118 = vpow.pop %v6117
        %v6119 = vmul.f32 %v5729, 1.442695
        %v6120 = vpow.pop %v6119
        %v6121 = vmul.f32 %v5730, 1.442695
        %v6122 = vpow.pop %v6121
        %v6123 = vmul.f32 %v5731, 1.442695
        %v6124 = vpow.pop %v6123
        %v6125 = vmul.f32 %v5732, 1.442695
        %v6126 = vpow.pop %v6125
        %v6127 = vmul.f32 %v5733, 1.442695
        %v6128 = vpow.pop %v6127
        %v6129 = vmul.f32 %v5734, 1.442695
        %v6130 = vpow.pop %v6129
        %v6131 = vmul.f32 %v5735, 1.442695
        %v6132 = vpow.pop %v6131
        %v6133 = vmul.f32 %v5736, 1.442695
        %v6134 = vpow.pop %v6133
        %v6135 = vmul.f32 %v5737, 1.442695
        %v6136 = vpow.pop %v6135
        %v6137 = vmul.f32 %v5738, 1.442695
        %v6138 = vpow.pop %v6137
        %v6139 = vmul.f32 %v5739, 1.442695
        %v6140 = vpow.pop %v6139
        %v6141 = vmul.f32 %v5740, 1.442695
        %v6142 = vpow.pop %v6141
        %v6143 = vmul.f32 %v5741, 1.442695
        %v6144 = vpow.pop %v6143
        %v6145 = vmul.f32 %v5742, 1.442695
        %v6146 = vpow.pop %v6145
        %v6147 = vmul.f32 %v5743, 1.442695
        %v6148 = vpow.pop %v6147
        %v6149 = vmul.f32 %v5744, 1.442695
        %v6150 = vpow.pop %v6149
        %v6151 = vmul.f32 %v5745, 1.442695
        %v6152 = vpow.pop %v6151
        %v6153 = vmul.f32 %v5746, 1.442695
        %v6154 = vpow.pop %v6153
        %v6155 = vmul.f32 %v5747, 1.442695
        %v6156 = vpow.pop %v6155
        %v6157 = vmul.f32 %v5748, 1.442695
        %v6158 = vpow.pop %v6157
        %v6159 = vmul.f32 %v5749, 1.442695
        %v6160 = vpow.pop %v6159
        %v6161 = vmul.f32 %v5750, 1.442695
        %v6162 = vpow.pop %v6161
        %v6163 = vmul.f32 %v5751, 1.442695
        %v6164 = vpow.pop %v6163
        %v6165 = vmul.f32 %v5752, 1.442695
        %v6166 = vpow.pop %v6165
        %v6167 = vmul.f32 %v5753, 1.442695
        %v6168 = vpow.pop %v6167
        %v6169 = vmul.f32 %v5754, 1.442695
        %v6170 = vpow.pop %v6169
        %v6171 = vmul.f32 %v5755, 1.442695
        %v6172 = vpow.pop %v6171
        %v6173 = vmul.f32 %v5756, 1.442695
        %v6174 = vpow.pop %v6173
        %v6175 = vmul.f32 %v5757, 1.442695
        %v6176 = vpow.pop %v6175
        %v6177 = vmul.f32 %v5758, 1.442695
        %v6178 = vpow.pop %v6177
        %v6179 = vmul.f32 %v5759, 1.442695
        %v6180 = vpow.pop %v6179
        %v6181 = vmul.f32 %v5760, 1.442695
        %v6182 = vpow.pop %v6181
        %v6183 = vmul.f32 %v5761, 1.442695
        %v6184 = vpow.pop %v6183
        %v6185 = vmul.f32 %v5762, 1.442695
        %v6186 = vpow.pop %v6185
        %v6187 = vmul.f32 %v5763, 1.442695
        %v6188 = vpow.pop %v6187
        %v6189 = vmul.f32 %v5764, 1.442695
        %v6190 = vpow.pop %v6189
        %v6191 = vmul.f32 %v5765, 1.442695
        %v6192 = vpow.pop %v6191
        %v6193 = vmul.f32 %v5766, 1.442695
        %v6194 = vpow.pop %v6193
        %v6195 = vmul.f32 %v5767, 1.442695
        %v6196 = vpow.pop %v6195
        %v6197 = vmul.f32 %v5768, 1.442695
        %v6198 = vpow.pop %v6197
        %v6199 = vmul.f32 %v5769, 1.442695
        %v6200 = vpow.pop %v6199
        %v6201 = vmul.f32 %v5770, 1.442695
        %v6202 = vpow.pop %v6201
        %v6203 = vmul.f32 %v5771, 1.442695
        %v6204 = vpow.pop %v6203
        %v6205 = vmul.f32 %v5772, 1.442695
        %v6206 = vpow.pop %v6205
        %v6207 = vmul.f32 %v5773, 1.442695
        %v6208 = vpow.pop %v6207
        %v6209 = vmul.f32 %v5774, 1.442695
        %v6210 = vpow.pop %v6209
        %v6211 = vmul.f32 %v5775, 1.442695
        %v6212 = vpow.pop %v6211
        %v6213 = vmul.f32 %v5776, 1.442695
        %v6214 = vpow.pop %v6213
        %v6215 = vmul.f32 %v5777, 1.442695
        %v6216 = vpow.pop %v6215
        %v6217 = vmul.f32 %v5778, 1.442695
        %v6218 = vpow.pop %v6217
        %v6219 = vmul.f32 %v5779, 1.442695
        %v6220 = vpow.pop %v6219
        %v6221 = vmul.f32 %v5780, 1.442695
        %v6222 = vpow.pop %v6221
        %v6223 = vmul.f32 %v5781, 1.442695
        %v6224 = vpow.pop %v6223
        %v6225 = vmul.f32 %v5782, 1.442695
        %v6226 = vpow.pop %v6225
        %v6227 = vmul.f32 %v5783, 1.442695
        %v6228 = vpow.pop %v6227
        %v6229 = vmul.f32 %v5784, 1.442695
        %v6230 = vpow.pop %v6229
        %v6231 = vmul.f32 %v5785, 1.442695
        %v6232 = vpow.pop %v6231
        %v6233 = vmul.f32 %v5786, 1.442695
        %v6234 = vpow.pop %v6233
        %v6235 = vmul.f32 %v5787, 1.442695
        %v6236 = vpow.pop %v6235
        %v6237 = vmul.f32 %v5788, 1.442695
        %v6238 = vpow.pop %v6237
        %v6239 = vmul.f32 %v5789, 1.442695
        %v6240 = vpow.pop %v6239
        %v6241 = vmul.f32 %v5790, 1.442695
        %v6242 = vpow.pop %v6241
        %v6243 = vmul.f32 %v5791, 1.442695
        %v6244 = vpow.pop %v6243
        %v6245 = vmul.f32 %v5792, 1.442695
        %v6246 = vpow.pop %v6245
        %v6247 = vmul.f32 %v5793, 1.442695
        %v6248 = vpow.pop %v6247
        %v6249 = vmul.f32 %v5794, 1.442695
        %v6250 = vpow.pop %v6249
        %v6251 = vmul.f32 %v5795, 1.442695
        %v6252 = vpow.pop %v6251
        %v6253 = vmul.f32 %v5796, 1.442695
        %v6254 = vpow.pop %v6253
        %v6255 = vmul.f32 %v5797, 1.442695
        %v6256 = vpow.pop %v6255
        %v6257 = vmul.f32 %v5798, 1.442695
        %v6258 = vpow.pop %v6257
        %v6259 = vmul.f32 %v5799, 1.442695
        %v6260 = vpow.pop %v6259
        %v6261 = vmul.f32 %v5800, 1.442695
        %v6262 = vpow.pop %v6261
        %v6263 = vmul.f32 %v5801, 1.442695
        %v6264 = vpow.pop %v6263
        %v6265 = vmul.f32 %v5802, 1.442695
        %v6266 = vpow.pop %v6265
        %v6267 = vmul.f32 %v5803, 1.442695
        %v6268 = vpow.pop %v6267
        %v6269 = vmul.f32 %v5804, 1.442695
        %v6270 = vpow.pop %v6269
        %v6271 = vmul.f32 %v5805, 1.442695
        %v6272 = vpow.pop %v6271
        %v6273 = vmul.f32 %v5806, 1.442695
        %v6274 = vpow.pop %v6273
        %v6275 = vmul.f32 %v5807, 1.442695
        %v6276 = vpow.pop %v6275
        %v6277 = vmul.f32 %v5808, 1.442695
        %v6278 = vpow.pop %v6277
        %v6279 = vmul.f32 %v5809, 1.442695
        %v6280 = vpow.pop %v6279
        %v6281 = vmul.f32 %v5810, 1.442695
        %v6282 = vpow.pop %v6281
        %v6283 = vmul.f32 %v5811, 1.442695
        %v6284 = vpow.pop %v6283
        %v6285 = vmul.f32 %v5812, 1.442695
        %v6286 = vpow.pop %v6285
        %v6287 = vmul.f32 %v5813, 1.442695
        %v6288 = vpow.pop %v6287
        %v6289 = vmul.f32 %v5814, 1.442695
        %v6290 = vpow.pop %v6289
        %v6291 = vmul.f32 %v5815, 1.442695
        %v6292 = vpow.pop %v6291
        %v6293 = vmul.f32 %v5816, 1.442695
        %v6294 = vpow.pop %v6293
        %v6295 = vmul.f32 %v5817, 1.442695
        %v6296 = vpow.pop %v6295
        %v6297 = vmul.f32 %v5818, 1.442695
        %v6298 = vpow.pop %v6297
        %v6299 = vmul.f32 %v5819, 1.442695
        %v6300 = vpow.pop %v6299
        %v6301 = vmul.f32 %v5820, 1.442695
        %v6302 = vpow.pop %v6301
        %v6303 = vmul.f32 %v5821, 1.442695
        %v6304 = vpow.pop %v6303
        %v6305 = vmul.f32 %v5822, 1.442695
        %v6306 = vpow.pop %v6305
        %v6307 = vmul.f32 %v5823, 1.442695
        %v6308 = vpow.pop %v6307
        %v6309 = vmul.f32 %v5824, 1.442695
        %v6310 = vpow.pop %v6309
        %v6311 = vmul.f32 %v5825, 1.442695
        %v6312 = vpow.pop %v6311
        %v6313 = vmul.f32 %v5826, 1.442695
        %v6314 = vpow.pop %v6313
        %v6315 = vmul.f32 %v5827, 1.442695
        %v6316 = vpow.pop %v6315
        %v6317 = vmul.f32 %v5828, 1.442695
        %v6318 = vpow.pop %v6317
        %v6319 = vmul.f32 %v5829, 1.442695
        %v6320 = vpow.pop %v6319
        %v6321 = vmul.f32 %v5830, 1.442695
        %v6322 = vpow.pop %v6321
        %v6323 = vmul.f32 %v5831, 1.442695
        %v6324 = vpow.pop %v6323
        %v6325 = vmul.f32 %v5832, 1.442695
        %v6326 = vpow.pop %v6325
        %v6327 = vmul.f32 %v5833, 1.442695
        %v6328 = vpow.pop %v6327
        %v6329 = vmul.f32 %v5834, 1.442695
        %v6330 = vpow.pop %v6329
        %v6331 = vmul.f32 %v5835, 1.442695
        %v6332 = vpow.pop %v6331
        %v6333 = vmul.f32 %v5836, 1.442695
        %v6334 = vpow.pop %v6333
        %v6335 = vmul.f32 %v5837, 1.442695
        %v6336 = vpow.pop %v6335
        %v6337 = vmul.f32 %v5838, 1.442695
        %v6338 = vpow.pop %v6337
        %v6339 = vmul.f32 %v5839, 1.442695
        %v6340 = vpow.pop %v6339
        %v6341 = vmul.f32 %v5840, 1.442695
        %v6342 = vpow.pop %v6341
        %v6343 = vmul.f32 %v5841, 1.442695
        %v6344 = vpow.pop %v6343
        %v6345 = vmul.f32 %v5842, 1.442695
        %v6346 = vpow.pop %v6345
        %v6347 = vmul.f32 %v5843, 1.442695
        %v6348 = vpow.pop %v6347
        %v6349 = vmul.f32 %v5844, 1.442695
        %v6350 = vpow.pop %v6349
        %v6351 = vmul.f32 %v5845, 1.442695
        %v6352 = vpow.pop %v6351
        %v6353 = vmul.f32 %v5846, 1.442695
        %v6354 = vpow.pop %v6353
        %v6355 = vmul.f32 %v5847, 1.442695
        %v6356 = vpow.pop %v6355
        %v6357 = vmul.f32 %v5848, 1.442695
        %v6358 = vpow.pop %v6357
        %v6359 = vmul.f32 %v5849, 1.442695
        %v6360 = vpow.pop %v6359
        %v6361 = vmul.f32 %v5850, 1.442695
        %v6362 = vpow.pop %v6361
        %v6363 = vmul.f32 %v5083, %v5852
        %v6364 = vmul.f32 %v5084, %v5854
        %v6365 = vmul.f32 %v5085, %v5856
        %v6366 = vmul.f32 %v5086, %v5858
        %v6367 = vmul.f32 %v5087, %v5860
        %v6368 = vmul.f32 %v5088, %v5862
        %v6369 = vmul.f32 %v5089, %v5864
        %v6370 = vmul.f32 %v5090, %v5866
        %v6371 = vmul.f32 %v5091, %v5868
        %v6372 = vmul.f32 %v5092, %v5870
        %v6373 = vmul.f32 %v5093, %v5872
        %v6374 = vmul.f32 %v5094, %v5874
        %v6375 = vmul.f32 %v5095, %v5876
        %v6376 = vmul.f32 %v5096, %v5878
        %v6377 = vmul.f32 %v5097, %v5880
        %v6378 = vmul.f32 %v5098, %v5882
        %v6379 = vmul.f32 %v5099, %v5884
        %v6380 = vmul.f32 %v5100, %v5886
        %v6381 = vmul.f32 %v5101, %v5888
        %v6382 = vmul.f32 %v5102, %v5890
        %v6383 = vmul.f32 %v5103, %v5892
        %v6384 = vmul.f32 %v5104, %v5894
        %v6385 = vmul.f32 %v5105, %v5896
        %v6386 = vmul.f32 %v5106, %v5898
        %v6387 = vmul.f32 %v5107, %v5900
        %v6388 = vmul.f32 %v5108, %v5902
        %v6389 = vmul.f32 %v5109, %v5904
        %v6390 = vmul.f32 %v5110, %v5906
        %v6391 = vmul.f32 %v5111, %v5908
        %v6392 = vmul.f32 %v5112, %v5910
        %v6393 = vmul.f32 %v5113, %v5912
        %v6394 = vmul.f32 %v5114, %v5914
        %v6395 = vmul.f32 %v5115, %v5916
        %v6396 = vmul.f32 %v5116, %v5918
        %v6397 = vmul.f32 %v5117, %v5920
        %v6398 = vmul.f32 %v5118, %v5922
        %v6399 = vmul.f32 %v5119, %v5924
        %v6400 = vmul.f32 %v5120, %v5926
        %v6401 = vmul.f32 %v5121, %v5928
        %v6402 = vmul.f32 %v5122, %v5930
        %v6403 = vmul.f32 %v5123, %v5932
        %v6404 = vmul.f32 %v5124, %v5934
        %v6405 = vmul.f32 %v5125, %v5936
        %v6406 = vmul.f32 %v5126, %v5938
        %v6407 = vmul.f32 %v5127, %v5940
        %v6408 = vmul.f32 %v5128, %v5942
        %v6409 = vmul.f32 %v5129, %v5944
        %v6410 = vmul.f32 %v5130, %v5946
        %v6411 = vmul.f32 %v5131, %v5948
        %v6412 = vmul.f32 %v5132, %v5950
        %v6413 = vmul.f32 %v5133, %v5952
        %v6414 = vmul.f32 %v5134, %v5954
        %v6415 = vmul.f32 %v5135, %v5956
        %v6416 = vmul.f32 %v5136, %v5958
        %v6417 = vmul.f32 %v5137, %v5960
        %v6418 = vmul.f32 %v5138, %v5962
        %v6419 = vmul.f32 %v5139, %v5964
        %v6420 = vmul.f32 %v5140, %v5966
        %v6421 = vmul.f32 %v5141, %v5968
        %v6422 = vmul.f32 %v5142, %v5970
        %v6423 = vmul.f32 %v5143, %v5972
        %v6424 = vmul.f32 %v5144, %v5974
        %v6425 = vmul.f32 %v5145, %v5976
        %v6426 = vmul.f32 %v5146, %v5978
        %v6427 = vmul.f32 %v5147, %v5980
        %v6428 = vmul.f32 %v5148, %v5982
        %v6429 = vmul.f32 %v5149, %v5984
        %v6430 = vmul.f32 %v5150, %v5986
        %v6431 = vmul.f32 %v5151, %v5988
        %v6432 = vmul.f32 %v5152, %v5990
        %v6433 = vmul.f32 %v5153, %v5992
        %v6434 = vmul.f32 %v5154, %v5994
        %v6435 = vmul.f32 %v5155, %v5996
        %v6436 = vmul.f32 %v5156, %v5998
        %v6437 = vmul.f32 %v5157, %v6000
        %v6438 = vmul.f32 %v5158, %v6002
        %v6439 = vmul.f32 %v5159, %v6004
        %v6440 = vmul.f32 %v5160, %v6006
        %v6441 = vmul.f32 %v5161, %v6008
        %v6442 = vmul.f32 %v5162, %v6010
        %v6443 = vmul.f32 %v5163, %v6012
        %v6444 = vmul.f32 %v5164, %v6014
        %v6445 = vmul.f32 %v5165, %v6016
        %v6446 = vmul.f32 %v5166, %v6018
        %v6447 = vmul.f32 %v5167, %v6020
        %v6448 = vmul.f32 %v5168, %v6022
        %v6449 = vmul.f32 %v5169, %v6024
        %v6450 = vmul.f32 %v5170, %v6026
        %v6451 = vmul.f32 %v5171, %v6028
        %v6452 = vmul.f32 %v5172, %v6030
        %v6453 = vmul.f32 %v5173, %v6032
        %v6454 = vmul.f32 %v5174, %v6034
        %v6455 = vmul.f32 %v5175, %v6036
        %v6456 = vmul.f32 %v5176, %v6038
        %v6457 = vmul.f32 %v5177, %v6040
        %v6458 = vmul.f32 %v5178, %v6042
        %v6459 = vmul.f32 %v5179, %v6044
        %v6460 = vmul.f32 %v5180, %v6046
        %v6461 = vmul.f32 %v5181, %v6048
        %v6462 = vmul.f32 %v5182, %v6050
        %v6463 = vmul.f32 %v5183, %v6052
        %v6464 = vmul.f32 %v5184, %v6054
        %v6465 = vmul.f32 %v5185, %v6056
        %v6466 = vmul.f32 %v5186, %v6058
        %v6467 = vmul.f32 %v5187, %v6060
        %v6468 = vmul.f32 %v5188, %v6062
        %v6469 = vmul.f32 %v5189, %v6064
        %v6470 = vmul.f32 %v5190, %v6066
        %v6471 = vmul.f32 %v5191, %v6068
        %v6472 = vmul.f32 %v5192, %v6070
        %v6473 = vmul.f32 %v5193, %v6072
        %v6474 = vmul.f32 %v5194, %v6074
        %v6475 = vmul.f32 %v5195, %v6076
        %v6476 = vmul.f32 %v5196, %v6078
        %v6477 = vmul.f32 %v5197, %v6080
        %v6478 = vmul.f32 %v5198, %v6082
        %v6479 = vmul.f32 %v5199, %v6084
        %v6480 = vmul.f32 %v5200, %v6086
        %v6481 = vmul.f32 %v5201, %v6088
        %v6482 = vmul.f32 %v5202, %v6090
        %v6483 = vmul.f32 %v5203, %v6092
        %v6484 = vmul.f32 %v5204, %v6094
        %v6485 = vmul.f32 %v5205, %v6096
        %v6486 = vmul.f32 %v5206, %v6098
        %v6487 = vmul.f32 %v5207, %v6100
        %v6488 = vmul.f32 %v5208, %v6102
        %v6489 = vmul.f32 %v5209, %v6104
        %v6490 = vmul.f32 %v5210, %v6106
        %v6491 = vmul.f32 %v5211, %v6108
        %v6492 = vmul.f32 %v5212, %v6110
        %v6493 = vmul.f32 %v5213, %v6112
        %v6494 = vmul.f32 %v5214, %v6114
        %v6495 = vmul.f32 %v5215, %v6116
        %v6496 = vmul.f32 %v5216, %v6118
        %v6497 = vmul.f32 %v5217, %v6120
        %v6498 = vmul.f32 %v5218, %v6122
        %v6499 = vmul.f32 %v5219, %v6124
        %v6500 = vmul.f32 %v5220, %v6126
        %v6501 = vmul.f32 %v5221, %v6128
        %v6502 = vmul.f32 %v5222, %v6130
        %v6503 = vmul.f32 %v5223, %v6132
        %v6504 = vmul.f32 %v5224, %v6134
        %v6505 = vmul.f32 %v5225, %v6136
        %v6506 = vmul.f32 %v5226, %v6138
        %v6507 = vmul.f32 %v5227, %v6140
        %v6508 = vmul.f32 %v5228, %v6142
        %v6509 = vmul.f32 %v5229, %v6144
        %v6510 = vmul.f32 %v5230, %v6146
        %v6511 = vmul.f32 %v5231, %v6148
        %v6512 = vmul.f32 %v5232, %v6150
        %v6513 = vmul.f32 %v5233, %v6152
        %v6514 = vmul.f32 %v5234, %v6154
        %v6515 = vmul.f32 %v5235, %v6156
        %v6516 = vmul.f32 %v5236, %v6158
        %v6517 = vmul.f32 %v5237, %v6160
        %v6518 = vmul.f32 %v5238, %v6162
        %v6519 = vmul.f32 %v5239, %v6164
        %v6520 = vmul.f32 %v5240, %v6166
        %v6521 = vmul.f32 %v5241, %v6168
        %v6522 = vmul.f32 %v5242, %v6170
        %v6523 = vmul.f32 %v5243, %v6172
        %v6524 = vmul.f32 %v5244, %v6174
        %v6525 = vmul.f32 %v5245, %v6176
        %v6526 = vmul.f32 %v5246, %v6178
        %v6527 = vmul.f32 %v5247, %v6180
        %v6528 = vmul.f32 %v5248, %v6182
        %v6529 = vmul.f32 %v5249, %v6184
        %v6530 = vmul.f32 %v5250, %v6186
        %v6531 = vmul.f32 %v5251, %v6188
        %v6532 = vmul.f32 %v5252, %v6190
        %v6533 = vmul.f32 %v5253, %v6192
        %v6534 = vmul.f32 %v5254, %v6194
        %v6535 = vmul.f32 %v5255, %v6196
        %v6536 = vmul.f32 %v5256, %v6198
        %v6537 = vmul.f32 %v5257, %v6200
        %v6538 = vmul.f32 %v5258, %v6202
        %v6539 = vmul.f32 %v5259, %v6204
        %v6540 = vmul.f32 %v5260, %v6206
        %v6541 = vmul.f32 %v5261, %v6208
        %v6542 = vmul.f32 %v5262, %v6210
        %v6543 = vmul.f32 %v5263, %v6212
        %v6544 = vmul.f32 %v5264, %v6214
        %v6545 = vmul.f32 %v5265, %v6216
        %v6546 = vmul.f32 %v5266, %v6218
        %v6547 = vmul.f32 %v5267, %v6220
        %v6548 = vmul.f32 %v5268, %v6222
        %v6549 = vmul.f32 %v5269, %v6224
        %v6550 = vmul.f32 %v5270, %v6226
        %v6551 = vmul.f32 %v5271, %v6228
        %v6552 = vmul.f32 %v5272, %v6230
        %v6553 = vmul.f32 %v5273, %v6232
        %v6554 = vmul.f32 %v5274, %v6234
        %v6555 = vmul.f32 %v5275, %v6236
        %v6556 = vmul.f32 %v5276, %v6238
        %v6557 = vmul.f32 %v5277, %v6240
        %v6558 = vmul.f32 %v5278, %v6242
        %v6559 = vmul.f32 %v5279, %v6244
        %v6560 = vmul.f32 %v5280, %v6246
        %v6561 = vmul.f32 %v5281, %v6248
        %v6562 = vmul.f32 %v5282, %v6250
        %v6563 = vmul.f32 %v5283, %v6252
        %v6564 = vmul.f32 %v5284, %v6254
        %v6565 = vmul.f32 %v5285, %v6256
        %v6566 = vmul.f32 %v5286, %v6258
        %v6567 = vmul.f32 %v5287, %v6260
        %v6568 = vmul.f32 %v5288, %v6262
        %v6569 = vmul.f32 %v5289, %v6264
        %v6570 = vmul.f32 %v5290, %v6266
        %v6571 = vmul.f32 %v5291, %v6268
        %v6572 = vmul.f32 %v5292, %v6270
        %v6573 = vmul.f32 %v5293, %v6272
        %v6574 = vmul.f32 %v5294, %v6274
        %v6575 = vmul.f32 %v5295, %v6276
        %v6576 = vmul.f32 %v5296, %v6278
        %v6577 = vmul.f32 %v5297, %v6280
        %v6578 = vmul.f32 %v5298, %v6282
        %v6579 = vmul.f32 %v5299, %v6284
        %v6580 = vmul.f32 %v5300, %v6286
        %v6581 = vmul.f32 %v5301, %v6288
        %v6582 = vmul.f32 %v5302, %v6290
        %v6583 = vmul.f32 %v5303, %v6292
        %v6584 = vmul.f32 %v5304, %v6294
        %v6585 = vmul.f32 %v5305, %v6296
        %v6586 = vmul.f32 %v5306, %v6298
        %v6587 = vmul.f32 %v5307, %v6300
        %v6588 = vmul.f32 %v5308, %v6302
        %v6589 = vmul.f32 %v5309, %v6304
        %v6590 = vmul.f32 %v5310, %v6306
        %v6591 = vmul.f32 %v5311, %v6308
        %v6592 = vmul.f32 %v5312, %v6310
        %v6593 = vmul.f32 %v5313, %v6312
        %v6594 = vmul.f32 %v5314, %v6314
        %v6595 = vmul.f32 %v5315, %v6316
        %v6596 = vmul.f32 %v5316, %v6318
        %v6597 = vmul.f32 %v5317, %v6320
        %v6598 = vmul.f32 %v5318, %v6322
        %v6599 = vmul.f32 %v5319, %v6324
        %v6600 = vmul.f32 %v5320, %v6326
        %v6601 = vmul.f32 %v5321, %v6328
        %v6602 = vmul.f32 %v5322, %v6330
        %v6603 = vmul.f32 %v5323, %v6332
        %v6604 = vmul.f32 %v5324, %v6334
        %v6605 = vmul.f32 %v5325, %v6336
        %v6606 = vmul.f32 %v5326, %v6338
        %v6607 = vmul.f32 %v5327, %v6340
        %v6608 = vmul.f32 %v5328, %v6342
        %v6609 = vmul.f32 %v5329, %v6344
        %v6610 = vmul.f32 %v5330, %v6346
        %v6611 = vmul.f32 %v5331, %v6348
        %v6612 = vmul.f32 %v5332, %v6350
        %v6613 = vmul.f32 %v5333, %v6352
        %v6614 = vmul.f32 %v5334, %v6354
        %v6615 = vmul.f32 %v5335, %v6356
        %v6616 = vmul.f32 %v5336, %v6358
        %v6617 = vmul.f32 %v5337, %v6360
        %v6618 = vmul.f32 %v5338, %v6362
        %v6619 = vsub.f32 1.0, %v6363
        %v6620 = vsub.f32 1.0, %v6364
        %v6621 = vsub.f32 1.0, %v6365
        %v6622 = vsub.f32 1.0, %v6366
        %v6623 = vsub.f32 1.0, %v6367
        %v6624 = vsub.f32 1.0, %v6368
        %v6625 = vsub.f32 1.0, %v6369
        %v6626 = vsub.f32 1.0, %v6370
        %v6627 = vsub.f32 1.0, %v6371
        %v6628 = vsub.f32 1.0, %v6372
        %v6629 = vsub.f32 1.0, %v6373
        %v6630 = vsub.f32 1.0, %v6374
        %v6631 = vsub.f32 1.0, %v6375
        %v6632 = vsub.f32 1.0, %v6376
        %v6633 = vsub.f32 1.0, %v6377
        %v6634 = vsub.f32 1.0, %v6378
        %v6635 = vsub.f32 1.0, %v6379
        %v6636 = vsub.f32 1.0, %v6380
        %v6637 = vsub.f32 1.0, %v6381
        %v6638 = vsub.f32 1.0, %v6382
        %v6639 = vsub.f32 1.0, %v6383
        %v6640 = vsub.f32 1.0, %v6384
        %v6641 = vsub.f32 1.0, %v6385
        %v6642 = vsub.f32 1.0, %v6386
        %v6643 = vsub.f32 1.0, %v6387
        %v6644 = vsub.f32 1.0, %v6388
        %v6645 = vsub.f32 1.0, %v6389
        %v6646 = vsub.f32 1.0, %v6390
        %v6647 = vsub.f32 1.0, %v6391
        %v6648 = vsub.f32 1.0, %v6392
        %v6649 = vsub.f32 1.0, %v6393
        %v6650 = vsub.f32 1.0, %v6394
        %v6651 = vsub.f32 1.0, %v6395
        %v6652 = vsub.f32 1.0, %v6396
        %v6653 = vsub.f32 1.0, %v6397
        %v6654 = vsub.f32 1.0, %v6398
        %v6655 = vsub.f32 1.0, %v6399
        %v6656 = vsub.f32 1.0, %v6400
        %v6657 = vsub.f32 1.0, %v6401
        %v6658 = vsub.f32 1.0, %v6402
        %v6659 = vsub.f32 1.0, %v6403
        %v6660 = vsub.f32 1.0, %v6404
        %v6661 = vsub.f32 1.0, %v6405
        %v6662 = vsub.f32 1.0, %v6406
        %v6663 = vsub.f32 1.0, %v6407
        %v6664 = vsub.f32 1.0, %v6408
        %v6665 = vsub.f32 1.0, %v6409
        %v6666 = vsub.f32 1.0, %v6410
        %v6667 = vsub.f32 1.0, %v6411
        %v6668 = vsub.f32 1.0, %v6412
        %v6669 = vsub.f32 1.0, %v6413
        %v6670 = vsub.f32 1.0, %v6414
        %v6671 = vsub.f32 1.0, %v6415
        %v6672 = vsub.f32 1.0, %v6416
        %v6673 = vsub.f32 1.0, %v6417
        %v6674 = vsub.f32 1.0, %v6418
        %v6675 = vsub.f32 1.0, %v6419
        %v6676 = vsub.f32 1.0, %v6420
        %v6677 = vsub.f32 1.0, %v6421
        %v6678 = vsub.f32 1.0, %v6422
        %v6679 = vsub.f32 1.0, %v6423
        %v6680 = vsub.f32 1.0, %v6424
        %v6681 = vsub.f32 1.0, %v6425
        %v6682 = vsub.f32 1.0, %v6426
        %v6683 = vsub.f32 1.0, %v6427
        %v6684 = vsub.f32 1.0, %v6428
        %v6685 = vsub.f32 1.0, %v6429
        %v6686 = vsub.f32 1.0, %v6430
        %v6687 = vsub.f32 1.0, %v6431
        %v6688 = vsub.f32 1.0, %v6432
        %v6689 = vsub.f32 1.0, %v6433
        %v6690 = vsub.f32 1.0, %v6434
        %v6691 = vsub.f32 1.0, %v6435
        %v6692 = vsub.f32 1.0, %v6436
        %v6693 = vsub.f32 1.0, %v6437
        %v6694 = vsub.f32 1.0, %v6438
        %v6695 = vsub.f32 1.0, %v6439
        %v6696 = vsub.f32 1.0, %v6440
        %v6697 = vsub.f32 1.0, %v6441
        %v6698 = vsub.f32 1.0, %v6442
        %v6699 = vsub.f32 1.0, %v6443
        %v6700 = vsub.f32 1.0, %v6444
        %v6701 = vsub.f32 1.0, %v6445
        %v6702 = vsub.f32 1.0, %v6446
        %v6703 = vsub.f32 1.0, %v6447
        %v6704 = vsub.f32 1.0, %v6448
        %v6705 = vsub.f32 1.0, %v6449
        %v6706 = vsub.f32 1.0, %v6450
        %v6707 = vsub.f32 1.0, %v6451
        %v6708 = vsub.f32 1.0, %v6452
        %v6709 = vsub.f32 1.0, %v6453
        %v6710 = vsub.f32 1.0, %v6454
        %v6711 = vsub.f32 1.0, %v6455
        %v6712 = vsub.f32 1.0, %v6456
        %v6713 = vsub.f32 1.0, %v6457
        %v6714 = vsub.f32 1.0, %v6458
        %v6715 = vsub.f32 1.0, %v6459
        %v6716 = vsub.f32 1.0, %v6460
        %v6717 = vsub.f32 1.0, %v6461
        %v6718 = vsub.f32 1.0, %v6462
        %v6719 = vsub.f32 1.0, %v6463
        %v6720 = vsub.f32 1.0, %v6464
        %v6721 = vsub.f32 1.0, %v6465
        %v6722 = vsub.f32 1.0, %v6466
        %v6723 = vsub.f32 1.0, %v6467
        %v6724 = vsub.f32 1.0, %v6468
        %v6725 = vsub.f32 1.0, %v6469
        %v6726 = vsub.f32 1.0, %v6470
        %v6727 = vsub.f32 1.0, %v6471
        %v6728 = vsub.f32 1.0, %v6472
        %v6729 = vsub.f32 1.0, %v6473
        %v6730 = vsub.f32 1.0, %v6474
        %v6731 = vsub.f32 1.0, %v6475
        %v6732 = vsub.f32 1.0, %v6476
        %v6733 = vsub.f32 1.0, %v6477
        %v6734 = vsub.f32 1.0, %v6478
        %v6735 = vsub.f32 1.0, %v6479
        %v6736 = vsub.f32 1.0, %v6480
        %v6737 = vsub.f32 1.0, %v6481
        %v6738 = vsub.f32 1.0, %v6482
        %v6739 = vsub.f32 1.0, %v6483
        %v6740 = vsub.f32 1.0, %v6484
        %v6741 = vsub.f32 1.0, %v6485
        %v6742 = vsub.f32 1.0, %v6486
        %v6743 = vsub.f32 1.0, %v6487
        %v6744 = vsub.f32 1.0, %v6488
        %v6745 = vsub.f32 1.0, %v6489
        %v6746 = vsub.f32 1.0, %v6490
        %v6747 = vsub.f32 1.0, %v6491
        %v6748 = vsub.f32 1.0, %v6492
        %v6749 = vsub.f32 1.0, %v6493
        %v6750 = vsub.f32 1.0, %v6494
        %v6751 = vsub.f32 1.0, %v6495
        %v6752 = vsub.f32 1.0, %v6496
        %v6753 = vsub.f32 1.0, %v6497
        %v6754 = vsub.f32 1.0, %v6498
        %v6755 = vsub.f32 1.0, %v6499
        %v6756 = vsub.f32 1.0, %v6500
        %v6757 = vsub.f32 1.0, %v6501
        %v6758 = vsub.f32 1.0, %v6502
        %v6759 = vsub.f32 1.0, %v6503
        %v6760 = vsub.f32 1.0, %v6504
        %v6761 = vsub.f32 1.0, %v6505
        %v6762 = vsub.f32 1.0, %v6506
        %v6763 = vsub.f32 1.0, %v6507
        %v6764 = vsub.f32 1.0, %v6508
        %v6765 = vsub.f32 1.0, %v6509
        %v6766 = vsub.f32 1.0, %v6510
        %v6767 = vsub.f32 1.0, %v6511
        %v6768 = vsub.f32 1.0, %v6512
        %v6769 = vsub.f32 1.0, %v6513
        %v6770 = vsub.f32 1.0, %v6514
        %v6771 = vsub.f32 1.0, %v6515
        %v6772 = vsub.f32 1.0, %v6516
        %v6773 = vsub.f32 1.0, %v6517
        %v6774 = vsub.f32 1.0, %v6518
        %v6775 = vsub.f32 1.0, %v6519
        %v6776 = vsub.f32 1.0, %v6520
        %v6777 = vsub.f32 1.0, %v6521
        %v6778 = vsub.f32 1.0, %v6522
        %v6779 = vsub.f32 1.0, %v6523
        %v6780 = vsub.f32 1.0, %v6524
        %v6781 = vsub.f32 1.0, %v6525
        %v6782 = vsub.f32 1.0, %v6526
        %v6783 = vsub.f32 1.0, %v6527
        %v6784 = vsub.f32 1.0, %v6528
        %v6785 = vsub.f32 1.0, %v6529
        %v6786 = vsub.f32 1.0, %v6530
        %v6787 = vsub.f32 1.0, %v6531
        %v6788 = vsub.f32 1.0, %v6532
        %v6789 = vsub.f32 1.0, %v6533
        %v6790 = vsub.f32 1.0, %v6534
        %v6791 = vsub.f32 1.0, %v6535
        %v6792 = vsub.f32 1.0, %v6536
        %v6793 = vsub.f32 1.0, %v6537
        %v6794 = vsub.f32 1.0, %v6538
        %v6795 = vsub.f32 1.0, %v6539
        %v6796 = vsub.f32 1.0, %v6540
        %v6797 = vsub.f32 1.0, %v6541
        %v6798 = vsub.f32 1.0, %v6542
        %v6799 = vsub.f32 1.0, %v6543
        %v6800 = vsub.f32 1.0, %v6544
        %v6801 = vsub.f32 1.0, %v6545
        %v6802 = vsub.f32 1.0, %v6546
        %v6803 = vsub.f32 1.0, %v6547
        %v6804 = vsub.f32 1.0, %v6548
        %v6805 = vsub.f32 1.0, %v6549
        %v6806 = vsub.f32 1.0, %v6550
        %v6807 = vsub.f32 1.0, %v6551
        %v6808 = vsub.f32 1.0, %v6552
        %v6809 = vsub.f32 1.0, %v6553
        %v6810 = vsub.f32 1.0, %v6554
        %v6811 = vsub.f32 1.0, %v6555
        %v6812 = vsub.f32 1.0, %v6556
        %v6813 = vsub.f32 1.0, %v6557
        %v6814 = vsub.f32 1.0, %v6558
        %v6815 = vsub.f32 1.0, %v6559
        %v6816 = vsub.f32 1.0, %v6560
        %v6817 = vsub.f32 1.0, %v6561
        %v6818 = vsub.f32 1.0, %v6562
        %v6819 = vsub.f32 1.0, %v6563
        %v6820 = vsub.f32 1.0, %v6564
        %v6821 = vsub.f32 1.0, %v6565
        %v6822 = vsub.f32 1.0, %v6566
        %v6823 = vsub.f32 1.0, %v6567
        %v6824 = vsub.f32 1.0, %v6568
        %v6825 = vsub.f32 1.0, %v6569
        %v6826 = vsub.f32 1.0, %v6570
        %v6827 = vsub.f32 1.0, %v6571
        %v6828 = vsub.f32 1.0, %v6572
        %v6829 = vsub.f32 1.0, %v6573
        %v6830 = vsub.f32 1.0, %v6574
        %v6831 = vsub.f32 1.0, %v6575
        %v6832 = vsub.f32 1.0, %v6576
        %v6833 = vsub.f32 1.0, %v6577
        %v6834 = vsub.f32 1.0, %v6578
        %v6835 = vsub.f32 1.0, %v6579
        %v6836 = vsub.f32 1.0, %v6580
        %v6837 = vsub.f32 1.0, %v6581
        %v6838 = vsub.f32 1.0, %v6582
        %v6839 = vsub.f32 1.0, %v6583
        %v6840 = vsub.f32 1.0, %v6584
        %v6841 = vsub.f32 1.0, %v6585
        %v6842 = vsub.f32 1.0, %v6586
        %v6843 = vsub.f32 1.0, %v6587
        %v6844 = vsub.f32 1.0, %v6588
        %v6845 = vsub.f32 1.0, %v6589
        %v6846 = vsub.f32 1.0, %v6590
        %v6847 = vsub.f32 1.0, %v6591
        %v6848 = vsub.f32 1.0, %v6592
        %v6849 = vsub.f32 1.0, %v6593
        %v6850 = vsub.f32 1.0, %v6594
        %v6851 = vsub.f32 1.0, %v6595
        %v6852 = vsub.f32 1.0, %v6596
        %v6853 = vsub.f32 1.0, %v6597
        %v6854 = vsub.f32 1.0, %v6598
        %v6855 = vsub.f32 1.0, %v6599
        %v6856 = vsub.f32 1.0, %v6600
        %v6857 = vsub.f32 1.0, %v6601
        %v6858 = vsub.f32 1.0, %v6602
        %v6859 = vsub.f32 1.0, %v6603
        %v6860 = vsub.f32 1.0, %v6604
        %v6861 = vsub.f32 1.0, %v6605
        %v6862 = vsub.f32 1.0, %v6606
        %v6863 = vsub.f32 1.0, %v6607
        %v6864 = vsub.f32 1.0, %v6608
        %v6865 = vsub.f32 1.0, %v6609
        %v6866 = vsub.f32 1.0, %v6610
        %v6867 = vsub.f32 1.0, %v6611
        %v6868 = vsub.f32 1.0, %v6612
        %v6869 = vsub.f32 1.0, %v6613
        %v6870 = vsub.f32 1.0, %v6614
        %v6871 = vsub.f32 1.0, %v6615
        %v6872 = vsub.f32 1.0, %v6616
        %v6873 = vsub.f32 1.0, %v6617
        %v6874 = vsub.f32 1.0, %v6618
        %v6875 = vmul.f32 %v1755, %v6619
        %v6876 = vmul.f32 %v1756, %v6620
        %v6877 = vmul.f32 %v1757, %v6621
        %v6878 = vmul.f32 %v1758, %v6622
        %v6879 = vmul.f32 %v1759, %v6623
        %v6880 = vmul.f32 %v1760, %v6624
        %v6881 = vmul.f32 %v1761, %v6625
        %v6882 = vmul.f32 %v1762, %v6626
        %v6883 = vmul.f32 %v1763, %v6627
        %v6884 = vmul.f32 %v1764, %v6628
        %v6885 = vmul.f32 %v1765, %v6629
        %v6886 = vmul.f32 %v1766, %v6630
        %v6887 = vmul.f32 %v1767, %v6631
        %v6888 = vmul.f32 %v1768, %v6632
        %v6889 = vmul.f32 %v1769, %v6633
        %v6890 = vmul.f32 %v1770, %v6634
        %v6891 = vmul.f32 %v1771, %v6635
        %v6892 = vmul.f32 %v1772, %v6636
        %v6893 = vmul.f32 %v1773, %v6637
        %v6894 = vmul.f32 %v1774, %v6638
        %v6895 = vmul.f32 %v1775, %v6639
        %v6896 = vmul.f32 %v1776, %v6640
        %v6897 = vmul.f32 %v1777, %v6641
        %v6898 = vmul.f32 %v1778, %v6642
        %v6899 = vmul.f32 %v1779, %v6643
        %v6900 = vmul.f32 %v1780, %v6644
        %v6901 = vmul.f32 %v1781, %v6645
        %v6902 = vmul.f32 %v1782, %v6646
        %v6903 = vmul.f32 %v1783, %v6647
        %v6904 = vmul.f32 %v1784, %v6648
        %v6905 = vmul.f32 %v1785, %v6649
        %v6906 = vmul.f32 %v1786, %v6650
        %v6907 = vmul.f32 %v1787, %v6651
        %v6908 = vmul.f32 %v1788, %v6652
        %v6909 = vmul.f32 %v1789, %v6653
        %v6910 = vmul.f32 %v1790, %v6654
        %v6911 = vmul.f32 %v1791, %v6655
        %v6912 = vmul.f32 %v1792, %v6656
        %v6913 = vmul.f32 %v1793, %v6657
        %v6914 = vmul.f32 %v1794, %v6658
        %v6915 = vmul.f32 %v1795, %v6659
        %v6916 = vmul.f32 %v1796, %v6660
        %v6917 = vmul.f32 %v1797, %v6661
        %v6918 = vmul.f32 %v1798, %v6662
        %v6919 = vmul.f32 %v1799, %v6663
        %v6920 = vmul.f32 %v1800, %v6664
        %v6921 = vmul.f32 %v1801, %v6665
        %v6922 = vmul.f32 %v1802, %v6666
        %v6923 = vmul.f32 %v1803, %v6667
        %v6924 = vmul.f32 %v1804, %v6668
        %v6925 = vmul.f32 %v1805, %v6669
        %v6926 = vmul.f32 %v1806, %v6670
        %v6927 = vmul.f32 %v1807, %v6671
        %v6928 = vmul.f32 %v1808, %v6672
        %v6929 = vmul.f32 %v1809, %v6673
        %v6930 = vmul.f32 %v1810, %v6674
        %v6931 = vmul.f32 %v1811, %v6675
        %v6932 = vmul.f32 %v1812, %v6676
        %v6933 = vmul.f32 %v1813, %v6677
        %v6934 = vmul.f32 %v1814, %v6678
        %v6935 = vmul.f32 %v1815, %v6679
        %v6936 = vmul.f32 %v1816, %v6680
        %v6937 = vmul.f32 %v1817, %v6681
        %v6938 = vmul.f32 %v1818, %v6682
        %v6939 = vmul.f32 %v1819, %v6683
        %v6940 = vmul.f32 %v1820, %v6684
        %v6941 = vmul.f32 %v1821, %v6685
        %v6942 = vmul.f32 %v1822, %v6686
        %v6943 = vmul.f32 %v1823, %v6687
        %v6944 = vmul.f32 %v1824, %v6688
        %v6945 = vmul.f32 %v1825, %v6689
        %v6946 = vmul.f32 %v1826, %v6690
        %v6947 = vmul.f32 %v1827, %v6691
        %v6948 = vmul.f32 %v1828, %v6692
        %v6949 = vmul.f32 %v1829, %v6693
        %v6950 = vmul.f32 %v1830, %v6694
        %v6951 = vmul.f32 %v1831, %v6695
        %v6952 = vmul.f32 %v1832, %v6696
        %v6953 = vmul.f32 %v1833, %v6697
        %v6954 = vmul.f32 %v1834, %v6698
        %v6955 = vmul.f32 %v1835, %v6699
        %v6956 = vmul.f32 %v1836, %v6700
        %v6957 = vmul.f32 %v1837, %v6701
        %v6958 = vmul.f32 %v1838, %v6702
        %v6959 = vmul.f32 %v1839, %v6703
        %v6960 = vmul.f32 %v1840, %v6704
        %v6961 = vmul.f32 %v1841, %v6705
        %v6962 = vmul.f32 %v1842, %v6706
        %v6963 = vmul.f32 %v1843, %v6707
        %v6964 = vmul.f32 %v1844, %v6708
        %v6965 = vmul.f32 %v1845, %v6709
        %v6966 = vmul.f32 %v1846, %v6710
        %v6967 = vmul.f32 %v1847, %v6711
        %v6968 = vmul.f32 %v1848, %v6712
        %v6969 = vmul.f32 %v1849, %v6713
        %v6970 = vmul.f32 %v1850, %v6714
        %v6971 = vmul.f32 %v1851, %v6715
        %v6972 = vmul.f32 %v1852, %v6716
        %v6973 = vmul.f32 %v1853, %v6717
        %v6974 = vmul.f32 %v1854, %v6718
        %v6975 = vmul.f32 %v1855, %v6719
        %v6976 = vmul.f32 %v1856, %v6720
        %v6977 = vmul.f32 %v1857, %v6721
        %v6978 = vmul.f32 %v1858, %v6722
        %v6979 = vmul.f32 %v1859, %v6723
        %v6980 = vmul.f32 %v1860, %v6724
        %v6981 = vmul.f32 %v1861, %v6725
        %v6982 = vmul.f32 %v1862, %v6726
        %v6983 = vmul.f32 %v1863, %v6727
        %v6984 = vmul.f32 %v1864, %v6728
        %v6985 = vmul.f32 %v1865, %v6729
        %v6986 = vmul.f32 %v1866, %v6730
        %v6987 = vmul.f32 %v1867, %v6731
        %v6988 = vmul.f32 %v1868, %v6732
        %v6989 = vmul.f32 %v1869, %v6733
        %v6990 = vmul.f32 %v1870, %v6734
        %v6991 = vmul.f32 %v1871, %v6735
        %v6992 = vmul.f32 %v1872, %v6736
        %v6993 = vmul.f32 %v1873, %v6737
        %v6994 = vmul.f32 %v1874, %v6738
        %v6995 = vmul.f32 %v1875, %v6739
        %v6996 = vmul.f32 %v1876, %v6740
        %v6997 = vmul.f32 %v1877, %v6741
        %v6998 = vmul.f32 %v1878, %v6742
        %v6999 = vmul.f32 %v1879, %v6743
        %v7000 = vmul.f32 %v1880, %v6744
        %v7001 = vmul.f32 %v1881, %v6745
        %v7002 = vmul.f32 %v1882, %v6746
        %v7003 = vmul.f32 %v1883, %v6747
        %v7004 = vmul.f32 %v1884, %v6748
        %v7005 = vmul.f32 %v1885, %v6749
        %v7006 = vmul.f32 %v1886, %v6750
        %v7007 = vmul.f32 %v1887, %v6751
        %v7008 = vmul.f32 %v1888, %v6752
        %v7009 = vmul.f32 %v1889, %v6753
        %v7010 = vmul.f32 %v1890, %v6754
        %v7011 = vmul.f32 %v1891, %v6755
        %v7012 = vmul.f32 %v1892, %v6756
        %v7013 = vmul.f32 %v1893, %v6757
        %v7014 = vmul.f32 %v1894, %v6758
        %v7015 = vmul.f32 %v1895, %v6759
        %v7016 = vmul.f32 %v1896, %v6760
        %v7017 = vmul.f32 %v1897, %v6761
        %v7018 = vmul.f32 %v1898, %v6762
        %v7019 = vmul.f32 %v1899, %v6763
        %v7020 = vmul.f32 %v1900, %v6764
        %v7021 = vmul.f32 %v1901, %v6765
        %v7022 = vmul.f32 %v1902, %v6766
        %v7023 = vmul.f32 %v1903, %v6767
        %v7024 = vmul.f32 %v1904, %v6768
        %v7025 = vmul.f32 %v1905, %v6769
        %v7026 = vmul.f32 %v1906, %v6770
        %v7027 = vmul.f32 %v1907, %v6771
        %v7028 = vmul.f32 %v1908, %v6772
        %v7029 = vmul.f32 %v1909, %v6773
        %v7030 = vmul.f32 %v1910, %v6774
        %v7031 = vmul.f32 %v1911, %v6775
        %v7032 = vmul.f32 %v1912, %v6776
        %v7033 = vmul.f32 %v1913, %v6777
        %v7034 = vmul.f32 %v1914, %v6778
        %v7035 = vmul.f32 %v1915, %v6779
        %v7036 = vmul.f32 %v1916, %v6780
        %v7037 = vmul.f32 %v1917, %v6781
        %v7038 = vmul.f32 %v1918, %v6782
        %v7039 = vmul.f32 %v1919, %v6783
        %v7040 = vmul.f32 %v1920, %v6784
        %v7041 = vmul.f32 %v1921, %v6785
        %v7042 = vmul.f32 %v1922, %v6786
        %v7043 = vmul.f32 %v1923, %v6787
        %v7044 = vmul.f32 %v1924, %v6788
        %v7045 = vmul.f32 %v1925, %v6789
        %v7046 = vmul.f32 %v1926, %v6790
        %v7047 = vmul.f32 %v1927, %v6791
        %v7048 = vmul.f32 %v1928, %v6792
        %v7049 = vmul.f32 %v1929, %v6793
        %v7050 = vmul.f32 %v1930, %v6794
        %v7051 = vmul.f32 %v1931, %v6795
        %v7052 = vmul.f32 %v1932, %v6796
        %v7053 = vmul.f32 %v1933, %v6797
        %v7054 = vmul.f32 %v1934, %v6798
        %v7055 = vmul.f32 %v1935, %v6799
        %v7056 = vmul.f32 %v1936, %v6800
        %v7057 = vmul.f32 %v1937, %v6801
        %v7058 = vmul.f32 %v1938, %v6802
        %v7059 = vmul.f32 %v1939, %v6803
        %v7060 = vmul.f32 %v1940, %v6804
        %v7061 = vmul.f32 %v1941, %v6805
        %v7062 = vmul.f32 %v1942, %v6806
        %v7063 = vmul.f32 %v1943, %v6807
        %v7064 = vmul.f32 %v1944, %v6808
        %v7065 = vmul.f32 %v1945, %v6809
        %v7066 = vmul.f32 %v1946, %v6810
        %v7067 = vmul.f32 %v1947, %v6811
        %v7068 = vmul.f32 %v1948, %v6812
        %v7069 = vmul.f32 %v1949, %v6813
        %v7070 = vmul.f32 %v1950, %v6814
        %v7071 = vmul.f32 %v1951, %v6815
        %v7072 = vmul.f32 %v1952, %v6816
        %v7073 = vmul.f32 %v1953, %v6817
        %v7074 = vmul.f32 %v1954, %v6818
        %v7075 = vmul.f32 %v1955, %v6819
        %v7076 = vmul.f32 %v1956, %v6820
        %v7077 = vmul.f32 %v1957, %v6821
        %v7078 = vmul.f32 %v1958, %v6822
        %v7079 = vmul.f32 %v1959, %v6823
        %v7080 = vmul.f32 %v1960, %v6824
        %v7081 = vmul.f32 %v1961, %v6825
        %v7082 = vmul.f32 %v1962, %v6826
        %v7083 = vmul.f32 %v1963, %v6827
        %v7084 = vmul.f32 %v1964, %v6828
        %v7085 = vmul.f32 %v1965, %v6829
        %v7086 = vmul.f32 %v1966, %v6830
        %v7087 = vmul.f32 %v1967, %v6831
        %v7088 = vmul.f32 %v1968, %v6832
        %v7089 = vmul.f32 %v1969, %v6833
        %v7090 = vmul.f32 %v1970, %v6834
        %v7091 = vmul.f32 %v1971, %v6835
        %v7092 = vmul.f32 %v1972, %v6836
        %v7093 = vmul.f32 %v1973, %v6837
        %v7094 = vmul.f32 %v1974, %v6838
        %v7095 = vmul.f32 %v1975, %v6839
        %v7096 = vmul.f32 %v1976, %v6840
        %v7097 = vmul.f32 %v1977, %v6841
        %v7098 = vmul.f32 %v1978, %v6842
        %v7099 = vmul.f32 %v1979, %v6843
        %v7100 = vmul.f32 %v1980, %v6844
        %v7101 = vmul.f32 %v1981, %v6845
        %v7102 = vmul.f32 %v1982, %v6846
        %v7103 = vmul.f32 %v1983, %v6847
        %v7104 = vmul.f32 %v1984, %v6848
        %v7105 = vmul.f32 %v1985, %v6849
        %v7106 = vmul.f32 %v1986, %v6850
        %v7107 = vmul.f32 %v1987, %v6851
        %v7108 = vmul.f32 %v1988, %v6852
        %v7109 = vmul.f32 %v1989, %v6853
        %v7110 = vmul.f32 %v1990, %v6854
        %v7111 = vmul.f32 %v1991, %v6855
        %v7112 = vmul.f32 %v1992, %v6856
        %v7113 = vmul.f32 %v1993, %v6857
        %v7114 = vmul.f32 %v1994, %v6858
        %v7115 = vmul.f32 %v1995, %v6859
        %v7116 = vmul.f32 %v1996, %v6860
        %v7117 = vmul.f32 %v1997, %v6861
        %v7118 = vmul.f32 %v1998, %v6862
        %v7119 = vmul.f32 %v1999, %v6863
        %v7120 = vmul.f32 %v2000, %v6864
        %v7121 = vmul.f32 %v2001, %v6865
        %v7122 = vmul.f32 %v2002, %v6866
        %v7123 = vmul.f32 %v2003, %v6867
        %v7124 = vmul.f32 %v2004, %v6868
        %v7125 = vmul.f32 %v2005, %v6869
        %v7126 = vmul.f32 %v2006, %v6870
        %v7127 = vmul.f32 %v2007, %v6871
        %v7128 = vmul.f32 %v2008, %v6872
        %v7129 = vmul.f32 %v2009, %v6873
        %v7130 = vmul.f32 %v2010, %v6874
        %v7131 = vmul.f32 %v572, 0.5
        %v7132 = vmul.f32 %v574, 0.5
        %v7133 = vmul.f32 %v925, 0.5
        %v7134 = vmul.f32 %v927, 0.5
        %v7135 = vmul.f32 %v576, 0.5
        %v7136 = vmul.f32 %v578, 0.5
        %v7137 = vmul.f32 %v929, 0.5
        %v7138 = vmul.f32 %v931, 0.5
        %v7139 = vmul.f32 %v582, 0.5
        %v7140 = vmul.f32 %v584, 0.5
        %v7141 = vmul.f32 %v935, 0.5
        %v7142 = vmul.f32 %v937, 0.5
        %v7143 = vmul.f32 %v586, 0.5
        %v7144 = vmul.f32 %v588, 0.5
        %v7145 = vmul.f32 %v939, 0.5
        %v7146 = vmul.f32 %v941, 0.5
        %v7147 = vmul.f32 %v592, 0.5
        %v7148 = vmul.f32 %v594, 0.5
        %v7149 = vmul.f32 %v945, 0.5
        %v7150 = vmul.f32 %v947, 0.5
        %v7151 = vmul.f32 %v596, 0.5
        %v7152 = vmul.f32 %v598, 0.5
        %v7153 = vmul.f32 %v949, 0.5
        %v7154 = vmul.f32 %v951, 0.5
        %v7155 = vmul.f32 %v602, 0.5
        %v7156 = vmul.f32 %v604, 0.5
        %v7157 = vmul.f32 %v955, 0.5
        %v7158 = vmul.f32 %v957, 0.5
        %v7159 = vmul.f32 %v606, 0.5
        %v7160 = vmul.f32 %v608, 0.5
        %v7161 = vmul.f32 %v959, 0.5
        %v7162 = vmul.f32 %v961, 0.5
        %v7163 = vmul.f32 %v612, 0.5
        %v7164 = vmul.f32 %v614, 0.5
        %v7165 = vmul.f32 %v965, 0.5
        %v7166 = vmul.f32 %v967, 0.5
        %v7167 = vmul.f32 %v616, 0.5
        %v7168 = vmul.f32 %v618, 0.5
        %v7169 = vmul.f32 %v969, 0.5
        %v7170 = vmul.f32 %v971, 0.5
        %v7171 = vmul.f32 %v622, 0.5
        %v7172 = vmul.f32 %v624, 0.5
        %v7173 = vmul.f32 %v975, 0.5
        %v7174 = vmul.f32 %v977, 0.5
        %v7175 = vmul.f32 %v626, 0.5
        %v7176 = vmul.f32 %v628, 0.5
        %v7177 = vmul.f32 %v979, 0.5
        %v7178 = vmul.f32 %v981, 0.5
        %v7179 = vmul.f32 %v632, 0.5
        %v7180 = vmul.f32 %v634, 0.5
        %v7181 = vmul.f32 %v985, 0.5
        %v7182 = vmul.f32 %v987, 0.5
        %v7183 = vmul.f32 %v636, 0.5
        %v7184 = vmul.f32 %v638, 0.5
        %v7185 = vmul.f32 %v989, 0.5
        %v7186 = vmul.f32 %v991, 0.5
        %v7187 = vmul.f32 %v642, 0.5
        %v7188 = vmul.f32 %v644, 0.5
        %v7189 = vmul.f32 %v995, 0.5
        %v7190 = vmul.f32 %v997, 0.5
        %v7191 = vmul.f32 %v646, 0.5
        %v7192 = vmul.f32 %v648, 0.5
        %v7193 = vmul.f32 %v999, 0.5
        %v7194 = vmul.f32 %v1001, 0.5
        %v7195 = vmul.f32 %v652, 0.5
        %v7196 = vmul.f32 %v654, 0.5
        %v7197 = vmul.f32 %v1005, 0.5
        %v7198 = vmul.f32 %v1007, 0.5
        %v7199 = vmul.f32 %v656, 0.5
        %v7200 = vmul.f32 %v658, 0.5
        %v7201 = vmul.f32 %v1009, 0.5
        %v7202 = vmul.f32 %v1011, 0.5
        %v7203 = vmul.f32 %v662, 0.5
        %v7204 = vmul.f32 %v664, 0.5
        %v7205 = vmul.f32 %v1015, 0.5
        %v7206 = vmul.f32 %v1017, 0.5
        %v7207 = vmul.f32 %v666, 0.5
        %v7208 = vmul.f32 %v668, 0.5
        %v7209 = vmul.f32 %v1019, 0.5
        %v7210 = vmul.f32 %v1021, 0.5
        %v7211 = vmul.f32 %v672, 0.5
        %v7212 = vmul.f32 %v674, 0.5
        %v7213 = vmul.f32 %v1025, 0.5
        %v7214 = vmul.f32 %v1027, 0.5
        %v7215 = vmul.f32 %v676, 0.5
        %v7216 = vmul.f32 %v678, 0.5
        %v7217 = vmul.f32 %v1029, 0.5
        %v7218 = vmul.f32 %v1031, 0.5
        %v7219 = vmul.f32 %v682, 0.5
        %v7220 = vmul.f32 %v684, 0.5
        %v7221 = vmul.f32 %v1035, 0.5
        %v7222 = vmul.f32 %v1037, 0.5
        %v7223 = vmul.f32 %v686, 0.5
        %v7224 = vmul.f32 %v688, 0.5
        %v7225 = vmul.f32 %v1039, 0.5
        %v7226 = vmul.f32 %v1041, 0.5
        %v7227 = vmul.f32 %v692, 0.5
        %v7228 = vmul.f32 %v694, 0.5
        %v7229 = vmul.f32 %v1045, 0.5
        %v7230 = vmul.f32 %v1047, 0.5
        %v7231 = vmul.f32 %v696, 0.5
        %v7232 = vmul.f32 %v698, 0.5
        %v7233 = vmul.f32 %v1049, 0.5
        %v7234 = vmul.f32 %v1051, 0.5
        %v7235 = vmul.f32 %v702, 0.5
        %v7236 = vmul.f32 %v704, 0.5
        %v7237 = vmul.f32 %v1055, 0.5
        %v7238 = vmul.f32 %v1057, 0.5
        %v7239 = vmul.f32 %v706, 0.5
        %v7240 = vmul.f32 %v708, 0.5
        %v7241 = vmul.f32 %v1059, 0.5
        %v7242 = vmul.f32 %v1061, 0.5
        %v7243 = vmul.f32 %v712, 0.5
        %v7244 = vmul.f32 %v714, 0.5
        %v7245 = vmul.f32 %v1065, 0.5
        %v7246 = vmul.f32 %v1067, 0.5
        %v7247 = vmul.f32 %v716, 0.5
        %v7248 = vmul.f32 %v718, 0.5
        %v7249 = vmul.f32 %v1069, 0.5
        %v7250 = vmul.f32 %v1071, 0.5
        %v7251 = vmul.f32 %v722, 0.5
        %v7252 = vmul.f32 %v724, 0.5
        %v7253 = vmul.f32 %v1075, 0.5
        %v7254 = vmul.f32 %v1077, 0.5
        %v7255 = vmul.f32 %v726, 0.5
        %v7256 = vmul.f32 %v728, 0.5
        %v7257 = vmul.f32 %v1079, 0.5
        %v7258 = vmul.f32 %v1081, 0.5
        %v7259 = vmul.f32 %v732, 0.5
        %v7260 = vmul.f32 %v734, 0.5
        %v7261 = vmul.f32 %v1085, 0.5
        %v7262 = vmul.f32 %v1087, 0.5
        %v7263 = vmul.f32 %v736, 0.5
        %v7264 = vmul.f32 %v738, 0.5
        %v7265 = vmul.f32 %v1089, 0.5
        %v7266 = vmul.f32 %v1091, 0.5
        %v7267 = vmul.f32 %v742, 0.5
        %v7268 = vmul.f32 %v744, 0.5
        %v7269 = vmul.f32 %v1095, 0.5
        %v7270 = vmul.f32 %v1097, 0.5
        %v7271 = vmul.f32 %v746, 0.5
        %v7272 = vmul.f32 %v748, 0.5
        %v7273 = vmul.f32 %v1099, 0.5
        %v7274 = vmul.f32 %v1101, 0.5
        %v7275 = vmul.f32 %v752, 0.5
        %v7276 = vmul.f32 %v754, 0.5
        %v7277 = vmul.f32 %v1105, 0.5
        %v7278 = vmul.f32 %v1107, 0.5
        %v7279 = vmul.f32 %v756, 0.5
        %v7280 = vmul.f32 %v758, 0.5
        %v7281 = vmul.f32 %v1109, 0.5
        %v7282 = vmul.f32 %v1111, 0.5
        %v7283 = vmul.f32 %v762, 0.5
        %v7284 = vmul.f32 %v764, 0.5
        %v7285 = vmul.f32 %v1115, 0.5
        %v7286 = vmul.f32 %v1117, 0.5
        %v7287 = vmul.f32 %v766, 0.5
        %v7288 = vmul.f32 %v768, 0.5
        %v7289 = vmul.f32 %v1119, 0.5
        %v7290 = vmul.f32 %v1121, 0.5
        %v7291 = vmul.f32 %v772, 0.5
        %v7292 = vmul.f32 %v774, 0.5
        %v7293 = vmul.f32 %v1125, 0.5
        %v7294 = vmul.f32 %v1127, 0.5
        %v7295 = vmul.f32 %v776, 0.5
        %v7296 = vmul.f32 %v778, 0.5
        %v7297 = vmul.f32 %v1129, 0.5
        %v7298 = vmul.f32 %v1131, 0.5
        %v7299 = vmul.f32 %v782, 0.5
        %v7300 = vmul.f32 %v784, 0.5
        %v7301 = vmul.f32 %v1135, 0.5
        %v7302 = vmul.f32 %v1137, 0.5
        %v7303 = vmul.f32 %v786, 0.5
        %v7304 = vmul.f32 %v788, 0.5
        %v7305 = vmul.f32 %v1139, 0.5
        %v7306 = vmul.f32 %v1141, 0.5
        %v7307 = vmul.f32 %v792, 0.5
        %v7308 = vmul.f32 %v794, 0.5
        %v7309 = vmul.f32 %v1145, 0.5
        %v7310 = vmul.f32 %v1147, 0.5
        %v7311 = vmul.f32 %v796, 0.5
        %v7312 = vmul.f32 %v798, 0.5
        %v7313 = vmul.f32 %v1149, 0.5
        %v7314 = vmul.f32 %v1151, 0.5
        %v7315 = vmul.f32 %v802, 0.5
        %v7316 = vmul.f32 %v804, 0.5
        %v7317 = vmul.f32 %v1155, 0.5
        %v7318 = vmul.f32 %v1157, 0.5
        %v7319 = vmul.f32 %v806, 0.5
        %v7320 = vmul.f32 %v808, 0.5
        %v7321 = vmul.f32 %v1159, 0.5
        %v7322 = vmul.f32 %v1161, 0.5
        %v7323 = vmul.f32 %v812, 0.5
        %v7324 = vmul.f32 %v814, 0.5
        %v7325 = vmul.f32 %v1165, 0.5
        %v7326 = vmul.f32 %v1167, 0.5
        %v7327 = vmul.f32 %v816, 0.5
        %v7328 = vmul.f32 %v818, 0.5
        %v7329 = vmul.f32 %v1169, 0.5
        %v7330 = vmul.f32 %v1171, 0.5
        %v7331 = vmul.f32 %v822, 0.5
        %v7332 = vmul.f32 %v824, 0.5
        %v7333 = vmul.f32 %v1175, 0.5
        %v7334 = vmul.f32 %v1177, 0.5
        %v7335 = vmul.f32 %v826, 0.5
        %v7336 = vmul.f32 %v828, 0.5
        %v7337 = vmul.f32 %v1179, 0.5
        %v7338 = vmul.f32 %v1181, 0.5
        %v7339 = vmul.f32 %v832, 0.5
        %v7340 = vmul.f32 %v834, 0.5
        %v7341 = vmul.f32 %v1185, 0.5
        %v7342 = vmul.f32 %v1187, 0.5
        %v7343 = vmul.f32 %v836, 0.5
        %v7344 = vmul.f32 %v838, 0.5
        %v7345 = vmul.f32 %v1189, 0.5
        %v7346 = vmul.f32 %v1191, 0.5
        %v7347 = vmul.f32 %v842, 0.5
        %v7348 = vmul.f32 %v844, 0.5
        %v7349 = vmul.f32 %v1195, 0.5
        %v7350 = vmul.f32 %v1197, 0.5
        %v7351 = vmul.f32 %v846, 0.5
        %v7352 = vmul.f32 %v848, 0.5
        %v7353 = vmul.f32 %v1199, 0.5
        %v7354 = vmul.f32 %v1201, 0.5
        %v7355 = vmul.f32 %v852, 0.5
        %v7356 = vmul.f32 %v854, 0.5
        %v7357 = vmul.f32 %v1205, 0.5
        %v7358 = vmul.f32 %v1207, 0.5
        %v7359 = vmul.f32 %v856, 0.5
        %v7360 = vmul.f32 %v858, 0.5
        %v7361 = vmul.f32 %v1209, 0.5
        %v7362 = vmul.f32 %v1211, 0.5
        %v7363 = vmul.f32 %v862, 0.5
        %v7364 = vmul.f32 %v864, 0.5
        %v7365 = vmul.f32 %v1215, 0.5
        %v7366 = vmul.f32 %v1217, 0.5
        %v7367 = vmul.f32 %v866, 0.5
        %v7368 = vmul.f32 %v868, 0.5
        %v7369 = vmul.f32 %v1219, 0.5
        %v7370 = vmul.f32 %v1221, 0.5
        %v7371 = vmul.f32 %v872, 0.5
        %v7372 = vmul.f32 %v874, 0.5
        %v7373 = vmul.f32 %v1225, 0.5
        %v7374 = vmul.f32 %v1227, 0.5
        %v7375 = vmul.f32 %v876, 0.5
        %v7376 = vmul.f32 %v878, 0.5
        %v7377 = vmul.f32 %v1229, 0.5
        %v7378 = vmul.f32 %v1231, 0.5
        %v7379 = vmul.f32 %v882, 0.5
        %v7380 = vmul.f32 %v884, 0.5
        %v7381 = vmul.f32 %v1235, 0.5
        %v7382 = vmul.f32 %v1237, 0.5
        %v7383 = vmul.f32 %v886, 0.5
        %v7384 = vmul.f32 %v888, 0.5
        %v7385 = vmul.f32 %v1239, 0.5
        %v7386 = vmul.f32 %v1241, 0.5
        %v7387 = vadd.f32 %v6875, 1.0
        %v7388 = vadd.f32 %v6876, 1.0
        %v7389 = vadd.f32 %v6877, 1.0
        %v7390 = vadd.f32 %v6878, 1.0
        %v7391 = vadd.f32 %v6879, 1.0
        %v7392 = vadd.f32 %v6880, 1.0
        %v7393 = vadd.f32 %v6881, 1.0
        %v7394 = vadd.f32 %v6882, 1.0
        %v7395 = vadd.f32 %v6883, 1.0
        %v7396 = vadd.f32 %v6884, 1.0
        %v7397 = vadd.f32 %v6885, 1.0
        %v7398 = vadd.f32 %v6886, 1.0
        %v7399 = vadd.f32 %v6887, 1.0
        %v7400 = vadd.f32 %v6888, 1.0
        %v7401 = vadd.f32 %v6889, 1.0
        %v7402 = vadd.f32 %v6890, 1.0
        %v7403 = vadd.f32 %v6891, 1.0
        %v7404 = vadd.f32 %v6892, 1.0
        %v7405 = vadd.f32 %v6893, 1.0
        %v7406 = vadd.f32 %v6894, 1.0
        %v7407 = vadd.f32 %v6895, 1.0
        %v7408 = vadd.f32 %v6896, 1.0
        %v7409 = vadd.f32 %v6897, 1.0
        %v7410 = vadd.f32 %v6898, 1.0
        %v7411 = vadd.f32 %v6899, 1.0
        %v7412 = vadd.f32 %v6900, 1.0
        %v7413 = vadd.f32 %v6901, 1.0
        %v7414 = vadd.f32 %v6902, 1.0
        %v7415 = vadd.f32 %v6903, 1.0
        %v7416 = vadd.f32 %v6904, 1.0
        %v7417 = vadd.f32 %v6905, 1.0
        %v7418 = vadd.f32 %v6906, 1.0
        %v7419 = vadd.f32 %v6907, 1.0
        %v7420 = vadd.f32 %v6908, 1.0
        %v7421 = vadd.f32 %v6909, 1.0
        %v7422 = vadd.f32 %v6910, 1.0
        %v7423 = vadd.f32 %v6911, 1.0
        %v7424 = vadd.f32 %v6912, 1.0
        %v7425 = vadd.f32 %v6913, 1.0
        %v7426 = vadd.f32 %v6914, 1.0
        %v7427 = vadd.f32 %v6915, 1.0
        %v7428 = vadd.f32 %v6916, 1.0
        %v7429 = vadd.f32 %v6917, 1.0
        %v7430 = vadd.f32 %v6918, 1.0
        %v7431 = vadd.f32 %v6919, 1.0
        %v7432 = vadd.f32 %v6920, 1.0
        %v7433 = vadd.f32 %v6921, 1.0
        %v7434 = vadd.f32 %v6922, 1.0
        %v7435 = vadd.f32 %v6923, 1.0
        %v7436 = vadd.f32 %v6924, 1.0
        %v7437 = vadd.f32 %v6925, 1.0
        %v7438 = vadd.f32 %v6926, 1.0
        %v7439 = vadd.f32 %v6927, 1.0
        %v7440 = vadd.f32 %v6928, 1.0
        %v7441 = vadd.f32 %v6929, 1.0
        %v7442 = vadd.f32 %v6930, 1.0
        %v7443 = vadd.f32 %v6931, 1.0
        %v7444 = vadd.f32 %v6932, 1.0
        %v7445 = vadd.f32 %v6933, 1.0
        %v7446 = vadd.f32 %v6934, 1.0
        %v7447 = vadd.f32 %v6935, 1.0
        %v7448 = vadd.f32 %v6936, 1.0
        %v7449 = vadd.f32 %v6937, 1.0
        %v7450 = vadd.f32 %v6938, 1.0
        %v7451 = vadd.f32 %v6939, 1.0
        %v7452 = vadd.f32 %v6940, 1.0
        %v7453 = vadd.f32 %v6941, 1.0
        %v7454 = vadd.f32 %v6942, 1.0
        %v7455 = vadd.f32 %v6943, 1.0
        %v7456 = vadd.f32 %v6944, 1.0
        %v7457 = vadd.f32 %v6945, 1.0
        %v7458 = vadd.f32 %v6946, 1.0
        %v7459 = vadd.f32 %v6947, 1.0
        %v7460 = vadd.f32 %v6948, 1.0
        %v7461 = vadd.f32 %v6949, 1.0
        %v7462 = vadd.f32 %v6950, 1.0
        %v7463 = vadd.f32 %v6951, 1.0
        %v7464 = vadd.f32 %v6952, 1.0
        %v7465 = vadd.f32 %v6953, 1.0
        %v7466 = vadd.f32 %v6954, 1.0
        %v7467 = vadd.f32 %v6955, 1.0
        %v7468 = vadd.f32 %v6956, 1.0
        %v7469 = vadd.f32 %v6957, 1.0
        %v7470 = vadd.f32 %v6958, 1.0
        %v7471 = vadd.f32 %v6959, 1.0
        %v7472 = vadd.f32 %v6960, 1.0
        %v7473 = vadd.f32 %v6961, 1.0
        %v7474 = vadd.f32 %v6962, 1.0
        %v7475 = vadd.f32 %v6963, 1.0
        %v7476 = vadd.f32 %v6964, 1.0
        %v7477 = vadd.f32 %v6965, 1.0
        %v7478 = vadd.f32 %v6966, 1.0
        %v7479 = vadd.f32 %v6967, 1.0
        %v7480 = vadd.f32 %v6968, 1.0
        %v7481 = vadd.f32 %v6969, 1.0
        %v7482 = vadd.f32 %v6970, 1.0
        %v7483 = vadd.f32 %v6971, 1.0
        %v7484 = vadd.f32 %v6972, 1.0
        %v7485 = vadd.f32 %v6973, 1.0
        %v7486 = vadd.f32 %v6974, 1.0
        %v7487 = vadd.f32 %v6975, 1.0
        %v7488 = vadd.f32 %v6976, 1.0
        %v7489 = vadd.f32 %v6977, 1.0
        %v7490 = vadd.f32 %v6978, 1.0
        %v7491 = vadd.f32 %v6979, 1.0
        %v7492 = vadd.f32 %v6980, 1.0
        %v7493 = vadd.f32 %v6981, 1.0
        %v7494 = vadd.f32 %v6982, 1.0
        %v7495 = vadd.f32 %v6983, 1.0
        %v7496 = vadd.f32 %v6984, 1.0
        %v7497 = vadd.f32 %v6985, 1.0
        %v7498 = vadd.f32 %v6986, 1.0
        %v7499 = vadd.f32 %v6987, 1.0
        %v7500 = vadd.f32 %v6988, 1.0
        %v7501 = vadd.f32 %v6989, 1.0
        %v7502 = vadd.f32 %v6990, 1.0
        %v7503 = vadd.f32 %v6991, 1.0
        %v7504 = vadd.f32 %v6992, 1.0
        %v7505 = vadd.f32 %v6993, 1.0
        %v7506 = vadd.f32 %v6994, 1.0
        %v7507 = vadd.f32 %v6995, 1.0
        %v7508 = vadd.f32 %v6996, 1.0
        %v7509 = vadd.f32 %v6997, 1.0
        %v7510 = vadd.f32 %v6998, 1.0
        %v7511 = vadd.f32 %v6999, 1.0
        %v7512 = vadd.f32 %v7000, 1.0
        %v7513 = vadd.f32 %v7001, 1.0
        %v7514 = vadd.f32 %v7002, 1.0
        %v7515 = vadd.f32 %v7003, 1.0
        %v7516 = vadd.f32 %v7004, 1.0
        %v7517 = vadd.f32 %v7005, 1.0
        %v7518 = vadd.f32 %v7006, 1.0
        %v7519 = vadd.f32 %v7007, 1.0
        %v7520 = vadd.f32 %v7008, 1.0
        %v7521 = vadd.f32 %v7009, 1.0
        %v7522 = vadd.f32 %v7010, 1.0
        %v7523 = vadd.f32 %v7011, 1.0
        %v7524 = vadd.f32 %v7012, 1.0
        %v7525 = vadd.f32 %v7013, 1.0
        %v7526 = vadd.f32 %v7014, 1.0
        %v7527 = vadd.f32 %v7015, 1.0
        %v7528 = vadd.f32 %v7016, 1.0
        %v7529 = vadd.f32 %v7017, 1.0
        %v7530 = vadd.f32 %v7018, 1.0
        %v7531 = vadd.f32 %v7019, 1.0
        %v7532 = vadd.f32 %v7020, 1.0
        %v7533 = vadd.f32 %v7021, 1.0
        %v7534 = vadd.f32 %v7022, 1.0
        %v7535 = vadd.f32 %v7023, 1.0
        %v7536 = vadd.f32 %v7024, 1.0
        %v7537 = vadd.f32 %v7025, 1.0
        %v7538 = vadd.f32 %v7026, 1.0
        %v7539 = vadd.f32 %v7027, 1.0
        %v7540 = vadd.f32 %v7028, 1.0
        %v7541 = vadd.f32 %v7029, 1.0
        %v7542 = vadd.f32 %v7030, 1.0
        %v7543 = vadd.f32 %v7031, 1.0
        %v7544 = vadd.f32 %v7032, 1.0
        %v7545 = vadd.f32 %v7033, 1.0
        %v7546 = vadd.f32 %v7034, 1.0
        %v7547 = vadd.f32 %v7035, 1.0
        %v7548 = vadd.f32 %v7036, 1.0
        %v7549 = vadd.f32 %v7037, 1.0
        %v7550 = vadd.f32 %v7038, 1.0
        %v7551 = vadd.f32 %v7039, 1.0
        %v7552 = vadd.f32 %v7040, 1.0
        %v7553 = vadd.f32 %v7041, 1.0
        %v7554 = vadd.f32 %v7042, 1.0
        %v7555 = vadd.f32 %v7043, 1.0
        %v7556 = vadd.f32 %v7044, 1.0
        %v7557 = vadd.f32 %v7045, 1.0
        %v7558 = vadd.f32 %v7046, 1.0
        %v7559 = vadd.f32 %v7047, 1.0
        %v7560 = vadd.f32 %v7048, 1.0
        %v7561 = vadd.f32 %v7049, 1.0
        %v7562 = vadd.f32 %v7050, 1.0
        %v7563 = vadd.f32 %v7051, 1.0
        %v7564 = vadd.f32 %v7052, 1.0
        %v7565 = vadd.f32 %v7053, 1.0
        %v7566 = vadd.f32 %v7054, 1.0
        %v7567 = vadd.f32 %v7055, 1.0
        %v7568 = vadd.f32 %v7056, 1.0
        %v7569 = vadd.f32 %v7057, 1.0
        %v7570 = vadd.f32 %v7058, 1.0
        %v7571 = vadd.f32 %v7059, 1.0
        %v7572 = vadd.f32 %v7060, 1.0
        %v7573 = vadd.f32 %v7061, 1.0
        %v7574 = vadd.f32 %v7062, 1.0
        %v7575 = vadd.f32 %v7063, 1.0
        %v7576 = vadd.f32 %v7064, 1.0
        %v7577 = vadd.f32 %v7065, 1.0
        %v7578 = vadd.f32 %v7066, 1.0
        %v7579 = vadd.f32 %v7067, 1.0
        %v7580 = vadd.f32 %v7068, 1.0
        %v7581 = vadd.f32 %v7069, 1.0
        %v7582 = vadd.f32 %v7070, 1.0
        %v7583 = vadd.f32 %v7071, 1.0
        %v7584 = vadd.f32 %v7072, 1.0
        %v7585 = vadd.f32 %v7073, 1.0
        %v7586 = vadd.f32 %v7074, 1.0
        %v7587 = vadd.f32 %v7075, 1.0
        %v7588 = vadd.f32 %v7076, 1.0
        %v7589 = vadd.f32 %v7077, 1.0
        %v7590 = vadd.f32 %v7078, 1.0
        %v7591 = vadd.f32 %v7079, 1.0
        %v7592 = vadd.f32 %v7080, 1.0
        %v7593 = vadd.f32 %v7081, 1.0
        %v7594 = vadd.f32 %v7082, 1.0
        %v7595 = vadd.f32 %v7083, 1.0
        %v7596 = vadd.f32 %v7084, 1.0
        %v7597 = vadd.f32 %v7085, 1.0
        %v7598 = vadd.f32 %v7086, 1.0
        %v7599 = vadd.f32 %v7087, 1.0
        %v7600 = vadd.f32 %v7088, 1.0
        %v7601 = vadd.f32 %v7089, 1.0
        %v7602 = vadd.f32 %v7090, 1.0
        %v7603 = vadd.f32 %v7091, 1.0
        %v7604 = vadd.f32 %v7092, 1.0
        %v7605 = vadd.f32 %v7093, 1.0
        %v7606 = vadd.f32 %v7094, 1.0
        %v7607 = vadd.f32 %v7095, 1.0
        %v7608 = vadd.f32 %v7096, 1.0
        %v7609 = vadd.f32 %v7097, 1.0
        %v7610 = vadd.f32 %v7098, 1.0
        %v7611 = vadd.f32 %v7099, 1.0
        %v7612 = vadd.f32 %v7100, 1.0
        %v7613 = vadd.f32 %v7101, 1.0
        %v7614 = vadd.f32 %v7102, 1.0
        %v7615 = vadd.f32 %v7103, 1.0
        %v7616 = vadd.f32 %v7104, 1.0
        %v7617 = vadd.f32 %v7105, 1.0
        %v7618 = vadd.f32 %v7106, 1.0
        %v7619 = vadd.f32 %v7107, 1.0
        %v7620 = vadd.f32 %v7108, 1.0
        %v7621 = vadd.f32 %v7109, 1.0
        %v7622 = vadd.f32 %v7110, 1.0
        %v7623 = vadd.f32 %v7111, 1.0
        %v7624 = vadd.f32 %v7112, 1.0
        %v7625 = vadd.f32 %v7113, 1.0
        %v7626 = vadd.f32 %v7114, 1.0
        %v7627 = vadd.f32 %v7115, 1.0
        %v7628 = vadd.f32 %v7116, 1.0
        %v7629 = vadd.f32 %v7117, 1.0
        %v7630 = vadd.f32 %v7118, 1.0
        %v7631 = vadd.f32 %v7119, 1.0
        %v7632 = vadd.f32 %v7120, 1.0
        %v7633 = vadd.f32 %v7121, 1.0
        %v7634 = vadd.f32 %v7122, 1.0
        %v7635 = vadd.f32 %v7123, 1.0
        %v7636 = vadd.f32 %v7124, 1.0
        %v7637 = vadd.f32 %v7125, 1.0
        %v7638 = vadd.f32 %v7126, 1.0
        %v7639 = vadd.f32 %v7127, 1.0
        %v7640 = vadd.f32 %v7128, 1.0
        %v7641 = vadd.f32 %v7129, 1.0
        %v7642 = vadd.f32 %v7130, 1.0
        %v7643 = vmul.f32 %v7131, %v7387
        %v7644 = vmul.f32 %v7132, %v7388
        %v7645 = vmul.f32 %v7133, %v7389
        %v7646 = vmul.f32 %v7134, %v7390
        %v7647 = vmul.f32 %v7135, %v7391
        %v7648 = vmul.f32 %v7136, %v7392
        %v7649 = vmul.f32 %v7137, %v7393
        %v7650 = vmul.f32 %v7138, %v7394
        %v7651 = vmul.f32 %v7139, %v7395
        %v7652 = vmul.f32 %v7140, %v7396
        %v7653 = vmul.f32 %v7141, %v7397
        %v7654 = vmul.f32 %v7142, %v7398
        %v7655 = vmul.f32 %v7143, %v7399
        %v7656 = vmul.f32 %v7144, %v7400
        %v7657 = vmul.f32 %v7145, %v7401
        %v7658 = vmul.f32 %v7146, %v7402
        %v7659 = vmul.f32 %v7147, %v7403
        %v7660 = vmul.f32 %v7148, %v7404
        %v7661 = vmul.f32 %v7149, %v7405
        %v7662 = vmul.f32 %v7150, %v7406
        %v7663 = vmul.f32 %v7151, %v7407
        %v7664 = vmul.f32 %v7152, %v7408
        %v7665 = vmul.f32 %v7153, %v7409
        %v7666 = vmul.f32 %v7154, %v7410
        %v7667 = vmul.f32 %v7155, %v7411
        %v7668 = vmul.f32 %v7156, %v7412
        %v7669 = vmul.f32 %v7157, %v7413
        %v7670 = vmul.f32 %v7158, %v7414
        %v7671 = vmul.f32 %v7159, %v7415
        %v7672 = vmul.f32 %v7160, %v7416
        %v7673 = vmul.f32 %v7161, %v7417
        %v7674 = vmul.f32 %v7162, %v7418
        %v7675 = vmul.f32 %v7163, %v7419
        %v7676 = vmul.f32 %v7164, %v7420
        %v7677 = vmul.f32 %v7165, %v7421
        %v7678 = vmul.f32 %v7166, %v7422
        %v7679 = vmul.f32 %v7167, %v7423
        %v7680 = vmul.f32 %v7168, %v7424
        %v7681 = vmul.f32 %v7169, %v7425
        %v7682 = vmul.f32 %v7170, %v7426
        %v7683 = vmul.f32 %v7171, %v7427
        %v7684 = vmul.f32 %v7172, %v7428
        %v7685 = vmul.f32 %v7173, %v7429
        %v7686 = vmul.f32 %v7174, %v7430
        %v7687 = vmul.f32 %v7175, %v7431
        %v7688 = vmul.f32 %v7176, %v7432
        %v7689 = vmul.f32 %v7177, %v7433
        %v7690 = vmul.f32 %v7178, %v7434
        %v7691 = vmul.f32 %v7179, %v7435
        %v7692 = vmul.f32 %v7180, %v7436
        %v7693 = vmul.f32 %v7181, %v7437
        %v7694 = vmul.f32 %v7182, %v7438
        %v7695 = vmul.f32 %v7183, %v7439
        %v7696 = vmul.f32 %v7184, %v7440
        %v7697 = vmul.f32 %v7185, %v7441
        %v7698 = vmul.f32 %v7186, %v7442
        %v7699 = vmul.f32 %v7187, %v7443
        %v7700 = vmul.f32 %v7188, %v7444
        %v7701 = vmul.f32 %v7189, %v7445
        %v7702 = vmul.f32 %v7190, %v7446
        %v7703 = vmul.f32 %v7191, %v7447
        %v7704 = vmul.f32 %v7192, %v7448
        %v7705 = vmul.f32 %v7193, %v7449
        %v7706 = vmul.f32 %v7194, %v7450
        %v7707 = vmul.f32 %v7195, %v7451
        %v7708 = vmul.f32 %v7196, %v7452
        %v7709 = vmul.f32 %v7197, %v7453
        %v7710 = vmul.f32 %v7198, %v7454
        %v7711 = vmul.f32 %v7199, %v7455
        %v7712 = vmul.f32 %v7200, %v7456
        %v7713 = vmul.f32 %v7201, %v7457
        %v7714 = vmul.f32 %v7202, %v7458
        %v7715 = vmul.f32 %v7203, %v7459
        %v7716 = vmul.f32 %v7204, %v7460
        %v7717 = vmul.f32 %v7205, %v7461
        %v7718 = vmul.f32 %v7206, %v7462
        %v7719 = vmul.f32 %v7207, %v7463
        %v7720 = vmul.f32 %v7208, %v7464
        %v7721 = vmul.f32 %v7209, %v7465
        %v7722 = vmul.f32 %v7210, %v7466
        %v7723 = vmul.f32 %v7211, %v7467
        %v7724 = vmul.f32 %v7212, %v7468
        %v7725 = vmul.f32 %v7213, %v7469
        %v7726 = vmul.f32 %v7214, %v7470
        %v7727 = vmul.f32 %v7215, %v7471
        %v7728 = vmul.f32 %v7216, %v7472
        %v7729 = vmul.f32 %v7217, %v7473
        %v7730 = vmul.f32 %v7218, %v7474
        %v7731 = vmul.f32 %v7219, %v7475
        %v7732 = vmul.f32 %v7220, %v7476
        %v7733 = vmul.f32 %v7221, %v7477
        %v7734 = vmul.f32 %v7222, %v7478
        %v7735 = vmul.f32 %v7223, %v7479
        %v7736 = vmul.f32 %v7224, %v7480
        %v7737 = vmul.f32 %v7225, %v7481
        %v7738 = vmul.f32 %v7226, %v7482
        %v7739 = vmul.f32 %v7227, %v7483
        %v7740 = vmul.f32 %v7228, %v7484
        %v7741 = vmul.f32 %v7229, %v7485
        %v7742 = vmul.f32 %v7230, %v7486
        %v7743 = vmul.f32 %v7231, %v7487
        %v7744 = vmul.f32 %v7232, %v7488
        %v7745 = vmul.f32 %v7233, %v7489
        %v7746 = vmul.f32 %v7234, %v7490
        %v7747 = vmul.f32 %v7235, %v7491
        %v7748 = vmul.f32 %v7236, %v7492
        %v7749 = vmul.f32 %v7237, %v7493
        %v7750 = vmul.f32 %v7238, %v7494
        %v7751 = vmul.f32 %v7239, %v7495
        %v7752 = vmul.f32 %v7240, %v7496
        %v7753 = vmul.f32 %v7241, %v7497
        %v7754 = vmul.f32 %v7242, %v7498
        %v7755 = vmul.f32 %v7243, %v7499
        %v7756 = vmul.f32 %v7244, %v7500
        %v7757 = vmul.f32 %v7245, %v7501
        %v7758 = vmul.f32 %v7246, %v7502
        %v7759 = vmul.f32 %v7247, %v7503
        %v7760 = vmul.f32 %v7248, %v7504
        %v7761 = vmul.f32 %v7249, %v7505
        %v7762 = vmul.f32 %v7250, %v7506
        %v7763 = vmul.f32 %v7251, %v7507
        %v7764 = vmul.f32 %v7252, %v7508
        %v7765 = vmul.f32 %v7253, %v7509
        %v7766 = vmul.f32 %v7254, %v7510
        %v7767 = vmul.f32 %v7255, %v7511
        %v7768 = vmul.f32 %v7256, %v7512
        %v7769 = vmul.f32 %v7257, %v7513
        %v7770 = vmul.f32 %v7258, %v7514
        %v7771 = vmul.f32 %v7259, %v7515
        %v7772 = vmul.f32 %v7260, %v7516
        %v7773 = vmul.f32 %v7261, %v7517
        %v7774 = vmul.f32 %v7262, %v7518
        %v7775 = vmul.f32 %v7263, %v7519
        %v7776 = vmul.f32 %v7264, %v7520
        %v7777 = vmul.f32 %v7265, %v7521
        %v7778 = vmul.f32 %v7266, %v7522
        %v7779 = vmul.f32 %v7267, %v7523
        %v7780 = vmul.f32 %v7268, %v7524
        %v7781 = vmul.f32 %v7269, %v7525
        %v7782 = vmul.f32 %v7270, %v7526
        %v7783 = vmul.f32 %v7271, %v7527
        %v7784 = vmul.f32 %v7272, %v7528
        %v7785 = vmul.f32 %v7273, %v7529
        %v7786 = vmul.f32 %v7274, %v7530
        %v7787 = vmul.f32 %v7275, %v7531
        %v7788 = vmul.f32 %v7276, %v7532
        %v7789 = vmul.f32 %v7277, %v7533
        %v7790 = vmul.f32 %v7278, %v7534
        %v7791 = vmul.f32 %v7279, %v7535
        %v7792 = vmul.f32 %v7280, %v7536
        %v7793 = vmul.f32 %v7281, %v7537
        %v7794 = vmul.f32 %v7282, %v7538
        %v7795 = vmul.f32 %v7283, %v7539
        %v7796 = vmul.f32 %v7284, %v7540
        %v7797 = vmul.f32 %v7285, %v7541
        %v7798 = vmul.f32 %v7286, %v7542
        %v7799 = vmul.f32 %v7287, %v7543
        %v7800 = vmul.f32 %v7288, %v7544
        %v7801 = vmul.f32 %v7289, %v7545
        %v7802 = vmul.f32 %v7290, %v7546
        %v7803 = vmul.f32 %v7291, %v7547
        %v7804 = vmul.f32 %v7292, %v7548
        %v7805 = vmul.f32 %v7293, %v7549
        %v7806 = vmul.f32 %v7294, %v7550
        %v7807 = vmul.f32 %v7295, %v7551
        %v7808 = vmul.f32 %v7296, %v7552
        %v7809 = vmul.f32 %v7297, %v7553
        %v7810 = vmul.f32 %v7298, %v7554
        %v7811 = vmul.f32 %v7299, %v7555
        %v7812 = vmul.f32 %v7300, %v7556
        %v7813 = vmul.f32 %v7301, %v7557
        %v7814 = vmul.f32 %v7302, %v7558
        %v7815 = vmul.f32 %v7303, %v7559
        %v7816 = vmul.f32 %v7304, %v7560
        %v7817 = vmul.f32 %v7305, %v7561
        %v7818 = vmul.f32 %v7306, %v7562
        %v7819 = vmul.f32 %v7307, %v7563
        %v7820 = vmul.f32 %v7308, %v7564
        %v7821 = vmul.f32 %v7309, %v7565
        %v7822 = vmul.f32 %v7310, %v7566
        %v7823 = vmul.f32 %v7311, %v7567
        %v7824 = vmul.f32 %v7312, %v7568
        %v7825 = vmul.f32 %v7313, %v7569
        %v7826 = vmul.f32 %v7314, %v7570
        %v7827 = vmul.f32 %v7315, %v7571
        %v7828 = vmul.f32 %v7316, %v7572
        %v7829 = vmul.f32 %v7317, %v7573
        %v7830 = vmul.f32 %v7318, %v7574
        %v7831 = vmul.f32 %v7319, %v7575
        %v7832 = vmul.f32 %v7320, %v7576
        %v7833 = vmul.f32 %v7321, %v7577
        %v7834 = vmul.f32 %v7322, %v7578
        %v7835 = vmul.f32 %v7323, %v7579
        %v7836 = vmul.f32 %v7324, %v7580
        %v7837 = vmul.f32 %v7325, %v7581
        %v7838 = vmul.f32 %v7326, %v7582
        %v7839 = vmul.f32 %v7327, %v7583
        %v7840 = vmul.f32 %v7328, %v7584
        %v7841 = vmul.f32 %v7329, %v7585
        %v7842 = vmul.f32 %v7330, %v7586
        %v7843 = vmul.f32 %v7331, %v7587
        %v7844 = vmul.f32 %v7332, %v7588
        %v7845 = vmul.f32 %v7333, %v7589
        %v7846 = vmul.f32 %v7334, %v7590
        %v7847 = vmul.f32 %v7335, %v7591
        %v7848 = vmul.f32 %v7336, %v7592
        %v7849 = vmul.f32 %v7337, %v7593
        %v7850 = vmul.f32 %v7338, %v7594
        %v7851 = vmul.f32 %v7339, %v7595
        %v7852 = vmul.f32 %v7340, %v7596
        %v7853 = vmul.f32 %v7341, %v7597
        %v7854 = vmul.f32 %v7342, %v7598
        %v7855 = vmul.f32 %v7343, %v7599
        %v7856 = vmul.f32 %v7344, %v7600
        %v7857 = vmul.f32 %v7345, %v7601
        %v7858 = vmul.f32 %v7346, %v7602
        %v7859 = vmul.f32 %v7347, %v7603
        %v7860 = vmul.f32 %v7348, %v7604
        %v7861 = vmul.f32 %v7349, %v7605
        %v7862 = vmul.f32 %v7350, %v7606
        %v7863 = vmul.f32 %v7351, %v7607
        %v7864 = vmul.f32 %v7352, %v7608
        %v7865 = vmul.f32 %v7353, %v7609
        %v7866 = vmul.f32 %v7354, %v7610
        %v7867 = vmul.f32 %v7355, %v7611
        %v7868 = vmul.f32 %v7356, %v7612
        %v7869 = vmul.f32 %v7357, %v7613
        %v7870 = vmul.f32 %v7358, %v7614
        %v7871 = vmul.f32 %v7359, %v7615
        %v7872 = vmul.f32 %v7360, %v7616
        %v7873 = vmul.f32 %v7361, %v7617
        %v7874 = vmul.f32 %v7362, %v7618
        %v7875 = vmul.f32 %v7363, %v7619
        %v7876 = vmul.f32 %v7364, %v7620
        %v7877 = vmul.f32 %v7365, %v7621
        %v7878 = vmul.f32 %v7366, %v7622
        %v7879 = vmul.f32 %v7367, %v7623
        %v7880 = vmul.f32 %v7368, %v7624
        %v7881 = vmul.f32 %v7369, %v7625
        %v7882 = vmul.f32 %v7370, %v7626
        %v7883 = vmul.f32 %v7371, %v7627
        %v7884 = vmul.f32 %v7372, %v7628
        %v7885 = vmul.f32 %v7373, %v7629
        %v7886 = vmul.f32 %v7374, %v7630
        %v7887 = vmul.f32 %v7375, %v7631
        %v7888 = vmul.f32 %v7376, %v7632
        %v7889 = vmul.f32 %v7377, %v7633
        %v7890 = vmul.f32 %v7378, %v7634
        %v7891 = vmul.f32 %v7379, %v7635
        %v7892 = vmul.f32 %v7380, %v7636
        %v7893 = vmul.f32 %v7381, %v7637
        %v7894 = vmul.f32 %v7382, %v7638
        %v7895 = vmul.f32 %v7383, %v7639
        %v7896 = vmul.f32 %v7384, %v7640
        %v7897 = vmul.f32 %v7385, %v7641
        %v7898 = vmul.f32 %v7386, %v7642
        %v7899 = vpack.c.bf16 %v7647, %v7643
        %v7900 = vpack.c.bf16 %v7648, %v7644
        %v7901 = vpack.c.bf16 %v7649, %v7645
        %v7902 = vpack.c.bf16 %v7650, %v7646
        %v7903 = vpack.c.bf16 %v7655, %v7651
        %v7904 = vpack.c.bf16 %v7656, %v7652
        %v7905 = vpack.c.bf16 %v7657, %v7653
        %v7906 = vpack.c.bf16 %v7658, %v7654
        %v7907 = vpack.c.bf16 %v7663, %v7659
        %v7908 = vpack.c.bf16 %v7664, %v7660
        %v7909 = vpack.c.bf16 %v7665, %v7661
        %v7910 = vpack.c.bf16 %v7666, %v7662
        %v7911 = vpack.c.bf16 %v7671, %v7667
        %v7912 = vpack.c.bf16 %v7672, %v7668
        %v7913 = vpack.c.bf16 %v7673, %v7669
        %v7914 = vpack.c.bf16 %v7674, %v7670
        %v7915 = vpack.c.bf16 %v7679, %v7675
        %v7916 = vpack.c.bf16 %v7680, %v7676
        %v7917 = vpack.c.bf16 %v7681, %v7677
        %v7918 = vpack.c.bf16 %v7682, %v7678
        %v7919 = vpack.c.bf16 %v7687, %v7683
        %v7920 = vpack.c.bf16 %v7688, %v7684
        %v7921 = vpack.c.bf16 %v7689, %v7685
        %v7922 = vpack.c.bf16 %v7690, %v7686
        %v7923 = vpack.c.bf16 %v7695, %v7691
        %v7924 = vpack.c.bf16 %v7696, %v7692
        %v7925 = vpack.c.bf16 %v7697, %v7693
        %v7926 = vpack.c.bf16 %v7698, %v7694
        %v7927 = vpack.c.bf16 %v7703, %v7699
        %v7928 = vpack.c.bf16 %v7704, %v7700
        %v7929 = vpack.c.bf16 %v7705, %v7701
        %v7930 = vpack.c.bf16 %v7706, %v7702
        %v7931 = vpack.c.bf16 %v7711, %v7707
        %v7932 = vpack.c.bf16 %v7712, %v7708
        %v7933 = vpack.c.bf16 %v7713, %v7709
        %v7934 = vpack.c.bf16 %v7714, %v7710
        %v7935 = vpack.c.bf16 %v7719, %v7715
        %v7936 = vpack.c.bf16 %v7720, %v7716
        %v7937 = vpack.c.bf16 %v7721, %v7717
        %v7938 = vpack.c.bf16 %v7722, %v7718
        %v7939 = vpack.c.bf16 %v7727, %v7723
        %v7940 = vpack.c.bf16 %v7728, %v7724
        %v7941 = vpack.c.bf16 %v7729, %v7725
        %v7942 = vpack.c.bf16 %v7730, %v7726
        %v7943 = vpack.c.bf16 %v7735, %v7731
        %v7944 = vpack.c.bf16 %v7736, %v7732
        %v7945 = vpack.c.bf16 %v7737, %v7733
        %v7946 = vpack.c.bf16 %v7738, %v7734
        %v7947 = vpack.c.bf16 %v7743, %v7739
        %v7948 = vpack.c.bf16 %v7744, %v7740
        %v7949 = vpack.c.bf16 %v7745, %v7741
        %v7950 = vpack.c.bf16 %v7746, %v7742
        %v7951 = vpack.c.bf16 %v7751, %v7747
        %v7952 = vpack.c.bf16 %v7752, %v7748
        %v7953 = vpack.c.bf16 %v7753, %v7749
        %v7954 = vpack.c.bf16 %v7754, %v7750
        %v7955 = vpack.c.bf16 %v7759, %v7755
        %v7956 = vpack.c.bf16 %v7760, %v7756
        %v7957 = vpack.c.bf16 %v7761, %v7757
        %v7958 = vpack.c.bf16 %v7762, %v7758
        %v7959 = vpack.c.bf16 %v7767, %v7763
        %v7960 = vpack.c.bf16 %v7768, %v7764
        %v7961 = vpack.c.bf16 %v7769, %v7765
        %v7962 = vpack.c.bf16 %v7770, %v7766
        %v7963 = vpack.c.bf16 %v7775, %v7771
        %v7964 = vpack.c.bf16 %v7776, %v7772
        %v7965 = vpack.c.bf16 %v7777, %v7773
        %v7966 = vpack.c.bf16 %v7778, %v7774
        %v7967 = vpack.c.bf16 %v7783, %v7779
        %v7968 = vpack.c.bf16 %v7784, %v7780
        %v7969 = vpack.c.bf16 %v7785, %v7781
        %v7970 = vpack.c.bf16 %v7786, %v7782
        %v7971 = vpack.c.bf16 %v7791, %v7787
        %v7972 = vpack.c.bf16 %v7792, %v7788
        %v7973 = vpack.c.bf16 %v7793, %v7789
        %v7974 = vpack.c.bf16 %v7794, %v7790
        %v7975 = vpack.c.bf16 %v7799, %v7795
        %v7976 = vpack.c.bf16 %v7800, %v7796
        %v7977 = vpack.c.bf16 %v7801, %v7797
        %v7978 = vpack.c.bf16 %v7802, %v7798
        %v7979 = vpack.c.bf16 %v7807, %v7803
        %v7980 = vpack.c.bf16 %v7808, %v7804
        %v7981 = vpack.c.bf16 %v7809, %v7805
        %v7982 = vpack.c.bf16 %v7810, %v7806
        %v7983 = vpack.c.bf16 %v7815, %v7811
        %v7984 = vpack.c.bf16 %v7816, %v7812
        %v7985 = vpack.c.bf16 %v7817, %v7813
        %v7986 = vpack.c.bf16 %v7818, %v7814
        %v7987 = vpack.c.bf16 %v7823, %v7819
        %v7988 = vpack.c.bf16 %v7824, %v7820
        %v7989 = vpack.c.bf16 %v7825, %v7821
        %v7990 = vpack.c.bf16 %v7826, %v7822
        %v7991 = vpack.c.bf16 %v7831, %v7827
        %v7992 = vpack.c.bf16 %v7832, %v7828
        %v7993 = vpack.c.bf16 %v7833, %v7829
        %v7994 = vpack.c.bf16 %v7834, %v7830
        %v7995 = vpack.c.bf16 %v7839, %v7835
        %v7996 = vpack.c.bf16 %v7840, %v7836
        %v7997 = vpack.c.bf16 %v7841, %v7837
        %v7998 = vpack.c.bf16 %v7842, %v7838
        %v7999 = vpack.c.bf16 %v7847, %v7843
        %v8000 = vpack.c.bf16 %v7848, %v7844
        %v8001 = vpack.c.bf16 %v7849, %v7845
        %v8002 = vpack.c.bf16 %v7850, %v7846
        %v8003 = vpack.c.bf16 %v7855, %v7851
        %v8004 = vpack.c.bf16 %v7856, %v7852
        %v8005 = vpack.c.bf16 %v7857, %v7853
        %v8006 = vpack.c.bf16 %v7858, %v7854
        %v8007 = vpack.c.bf16 %v7863, %v7859
        %v8008 = vpack.c.bf16 %v7864, %v7860
        %v8009 = vpack.c.bf16 %v7865, %v7861
        %v8010 = vpack.c.bf16 %v7866, %v7862
        %v8011 = vpack.c.bf16 %v7871, %v7867
        %v8012 = vpack.c.bf16 %v7872, %v7868
        %v8013 = vpack.c.bf16 %v7873, %v7869
        %v8014 = vpack.c.bf16 %v7874, %v7870
        %v8015 = vpack.c.bf16 %v7879, %v7875
        %v8016 = vpack.c.bf16 %v7880, %v7876
        %v8017 = vpack.c.bf16 %v7881, %v7877
        %v8018 = vpack.c.bf16 %v7882, %v7878
        %v8019 = vpack.c.bf16 %v7887, %v7883
        %v8020 = vpack.c.bf16 %v7888, %v7884
        %v8021 = vpack.c.bf16 %v7889, %v7885
        %v8022 = vpack.c.bf16 %v7890, %v7886
        %v8023 = vpack.c.bf16 %v7895, %v7891
        %v8024 = vpack.c.bf16 %v7896, %v7892
        %v8025 = vpack.c.bf16 %v7897, %v7893
        %v8026 = vpack.c.bf16 %v7898, %v7894
        %v8027 = vld [vmem:[%s3] sm:$0xf]
        %v8028 = vld [vmem:[%s3 + $0x4] sm:$0xf]
        %v8029 = vld [vmem:[%s3 + $0x8] sm:$0xf]
        %v8030 = vld [vmem:[%s3 + $0xc] sm:$0xf]
        %v8031 = vld [vmem:[%s3 + $0x10] sm:$0xf]
        %v8032 = vld [vmem:[%s3 + $0x14] sm:$0xf]
        %v8033 = vld [vmem:[%s3 + $0x18] sm:$0xf]
        %v8034 = vld [vmem:[%s3 + $0x1c] sm:$0xf]
        %v8035 = vld [vmem:[%s3 + $0x20] sm:$0xf]
        %v8036 = vld [vmem:[%s3 + $0x24] sm:$0xf]
        %v8037 = vld [vmem:[%s3 + $0x28] sm:$0xf]
        %v8038 = vld [vmem:[%s3 + $0x2c] sm:$0xf]
        %v8039 = vld [vmem:[%s3 + $0x30] sm:$0xf]
        %v8040 = vld [vmem:[%s3 + $0x34] sm:$0xf]
        %v8041 = vld [vmem:[%s3 + $0x38] sm:$0xf]
        %v8042 = vld [vmem:[%s3 + $0x3c] sm:$0xf]
        %v8043 = vld [vmem:[%s3 + $0x40] sm:$0xf]
        %v8044 = vld [vmem:[%s3 + $0x44] sm:$0xf]
        %v8045 = vld [vmem:[%s3 + $0x48] sm:$0xf]
        %v8046 = vld [vmem:[%s3 + $0x4c] sm:$0xf]
        %v8047 = vld [vmem:[%s3 + $0x50] sm:$0xf]
        %v8048 = vld [vmem:[%s3 + $0x54] sm:$0xf]
        %v8049 = vld [vmem:[%s3 + $0x58] sm:$0xf]
        %v8050 = vld [vmem:[%s3 + $0x5c] sm:$0xf]
        %v8051 = vld [vmem:[%s3 + $0x60] sm:$0xf]
        %v8052 = vld [vmem:[%s3 + $0x64] sm:$0xf]
        %v8053 = vld [vmem:[%s3 + $0x68] sm:$0xf]
        %v8054 = vld [vmem:[%s3 + $0x6c] sm:$0xf]
        %v8055 = vld [vmem:[%s3 + $0x70] sm:$0xf]
        %v8056 = vld [vmem:[%s3 + $0x74] sm:$0xf]
        %v8057 = vld [vmem:[%s3 + $0x78] sm:$0xf]
        %v8058 = vld [vmem:[%s3 + $0x7c] sm:$0xf]
        %v8059 = vld [vmem:[%s3 + $0x80] sm:$0xf]
        %v8060 = vld [vmem:[%s3 + $0x84] sm:$0xf]
        %v8061 = vld [vmem:[%s3 + $0x88] sm:$0xf]
        %v8062 = vld [vmem:[%s3 + $0x8c] sm:$0xf]
        %v8063 = vld [vmem:[%s3 + $0x90] sm:$0xf]
        %v8064 = vld [vmem:[%s3 + $0x94] sm:$0xf]
        %v8065 = vld [vmem:[%s3 + $0x98] sm:$0xf]
        %v8066 = vld [vmem:[%s3 + $0x9c] sm:$0xf]
        %v8067 = vld [vmem:[%s3 + $0xa0] sm:$0xf]
        %v8068 = vld [vmem:[%s3 + $0xa4] sm:$0xf]
        %v8069 = vld [vmem:[%s3 + $0xa8] sm:$0xf]
        %v8070 = vld [vmem:[%s3 + $0xac] sm:$0xf]
        %v8071 = vld [vmem:[%s3 + $0xb0] sm:$0xf]
        %v8072 = vld [vmem:[%s3 + $0xb4] sm:$0xf]
        %v8073 = vld [vmem:[%s3 + $0xb8] sm:$0xf]
        %v8074 = vld [vmem:[%s3 + $0xbc] sm:$0xf]
        %v8075 = vld [vmem:[%s3 + $0xc0] sm:$0xf]
        %v8076 = vld [vmem:[%s3 + $0xc4] sm:$0xf]
        %v8077 = vld [vmem:[%s3 + $0xc8] sm:$0xf]
        %v8078 = vld [vmem:[%s3 + $0xcc] sm:$0xf]
        %v8079 = vld [vmem:[%s3 + $0xd0] sm:$0xf]
        %v8080 = vld [vmem:[%s3 + $0xd4] sm:$0xf]
        %v8081 = vld [vmem:[%s3 + $0xd8] sm:$0xf]
        %v8082 = vld [vmem:[%s3 + $0xdc] sm:$0xf]
        %v8083 = vld [vmem:[%s3 + $0xe0] sm:$0xf]
        %v8084 = vld [vmem:[%s3 + $0xe4] sm:$0xf]
        %v8085 = vld [vmem:[%s3 + $0xe8] sm:$0xf]
        %v8086 = vld [vmem:[%s3 + $0xec] sm:$0xf]
        %v8087 = vld [vmem:[%s3 + $0xf0] sm:$0xf]
        %v8088 = vld [vmem:[%s3 + $0xf4] sm:$0xf]
        %v8089 = vld [vmem:[%s3 + $0xf8] sm:$0xf]
        %v8090 = vld [vmem:[%s3 + $0xfc] sm:$0xf]
        %v8091 = vld [vmem:[%s4] sm:$0x1]
        %v8093 = vlaneseq
        %v8094 = vshrl.u32 %v8093, 7
        %v8095 = vsub.s32 0, %v8094
        %v8096 = vrot.slane %v8091, %v8095
        %v8162 = vunpack.c.l.b16 %v8027
        %v8163 = vunpack.c.l.b16 %v8028
        %v8164 = vunpack.c.l.b16 %v8029
        %v8165 = vunpack.c.l.b16 %v8030
        %v8166 = vunpack.c.l.b16 %v8031
        %v8167 = vunpack.c.l.b16 %v8032
        %v8168 = vunpack.c.l.b16 %v8033
        %v8169 = vunpack.c.l.b16 %v8034
        %v8170 = vunpack.c.l.b16 %v8035
        %v8171 = vunpack.c.l.b16 %v8036
        %v8172 = vunpack.c.l.b16 %v8037
        %v8173 = vunpack.c.l.b16 %v8038
        %v8174 = vunpack.c.l.b16 %v8039
        %v8175 = vunpack.c.l.b16 %v8040
        %v8176 = vunpack.c.l.b16 %v8041
        %v8177 = vunpack.c.l.b16 %v8042
        %v8178 = vunpack.c.l.b16 %v8043
        %v8179 = vunpack.c.l.b16 %v8044
        %v8180 = vunpack.c.l.b16 %v8045
        %v8181 = vunpack.c.l.b16 %v8046
        %v8182 = vunpack.c.l.b16 %v8047
        %v8183 = vunpack.c.l.b16 %v8048
        %v8184 = vunpack.c.l.b16 %v8049
        %v8185 = vunpack.c.l.b16 %v8050
        %v8186 = vunpack.c.l.b16 %v8051
        %v8187 = vunpack.c.l.b16 %v8052
        %v8188 = vunpack.c.l.b16 %v8053
        %v8189 = vunpack.c.l.b16 %v8054
        %v8190 = vunpack.c.l.b16 %v8055
        %v8191 = vunpack.c.l.b16 %v8056
        %v8192 = vunpack.c.l.b16 %v8057
        %v8193 = vunpack.c.l.b16 %v8058
        %v8194 = vunpack.c.l.b16 %v8059
        %v8195 = vunpack.c.l.b16 %v8060
        %v8196 = vunpack.c.l.b16 %v8061
        %v8197 = vunpack.c.l.b16 %v8062
        %v8198 = vunpack.c.l.b16 %v8063
        %v8199 = vunpack.c.l.b16 %v8064
        %v8200 = vunpack.c.l.b16 %v8065
        %v8201 = vunpack.c.l.b16 %v8066
        %v8202 = vunpack.c.l.b16 %v8067
        %v8203 = vunpack.c.l.b16 %v8068
        %v8204 = vunpack.c.l.b16 %v8069
        %v8205 = vunpack.c.l.b16 %v8070
        %v8206 = vunpack.c.l.b16 %v8071
        %v8207 = vunpack.c.l.b16 %v8072
        %v8208 = vunpack.c.l.b16 %v8073
        %v8209 = vunpack.c.l.b16 %v8074
        %v8210 = vunpack.c.l.b16 %v8075
        %v8211 = vunpack.c.l.b16 %v8076
        %v8212 = vunpack.c.l.b16 %v8077
        %v8213 = vunpack.c.l.b16 %v8078
        %v8214 = vunpack.c.l.b16 %v8079
        %v8215 = vunpack.c.l.b16 %v8080
        %v8216 = vunpack.c.l.b16 %v8081
        %v8217 = vunpack.c.l.b16 %v8082
        %v8218 = vunpack.c.l.b16 %v8083
        %v8219 = vunpack.c.l.b16 %v8084
        %v8220 = vunpack.c.l.b16 %v8085
        %v8221 = vunpack.c.l.b16 %v8086
        %v8222 = vunpack.c.l.b16 %v8087
        %v8223 = vunpack.c.l.b16 %v8088
        %v8224 = vunpack.c.l.b16 %v8089
        %v8225 = vunpack.c.l.b16 %v8090
        %v8226 = vpack.c.b16 %v8163, %v8162
        %v8227 = vpack.c.b16 %v8165, %v8164
        %v8228 = vpack.c.b16 %v8167, %v8166
        %v8229 = vpack.c.b16 %v8169, %v8168
        %v8230 = vpack.c.b16 %v8171, %v8170
        %v8231 = vpack.c.b16 %v8173, %v8172
        %v8232 = vpack.c.b16 %v8175, %v8174
        %v8233 = vpack.c.b16 %v8177, %v8176
        %v8234 = vpack.c.b16 %v8179, %v8178
        %v8235 = vpack.c.b16 %v8181, %v8180
        %v8236 = vpack.c.b16 %v8183, %v8182
        %v8237 = vpack.c.b16 %v8185, %v8184
        %v8238 = vpack.c.b16 %v8187, %v8186
        %v8239 = vpack.c.b16 %v8189, %v8188
        %v8240 = vpack.c.b16 %v8191, %v8190
        %v8241 = vpack.c.b16 %v8193, %v8192
        %v8242 = vpack.c.b16 %v8195, %v8194
        %v8243 = vpack.c.b16 %v8197, %v8196
        %v8244 = vpack.c.b16 %v8199, %v8198
        %v8245 = vpack.c.b16 %v8201, %v8200
        %v8246 = vpack.c.b16 %v8203, %v8202
        %v8247 = vpack.c.b16 %v8205, %v8204
        %v8248 = vpack.c.b16 %v8207, %v8206
        %v8249 = vpack.c.b16 %v8209, %v8208
        %v8250 = vpack.c.b16 %v8211, %v8210
        %v8251 = vpack.c.b16 %v8213, %v8212
        %v8252 = vpack.c.b16 %v8215, %v8214
        %v8253 = vpack.c.b16 %v8217, %v8216
        %v8254 = vpack.c.b16 %v8219, %v8218
        %v8255 = vpack.c.b16 %v8221, %v8220
        %v8256 = vpack.c.b16 %v8223, %v8222
        %v8257 = vpack.c.b16 %v8225, %v8224
        %8290 = vmatprep.subr.bf16.mxu0 0
        %8291 = vmatpush1.bf16.msra.mxu0 %v8233
        %8292 = vmatprep.subr.bf16.mxu0 0
        %8293 = vmatpush1.bf16.msra.mxu0 %v8232
        %8294 = vmatprep.subr.bf16.mxu0 0
        %8295 = vmatpush1.bf16.msra.mxu0 %v8231
        %8296 = vmatprep.subr.bf16.mxu0 0
        %8297 = vmatpush1.bf16.msra.mxu0 %v8230
        %8298 = vmatprep.subr.bf16.mxu0 0
        %8299 = vmatpush1.bf16.msra.mxu0 %v8229
        %8300 = vmatprep.subr.bf16.mxu0 0
        %8301 = vmatpush1.bf16.msra.mxu0 %v8228
        %8302 = vmatprep.subr.bf16.mxu0 0
        %8303 = vmatpush1.bf16.msra.mxu0 %v8227
        %8304 = vmatprep.subr.bf16.mxu0 0
        %8305 = vmatpush1.bf16.msra.mxu0 %v8226
        %8306 = vmatprep.subr.bf16.mxu0 0
        %8307 = vmatpush2.bf16.msra.mxu0 %v8241
        %8308 = vmatprep.subr.bf16.mxu0 0
        %8309 = vmatpush2.bf16.msra.mxu0 %v8240
        %8310 = vmatprep.subr.bf16.mxu0 0
        %8311 = vmatpush2.bf16.msra.mxu0 %v8239
        %8312 = vmatprep.subr.bf16.mxu0 0
        %8313 = vmatpush2.bf16.msra.mxu0 %v8238
        %8314 = vmatprep.subr.bf16.mxu0 0
        %8315 = vmatpush2.bf16.msra.mxu0 %v8237
        %8316 = vmatprep.subr.bf16.mxu0 0
        %8317 = vmatpush2.bf16.msra.mxu0 %v8236
        %8318 = vmatprep.subr.bf16.mxu0 0
        %8319 = vmatpush2.bf16.msra.mxu0 %v8235
        %8320 = vmatprep.subr.bf16.mxu0 0
        %8321 = vmatpush2.bf16.msra.mxu0 %v8234
        %8322 = vmatprep.mubr.bf16.mxu0 %v7900
        %8323 = vmatmul.mubr.bf16.gmra.mxu0 %v7899
        %v8324 = vpop.f32.mrf.mxu0
        %v8325 = vadd.f32 %v8096, %v8324
        %v8326 = vpop.f32.mrf.mxu0
        %v8327 = vpop.f32.mrf.mxu0
        %v8328 = vadd.f32 %v8096, %v8327
        %v8329 = vpop.f32.mrf.mxu0
        %8330 = vmatprep.mubr.bf16.mxu0 %v7904
        %8331 = vmatmul.mubr.bf16.gmra.mxu0 %v7903
        %v8332 = vpop.f32.mrf.mxu0
        %v8333 = vadd.f32 %v8096, %v8332
        %v8334 = vpop.f32.mrf.mxu0
        %v8335 = vpop.f32.mrf.mxu0
        %v8336 = vadd.f32 %v8096, %v8335
        %v8337 = vpop.f32.mrf.mxu0
        %8338 = vmatprep.mubr.bf16.mxu0 %v7908
        %8339 = vmatmul.mubr.bf16.gmra.mxu0 %v7907
        %v8340 = vpop.f32.mrf.mxu0
        %v8341 = vadd.f32 %v8096, %v8340
        %v8342 = vpop.f32.mrf.mxu0
        %v8343 = vpop.f32.mrf.mxu0
        %v8344 = vadd.f32 %v8096, %v8343
        %v8345 = vpop.f32.mrf.mxu0
        %8346 = vmatprep.mubr.bf16.mxu0 %v7912
        %8347 = vmatmul.mubr.bf16.gmra.mxu0 %v7911
        %v8348 = vpop.f32.mrf.mxu0
        %v8349 = vadd.f32 %v8096, %v8348
        %v8350 = vpop.f32.mrf.mxu0
        %v8351 = vpop.f32.mrf.mxu0
        %v8352 = vadd.f32 %v8096, %v8351
        %v8353 = vpop.f32.mrf.mxu0
        %8354 = vmatprep.mubr.bf16.mxu0 %v7916
        %8355 = vmatmul.mubr.bf16.gmra.mxu0 %v7915
        %v8356 = vpop.f32.mrf.mxu0
        %v8357 = vadd.f32 %v8096, %v8356
        %v8358 = vpop.f32.mrf.mxu0
        %v8359 = vpop.f32.mrf.mxu0
        %v8360 = vadd.f32 %v8096, %v8359
        %v8361 = vpop.f32.mrf.mxu0
        %8362 = vmatprep.mubr.bf16.mxu0 %v7920
        %8363 = vmatmul.mubr.bf16.gmra.mxu0 %v7919
        %v8364 = vpop.f32.mrf.mxu0
        %v8365 = vadd.f32 %v8096, %v8364
        %v8366 = vpop.f32.mrf.mxu0
        %v8367 = vpop.f32.mrf.mxu0
        %v8368 = vadd.f32 %v8096, %v8367
        %v8369 = vpop.f32.mrf.mxu0
        %8370 = vmatprep.mubr.bf16.mxu0 %v7924
        %8371 = vmatmul.mubr.bf16.gmra.mxu0 %v7923
        %v8372 = vpop.f32.mrf.mxu0
        %v8373 = vadd.f32 %v8096, %v8372
        %v8374 = vpop.f32.mrf.mxu0
        %v8375 = vpop.f32.mrf.mxu0
        %v8376 = vadd.f32 %v8096, %v8375
        %v8377 = vpop.f32.mrf.mxu0
        %8378 = vmatprep.mubr.bf16.mxu0 %v7928
        %8379 = vmatmul.mubr.bf16.gmra.mxu0 %v7927
        %v8380 = vpop.f32.mrf.mxu0
        %v8381 = vadd.f32 %v8096, %v8380
        %v8382 = vpop.f32.mrf.mxu0
        %v8383 = vpop.f32.mrf.mxu0
        %v8384 = vadd.f32 %v8096, %v8383
        %v8385 = vpop.f32.mrf.mxu0
        %8386 = vmatprep.mubr.bf16.mxu0 %v7932
        %8387 = vmatmul.mubr.bf16.gmra.mxu0 %v7931
        %v8388 = vpop.f32.mrf.mxu0
        %v8389 = vadd.f32 %v8096, %v8388
        %v8390 = vpop.f32.mrf.mxu0
        %v8391 = vpop.f32.mrf.mxu0
        %v8392 = vadd.f32 %v8096, %v8391
        %v8393 = vpop.f32.mrf.mxu0
        %8394 = vmatprep.mubr.bf16.mxu0 %v7936
        %8395 = vmatmul.mubr.bf16.gmra.mxu0 %v7935
        %v8396 = vpop.f32.mrf.mxu0
        %v8397 = vadd.f32 %v8096, %v8396
        %v8398 = vpop.f32.mrf.mxu0
        %v8399 = vpop.f32.mrf.mxu0
        %v8400 = vadd.f32 %v8096, %v8399
        %v8401 = vpop.f32.mrf.mxu0
        %8402 = vmatprep.mubr.bf16.mxu0 %v7940
        %8403 = vmatmul.mubr.bf16.gmra.mxu0 %v7939
        %v8404 = vpop.f32.mrf.mxu0
        %v8405 = vadd.f32 %v8096, %v8404
        %v8406 = vpop.f32.mrf.mxu0
        %v8407 = vpop.f32.mrf.mxu0
        %v8408 = vadd.f32 %v8096, %v8407
        %v8409 = vpop.f32.mrf.mxu0
        %8410 = vmatprep.mubr.bf16.mxu0 %v7944
        %8411 = vmatmul.mubr.bf16.gmra.mxu0 %v7943
        %v8412 = vpop.f32.mrf.mxu0
        %v8413 = vadd.f32 %v8096, %v8412
        %v8414 = vpop.f32.mrf.mxu0
        %v8415 = vpop.f32.mrf.mxu0
        %v8416 = vadd.f32 %v8096, %v8415
        %v8417 = vpop.f32.mrf.mxu0
        %8418 = vmatprep.mubr.bf16.mxu0 %v7948
        %8419 = vmatmul.mubr.bf16.gmra.mxu0 %v7947
        %v8420 = vpop.f32.mrf.mxu0
        %v8421 = vadd.f32 %v8096, %v8420
        %v8422 = vpop.f32.mrf.mxu0
        %v8423 = vpop.f32.mrf.mxu0
        %v8424 = vadd.f32 %v8096, %v8423
        %v8425 = vpop.f32.mrf.mxu0
        %8426 = vmatprep.mubr.bf16.mxu0 %v7952
        %8427 = vmatmul.mubr.bf16.gmra.mxu0 %v7951
        %v8428 = vpop.f32.mrf.mxu0
        %v8429 = vadd.f32 %v8096, %v8428
        %v8430 = vpop.f32.mrf.mxu0
        %v8431 = vpop.f32.mrf.mxu0
        %v8432 = vadd.f32 %v8096, %v8431
        %v8433 = vpop.f32.mrf.mxu0
        %8434 = vmatprep.mubr.bf16.mxu0 %v7956
        %8435 = vmatmul.mubr.bf16.gmra.mxu0 %v7955
        %v8436 = vpop.f32.mrf.mxu0
        %v8437 = vadd.f32 %v8096, %v8436
        %v8438 = vpop.f32.mrf.mxu0
        %v8439 = vpop.f32.mrf.mxu0
        %v8440 = vadd.f32 %v8096, %v8439
        %v8441 = vpop.f32.mrf.mxu0
        %8442 = vmatprep.mubr.bf16.mxu0 %v7960
        %8443 = vmatmul.mubr.bf16.gmra.mxu0 %v7959
        %v8444 = vpop.f32.mrf.mxu0
        %v8445 = vadd.f32 %v8096, %v8444
        %v8446 = vpop.f32.mrf.mxu0
        %v8447 = vpop.f32.mrf.mxu0
        %v8448 = vadd.f32 %v8096, %v8447
        %v8449 = vpop.f32.mrf.mxu0
        %8450 = vmatprep.mubr.bf16.mxu0 %v7964
        %8451 = vmatmul.mubr.bf16.gmra.mxu0 %v7963
        %v8452 = vpop.f32.mrf.mxu0
        %v8453 = vadd.f32 %v8096, %v8452
        %v8454 = vpop.f32.mrf.mxu0
        %v8455 = vpop.f32.mrf.mxu0
        %v8456 = vadd.f32 %v8096, %v8455
        %v8457 = vpop.f32.mrf.mxu0
        %8458 = vmatprep.mubr.bf16.mxu0 %v7968
        %8459 = vmatmul.mubr.bf16.gmra.mxu0 %v7967
        %v8460 = vpop.f32.mrf.mxu0
        %v8461 = vadd.f32 %v8096, %v8460
        %v8462 = vpop.f32.mrf.mxu0
        %v8463 = vpop.f32.mrf.mxu0
        %v8464 = vadd.f32 %v8096, %v8463
        %v8465 = vpop.f32.mrf.mxu0
        %8466 = vmatprep.mubr.bf16.mxu0 %v7972
        %8467 = vmatmul.mubr.bf16.gmra.mxu0 %v7971
        %v8468 = vpop.f32.mrf.mxu0
        %v8469 = vadd.f32 %v8096, %v8468
        %v8470 = vpop.f32.mrf.mxu0
        %v8471 = vpop.f32.mrf.mxu0
        %v8472 = vadd.f32 %v8096, %v8471
        %v8473 = vpop.f32.mrf.mxu0
        %8474 = vmatprep.mubr.bf16.mxu0 %v7976
        %8475 = vmatmul.mubr.bf16.gmra.mxu0 %v7975
        %v8476 = vpop.f32.mrf.mxu0
        %v8477 = vadd.f32 %v8096, %v8476
        %v8478 = vpop.f32.mrf.mxu0
        %v8479 = vpop.f32.mrf.mxu0
        %v8480 = vadd.f32 %v8096, %v8479
        %v8481 = vpop.f32.mrf.mxu0
        %8482 = vmatprep.mubr.bf16.mxu0 %v7980
        %8483 = vmatmul.mubr.bf16.gmra.mxu0 %v7979
        %v8484 = vpop.f32.mrf.mxu0
        %v8485 = vadd.f32 %v8096, %v8484
        %v8486 = vpop.f32.mrf.mxu0
        %v8487 = vpop.f32.mrf.mxu0
        %v8488 = vadd.f32 %v8096, %v8487
        %v8489 = vpop.f32.mrf.mxu0
        %8490 = vmatprep.mubr.bf16.mxu0 %v7984
        %8491 = vmatmul.mubr.bf16.gmra.mxu0 %v7983
        %v8492 = vpop.f32.mrf.mxu0
        %v8493 = vadd.f32 %v8096, %v8492
        %v8494 = vpop.f32.mrf.mxu0
        %v8495 = vpop.f32.mrf.mxu0
        %v8496 = vadd.f32 %v8096, %v8495
        %v8497 = vpop.f32.mrf.mxu0
        %8498 = vmatprep.mubr.bf16.mxu0 %v7988
        %8499 = vmatmul.mubr.bf16.gmra.mxu0 %v7987
        %v8500 = vpop.f32.mrf.mxu0
        %v8501 = vadd.f32 %v8096, %v8500
        %v8502 = vpop.f32.mrf.mxu0
        %v8503 = vpop.f32.mrf.mxu0
        %v8504 = vadd.f32 %v8096, %v8503
        %v8505 = vpop.f32.mrf.mxu0
        %8506 = vmatprep.mubr.bf16.mxu0 %v7992
        %8507 = vmatmul.mubr.bf16.gmra.mxu0 %v7991
        %v8508 = vpop.f32.mrf.mxu0
        %v8509 = vadd.f32 %v8096, %v8508
        %v8510 = vpop.f32.mrf.mxu0
        %v8511 = vpop.f32.mrf.mxu0
        %v8512 = vadd.f32 %v8096, %v8511
        %v8513 = vpop.f32.mrf.mxu0
        %8514 = vmatprep.mubr.bf16.mxu0 %v7996
        %8515 = vmatmul.mubr.bf16.gmra.mxu0 %v7995
        %v8516 = vpop.f32.mrf.mxu0
        %v8517 = vadd.f32 %v8096, %v8516
        %v8518 = vpop.f32.mrf.mxu0
        %v8519 = vpop.f32.mrf.mxu0
        %v8520 = vadd.f32 %v8096, %v8519
        %v8521 = vpop.f32.mrf.mxu0
        %8522 = vmatprep.mubr.bf16.mxu0 %v8000
        %8523 = vmatmul.mubr.bf16.gmra.mxu0 %v7999
        %v8524 = vpop.f32.mrf.mxu0
        %v8525 = vadd.f32 %v8096, %v8524
        %v8526 = vpop.f32.mrf.mxu0
        %v8527 = vpop.f32.mrf.mxu0
        %v8528 = vadd.f32 %v8096, %v8527
        %v8529 = vpop.f32.mrf.mxu0
        %8530 = vmatprep.mubr.bf16.mxu0 %v8004
        %8531 = vmatmul.mubr.bf16.gmra.mxu0 %v8003
        %v8532 = vpop.f32.mrf.mxu0
        %v8533 = vadd.f32 %v8096, %v8532
        %v8534 = vpop.f32.mrf.mxu0
        %v8535 = vpop.f32.mrf.mxu0
        %v8536 = vadd.f32 %v8096, %v8535
        %v8537 = vpop.f32.mrf.mxu0
        %8538 = vmatprep.mubr.bf16.mxu0 %v8008
        %8539 = vmatmul.mubr.bf16.gmra.mxu0 %v8007
        %v8540 = vpop.f32.mrf.mxu0
        %v8541 = vadd.f32 %v8096, %v8540
        %v8542 = vpop.f32.mrf.mxu0
        %v8543 = vpop.f32.mrf.mxu0
        %v8544 = vadd.f32 %v8096, %v8543
        %v8545 = vpop.f32.mrf.mxu0
        %8546 = vmatprep.mubr.bf16.mxu0 %v8012
        %8547 = vmatmul.mubr.bf16.gmra.mxu0 %v8011
        %v8548 = vpop.f32.mrf.mxu0
        %v8549 = vadd.f32 %v8096, %v8548
        %v8550 = vpop.f32.mrf.mxu0
        %v8551 = vpop.f32.mrf.mxu0
        %v8552 = vadd.f32 %v8096, %v8551
        %v8553 = vpop.f32.mrf.mxu0
        %8554 = vmatprep.mubr.bf16.mxu0 %v8016
        %8555 = vmatmul.mubr.bf16.gmra.mxu0 %v8015
        %v8556 = vpop.f32.mrf.mxu0
        %v8557 = vadd.f32 %v8096, %v8556
        %v8558 = vpop.f32.mrf.mxu0
        %v8559 = vpop.f32.mrf.mxu0
        %v8560 = vadd.f32 %v8096, %v8559
        %v8561 = vpop.f32.mrf.mxu0
        %8562 = vmatprep.mubr.bf16.mxu0 %v8020
        %8563 = vmatmul.mubr.bf16.gmra.mxu0 %v8019
        %v8564 = vpop.f32.mrf.mxu0
        %v8565 = vadd.f32 %v8096, %v8564
        %v8566 = vpop.f32.mrf.mxu0
        %v8567 = vpop.f32.mrf.mxu0
        %v8568 = vadd.f32 %v8096, %v8567
        %v8569 = vpop.f32.mrf.mxu0
        %8570 = vmatprep.mubr.bf16.mxu0 %v8024
        %8571 = vmatmul.mubr.bf16.gmra.mxu0 %v8023
        %v8572 = vpop.f32.mrf.mxu0
        %v8573 = vadd.f32 %v8096, %v8572
        %v8574 = vpop.f32.mrf.mxu0
        %v8575 = vpop.f32.mrf.mxu0
        %v8576 = vadd.f32 %v8096, %v8575
        %v8577 = vpop.f32.mrf.mxu0
        %8578 = vdwg.mxu0
        %8579 = vmatprep.subr.bf16.mxu0 0
        %8580 = vmatpush1.bf16.msra.mxu0 %v8249
        %8581 = vmatprep.subr.bf16.mxu0 0
        %8582 = vmatpush1.bf16.msra.mxu0 %v8248
        %8583 = vmatprep.subr.bf16.mxu0 0
        %8584 = vmatpush1.bf16.msra.mxu0 %v8247
        %8585 = vmatprep.subr.bf16.mxu0 0
        %8586 = vmatpush1.bf16.msra.mxu0 %v8246
        %8587 = vmatprep.subr.bf16.mxu0 0
        %8588 = vmatpush1.bf16.msra.mxu0 %v8245
        %8589 = vmatprep.subr.bf16.mxu0 0
        %8590 = vmatpush1.bf16.msra.mxu0 %v8244
        %8591 = vmatprep.subr.bf16.mxu0 0
        %8592 = vmatpush1.bf16.msra.mxu0 %v8243
        %8593 = vmatprep.subr.bf16.mxu0 0
        %8594 = vmatpush1.bf16.msra.mxu0 %v8242
        %8595 = vmatprep.subr.bf16.mxu0 0
        %8596 = vmatpush2.bf16.msra.mxu0 %v8257
        %8597 = vmatprep.subr.bf16.mxu0 0
        %8598 = vmatpush2.bf16.msra.mxu0 %v8256
        %8599 = vmatprep.subr.bf16.mxu0 0
        %8600 = vmatpush2.bf16.msra.mxu0 %v8255
        %8601 = vmatprep.subr.bf16.mxu0 0
        %8602 = vmatpush2.bf16.msra.mxu0 %v8254
        %8603 = vmatprep.subr.bf16.mxu0 0
        %8604 = vmatpush2.bf16.msra.mxu0 %v8253
        %8605 = vmatprep.subr.bf16.mxu0 0
        %8606 = vmatpush2.bf16.msra.mxu0 %v8252
        %8607 = vmatprep.subr.bf16.mxu0 0
        %8608 = vmatpush2.bf16.msra.mxu0 %v8251
        %8609 = vmatprep.subr.bf16.mxu0 0
        %8610 = vmatpush2.bf16.msra.mxu0 %v8250
        %8611 = vmatprep.mubr.bf16.mxu0 %v7902
        %8612 = vmatmul.mubr.bf16.gmra.mxu0 %v7901
        %v8613 = vpop.f32.mrf.mxu0
        %v8614 = vadd.f32 %v8325, %v8613
        %v8615 = vpop.f32.mrf.mxu0
        %v8616 = vpop.f32.mrf.mxu0
        %v8617 = vadd.f32 %v8328, %v8616
        %v8618 = vpop.f32.mrf.mxu0
        %8619 = vmatprep.mubr.bf16.mxu0 %v7906
        %8620 = vmatmul.mubr.bf16.gmra.mxu0 %v7905
        %v8621 = vpop.f32.mrf.mxu0
        %v8622 = vadd.f32 %v8333, %v8621
        %v8623 = vpop.f32.mrf.mxu0
        %v8624 = vpop.f32.mrf.mxu0
        %v8625 = vadd.f32 %v8336, %v8624
        %v8626 = vpop.f32.mrf.mxu0
        %8627 = vmatprep.mubr.bf16.mxu0 %v7910
        %8628 = vmatmul.mubr.bf16.gmra.mxu0 %v7909
        %v8629 = vpop.f32.mrf.mxu0
        %v8630 = vadd.f32 %v8341, %v8629
        %v8631 = vpop.f32.mrf.mxu0
        %v8632 = vpop.f32.mrf.mxu0
        %v8633 = vadd.f32 %v8344, %v8632
        %v8634 = vpop.f32.mrf.mxu0
        %8635 = vmatprep.mubr.bf16.mxu0 %v7914
        %8636 = vmatmul.mubr.bf16.gmra.mxu0 %v7913
        %v8637 = vpop.f32.mrf.mxu0
        %v8638 = vadd.f32 %v8349, %v8637
        %v8639 = vpop.f32.mrf.mxu0
        %v8640 = vpop.f32.mrf.mxu0
        %v8641 = vadd.f32 %v8352, %v8640
        %v8642 = vpop.f32.mrf.mxu0
        %8643 = vmatprep.mubr.bf16.mxu0 %v7918
        %8644 = vmatmul.mubr.bf16.gmra.mxu0 %v7917
        %v8645 = vpop.f32.mrf.mxu0
        %v8646 = vadd.f32 %v8357, %v8645
        %v8647 = vpop.f32.mrf.mxu0
        %v8648 = vpop.f32.mrf.mxu0
        %v8649 = vadd.f32 %v8360, %v8648
        %v8650 = vpop.f32.mrf.mxu0
        %8651 = vmatprep.mubr.bf16.mxu0 %v7922
        %8652 = vmatmul.mubr.bf16.gmra.mxu0 %v7921
        %v8653 = vpop.f32.mrf.mxu0
        %v8654 = vadd.f32 %v8365, %v8653
        %v8655 = vpop.f32.mrf.mxu0
        %v8656 = vpop.f32.mrf.mxu0
        %v8657 = vadd.f32 %v8368, %v8656
        %v8658 = vpop.f32.mrf.mxu0
        %8659 = vmatprep.mubr.bf16.mxu0 %v7926
        %8660 = vmatmul.mubr.bf16.gmra.mxu0 %v7925
        %v8661 = vpop.f32.mrf.mxu0
        %v8662 = vadd.f32 %v8373, %v8661
        %v8663 = vpop.f32.mrf.mxu0
        %v8664 = vpop.f32.mrf.mxu0
        %v8665 = vadd.f32 %v8376, %v8664
        %v8666 = vpop.f32.mrf.mxu0
        %8667 = vmatprep.mubr.bf16.mxu0 %v7930
        %8668 = vmatmul.mubr.bf16.gmra.mxu0 %v7929
        %v8669 = vpop.f32.mrf.mxu0
        %v8670 = vadd.f32 %v8381, %v8669
        %v8671 = vpop.f32.mrf.mxu0
        %v8672 = vpop.f32.mrf.mxu0
        %v8673 = vadd.f32 %v8384, %v8672
        %v8674 = vpop.f32.mrf.mxu0
        %8675 = vmatprep.mubr.bf16.mxu0 %v7934
        %8676 = vmatmul.mubr.bf16.gmra.mxu0 %v7933
        %v8677 = vpop.f32.mrf.mxu0
        %v8678 = vadd.f32 %v8389, %v8677
        %v8679 = vpop.f32.mrf.mxu0
        %v8680 = vpop.f32.mrf.mxu0
        %v8681 = vadd.f32 %v8392, %v8680
        %v8682 = vpop.f32.mrf.mxu0
        %8683 = vmatprep.mubr.bf16.mxu0 %v7938
        %8684 = vmatmul.mubr.bf16.gmra.mxu0 %v7937
        %v8685 = vpop.f32.mrf.mxu0
        %v8686 = vadd.f32 %v8397, %v8685
        %v8687 = vpop.f32.mrf.mxu0
        %v8688 = vpop.f32.mrf.mxu0
        %v8689 = vadd.f32 %v8400, %v8688
        %v8690 = vpop.f32.mrf.mxu0
        %8691 = vmatprep.mubr.bf16.mxu0 %v7942
        %8692 = vmatmul.mubr.bf16.gmra.mxu0 %v7941
        %v8693 = vpop.f32.mrf.mxu0
        %v8694 = vadd.f32 %v8405, %v8693
        %v8695 = vpop.f32.mrf.mxu0
        %v8696 = vpop.f32.mrf.mxu0
        %v8697 = vadd.f32 %v8408, %v8696
        %v8698 = vpop.f32.mrf.mxu0
        %8699 = vmatprep.mubr.bf16.mxu0 %v7946
        %8700 = vmatmul.mubr.bf16.gmra.mxu0 %v7945
        %v8701 = vpop.f32.mrf.mxu0
        %v8702 = vadd.f32 %v8413, %v8701
        %v8703 = vpop.f32.mrf.mxu0
        %v8704 = vpop.f32.mrf.mxu0
        %v8705 = vadd.f32 %v8416, %v8704
        %v8706 = vpop.f32.mrf.mxu0
        %8707 = vmatprep.mubr.bf16.mxu0 %v7950
        %8708 = vmatmul.mubr.bf16.gmra.mxu0 %v7949
        %v8709 = vpop.f32.mrf.mxu0
        %v8710 = vadd.f32 %v8421, %v8709
        %v8711 = vpop.f32.mrf.mxu0
        %v8712 = vpop.f32.mrf.mxu0
        %v8713 = vadd.f32 %v8424, %v8712
        %v8714 = vpop.f32.mrf.mxu0
        %8715 = vmatprep.mubr.bf16.mxu0 %v7954
        %8716 = vmatmul.mubr.bf16.gmra.mxu0 %v7953
        %v8717 = vpop.f32.mrf.mxu0
        %v8718 = vadd.f32 %v8429, %v8717
        %v8719 = vpop.f32.mrf.mxu0
        %v8720 = vpop.f32.mrf.mxu0
        %v8721 = vadd.f32 %v8432, %v8720
        %v8722 = vpop.f32.mrf.mxu0
        %8723 = vmatprep.mubr.bf16.mxu0 %v7958
        %8724 = vmatmul.mubr.bf16.gmra.mxu0 %v7957
        %v8725 = vpop.f32.mrf.mxu0
        %v8726 = vadd.f32 %v8437, %v8725
        %v8727 = vpop.f32.mrf.mxu0
        %v8728 = vpop.f32.mrf.mxu0
        %v8729 = vadd.f32 %v8440, %v8728
        %v8730 = vpop.f32.mrf.mxu0
        %8731 = vmatprep.mubr.bf16.mxu0 %v7962
        %8732 = vmatmul.mubr.bf16.gmra.mxu0 %v7961
        %v8733 = vpop.f32.mrf.mxu0
        %v8734 = vadd.f32 %v8445, %v8733
        %v8735 = vpop.f32.mrf.mxu0
        %v8736 = vpop.f32.mrf.mxu0
        %v8737 = vadd.f32 %v8448, %v8736
        %v8738 = vpop.f32.mrf.mxu0
        %8739 = vmatprep.mubr.bf16.mxu0 %v7966
        %8740 = vmatmul.mubr.bf16.gmra.mxu0 %v7965
        %v8741 = vpop.f32.mrf.mxu0
        %v8742 = vadd.f32 %v8453, %v8741
        %v8743 = vpop.f32.mrf.mxu0
        %v8744 = vpop.f32.mrf.mxu0
        %v8745 = vadd.f32 %v8456, %v8744
        %v8746 = vpop.f32.mrf.mxu0
        %8747 = vmatprep.mubr.bf16.mxu0 %v7970
        %8748 = vmatmul.mubr.bf16.gmra.mxu0 %v7969
        %v8749 = vpop.f32.mrf.mxu0
        %v8750 = vadd.f32 %v8461, %v8749
        %v8751 = vpop.f32.mrf.mxu0
        %v8752 = vpop.f32.mrf.mxu0
        %v8753 = vadd.f32 %v8464, %v8752
        %v8754 = vpop.f32.mrf.mxu0
        %8755 = vmatprep.mubr.bf16.mxu0 %v7974
        %8756 = vmatmul.mubr.bf16.gmra.mxu0 %v7973
        %v8757 = vpop.f32.mrf.mxu0
        %v8758 = vadd.f32 %v8469, %v8757
        %v8759 = vpop.f32.mrf.mxu0
        %v8760 = vpop.f32.mrf.mxu0
        %v8761 = vadd.f32 %v8472, %v8760
        %v8762 = vpop.f32.mrf.mxu0
        %8763 = vmatprep.mubr.bf16.mxu0 %v7978
        %8764 = vmatmul.mubr.bf16.gmra.mxu0 %v7977
        %v8765 = vpop.f32.mrf.mxu0
        %v8766 = vadd.f32 %v8477, %v8765
        %v8767 = vpop.f32.mrf.mxu0
        %v8768 = vpop.f32.mrf.mxu0
        %v8769 = vadd.f32 %v8480, %v8768
        %v8770 = vpop.f32.mrf.mxu0
        %8771 = vmatprep.mubr.bf16.mxu0 %v7982
        %8772 = vmatmul.mubr.bf16.gmra.mxu0 %v7981
        %v8773 = vpop.f32.mrf.mxu0
        %v8774 = vadd.f32 %v8485, %v8773
        %v8775 = vpop.f32.mrf.mxu0
        %v8776 = vpop.f32.mrf.mxu0
        %v8777 = vadd.f32 %v8488, %v8776
        %v8778 = vpop.f32.mrf.mxu0
        %8779 = vmatprep.mubr.bf16.mxu0 %v7986
        %8780 = vmatmul.mubr.bf16.gmra.mxu0 %v7985
        %v8781 = vpop.f32.mrf.mxu0
        %v8782 = vadd.f32 %v8493, %v8781
        %v8783 = vpop.f32.mrf.mxu0
        %v8784 = vpop.f32.mrf.mxu0
        %v8785 = vadd.f32 %v8496, %v8784
        %v8786 = vpop.f32.mrf.mxu0
        %8787 = vmatprep.mubr.bf16.mxu0 %v7990
        %8788 = vmatmul.mubr.bf16.gmra.mxu0 %v7989
        %v8789 = vpop.f32.mrf.mxu0
        %v8790 = vadd.f32 %v8501, %v8789
        %v8791 = vpop.f32.mrf.mxu0
        %v8792 = vpop.f32.mrf.mxu0
        %v8793 = vadd.f32 %v8504, %v8792
        %v8794 = vpop.f32.mrf.mxu0
        %8795 = vmatprep.mubr.bf16.mxu0 %v7994
        %8796 = vmatmul.mubr.bf16.gmra.mxu0 %v7993
        %v8797 = vpop.f32.mrf.mxu0
        %v8798 = vadd.f32 %v8509, %v8797
        %v8799 = vpop.f32.mrf.mxu0
        %v8800 = vpop.f32.mrf.mxu0
        %v8801 = vadd.f32 %v8512, %v8800
        %v8802 = vpop.f32.mrf.mxu0
        %8803 = vmatprep.mubr.bf16.mxu0 %v7998
        %8804 = vmatmul.mubr.bf16.gmra.mxu0 %v7997
        %v8805 = vpop.f32.mrf.mxu0
        %v8806 = vadd.f32 %v8517, %v8805
        %v8807 = vpop.f32.mrf.mxu0
        %v8808 = vpop.f32.mrf.mxu0
        %v8809 = vadd.f32 %v8520, %v8808
        %v8810 = vpop.f32.mrf.mxu0
        %8811 = vmatprep.mubr.bf16.mxu0 %v8002
        %8812 = vmatmul.mubr.bf16.gmra.mxu0 %v8001
        %v8813 = vpop.f32.mrf.mxu0
        %v8814 = vadd.f32 %v8525, %v8813
        %v8815 = vpop.f32.mrf.mxu0
        %v8816 = vpop.f32.mrf.mxu0
        %v8817 = vadd.f32 %v8528, %v8816
        %v8818 = vpop.f32.mrf.mxu0
        %8819 = vmatprep.mubr.bf16.mxu0 %v8006
        %8820 = vmatmul.mubr.bf16.gmra.mxu0 %v8005
        %v8821 = vpop.f32.mrf.mxu0
        %v8822 = vadd.f32 %v8533, %v8821
        %v8823 = vpop.f32.mrf.mxu0
        %v8824 = vpop.f32.mrf.mxu0
        %v8825 = vadd.f32 %v8536, %v8824
        %v8826 = vpop.f32.mrf.mxu0
        %8827 = vmatprep.mubr.bf16.mxu0 %v8010
        %8828 = vmatmul.mubr.bf16.gmra.mxu0 %v8009
        %v8829 = vpop.f32.mrf.mxu0
        %v8830 = vadd.f32 %v8541, %v8829
        %v8831 = vpop.f32.mrf.mxu0
        %v8832 = vpop.f32.mrf.mxu0
        %v8833 = vadd.f32 %v8544, %v8832
        %v8834 = vpop.f32.mrf.mxu0
        %8835 = vmatprep.mubr.bf16.mxu0 %v8014
        %8836 = vmatmul.mubr.bf16.gmra.mxu0 %v8013
        %v8837 = vpop.f32.mrf.mxu0
        %v8838 = vadd.f32 %v8549, %v8837
        %v8839 = vpop.f32.mrf.mxu0
        %v8840 = vpop.f32.mrf.mxu0
        %v8841 = vadd.f32 %v8552, %v8840
        %v8842 = vpop.f32.mrf.mxu0
        %8843 = vmatprep.mubr.bf16.mxu0 %v8018
        %8844 = vmatmul.mubr.bf16.gmra.mxu0 %v8017
        %v8845 = vpop.f32.mrf.mxu0
        %v8846 = vadd.f32 %v8557, %v8845
        %v8847 = vpop.f32.mrf.mxu0
        %v8848 = vpop.f32.mrf.mxu0
        %v8849 = vadd.f32 %v8560, %v8848
        %v8850 = vpop.f32.mrf.mxu0
        %8851 = vmatprep.mubr.bf16.mxu0 %v8022
        %8852 = vmatmul.mubr.bf16.gmra.mxu0 %v8021
        %v8853 = vpop.f32.mrf.mxu0
        %v8854 = vadd.f32 %v8565, %v8853
        %v8855 = vpop.f32.mrf.mxu0
        %v8856 = vpop.f32.mrf.mxu0
        %v8857 = vadd.f32 %v8568, %v8856
        %v8858 = vpop.f32.mrf.mxu0
        %8859 = vmatprep.mubr.bf16.mxu0 %v8026
        %8860 = vmatmul.mubr.bf16.gmra.mxu0 %v8025
        %v8861 = vpop.f32.mrf.mxu0
        %v8862 = vadd.f32 %v8573, %v8861
        %v8863 = vpop.f32.mrf.mxu0
        %v8864 = vpop.f32.mrf.mxu0
        %v8865 = vadd.f32 %v8576, %v8864
        %v8866 = vpop.f32.mrf.mxu0
        %8867 = vdwg.mxu0
        %8868 = vst [vmem:[%s218] sm:$0xff] %v8614
        %8869 = vst [vmem:[%s218 + $0x8] sm:$0xff] %v8617
        %8870 = vst [vmem:[%s218 + $0x10] sm:$0xff] %v8622
        %8871 = vst [vmem:[%s218 + $0x18] sm:$0xff] %v8625
        %8872 = vst [vmem:[%s218 + $0x20] sm:$0xff] %v8630
        %8873 = vst [vmem:[%s218 + $0x28] sm:$0xff] %v8633
        %8874 = vst [vmem:[%s218 + $0x30] sm:$0xff] %v8638
        %8875 = vst [vmem:[%s218 + $0x38] sm:$0xff] %v8641
        %8876 = vst [vmem:[%s218 + $0x40] sm:$0xff] %v8646
        %8877 = vst [vmem:[%s218 + $0x48] sm:$0xff] %v8649
        %8878 = vst [vmem:[%s218 + $0x50] sm:$0xff] %v8654
        %8879 = vst [vmem:[%s218 + $0x58] sm:$0xff] %v8657
        %8880 = vst [vmem:[%s218 + $0x60] sm:$0xff] %v8662
        %8881 = vst [vmem:[%s218 + $0x68] sm:$0xff] %v8665
        %8882 = vst [vmem:[%s218 + $0x70] sm:$0xff] %v8670
        %8883 = vst [vmem:[%s218 + $0x78] sm:$0xff] %v8673
        %8884 = vst [vmem:[%s218 + $0x80] sm:$0xff] %v8678
        %8885 = vst [vmem:[%s218 + $0x88] sm:$0xff] %v8681
        %8886 = vst [vmem:[%s218 + $0x90] sm:$0xff] %v8686
        %8887 = vst [vmem:[%s218 + $0x98] sm:$0xff] %v8689
        %8888 = vst [vmem:[%s218 + $0xa0] sm:$0xff] %v8694
        %8889 = vst [vmem:[%s218 + $0xa8] sm:$0xff] %v8697
        %8890 = vst [vmem:[%s218 + $0xb0] sm:$0xff] %v8702
        %8891 = vst [vmem:[%s218 + $0xb8] sm:$0xff] %v8705
        %8892 = vst [vmem:[%s218 + $0xc0] sm:$0xff] %v8710
        %8893 = vst [vmem:[%s218 + $0xc8] sm:$0xff] %v8713
        %8894 = vst [vmem:[%s218 + $0xd0] sm:$0xff] %v8718
        %8895 = vst [vmem:[%s218 + $0xd8] sm:$0xff] %v8721
        %8896 = vst [vmem:[%s218 + $0xe0] sm:$0xff] %v8726
        %8897 = vst [vmem:[%s218 + $0xe8] sm:$0xff] %v8729
        %8898 = vst [vmem:[%s218 + $0xf0] sm:$0xff] %v8734
        %8899 = vst [vmem:[%s218 + $0xf8] sm:$0xff] %v8737
        %8900 = vst [vmem:[%s218 + $0x100] sm:$0xff] %v8742
        %8901 = vst [vmem:[%s218 + $0x108] sm:$0xff] %v8745
        %8902 = vst [vmem:[%s218 + $0x110] sm:$0xff] %v8750
        %8903 = vst [vmem:[%s218 + $0x118] sm:$0xff] %v8753
        %8904 = vst [vmem:[%s218 + $0x120] sm:$0xff] %v8758
        %8905 = vst [vmem:[%s218 + $0x128] sm:$0xff] %v8761
        %8906 = vst [vmem:[%s218 + $0x130] sm:$0xff] %v8766
        %8907 = vst [vmem:[%s218 + $0x138] sm:$0xff] %v8769
        %8908 = vst [vmem:[%s218 + $0x140] sm:$0xff] %v8774
        %8909 = vst [vmem:[%s218 + $0x148] sm:$0xff] %v8777
        %8910 = vst [vmem:[%s218 + $0x150] sm:$0xff] %v8782
        %8911 = vst [vmem:[%s218 + $0x158] sm:$0xff] %v8785
        %8912 = vst [vmem:[%s218 + $0x160] sm:$0xff] %v8790
        %8913 = vst [vmem:[%s218 + $0x168] sm:$0xff] %v8793
        %8914 = vst [vmem:[%s218 + $0x170] sm:$0xff] %v8798
        %8915 = vst [vmem:[%s218 + $0x178] sm:$0xff] %v8801
        %8916 = vst [vmem:[%s218 + $0x180] sm:$0xff] %v8806
        %8917 = vst [vmem:[%s218 + $0x188] sm:$0xff] %v8809
        %8918 = vst [vmem:[%s218 + $0x190] sm:$0xff] %v8814
        %8919 = vst [vmem:[%s218 + $0x198] sm:$0xff] %v8817
        %8920 = vst [vmem:[%s218 + $0x1a0] sm:$0xff] %v8822
        %8921 = vst [vmem:[%s218 + $0x1a8] sm:$0xff] %v8825
        %8922 = vst [vmem:[%s218 + $0x1b0] sm:$0xff] %v8830
        %8923 = vst [vmem:[%s218 + $0x1b8] sm:$0xff] %v8833
        %8924 = vst [vmem:[%s218 + $0x1c0] sm:$0xff] %v8838
        %8925 = vst [vmem:[%s218 + $0x1c8] sm:$0xff] %v8841
        %8926 = vst [vmem:[%s218 + $0x1d0] sm:$0xff] %v8846
        %8927 = vst [vmem:[%s218 + $0x1d8] sm:$0xff] %v8849
        %8928 = vst [vmem:[%s218 + $0x1e0] sm:$0xff] %v8854
        %8929 = vst [vmem:[%s218 + $0x1e8] sm:$0xff] %v8857
        %8930 = vst [vmem:[%s218 + $0x1f0] sm:$0xff] %v8862
        %8931 = vst [vmem:[%s218 + $0x1f8] sm:$0xff] %v8865
        %s8932 = sand.u32 %s137, 1
        %s8933 = scalar_lea.sflag [#allocation3], %s8932
        %s8934 = sand.u32 %s137, 1
        %s8935 = smul.addr %s8934, 512
        %s8936 = scalar_lea.vmem [#allocation2], %s8935
        // Predicated region
        $region41: #{mlp_pallas.1} parent=39 // pred_check
          %p8937 = pneg %p147
        $region42: #{mlp_pallas.1} parent=39 // pred_check_branch
          %8939 = sbr.rel (%p8937) target = $region44
        $region43: #{mlp_pallas.1} parent=39 // pred_region
          %s8940 = smul.u32 64, %s19
          %s8942 = ssub.s32 8192, 8192
          %8943 = vsyncadd %s8933, %s8942
          %s8944 = smul.addr %s8940, 128
          %s8945 = scalar_lea.hbm %s5, %s8944
          %s8946 = sshll.u32 %s8936, 4
          %s8947 = int_to_ptr.vmem [resolvable:$true] %s8946
          %8952 = dma.vmem_to_hbm [thread:$0]  %s8947, 8192, %s8945, %s8933, 128, 128, 8
        $region44: #{mlp_pallas.1} parent=39 // pred_fallthru
          _
      $region40: #{mlp_pallas.1} parent=5 // pred_fallthru
        _
      %p8953 = scmp.le.s32.totalorder 2, %s14
      // Predicated region
      $region45: #{mlp_pallas.1} parent=5 // pred_check
        %p8954 = pneg %p8953
      $region46: #{mlp_pallas.1} parent=5 // pred_check_branch
        %8956 = sbr.rel (%p8954) target = $region48
      $region47: #{mlp_pallas.1} parent=5 // pred_region
        %s8957 = ssub.s32 %s14, 2
        // Predicated region
        $region49: #{mlp_pallas.1} parent=47 // pred_check
          %p8958 = pneg %p153
        $region50: #{mlp_pallas.1} parent=47 // pred_check_branch
          %8960 = sbr.rel (%p8958) target = $region52
        $region51: #{mlp_pallas.1} parent=47 // pred_region
          %s8961 = sand.u32 %s138, 1
          %s8962 = scalar_lea.sflag [#allocation3], %s8961
          %s8963 = sand.u32 %s138, 1
          %s8964 = smul.addr %s8963, 512
          %s8965 = scalar_lea.vmem [#allocation2], %s8964
          %8966 = dma.done %s8962, 8192
        $region52: #{mlp_pallas.1} parent=47 // pred_fallthru
          _
      $region48: #{mlp_pallas.1} parent=5 // pred_fallthru
        _
    $region6: #{mlp_pallas.1} parent=1 // loop_footer
      %s18 = sadd.s32 1, %s14
    $region7: #{mlp_pallas.1} parent=1 // loop_footer_branch
      %13 = sbr.rel target = $region3
    $region8: #{mlp_pallas.1} parent=1 // loop_exit
      _
    %8967 = vsyncpa [#allocation3], 1
    %s8968 = scalar_lea.sflag [#allocation3], 1
    %8969 = vsyncpa %s8968, 1

</llo_original>
